<compile_context>
chip_gen: v6e
topology: v6e:2x2x1
jax: 0.10.0
libtpu: 0.0.40
codegen_flags: <defaults>
</compile_context>

<pallas_src>
import functools

import jax
import jax.numpy as jnp
from jax.experimental import pallas as pl
from jax.experimental.pallas import tpu as pltpu

BN_EPS = 1e-5
LANE = 128                        # channel padding target (lane-dense, MXU width)
VMEM_LIMIT = 48 * 1024 * 1024     # < 64 MiB physical on v7x; ample headroom on v5e/v6e
TILE_BYTES_BUDGET = 2 * 1024 * 1024


def _round_up(x, m):
    return (x + m - 1) // m * m


def _pick_tile_h(h, wp, cpad, halo, budget=TILE_BYTES_BUDGET):
    """Largest tile_h dividing h, multiple of 2*halo, whose bf16 block fits budget."""
    step = 2 * halo
    best = None
    for t in range(step, h + 1, step):
        if h % t == 0 and t * wp * cpad * 2 <= budget:
            best = t
    if best is not None:
        return best
    for t in range(step, h + 1, step):      # fall back to smallest legal tile
        if h % t == 0:
            return t
    raise NotImplementedError("spatial height must be divisible by 2*(kernel_size//2)")


def _pick_rows(m, cap=4096):
    """Row-block size for the flattened elementwise pass."""
    if m <= cap:
        return m
    best = None
    for r in range(8, cap + 1, 8):
        if m % r == 0:
            best = r
    return best if best is not None else m


# ----------------------------------------------------------------------------
# Conv pass: im2col-free K*K tap-shifted matmuls + BN partial statistics.
# Grid = (N, H // TILE_H).  The halo comes from a small 2*halo-row side block,
# so input rows are DMA'd ~once (not twice) and no full-block concat is built.
# Optional fused prologue applies the PREVIOUS layer's BN affine + ReLU to the
# loaded window (spatial pad masked back to zero).
# ----------------------------------------------------------------------------
def _conv_stats_kernel(*refs, ksz, tile_h, h, w_out, fuse):
    if fuse:
        xa_ref, xb_ref, w_ref, sc_ref, sh_ref, y_ref, st_ref = refs
    else:
        xa_ref, xb_ref, w_ref, y_ref, st_ref = refs

    halo = ksz // 2
    win_h = tile_h + 2 * halo
    cin_p = xa_ref.shape[-1]
    cout_p = w_ref.shape[-1]
    wp = xa_ref.shape[2]

    # (tile_h + 2*halo, Wp, Cin_pad) window: main tile + small halo strip.
    x_win = jnp.concatenate([xa_ref[0], xb_ref[0]], axis=0)

    if fuse:
        # Fused BN(layer1) + ReLU prologue; spatial pad positions forced back to 0
        # so zero-padding semantics of the original module are preserved.
        j = pl.program_id(1)
        rr = jax.lax.broadcasted_iota(jnp.int32, (win_h, wp, cin_p), 0) + j * tile_h
        cc = jax.lax.broadcasted_iota(jnp.int32, (win_h, wp, cin_p), 1)
        valid = (rr >= halo) & (rr < h + halo) & (cc >= halo) & (cc < w_out + halo)
        v = (x_win.astype(jnp.float32) * sc_ref[...].reshape(1, 1, cin_p)
             + sh_ref[...].reshape(1, 1, cin_p))
        v = jnp.maximum(v, 0.0)
        x_win = jnp.where(valid, v, 0.0).astype(jnp.bfloat16)

    acc = jnp.zeros((tile_h * w_out, cout_p), jnp.float32)
    for kw in range(ksz):
        # One W-shift relayout per kw (hoisted out of the kh loop); the kh shift
        # becomes a cheap sublane-aligned row slice of the flattened view.
        xk = x_win[:, kw:kw + w_out, :].reshape(win_h * w_out, cin_p)
        for kh in range(ksz):
            xs = xk[kh * w_out:(kh + tile_h) * w_out]
            acc = acc + jnp.dot(xs, w_ref[kh * ksz + kw],
                                preferred_element_type=jnp.float32)

    # bf16 writeback (halves HBM traffic); stats stay in f32.
    y_ref[0] = acc.reshape(tile_h, w_out, cout_p).astype(y_ref.dtype)

    # Per-tile BN partials: row 0 = sum, row 1 = centered M2 (Welford-style combine
    # in the wrapper avoids E[x^2]-E[x]^2 cancellation).
    inv_cnt = 1.0 / float(tile_h * w_out)
    s = jnp.sum(acc, axis=0, keepdims=True)
    mu = s * inv_cnt
    d = acc - mu
    m2 = jnp.sum(d * d, axis=0, keepdims=True)
    st_ref[0, 0] = jnp.concatenate([s, m2], axis=0)


def _conv_stats(xp, w_kk, *, tile_h, ksz, h, w_out, prologue=None):
    """xp: spatially padded NHWC bf16 (N, h+tile_h, w+2*halo, Cin_pad).
    w_kk: (K*K, Cin_pad, Cout_pad) bf16.  prologue: optional (scale, shift)."""
    n, _, wp, cin_p = xp.shape
    kk, _, cout_p = w_kk.shape
    halo = ksz // 2
    hb = h // tile_h
    hblk = 2 * halo
    step = tile_h // hblk          # tile_h is a multiple of 2*halo by construction

    in_specs = [
        pl.BlockSpec((1, tile_h, wp, cin_p), lambda i, j: (i, j, 0, 0)),
        # small halo strip: rows [(j+1)*tile_h, (j+1)*tile_h + 2*halo)
        pl.BlockSpec((1, hblk, wp, cin_p), lambda i, j: (i, (j + 1) * step, 0, 0)),
        # weights: constant block index -> stays VMEM-resident across the grid
        pl.BlockSpec((kk, cin_p, cout_p), lambda i, j: (0, 0, 0)),
    ]
    args = [xp, xp, w_kk]
    if prologue is not None:
        sc, sh = prologue
        in_specs += [pl.BlockSpec((1, cin_p), lambda i, j: (0, 0)),
                     pl.BlockSpec((1, cin_p), lambda i, j: (0, 0))]
        args += [sc, sh]

    kern = functools.partial(_conv_stats_kernel, ksz=ksz, tile_h=tile_h,
                             h=h, w_out=w_out, fuse=prologue is not None)
    y, stats = pl.pallas_call(
        kern,
        grid=(n, hb),
        in_specs=in_specs,
        out_specs=[
            pl.BlockSpec((1, tile_h, w_out, cout_p), lambda i, j: (i, j, 0, 0)),
            pl.BlockSpec((1, 1, 2, cout_p), lambda i, j: (i, j, 0, 0)),
        ],
        out_shape=[
            jax.ShapeDtypeStruct((n, h, w_out, cout_p), jnp.bfloat16),
            jax.ShapeDtypeStruct((n, hb, 2, cout_p), jnp.float32),
        ],
        compiler_params=pltpu.CompilerParams(
            dimension_semantics=("parallel", "parallel"),
            vmem_limit_bytes=VMEM_LIMIT),
    )(*args)
    return y, stats


# ----------------------------------------------------------------------------
# Final pass: BN2 affine + residual add + act_out (ReLU), flattened lane-dense.
# ----------------------------------------------------------------------------
def _bn_res_act_kernel(y_ref, sc_ref, sh_ref, res_ref, o_ref):
    v = y_ref[...].astype(jnp.float32) * sc_ref[...] + sh_ref[...]
    v = v + res_ref[...].astype(jnp.float32)
    o_ref[...] = jnp.maximum(v, 0.0).astype(o_ref.dtype)


def _bn_res_act(y2, res, sc, sh):
    m, cpad = y2.shape
    rows = _pick_rows(m)
    blk = pl.BlockSpec((rows, cpad), lambda i: (i, 0))
    vec = pl.BlockSpec((1, cpad), lambda i: (0, 0))
    return pl.pallas_call(
        _bn_res_act_kernel,
        grid=(m // rows,),
        in_specs=[blk, vec, vec, blk],
        out_specs=blk,
        out_shape=jax.ShapeDtypeStruct((m, cpad), jnp.float32),
        compiler_params=pltpu.CompilerParams(
            dimension_semantics=("parallel",),
            vmem_limit_bytes=VMEM_LIMIT),
    )(y2, sc, sh, res)


# ----------------------------------------------------------------------------
# Plain-JAX glue: hypernetwork weights, weight packing, global BN statistics.
# ----------------------------------------------------------------------------
def _hyper_conv_weight(z_out, z_in, hp):
    # DHP hypernetwork: W[o,i,:] = w2[o,i] @ (z_out[o]*z_in[i]*w1 + b1) + b2[o,i]
    w1, b1, w2, b2 = hp["w1"], hp["b1"], hp["w2"], hp["b2"]
    cout, cin, kk, _ = w2.shape
    lm = jnp.outer(z_out, z_in)                        # (Cout, Cin)
    emb = lm[..., None] * w1 + b1                      # (Cout, Cin, m)
    wt = jnp.einsum("oikm,oim->oik", w2, emb) + b2     # (Cout, Cin, K*K)
    ksz = int(round(kk ** 0.5))
    return wt.reshape(cout, cin, ksz, ksz)             # PyTorch conv weight layout


def _pack_weight(w_oihw, cin_pad, cout_pad):
    cout, cin, ksz, _ = w_oihw.shape
    w = jnp.transpose(w_oihw, (2, 3, 1, 0)).reshape(ksz * ksz, cin, cout)
    w = jnp.pad(w, ((0, 0), (0, cin_pad - cin), (0, cout_pad - cout)))
    return w.astype(jnp.bfloat16)


def _bn_affine(stats, gamma, beta, cnt_per_tile, cpad):
    """Combine per-tile (sum, centered M2) partials -> global mean/var (training-mode
    batch statistics, biased variance, as in PyTorch BatchNorm normalization)."""
    st = stats.astype(jnp.float32).reshape(-1, 2, cpad)
    s = st[:, 0]                                   # (T, cpad)
    m2 = st[:, 1]                                  # (T, cpad)
    t = s.shape[0]
    total = float(t * cnt_per_tile)
    mean_t = s / float(cnt_per_tile)
    mean = jnp.sum(s, axis=0) / total
    m2_tot = (jnp.sum(m2, axis=0)
              + float(cnt_per_tile) * jnp.sum((mean_t - mean[None, :]) ** 2, axis=0))
    var = jnp.maximum(m2_tot / total, 0.0)
    inv = jax.lax.rsqrt(var + BN_EPS)
    g = jnp.pad(gamma, (0, cpad - gamma.shape[0]))
    b = jnp.pad(beta, (0, cpad - beta.shape[0]))
    scale = g * inv
    shift = b - mean * scale
    return scale.reshape(1, cpad), shift.reshape(1, cpad)


# ----------------------------------------------------------------------------
# ResBlock_dhp forward (non-finetuning path, downsample=None, stride=1)
# ----------------------------------------------------------------------------
def resblock_dhp_forward(x_nchw, latent_in, params, stride=1):
    assert stride == 1, "downsample=None / stride=1 path only"
    ksz = params["kernel_size"]
    halo = ksz // 2
    x = jnp.transpose(x_nchw, (0, 2, 3, 1)).astype(jnp.float32)   # NCHW -> NHWC
    n, h, w, cin = x.shape
    planes = params["layer1"]["latent"].shape[0]
    assert cin == planes, "identity shortcut requires in_channels == planes"

    cpad = _round_up(max(cin, planes), LANE)
    tile_h = _pick_tile_h(h, w + 2 * halo, cpad, halo)
    cnt_per_tile = tile_h * w

    # channel-padded input (lane-dense); also the identity shortcut (kept f32).
    x_ch = jnp.pad(x, ((0, 0), (0, 0), (0, 0), (0, cpad - cin)))

    def spad(a):
        # spatial zero-pad: top halo, bottom (tile_h - halo) so both the main
        # tile blocks and the 2*halo halo blocks divide the padded height.
        return jnp.pad(a, ((0, 0), (halo, tile_h - halo), (halo, halo), (0, 0)))

    # layer1 = conv_dhp(in_channels, planes, act=True); input latent = latent_input_vector
    w1 = _hyper_conv_weight(params["layer1"]["latent"], latent_in,
                            params["layer1"]["hyper"])
    xp1 = spad(x_ch.astype(jnp.bfloat16))
    y1_raw, st1 = _conv_stats(xp1, _pack_weight(w1, cpad, cpad),
                              tile_h=tile_h, ksz=ksz, h=h, w_out=w)
    sc1, sh1 = _bn_affine(st1, params["layer1"]["bn_gamma"],
                          params["layer1"]["bn_beta"], cnt_per_tile, cpad)

    # layer2 = conv_dhp(planes, planes, act=False); input latent = layer1.latent_vector.
    # BN1 + ReLU are fused into layer2's conv prologue (pad region masked to zero),
    # so the y1 intermediate is only written/read once (bf16-rounded before BN1 —
    # ~1e-3 relative mismatch vs an all-f32 path; acceptable for bf16 pipelines).
    w2 = _hyper_conv_weight(params["layer2"]["latent"], params["layer1"]["latent"],
                            params["layer2"]["hyper"])
    xp2 = spad(y1_raw)
    y2_raw, st2 = _conv_stats(xp2, _pack_weight(w2, cpad, cpad),
                              tile_h=tile_h, ksz=ksz, h=h, w_out=w,
                              prologue=(sc1, sh1))
    sc2, sh2 = _bn_affine(st2, params["layer2"]["bn_gamma"],
                          params["layer2"]["bn_beta"], cnt_per_tile, cpad)

    # out = act_out(bn2(conv2) + x)  — flattened lane-dense elementwise pass.
    out = _bn_res_act(y2_raw.reshape(n * h * w, cpad),
                      x_ch.reshape(n * h * w, cpad), sc2, sh2)
    out = out.reshape(n, h, w, cpad)[..., :planes]
    return jnp.transpose(out, (0, 3, 1, 2))                  # NHWC -> NCHW


# ----------------------------------------------------------------------------
# Deterministic parameter construction (shapes from ResBlock_dhp.__init__)
# ----------------------------------------------------------------------------
def init_params(key, in_channels, planes, kernel_size, embedding_dim=8):
    ks = jax.random.split(key, 4)

    def hyper(k, cout, cin):
        k1, k2, k3, k4 = jax.random.split(k, 4)
        return {
            "w1": jax.random.normal(k1, (embedding_dim,), jnp.float32),
            "b1": jax.random.normal(k2, (embedding_dim,), jnp.float32) * 0.1,
            "w2": jax.random.normal(
                k3, (cout, cin, kernel_size ** 2, embedding_dim), jnp.float32
            ) * (1.0 / (embedding_dim * cin)),
            "b2": jax.random.normal(k4, (cout, cin, kernel_size ** 2), jnp.float32) * 0.01,
        }

    return {
        "kernel_size": kernel_size,
        "layer1": {
            "latent": jax.random.normal(ks[0], (planes,), jnp.float32),
            "hyper": hyper(ks[1], planes, in_channels),
            "bn_gamma": jnp.ones((planes,), jnp.float32),
            "bn_beta": jnp.zeros((planes,), jnp.float32),
        },
        "layer2": {
            "latent": jax.random.normal(ks[2], (planes,), jnp.float32),
            "hyper": hyper(ks[3], planes, planes),
            "bn_gamma": jnp.ones((planes,), jnp.float32),
            "bn_beta": jnp.zeros((planes,), jnp.float32),
        },
    }


if __name__ == "__main__":
    key = jax.random.PRNGKey(0)
    kx, kl, kp = jax.random.split(key, 3)

    N, C, H, W = 2, 4, 16, 16          # in_channels = planes = 4 (identity shortcut)
    planes, ksz = 4, 3

    x = jax.random.normal(kx, (N, C, H, W), jnp.float32)
    latent_input_vector = jax.random.normal(kl, (C,), jnp.float32)
    params = init_params(kp, C, planes, ksz, embedding_dim=8)

    fwd = jax.jit(lambda xx, zz: resblock_dhp_forward(xx, zz, params))
    out = fwd(x, latent_input_vector)
    jax.block_until_ready(out)

    assert out.shape == (N, planes, H, W) and out.dtype == jnp.float32
    print("KERNEL_OK")
</pallas_src>

<mosaic_0001>
module attributes {stable_mosaic.version = 11 : i64} {
  func.func @_conv_stats_kernel(%arg0: i32, %arg1: i32, %arg2: memref<1x16x18x128xbf16, #tpu.memory_space<vmem>>, %arg3: memref<1x2x18x128xbf16, #tpu.memory_space<vmem>>, %arg4: memref<9x128x128xbf16, #tpu.memory_space<vmem>>, %arg5: memref<1x16x16x128xbf16, #tpu.memory_space<vmem>>, %arg6: memref<1x1x2x128xf32, #tpu.memory_space<vmem>>) attributes {dimension_semantics = [#tpu.dimension_semantics<parallel>, #tpu.dimension_semantics<parallel>], iteration_bounds = array<i64: 2, 1>, scalar_prefetch = 0 : i64, scratch_operands = 0 : i64, tpu.core_type = #tpu.core_type<tc>, window_params = [{transform_indices = @transform_0, window_bounds = array<i64: 1, 16, 18, 128>}, {transform_indices = @transform_1, window_bounds = array<i64: 1, 2, 18, 128>}, {pipeline_mode = #tpu.pipeline_mode<synchronous>, transform_indices = @transform_2, window_bounds = array<i64: 9, 128, 128>}, {transform_indices = @transform_3, window_bounds = array<i64: 1, 16, 16, 128>}, {transform_indices = @transform_4, window_bounds = array<i64: 1, 1, 2, 128>}]} {
    %c0 = arith.constant 0 : index
    %c0_0 = arith.constant 0 : index
    %c0_1 = arith.constant 0 : index
    %c0_2 = arith.constant 0 : index
    %0 = vector.load %arg2[%c0, %c0_0, %c0_1, %c0_2] : memref<1x16x18x128xbf16, #tpu.memory_space<vmem>>, vector<1x16x18x128xbf16>
    %1 = vector.shape_cast %0 : vector<1x16x18x128xbf16> to vector<16x18x128xbf16>
    %c0_3 = arith.constant 0 : index
    %c0_4 = arith.constant 0 : index
    %c0_5 = arith.constant 0 : index
    %c0_6 = arith.constant 0 : index
    %2 = vector.load %arg3[%c0_3, %c0_4, %c0_5, %c0_6] : memref<1x2x18x128xbf16, #tpu.memory_space<vmem>>, vector<1x2x18x128xbf16>
    %3 = vector.shape_cast %2 : vector<1x2x18x128xbf16> to vector<2x18x128xbf16>
    %4 = tpu.concatenate %1, %3 in 0 : vector<16x18x128xbf16>, vector<2x18x128xbf16> -> vector<18x18x128xbf16>
    %cst = arith.constant 0.000000e+00 : f32
    %5 = vector.broadcast %cst : f32 to vector<256x128xf32>
    %6 = vector.extract_strided_slice %4 {offsets = [0, 0, 0], sizes = [18, 16, 128], strides = [1, 1, 1]} : vector<18x18x128xbf16> to vector<18x16x128xbf16>
    %7 = vector.shape_cast %6 : vector<18x16x128xbf16> to vector<288x128xbf16>
    %8 = vector.extract_strided_slice %7 {offsets = [0, 0], sizes = [256, 128], strides = [1, 1]} : vector<288x128xbf16> to vector<256x128xbf16>
    %c0_7 = arith.constant 0 : index
    %c0_8 = arith.constant 0 : index
    %c0_9 = arith.constant 0 : index
    %9 = vector.load %arg4[%c0_7, %c0_8, %c0_9] : memref<9x128x128xbf16, #tpu.memory_space<vmem>>, vector<1x128x128xbf16>
    %10 = vector.shape_cast %9 : vector<1x128x128xbf16> to vector<128x128xbf16>
    %cst_10 = arith.constant dense<0.000000e+00> : vector<256x128xf32>
    %11 = tpu.matmul %8, %10, %cst_10 {dimension_numbers = #tpu.dot_dimension_numbers<[1], [0], [0], [1], [0, 0, 1, 1], [], []>} : vector<256x128xbf16>, vector<128x128xbf16>, vector<256x128xf32> -> vector<256x128xf32>
    %12 = arith.addf %5, %11 : vector<256x128xf32>
    %13 = vector.extract_strided_slice %7 {offsets = [16, 0], sizes = [256, 128], strides = [1, 1]} : vector<288x128xbf16> to vector<256x128xbf16>
    %c3 = arith.constant 3 : index
    %c0_11 = arith.constant 0 : index
    %c0_12 = arith.constant 0 : index
    %14 = vector.load %arg4[%c3, %c0_11, %c0_12] : memref<9x128x128xbf16, #tpu.memory_space<vmem>>, vector<1x128x128xbf16>
    %15 = vector.shape_cast %14 : vector<1x128x128xbf16> to vector<128x128xbf16>
    %cst_13 = arith.constant dense<0.000000e+00> : vector<256x128xf32>
    %16 = tpu.matmul %13, %15, %cst_13 {dimension_numbers = #tpu.dot_dimension_numbers<[1], [0], [0], [1], [0, 0, 1, 1], [], []>} : vector<256x128xbf16>, vector<128x128xbf16>, vector<256x128xf32> -> vector<256x128xf32>
    %17 = arith.addf %12, %16 : vector<256x128xf32>
    %18 = vector.extract_strided_slice %7 {offsets = [32, 0], sizes = [256, 128], strides = [1, 1]} : vector<288x128xbf16> to vector<256x128xbf16>
    %c6 = arith.constant 6 : index
    %c0_14 = arith.constant 0 : index
    %c0_15 = arith.constant 0 : index
    %19 = vector.load %arg4[%c6, %c0_14, %c0_15] : memref<9x128x128xbf16, #tpu.memory_space<vmem>>, vector<1x128x128xbf16>
    %20 = vector.shape_cast %19 : vector<1x128x128xbf16> to vector<128x128xbf16>
    %cst_16 = arith.constant dense<0.000000e+00> : vector<256x128xf32>
    %21 = tpu.matmul %18, %20, %cst_16 {dimension_numbers = #tpu.dot_dimension_numbers<[1], [0], [0], [1], [0, 0, 1, 1], [], []>} : vector<256x128xbf16>, vector<128x128xbf16>, vector<256x128xf32> -> vector<256x128xf32>
    %22 = arith.addf %17, %21 : vector<256x128xf32>
    %23 = vector.extract_strided_slice %4 {offsets = [0, 1, 0], sizes = [18, 16, 128], strides = [1, 1, 1]} : vector<18x18x128xbf16> to vector<18x16x128xbf16>
    %24 = vector.shape_cast %23 : vector<18x16x128xbf16> to vector<288x128xbf16>
    %25 = vector.extract_strided_slice %24 {offsets = [0, 0], sizes = [256, 128], strides = [1, 1]} : vector<288x128xbf16> to vector<256x128xbf16>
    %c1 = arith.constant 1 : index
    %c0_17 = arith.constant 0 : index
    %c0_18 = arith.constant 0 : index
    %26 = vector.load %arg4[%c1, %c0_17, %c0_18] : memref<9x128x128xbf16, #tpu.memory_space<vmem>>, vector<1x128x128xbf16>
    %27 = vector.shape_cast %26 : vector<1x128x128xbf16> to vector<128x128xbf16>
    %cst_19 = arith.constant dense<0.000000e+00> : vector<256x128xf32>
    %28 = tpu.matmul %25, %27, %cst_19 {dimension_numbers = #tpu.dot_dimension_numbers<[1], [0], [0], [1], [0, 0, 1, 1], [], []>} : vector<256x128xbf16>, vector<128x128xbf16>, vector<256x128xf32> -> vector<256x128xf32>
    %29 = arith.addf %22, %28 : vector<256x128xf32>
    %30 = vector.extract_strided_slice %24 {offsets = [16, 0], sizes = [256, 128], strides = [1, 1]} : vector<288x128xbf16> to vector<256x128xbf16>
    %c4 = arith.constant 4 : index
    %c0_20 = arith.constant 0 : index
    %c0_21 = arith.constant 0 : index
    %31 = vector.load %arg4[%c4, %c0_20, %c0_21] : memref<9x128x128xbf16, #tpu.memory_space<vmem>>, vector<1x128x128xbf16>
    %32 = vector.shape_cast %31 : vector<1x128x128xbf16> to vector<128x128xbf16>
    %cst_22 = arith.constant dense<0.000000e+00> : vector<256x128xf32>
    %33 = tpu.matmul %30, %32, %cst_22 {dimension_numbers = #tpu.dot_dimension_numbers<[1], [0], [0], [1], [0, 0, 1, 1], [], []>} : vector<256x128xbf16>, vector<128x128xbf16>, vector<256x128xf32> -> vector<256x128xf32>
    %34 = arith.addf %29, %33 : vector<256x128xf32>
    %35 = vector.extract_strided_slice %24 {offsets = [32, 0], sizes = [256, 128], strides = [1, 1]} : vector<288x128xbf16> to vector<256x128xbf16>
    %c7 = arith.constant 7 : index
    %c0_23 = arith.constant 0 : index
    %c0_24 = arith.constant 0 : index
    %36 = vector.load %arg4[%c7, %c0_23, %c0_24] : memref<9x128x128xbf16, #tpu.memory_space<vmem>>, vector<1x128x128xbf16>
    %37 = vector.shape_cast %36 : vector<1x128x128xbf16> to vector<128x128xbf16>
    %cst_25 = arith.constant dense<0.000000e+00> : vector<256x128xf32>
    %38 = tpu.matmul %35, %37, %cst_25 {dimension_numbers = #tpu.dot_dimension_numbers<[1], [0], [0], [1], [0, 0, 1, 1], [], []>} : vector<256x128xbf16>, vector<128x128xbf16>, vector<256x128xf32> -> vector<256x128xf32>
    %39 = arith.addf %34, %38 : vector<256x128xf32>
    %40 = vector.extract_strided_slice %4 {offsets = [0, 2, 0], sizes = [18, 16, 128], strides = [1, 1, 1]} : vector<18x18x128xbf16> to vector<18x16x128xbf16>
    %41 = vector.shape_cast %40 : vector<18x16x128xbf16> to vector<288x128xbf16>
    %42 = vector.extract_strided_slice %41 {offsets = [0, 0], sizes = [256, 128], strides = [1, 1]} : vector<288x128xbf16> to vector<256x128xbf16>
    %c2 = arith.constant 2 : index
    %c0_26 = arith.constant 0 : index
    %c0_27 = arith.constant 0 : index
    %43 = vector.load %arg4[%c2, %c0_26, %c0_27] : memref<9x128x128xbf16, #tpu.memory_space<vmem>>, vector<1x128x128xbf16>
    %44 = vector.shape_cast %43 : vector<1x128x128xbf16> to vector<128x128xbf16>
    %cst_28 = arith.constant dense<0.000000e+00> : vector<256x128xf32>
    %45 = tpu.matmul %42, %44, %cst_28 {dimension_numbers = #tpu.dot_dimension_numbers<[1], [0], [0], [1], [0, 0, 1, 1], [], []>} : vector<256x128xbf16>, vector<128x128xbf16>, vector<256x128xf32> -> vector<256x128xf32>
    %46 = arith.addf %39, %45 : vector<256x128xf32>
    %47 = vector.extract_strided_slice %41 {offsets = [16, 0], sizes = [256, 128], strides = [1, 1]} : vector<288x128xbf16> to vector<256x128xbf16>
    %c5 = arith.constant 5 : index
    %c0_29 = arith.constant 0 : index
    %c0_30 = arith.constant 0 : index
    %48 = vector.load %arg4[%c5, %c0_29, %c0_30] : memref<9x128x128xbf16, #tpu.memory_space<vmem>>, vector<1x128x128xbf16>
    %49 = vector.shape_cast %48 : vector<1x128x128xbf16> to vector<128x128xbf16>
    %cst_31 = arith.constant dense<0.000000e+00> : vector<256x128xf32>
    %50 = tpu.matmul %47, %49, %cst_31 {dimension_numbers = #tpu.dot_dimension_numbers<[1], [0], [0], [1], [0, 0, 1, 1], [], []>} : vector<256x128xbf16>, vector<128x128xbf16>, vector<256x128xf32> -> vector<256x128xf32>
    %51 = arith.addf %46, %50 : vector<256x128xf32>
    %52 = vector.extract_strided_slice %41 {offsets = [32, 0], sizes = [256, 128], strides = [1, 1]} : vector<288x128xbf16> to vector<256x128xbf16>
    %c8 = arith.constant 8 : index
    %c0_32 = arith.constant 0 : index
    %c0_33 = arith.constant 0 : index
    %53 = vector.load %arg4[%c8, %c0_32, %c0_33] : memref<9x128x128xbf16, #tpu.memory_space<vmem>>, vector<1x128x128xbf16>
    %54 = vector.shape_cast %53 : vector<1x128x128xbf16> to vector<128x128xbf16>
    %cst_34 = arith.constant dense<0.000000e+00> : vector<256x128xf32>
    %55 = tpu.matmul %52, %54, %cst_34 {dimension_numbers = #tpu.dot_dimension_numbers<[1], [0], [0], [1], [0, 0, 1, 1], [], []>} : vector<256x128xbf16>, vector<128x128xbf16>, vector<256x128xf32> -> vector<256x128xf32>
    %56 = arith.addf %51, %55 : vector<256x128xf32>
    %57 = vector.shape_cast %56 : vector<256x128xf32> to vector<16x16x128xf32>
    %58 = arith.truncf %57 : vector<16x16x128xf32> to vector<16x16x128xbf16>
    %c0_35 = arith.constant 0 : index
    %c0_36 = arith.constant 0 : index
    %c0_37 = arith.constant 0 : index
    %c0_38 = arith.constant 0 : index
    %59 = vector.load %arg5[%c0_35, %c0_36, %c0_37, %c0_38] : memref<1x16x16x128xbf16, #tpu.memory_space<vmem>>, vector<1x16x16x128xbf16>
    %60 = vector.shape_cast %59 : vector<1x16x16x128xbf16> to vector<16x16x128xbf16>
    %61 = vector.shape_cast %58 : vector<16x16x128xbf16> to vector<1x16x16x128xbf16>
    tpu.vector_store %arg5[%c0_35, %c0_36, %c0_37, %c0_38], %61 {strides = array<i32>} : memref<1x16x16x128xbf16, #tpu.memory_space<vmem>>, vector<1x16x16x128xbf16>,
    %cst_39 = arith.constant dense<0.000000e+00> : vector<128xf32>
    %62 = vector.multi_reduction <add>, %56, %cst_39 [0] : vector<256x128xf32> to vector<128xf32>
    %63 = vector.shape_cast %62 : vector<128xf32> to vector<1x128xf32>
    %cst_40 = arith.constant 3.906250e-03 : f32
    %64 = vector.broadcast %cst_40 : f32 to vector<1x128xf32>
    %65 = arith.mulf %63, %64 : vector<1x128xf32>
    %66 = vector.broadcast %65 : vector<1x128xf32> to vector<256x128xf32>
    %67 = arith.subf %56, %66 : vector<256x128xf32>
    %68 = arith.mulf %67, %67 : vector<256x128xf32>
    %cst_41 = arith.constant dense<0.000000e+00> : vector<128xf32>
    %69 = vector.multi_reduction <add>, %68, %cst_41 [0] : vector<256x128xf32> to vector<128xf32>
    %70 = vector.shape_cast %69 : vector<128xf32> to vector<1x128xf32>
    %71 = tpu.concatenate %63, %70 in 0 : vector<1x128xf32>, vector<1x128xf32> -> vector<2x128xf32>
    %c0_42 = arith.constant 0 : index
    %c0_43 = arith.constant 0 : index
    %c0_44 = arith.constant 0 : index
    %c0_45 = arith.constant 0 : index
    %72 = vector.load %arg6[%c0_42, %c0_43, %c0_44, %c0_45] : memref<1x1x2x128xf32, #tpu.memory_space<vmem>>, vector<1x1x2x128xf32>
    %73 = vector.shape_cast %72 : vector<1x1x2x128xf32> to vector<2x128xf32>
    %74 = vector.shape_cast %71 : vector<2x128xf32> to vector<1x1x2x128xf32>
    tpu.vector_store %arg6[%c0_42, %c0_43, %c0_44, %c0_45], %74 {strides = array<i32>} : memref<1x1x2x128xf32, #tpu.memory_space<vmem>>, vector<1x1x2x128xf32>,
    return
  }
  func.func @transform_0(%arg0: i32, %arg1: i32) -> (i32, i32, i32, i32) {
    %c0_i32 = arith.constant 0 : i32
    %c0_i32_0 = arith.constant 0 : i32
    %c0_i32_1 = arith.constant 0 : i32
    return %arg0, %arg1, %c0_i32, %c0_i32_0 : i32, i32, i32, i32
  }
  func.func @transform_1(%arg0: i32, %arg1: i32) -> (i32, i32, i32, i32) {
    %c1_i32 = arith.constant 1 : i32
    %0 = arith.addi %arg1, %c1_i32 : i32
    %c8_i32 = arith.constant 8 : i32
    %1 = arith.muli %0, %c8_i32 : i32
    %c0_i32 = arith.constant 0 : i32
    %c0_i32_0 = arith.constant 0 : i32
    %c0_i32_1 = arith.constant 0 : i32
    return %arg0, %1, %c0_i32, %c0_i32_0 : i32, i32, i32, i32
  }
  func.func @transform_2(%arg0: i32, %arg1: i32) -> (i32, i32, i32) {
    %c0_i32 = arith.constant 0 : i32
    %c0_i32_0 = arith.constant 0 : i32
    %c0_i32_1 = arith.constant 0 : i32
    %c0_i32_2 = arith.constant 0 : i32
    return %c0_i32, %c0_i32_0, %c0_i32_1 : i32, i32, i32
  }
  func.func @transform_3(%arg0: i32, %arg1: i32) -> (i32, i32, i32, i32) {
    %c0_i32 = arith.constant 0 : i32
    %c0_i32_0 = arith.constant 0 : i32
    %c0_i32_1 = arith.constant 0 : i32
    return %arg0, %arg1, %c0_i32, %c0_i32_0 : i32, i32, i32, i32
  }
  func.func @transform_4(%arg0: i32, %arg1: i32) -> (i32, i32, i32, i32) {
    %c0_i32 = arith.constant 0 : i32
    %c0_i32_0 = arith.constant 0 : i32
    %c0_i32_1 = arith.constant 0 : i32
    return %arg0, %arg1, %c0_i32, %c0_i32_0 : i32, i32, i32, i32
  }
}

module attributes {stable_mosaic.version = 11 : i64} {
  func.func @_conv_stats_kernel(%arg0: i32, %arg1: i32, %arg2: memref<1x16x18x128xbf16, #tpu.memory_space<vmem>>, %arg3: memref<1x2x18x128xbf16, #tpu.memory_space<vmem>>, %arg4: memref<9x128x128xbf16, #tpu.memory_space<vmem>>, %arg5: memref<1x128xf32, #tpu.memory_space<vmem>>, %arg6: memref<1x128xf32, #tpu.memory_space<vmem>>, %arg7: memref<1x16x16x128xbf16, #tpu.memory_space<vmem>>, %arg8: memref<1x1x2x128xf32, #tpu.memory_space<vmem>>) attributes {dimension_semantics = [#tpu.dimension_semantics<parallel>, #tpu.dimension_semantics<parallel>], iteration_bounds = array<i64: 2, 1>, scalar_prefetch = 0 : i64, scratch_operands = 0 : i64, tpu.core_type = #tpu.core_type<tc>, window_params = [{transform_indices = @transform_0, window_bounds = array<i64: 1, 16, 18, 128>}, {transform_indices = @transform_1, window_bounds = array<i64: 1, 2, 18, 128>}, {pipeline_mode = #tpu.pipeline_mode<synchronous>, transform_indices = @transform_2, window_bounds = array<i64: 9, 128, 128>}, {pipeline_mode = #tpu.pipeline_mode<synchronous>, transform_indices = @transform_3, window_bounds = array<i64: 1, 128>}, {pipeline_mode = #tpu.pipeline_mode<synchronous>, transform_indices = @transform_4, window_bounds = array<i64: 1, 128>}, {transform_indices = @transform_5, window_bounds = array<i64: 1, 16, 16, 128>}, {transform_indices = @transform_6, window_bounds = array<i64: 1, 1, 2, 128>}]} {
    %c0 = arith.constant 0 : index
    %c0_0 = arith.constant 0 : index
    %c0_1 = arith.constant 0 : index
    %c0_2 = arith.constant 0 : index
    %0 = vector.load %arg2[%c0, %c0_0, %c0_1, %c0_2] : memref<1x16x18x128xbf16, #tpu.memory_space<vmem>>, vector<1x16x18x128xbf16>
    %1 = vector.shape_cast %0 : vector<1x16x18x128xbf16> to vector<16x18x128xbf16>
    %c0_3 = arith.constant 0 : index
    %c0_4 = arith.constant 0 : index
    %c0_5 = arith.constant 0 : index
    %c0_6 = arith.constant 0 : index
    %2 = vector.load %arg3[%c0_3, %c0_4, %c0_5, %c0_6] : memref<1x2x18x128xbf16, #tpu.memory_space<vmem>>, vector<1x2x18x128xbf16>
    %3 = vector.shape_cast %2 : vector<1x2x18x128xbf16> to vector<2x18x128xbf16>
    %4 = tpu.concatenate %1, %3 in 0 : vector<16x18x128xbf16>, vector<2x18x128xbf16> -> vector<18x18x128xbf16>
    %5 = tpu.iota {dimensions = array<i32: 0>} : vector<18x18x128xi32>
    %c16_i32 = arith.constant 16 : i32
    %6 = arith.muli %arg1, %c16_i32 : i32
    %7 = vector.broadcast %6 : i32 to vector<18x18x128xi32>
    %8 = arith.addi %5, %7 : vector<18x18x128xi32>
    %9 = tpu.iota {dimensions = array<i32: 1>} : vector<18x18x128xi32>
    %c1_i32 = arith.constant 1 : i32
    %10 = vector.broadcast %c1_i32 : i32 to vector<18x18x128xi32>
    %11 = arith.cmpi sge, %8, %10 : vector<18x18x128xi32>
    %c17_i32 = arith.constant 17 : i32
    %12 = vector.broadcast %c17_i32 : i32 to vector<18x18x128xi32>
    %13 = arith.cmpi slt, %8, %12 : vector<18x18x128xi32>
    %14 = arith.andi %11, %13 : vector<18x18x128xi1>
    %c1_i32_7 = arith.constant 1 : i32
    %15 = vector.broadcast %c1_i32_7 : i32 to vector<18x18x128xi32>
    %16 = arith.cmpi sge, %9, %15 : vector<18x18x128xi32>
    %17 = arith.andi %14, %16 : vector<18x18x128xi1>
    %c17_i32_8 = arith.constant 17 : i32
    %18 = vector.broadcast %c17_i32_8 : i32 to vector<18x18x128xi32>
    %19 = arith.cmpi slt, %9, %18 : vector<18x18x128xi32>
    %20 = arith.andi %17, %19 : vector<18x18x128xi1>
    %21 = arith.extf %4 : vector<18x18x128xbf16> to vector<18x18x128xf32>
    %c0_9 = arith.constant 0 : index
    %c0_10 = arith.constant 0 : index
    %22 = vector.load %arg5[%c0_9, %c0_10] : memref<1x128xf32, #tpu.memory_space<vmem>>, vector<1x128xf32>
    %23 = vector.shape_cast %22 : vector<1x128xf32> to vector<1x1x128xf32>
    %24 = vector.broadcast %23 : vector<1x1x128xf32> to vector<18x18x128xf32>
    %25 = arith.mulf %21, %24 : vector<18x18x128xf32>
    %c0_11 = arith.constant 0 : index
    %c0_12 = arith.constant 0 : index
    %26 = vector.load %arg6[%c0_11, %c0_12] : memref<1x128xf32, #tpu.memory_space<vmem>>, vector<1x128xf32>
    %27 = vector.shape_cast %26 : vector<1x128xf32> to vector<1x1x128xf32>
    %28 = vector.broadcast %27 : vector<1x1x128xf32> to vector<18x18x128xf32>
    %29 = arith.addf %25, %28 : vector<18x18x128xf32>
    %cst = arith.constant 0.000000e+00 : f32
    %30 = vector.broadcast %cst : f32 to vector<18x18x128xf32>
    %31 = arith.maximumf %29, %30 : vector<18x18x128xf32>
    %cst_13 = arith.constant 0.000000e+00 : f32
    %32 = vector.broadcast %cst_13 : f32 to vector<18x18x128xf32>
    %33 = arith.select %20, %31, %32 : vector<18x18x128xi1>, vector<18x18x128xf32>
    %34 = arith.truncf %33 : vector<18x18x128xf32> to vector<18x18x128xbf16>
    %cst_14 = arith.constant 0.000000e+00 : f32
    %35 = vector.broadcast %cst_14 : f32 to vector<256x128xf32>
    %36 = vector.extract_strided_slice %34 {offsets = [0, 0, 0], sizes = [18, 16, 128], strides = [1, 1, 1]} : vector<18x18x128xbf16> to vector<18x16x128xbf16>
    %37 = vector.shape_cast %36 : vector<18x16x128xbf16> to vector<288x128xbf16>
    %38 = vector.extract_strided_slice %37 {offsets = [0, 0], sizes = [256, 128], strides = [1, 1]} : vector<288x128xbf16> to vector<256x128xbf16>
    %c0_15 = arith.constant 0 : index
    %c0_16 = arith.constant 0 : index
    %c0_17 = arith.constant 0 : index
    %39 = vector.load %arg4[%c0_15, %c0_16, %c0_17] : memref<9x128x128xbf16, #tpu.memory_space<vmem>>, vector<1x128x128xbf16>
    %40 = vector.shape_cast %39 : vector<1x128x128xbf16> to vector<128x128xbf16>
    %cst_18 = arith.constant dense<0.000000e+00> : vector<256x128xf32>
    %41 = tpu.matmul %38, %40, %cst_18 {dimension_numbers = #tpu.dot_dimension_numbers<[1], [0], [0], [1], [0, 0, 1, 1], [], []>} : vector<256x128xbf16>, vector<128x128xbf16>, vector<256x128xf32> -> vector<256x128xf32>
    %42 = arith.addf %35, %41 : vector<256x128xf32>
    %43 = vector.extract_strided_slice %37 {offsets = [16, 0], sizes = [256, 128], strides = [1, 1]} : vector<288x128xbf16> to vector<256x128xbf16>
    %c3 = arith.constant 3 : index
    %c0_19 = arith.constant 0 : index
    %c0_20 = arith.constant 0 : index
    %44 = vector.load %arg4[%c3, %c0_19, %c0_20] : memref<9x128x128xbf16, #tpu.memory_space<vmem>>, vector<1x128x128xbf16>
    %45 = vector.shape_cast %44 : vector<1x128x128xbf16> to vector<128x128xbf16>
    %cst_21 = arith.constant dense<0.000000e+00> : vector<256x128xf32>
    %46 = tpu.matmul %43, %45, %cst_21 {dimension_numbers = #tpu.dot_dimension_numbers<[1], [0], [0], [1], [0, 0, 1, 1], [], []>} : vector<256x128xbf16>, vector<128x128xbf16>, vector<256x128xf32> -> vector<256x128xf32>
    %47 = arith.addf %42, %46 : vector<256x128xf32>
    %48 = vector.extract_strided_slice %37 {offsets = [32, 0], sizes = [256, 128], strides = [1, 1]} : vector<288x128xbf16> to vector<256x128xbf16>
    %c6 = arith.constant 6 : index
    %c0_22 = arith.constant 0 : index
    %c0_23 = arith.constant 0 : index
    %49 = vector.load %arg4[%c6, %c0_22, %c0_23] : memref<9x128x128xbf16, #tpu.memory_space<vmem>>, vector<1x128x128xbf16>
    %50 = vector.shape_cast %49 : vector<1x128x128xbf16> to vector<128x128xbf16>
    %cst_24 = arith.constant dense<0.000000e+00> : vector<256x128xf32>
    %51 = tpu.matmul %48, %50, %cst_24 {dimension_numbers = #tpu.dot_dimension_numbers<[1], [0], [0], [1], [0, 0, 1, 1], [], []>} : vector<256x128xbf16>, vector<128x128xbf16>, vector<256x128xf32> -> vector<256x128xf32>
    %52 = arith.addf %47, %51 : vector<256x128xf32>
    %53 = vector.extract_strided_slice %34 {offsets = [0, 1, 0], sizes = [18, 16, 128], strides = [1, 1, 1]} : vector<18x18x128xbf16> to vector<18x16x128xbf16>
    %54 = vector.shape_cast %53 : vector<18x16x128xbf16> to vector<288x128xbf16>
    %55 = vector.extract_strided_slice %54 {offsets = [0, 0], sizes = [256, 128], strides = [1, 1]} : vector<288x128xbf16> to vector<256x128xbf16>
    %c1 = arith.constant 1 : index
    %c0_25 = arith.constant 0 : index
    %c0_26 = arith.constant 0 : index
    %56 = vector.load %arg4[%c1, %c0_25, %c0_26] : memref<9x128x128xbf16, #tpu.memory_space<vmem>>, vector<1x128x128xbf16>
    %57 = vector.shape_cast %56 : vector<1x128x128xbf16> to vector<128x128xbf16>
    %cst_27 = arith.constant dense<0.000000e+00> : vector<256x128xf32>
    %58 = tpu.matmul %55, %57, %cst_27 {dimension_numbers = #tpu.dot_dimension_numbers<[1], [0], [0], [1], [0, 0, 1, 1], [], []>} : vector<256x128xbf16>, vector<128x128xbf16>, vector<256x128xf32> -> vector<256x128xf32>
    %59 = arith.addf %52, %58 : vector<256x128xf32>
    %60 = vector.extract_strided_slice %54 {offsets = [16, 0], sizes = [256, 128], strides = [1, 1]} : vector<288x128xbf16> to vector<256x128xbf16>
    %c4 = arith.constant 4 : index
    %c0_28 = arith.constant 0 : index
    %c0_29 = arith.constant 0 : index
    %61 = vector.load %arg4[%c4, %c0_28, %c0_29] : memref<9x128x128xbf16, #tpu.memory_space<vmem>>, vector<1x128x128xbf16>
    %62 = vector.shape_cast %61 : vector<1x128x128xbf16> to vector<128x128xbf16>
    %cst_30 = arith.constant dense<0.000000e+00> : vector<256x128xf32>
    %63 = tpu.matmul %60, %62, %cst_30 {dimension_numbers = #tpu.dot_dimension_numbers<[1], [0], [0], [1], [0, 0, 1, 1], [], []>} : vector<256x128xbf16>, vector<128x128xbf16>, vector<256x128xf32> -> vector<256x128xf32>
    %64 = arith.addf %59, %63 : vector<256x128xf32>
    %65 = vector.extract_strided_slice %54 {offsets = [32, 0], sizes = [256, 128], strides = [1, 1]} : vector<288x128xbf16> to vector<256x128xbf16>
    %c7 = arith.constant 7 : index
    %c0_31 = arith.constant 0 : index
    %c0_32 = arith.constant 0 : index
    %66 = vector.load %arg4[%c7, %c0_31, %c0_32] : memref<9x128x128xbf16, #tpu.memory_space<vmem>>, vector<1x128x128xbf16>
    %67 = vector.shape_cast %66 : vector<1x128x128xbf16> to vector<128x128xbf16>
    %cst_33 = arith.constant dense<0.000000e+00> : vector<256x128xf32>
    %68 = tpu.matmul %65, %67, %cst_33 {dimension_numbers = #tpu.dot_dimension_numbers<[1], [0], [0], [1], [0, 0, 1, 1], [], []>} : vector<256x128xbf16>, vector<128x128xbf16>, vector<256x128xf32> -> vector<256x128xf32>
    %69 = arith.addf %64, %68 : vector<256x128xf32>
    %70 = vector.extract_strided_slice %34 {offsets = [0, 2, 0], sizes = [18, 16, 128], strides = [1, 1, 1]} : vector<18x18x128xbf16> to vector<18x16x128xbf16>
    %71 = vector.shape_cast %70 : vector<18x16x128xbf16> to vector<288x128xbf16>
    %72 = vector.extract_strided_slice %71 {offsets = [0, 0], sizes = [256, 128], strides = [1, 1]} : vector<288x128xbf16> to vector<256x128xbf16>
    %c2 = arith.constant 2 : index
    %c0_34 = arith.constant 0 : index
    %c0_35 = arith.constant 0 : index
    %73 = vector.load %arg4[%c2, %c0_34, %c0_35] : memref<9x128x128xbf16, #tpu.memory_space<vmem>>, vector<1x128x128xbf16>
    %74 = vector.shape_cast %73 : vector<1x128x128xbf16> to vector<128x128xbf16>
    %cst_36 = arith.constant dense<0.000000e+00> : vector<256x128xf32>
    %75 = tpu.matmul %72, %74, %cst_36 {dimension_numbers = #tpu.dot_dimension_numbers<[1], [0], [0], [1], [0, 0, 1, 1], [], []>} : vector<256x128xbf16>, vector<128x128xbf16>, vector<256x128xf32> -> vector<256x128xf32>
    %76 = arith.addf %69, %75 : vector<256x128xf32>
    %77 = vector.extract_strided_slice %71 {offsets = [16, 0], sizes = [256, 128], strides = [1, 1]} : vector<288x128xbf16> to vector<256x128xbf16>
    %c5 = arith.constant 5 : index
    %c0_37 = arith.constant 0 : index
    %c0_38 = arith.constant 0 : index
    %78 = vector.load %arg4[%c5, %c0_37, %c0_38] : memref<9x128x128xbf16, #tpu.memory_space<vmem>>, vector<1x128x128xbf16>
    %79 = vector.shape_cast %78 : vector<1x128x128xbf16> to vector<128x128xbf16>
    %cst_39 = arith.constant dense<0.000000e+00> : vector<256x128xf32>
    %80 = tpu.matmul %77, %79, %cst_39 {dimension_numbers = #tpu.dot_dimension_numbers<[1], [0], [0], [1], [0, 0, 1, 1], [], []>} : vector<256x128xbf16>, vector<128x128xbf16>, vector<256x128xf32> -> vector<256x128xf32>
    %81 = arith.addf %76, %80 : vector<256x128xf32>
    %82 = vector.extract_strided_slice %71 {offsets = [32, 0], sizes = [256, 128], strides = [1, 1]} : vector<288x128xbf16> to vector<256x128xbf16>
    %c8 = arith.constant 8 : index
    %c0_40 = arith.constant 0 : index
    %c0_41 = arith.constant 0 : index
    %83 = vector.load %arg4[%c8, %c0_40, %c0_41] : memref<9x128x128xbf16, #tpu.memory_space<vmem>>, vector<1x128x128xbf16>
    %84 = vector.shape_cast %83 : vector<1x128x128xbf16> to vector<128x128xbf16>
    %cst_42 = arith.constant dense<0.000000e+00> : vector<256x128xf32>
    %85 = tpu.matmul %82, %84, %cst_42 {dimension_numbers = #tpu.dot_dimension_numbers<[1], [0], [0], [1], [0, 0, 1, 1], [], []>} : vector<256x128xbf16>, vector<128x128xbf16>, vector<256x128xf32> -> vector<256x128xf32>
    %86 = arith.addf %81, %85 : vector<256x128xf32>
    %87 = vector.shape_cast %86 : vector<256x128xf32> to vector<16x16x128xf32>
    %88 = arith.truncf %87 : vector<16x16x128xf32> to vector<16x16x128xbf16>
    %c0_43 = arith.constant 0 : index
    %c0_44 = arith.constant 0 : index
    %c0_45 = arith.constant 0 : index
    %c0_46 = arith.constant 0 : index
    %89 = vector.load %arg7[%c0_43, %c0_44, %c0_45, %c0_46] : memref<1x16x16x128xbf16, #tpu.memory_space<vmem>>, vector<1x16x16x128xbf16>
    %90 = vector.shape_cast %89 : vector<1x16x16x128xbf16> to vector<16x16x128xbf16>
    %91 = vector.shape_cast %88 : vector<16x16x128xbf16> to vector<1x16x16x128xbf16>
    tpu.vector_store %arg7[%c0_43, %c0_44, %c0_45, %c0_46], %91 {strides = array<i32>} : memref<1x16x16x128xbf16, #tpu.memory_space<vmem>>, vector<1x16x16x128xbf16>,
    %cst_47 = arith.constant dense<0.000000e+00> : vector<128xf32>
    %92 = vector.multi_reduction <add>, %86, %cst_47 [0] : vector<256x128xf32> to vector<128xf32>
    %93 = vector.shape_cast %92 : vector<128xf32> to vector<1x128xf32>
    %cst_48 = arith.constant 3.906250e-03 : f32
    %94 = vector.broadcast %cst_48 : f32 to vector<1x128xf32>
    %95 = arith.mulf %93, %94 : vector<1x128xf32>
    %96 = vector.broadcast %95 : vector<1x128xf32> to vector<256x128xf32>
    %97 = arith.subf %86, %96 : vector<256x128xf32>
    %98 = arith.mulf %97, %97 : vector<256x128xf32>
    %cst_49 = arith.constant dense<0.000000e+00> : vector<128xf32>
    %99 = vector.multi_reduction <add>, %98, %cst_49 [0] : vector<256x128xf32> to vector<128xf32>
    %100 = vector.shape_cast %99 : vector<128xf32> to vector<1x128xf32>
    %101 = tpu.concatenate %93, %100 in 0 : vector<1x128xf32>, vector<1x128xf32> -> vector<2x128xf32>
    %c0_50 = arith.constant 0 : index
    %c0_51 = arith.constant 0 : index
    %c0_52 = arith.constant 0 : index
    %c0_53 = arith.constant 0 : index
    %102 = vector.load %arg8[%c0_50, %c0_51, %c0_52, %c0_53] : memref<1x1x2x128xf32, #tpu.memory_space<vmem>>, vector<1x1x2x128xf32>
    %103 = vector.shape_cast %102 : vector<1x1x2x128xf32> to vector<2x128xf32>
    %104 = vector.shape_cast %101 : vector<2x128xf32> to vector<1x1x2x128xf32>
    tpu.vector_store %arg8[%c0_50, %c0_51, %c0_52, %c0_53], %104 {strides = array<i32>} : memref<1x1x2x128xf32, #tpu.memory_space<vmem>>, vector<1x1x2x128xf32>,
    return
  }
  func.func @transform_0(%arg0: i32, %arg1: i32) -> (i32, i32, i32, i32) {
    %c0_i32 = arith.constant 0 : i32
    %c0_i32_0 = arith.constant 0 : i32
    %c0_i32_1 = arith.constant 0 : i32
    return %arg0, %arg1, %c0_i32, %c0_i32_0 : i32, i32, i32, i32
  }
  func.func @transform_1(%arg0: i32, %arg1: i32) -> (i32, i32, i32, i32) {
    %c1_i32 = arith.constant 1 : i32
    %0 = arith.addi %arg1, %c1_i32 : i32
    %c8_i32 = arith.constant 8 : i32
    %1 = arith.muli %0, %c8_i32 : i32
    %c0_i32 = arith.constant 0 : i32
    %c0_i32_0 = arith.constant 0 : i32
    %c0_i32_1 = arith.constant 0 : i32
    return %arg0, %1, %c0_i32, %c0_i32_0 : i32, i32, i32, i32
  }
  func.func @transform_2(%arg0: i32, %arg1: i32) -> (i32, i32, i32) {
    %c0_i32 = arith.constant 0 : i32
    %c0_i32_0 = arith.constant 0 : i32
    %c0_i32_1 = arith.constant 0 : i32
    %c0_i32_2 = arith.constant 0 : i32
    return %c0_i32, %c0_i32_0, %c0_i32_1 : i32, i32, i32
  }
  func.func @transform_3(%arg0: i32, %arg1: i32) -> (i32, i32) {
    %c0_i32 = arith.constant 0 : i32
    %c0_i32_0 = arith.constant 0 : i32
    %c0_i32_1 = arith.constant 0 : i32
    return %c0_i32, %c0_i32_0 : i32, i32
  }
  func.func @transform_4(%arg0: i32, %arg1: i32) -> (i32, i32) {
    %c0_i32 = arith.constant 0 : i32
    %c0_i32_0 = arith.constant 0 : i32
    %c0_i32_1 = arith.constant 0 : i32
    return %c0_i32, %c0_i32_0 : i32, i32
  }
  func.func @transform_5(%arg0: i32, %arg1: i32) -> (i32, i32, i32, i32) {
    %c0_i32 = arith.constant 0 : i32
    %c0_i32_0 = arith.constant 0 : i32
    %c0_i32_1 = arith.constant 0 : i32
    return %arg0, %arg1, %c0_i32, %c0_i32_0 : i32, i32, i32, i32
  }
  func.func @transform_6(%arg0: i32, %arg1: i32) -> (i32, i32, i32, i32) {
    %c0_i32 = arith.constant 0 : i32
    %c0_i32_0 = arith.constant 0 : i32
    %c0_i32_1 = arith.constant 0 : i32
    return %arg0, %arg1, %c0_i32, %c0_i32_0 : i32, i32, i32, i32
  }
}

module attributes {stable_mosaic.version = 11 : i64} {
  func.func @_bn_res_act_kernel(%arg0: i32, %arg1: memref<512x128xbf16, #tpu.memory_space<vmem>>, %arg2: memref<1x128xf32, #tpu.memory_space<vmem>>, %arg3: memref<1x128xf32, #tpu.memory_space<vmem>>, %arg4: memref<512x128xf32, #tpu.memory_space<vmem>>, %arg5: memref<512x128xf32, #tpu.memory_space<vmem>>) attributes {dimension_semantics = [#tpu.dimension_semantics<parallel>], iteration_bounds = array<i64: 1>, scalar_prefetch = 0 : i64, scratch_operands = 0 : i64, tpu.core_type = #tpu.core_type<tc>, window_params = [{transform_indices = @transform_0, window_bounds = array<i64: 512, 128>}, {pipeline_mode = #tpu.pipeline_mode<synchronous>, transform_indices = @transform_1, window_bounds = array<i64: 1, 128>}, {pipeline_mode = #tpu.pipeline_mode<synchronous>, transform_indices = @transform_2, window_bounds = array<i64: 1, 128>}, {transform_indices = @transform_3, window_bounds = array<i64: 512, 128>}, {transform_indices = @transform_4, window_bounds = array<i64: 512, 128>}]} {
    %c0 = arith.constant 0 : index
    %c0_0 = arith.constant 0 : index
    %0 = vector.load %arg1[%c0, %c0_0] : memref<512x128xbf16, #tpu.memory_space<vmem>>, vector<512x128xbf16>
    %1 = arith.extf %0 : vector<512x128xbf16> to vector<512x128xf32>
    %c0_1 = arith.constant 0 : index
    %c0_2 = arith.constant 0 : index
    %2 = vector.load %arg2[%c0_1, %c0_2] : memref<1x128xf32, #tpu.memory_space<vmem>>, vector<1x128xf32>
    %3 = vector.broadcast %2 : vector<1x128xf32> to vector<512x128xf32>
    %4 = arith.mulf %1, %3 : vector<512x128xf32>
    %c0_3 = arith.constant 0 : index
    %c0_4 = arith.constant 0 : index
    %5 = vector.load %arg3[%c0_3, %c0_4] : memref<1x128xf32, #tpu.memory_space<vmem>>, vector<1x128xf32>
    %6 = vector.broadcast %5 : vector<1x128xf32> to vector<512x128xf32>
    %7 = arith.addf %4, %6 : vector<512x128xf32>
    %c0_5 = arith.constant 0 : index
    %c0_6 = arith.constant 0 : index
    %8 = vector.load %arg4[%c0_5, %c0_6] : memref<512x128xf32, #tpu.memory_space<vmem>>, vector<512x128xf32>
    %9 = arith.addf %7, %8 : vector<512x128xf32>
    %cst = arith.constant 0.000000e+00 : f32
    %10 = vector.broadcast %cst : f32 to vector<512x128xf32>
    %11 = arith.maximumf %9, %10 : vector<512x128xf32>
    %c0_7 = arith.constant 0 : index
    %c0_8 = arith.constant 0 : index
    %12 = vector.load %arg5[%c0_7, %c0_8] : memref<512x128xf32, #tpu.memory_space<vmem>>, vector<512x128xf32>
    tpu.vector_store %arg5[%c0_7, %c0_8], %11 {strides = array<i32>} : memref<512x128xf32, #tpu.memory_space<vmem>>, vector<512x128xf32>,
    return
  }
  func.func @transform_0(%arg0: i32) -> (i32, i32) {
    %c0_i32 = arith.constant 0 : i32
    %c0_i32_0 = arith.constant 0 : i32
    return %arg0, %c0_i32 : i32, i32
  }
  func.func @transform_1(%arg0: i32) -> (i32, i32) {
    %c0_i32 = arith.constant 0 : i32
    %c0_i32_0 = arith.constant 0 : i32
    %c0_i32_1 = arith.constant 0 : i32
    return %c0_i32, %c0_i32_0 : i32, i32
  }
  func.func @transform_2(%arg0: i32) -> (i32, i32) {
    %c0_i32 = arith.constant 0 : i32
    %c0_i32_0 = arith.constant 0 : i32
    %c0_i32_1 = arith.constant 0 : i32
    return %c0_i32, %c0_i32_0 : i32, i32
  }
  func.func @transform_3(%arg0: i32) -> (i32, i32) {
    %c0_i32 = arith.constant 0 : i32
    %c0_i32_0 = arith.constant 0 : i32
    return %arg0, %c0_i32 : i32, i32
  }
  func.func @transform_4(%arg0: i32) -> (i32, i32) {
    %c0_i32 = arith.constant 0 : i32
    %c0_i32_0 = arith.constant 0 : i32
    return %arg0, %c0_i32 : i32, i32
  }
}

</mosaic_0001>

<llo_original>
// kernel: _lambda_.5
$region0: #{_lambda_.5}
  #allocation0 [shape = 'u32[]', space=smem, size = 0x4, offset = 0x4, fixed_abs, tag = 'smem constant byte address 0x4 - core index']
  #allocation1 [shape = 'u32[144,128]{1,0:T(1,128)}', space=vmem, size = 0x12000, scoped, tag = 'internal scratch']
  %s0 = inlined_call_operand.vmem [shape: bf16[512,128], index: 0, kind: input, shape index: {}]
  %s1 = inlined_call_operand.vmem [shape: f32[1,128], index: 1, kind: input, shape index: {}]
  %s2 = inlined_call_operand.vmem [shape: f32[1,128], index: 2, kind: input, shape index: {}]
  %s3 = inlined_call_operand.vmem [shape: f32[512,128], index: 3, kind: input, shape index: {}]
  %s4 = inlined_call_operand.vmem [shape: f32[512,128], index: 4, kind: output, shape index: {}]
  %s5 = sld [smem:[#allocation0]]
  $region26: #{_lambda_.5} parent=0
    _
  %s7 = ssub.s32 1, %s5
  %s8 = scalar_select 0, %s7, %s5
  // Predicated region
  $region2: #{_lambda_.5} parent=0 // pred_check
    _
  $region3: #{_lambda_.5} parent=0 // pred_check_branch
    %10 = sbr.rel (0) target = $region5
  $region4: #{_lambda_.5} parent=0 // pred_region
    _
  $region5: #{_lambda_.5} parent=0 // pred_fallthru
    _
  // Predicated region
  $region6: #{_lambda_.5} parent=0 // pred_check
    _
  $region7: #{_lambda_.5} parent=0 // pred_check_branch
    %12 = sbr.rel (0) target = $region9
  $region8: #{_lambda_.5} parent=0 // pred_region
    _
  $region9: #{_lambda_.5} parent=0 // pred_fallthru
    _
  // Predicated region
  $region10: #{_lambda_.5} parent=0 // pred_check
    _
  $region11: #{_lambda_.5} parent=0 // pred_check_branch
    %14 = sbr.rel (0) target = $region13
  $region12: #{_lambda_.5} parent=0 // pred_region
    _
  $region13: #{_lambda_.5} parent=0 // pred_fallthru
    _
  // Predicated region
  $region14: #{_lambda_.5} parent=0 // pred_check
    _
  $region15: #{_lambda_.5} parent=0 // pred_check_branch
    %16 = sbr.rel (0) target = $region17
  $region16: #{_lambda_.5} parent=0 // pred_region
    _
  $region17: #{_lambda_.5} parent=0 // pred_fallthru
    _
  %v17 = vld [vmem:[%s0] sm:$0xf]
  %v18 = vld [vmem:[%s0 + $0x4] sm:$0xf]
  %v19 = vld [vmem:[%s0 + $0x8] sm:$0xf]
  %v20 = vld [vmem:[%s0 + $0xc] sm:$0xf]
  %v21 = vld [vmem:[%s0 + $0x10] sm:$0xf]
  %v22 = vld [vmem:[%s0 + $0x14] sm:$0xf]
  %v23 = vld [vmem:[%s0 + $0x18] sm:$0xf]
  %v24 = vld [vmem:[%s0 + $0x1c] sm:$0xf]
  %v25 = vld [vmem:[%s0 + $0x20] sm:$0xf]
  %v26 = vld [vmem:[%s0 + $0x24] sm:$0xf]
  %v27 = vld [vmem:[%s0 + $0x28] sm:$0xf]
  %v28 = vld [vmem:[%s0 + $0x2c] sm:$0xf]
  %v29 = vld [vmem:[%s0 + $0x30] sm:$0xf]
  %v30 = vld [vmem:[%s0 + $0x34] sm:$0xf]
  %v31 = vld [vmem:[%s0 + $0x38] sm:$0xf]
  %v32 = vld [vmem:[%s0 + $0x3c] sm:$0xf]
  %v33 = vld [vmem:[%s0 + $0x40] sm:$0xf]
  %v34 = vld [vmem:[%s0 + $0x44] sm:$0xf]
  %v35 = vld [vmem:[%s0 + $0x48] sm:$0xf]
  %v36 = vld [vmem:[%s0 + $0x4c] sm:$0xf]
  %v37 = vld [vmem:[%s0 + $0x50] sm:$0xf]
  %v38 = vld [vmem:[%s0 + $0x54] sm:$0xf]
  %v39 = vld [vmem:[%s0 + $0x58] sm:$0xf]
  %v40 = vld [vmem:[%s0 + $0x5c] sm:$0xf]
  %v41 = vld [vmem:[%s0 + $0x60] sm:$0xf]
  %v42 = vld [vmem:[%s0 + $0x64] sm:$0xf]
  %v43 = vld [vmem:[%s0 + $0x68] sm:$0xf]
  %v44 = vld [vmem:[%s0 + $0x6c] sm:$0xf]
  %v45 = vld [vmem:[%s0 + $0x70] sm:$0xf]
  %v46 = vld [vmem:[%s0 + $0x74] sm:$0xf]
  %v47 = vld [vmem:[%s0 + $0x78] sm:$0xf]
  %v48 = vld [vmem:[%s0 + $0x7c] sm:$0xf]
  %v49 = vld [vmem:[%s0 + $0x80] sm:$0xf]
  %v50 = vld [vmem:[%s0 + $0x84] sm:$0xf]
  %v51 = vld [vmem:[%s0 + $0x88] sm:$0xf]
  %v52 = vld [vmem:[%s0 + $0x8c] sm:$0xf]
  %v53 = vld [vmem:[%s0 + $0x90] sm:$0xf]
  %v54 = vld [vmem:[%s0 + $0x94] sm:$0xf]
  %v55 = vld [vmem:[%s0 + $0x98] sm:$0xf]
  %v56 = vld [vmem:[%s0 + $0x9c] sm:$0xf]
  %v57 = vld [vmem:[%s0 + $0xa0] sm:$0xf]
  %v58 = vld [vmem:[%s0 + $0xa4] sm:$0xf]
  %v59 = vld [vmem:[%s0 + $0xa8] sm:$0xf]
  %v60 = vld [vmem:[%s0 + $0xac] sm:$0xf]
  %v61 = vld [vmem:[%s0 + $0xb0] sm:$0xf]
  %v62 = vld [vmem:[%s0 + $0xb4] sm:$0xf]
  %v63 = vld [vmem:[%s0 + $0xb8] sm:$0xf]
  %v64 = vld [vmem:[%s0 + $0xbc] sm:$0xf]
  %v65 = vld [vmem:[%s0 + $0xc0] sm:$0xf]
  %v66 = vld [vmem:[%s0 + $0xc4] sm:$0xf]
  %v67 = vld [vmem:[%s0 + $0xc8] sm:$0xf]
  %v68 = vld [vmem:[%s0 + $0xcc] sm:$0xf]
  %v69 = vld [vmem:[%s0 + $0xd0] sm:$0xf]
  %v70 = vld [vmem:[%s0 + $0xd4] sm:$0xf]
  %v71 = vld [vmem:[%s0 + $0xd8] sm:$0xf]
  %v72 = vld [vmem:[%s0 + $0xdc] sm:$0xf]
  %v73 = vld [vmem:[%s0 + $0xe0] sm:$0xf]
  %v74 = vld [vmem:[%s0 + $0xe4] sm:$0xf]
  %v75 = vld [vmem:[%s0 + $0xe8] sm:$0xf]
  %v76 = vld [vmem:[%s0 + $0xec] sm:$0xf]
  %v77 = vld [vmem:[%s0 + $0xf0] sm:$0xf]
  %v78 = vld [vmem:[%s0 + $0xf4] sm:$0xf]
  %v79 = vld [vmem:[%s0 + $0xf8] sm:$0xf]
  %v80 = vld [vmem:[%s0 + $0xfc] sm:$0xf]
  %v81 = vunpack.c.l.bf16 %v17
  %v82 = vunpack.c.l.bf16 %v18
  %v83 = vunpack.c.l.bf16 %v19
  %v84 = vunpack.c.l.bf16 %v20
  %v85 = vunpack.c.l.bf16 %v21
  %v86 = vunpack.c.l.bf16 %v22
  %v87 = vunpack.c.l.bf16 %v23
  %v88 = vunpack.c.l.bf16 %v24
  %v89 = vunpack.c.l.bf16 %v25
  %v90 = vunpack.c.l.bf16 %v26
  %v91 = vunpack.c.l.bf16 %v27
  %v92 = vunpack.c.l.bf16 %v28
  %v93 = vunpack.c.l.bf16 %v29
  %v94 = vunpack.c.l.bf16 %v30
  %v95 = vunpack.c.l.bf16 %v31
  %v96 = vunpack.c.l.bf16 %v32
  %v97 = vunpack.c.l.bf16 %v33
  %v98 = vunpack.c.l.bf16 %v34
  %v99 = vunpack.c.l.bf16 %v35
  %v100 = vunpack.c.l.bf16 %v36
  %v101 = vunpack.c.l.bf16 %v37
  %v102 = vunpack.c.l.bf16 %v38
  %v103 = vunpack.c.l.bf16 %v39
  %v104 = vunpack.c.l.bf16 %v40
  %v105 = vunpack.c.l.bf16 %v41
  %v106 = vunpack.c.l.bf16 %v42
  %v107 = vunpack.c.l.bf16 %v43
  %v108 = vunpack.c.l.bf16 %v44
  %v109 = vunpack.c.l.bf16 %v45
  %v110 = vunpack.c.l.bf16 %v46
  %v111 = vunpack.c.l.bf16 %v47
  %v112 = vunpack.c.l.bf16 %v48
  %v113 = vunpack.c.l.bf16 %v49
  %v114 = vunpack.c.l.bf16 %v50
  %v115 = vunpack.c.l.bf16 %v51
  %v116 = vunpack.c.l.bf16 %v52
  %v117 = vunpack.c.l.bf16 %v53
  %v118 = vunpack.c.l.bf16 %v54
  %v119 = vunpack.c.l.bf16 %v55
  %v120 = vunpack.c.l.bf16 %v56
  %v121 = vunpack.c.l.bf16 %v57
  %v122 = vunpack.c.l.bf16 %v58
  %v123 = vunpack.c.l.bf16 %v59
  %v124 = vunpack.c.l.bf16 %v60
  %v125 = vunpack.c.l.bf16 %v61
  %v126 = vunpack.c.l.bf16 %v62
  %v127 = vunpack.c.l.bf16 %v63
  %v128 = vunpack.c.l.bf16 %v64
  %v129 = vunpack.c.l.bf16 %v65
  %v130 = vunpack.c.l.bf16 %v66
  %v131 = vunpack.c.l.bf16 %v67
  %v132 = vunpack.c.l.bf16 %v68
  %v133 = vunpack.c.l.bf16 %v69
  %v134 = vunpack.c.l.bf16 %v70
  %v135 = vunpack.c.l.bf16 %v71
  %v136 = vunpack.c.l.bf16 %v72
  %v137 = vunpack.c.l.bf16 %v73
  %v138 = vunpack.c.l.bf16 %v74
  %v139 = vunpack.c.l.bf16 %v75
  %v140 = vunpack.c.l.bf16 %v76
  %v141 = vunpack.c.l.bf16 %v77
  %v142 = vunpack.c.l.bf16 %v78
  %v143 = vunpack.c.l.bf16 %v79
  %v144 = vunpack.c.l.bf16 %v80
  %v145 = vld [vmem:[%s1] sm:$0x1]
  %v147 = vlaneseq
  %v148 = vshrl.u32 %v147, 7
  %v149 = vsub.s32 0, %v148
  %v150 = vrot.slane %v145, %v149
  %v152 = vmul.f32 %v81, %v150
  %v153 = vmul.f32 %v82, %v150
  %v154 = vmul.f32 %v83, %v150
  %v155 = vmul.f32 %v84, %v150
  %v156 = vmul.f32 %v85, %v150
  %v157 = vmul.f32 %v86, %v150
  %v158 = vmul.f32 %v87, %v150
  %v159 = vmul.f32 %v88, %v150
  %v160 = vmul.f32 %v89, %v150
  %v161 = vmul.f32 %v90, %v150
  %v162 = vmul.f32 %v91, %v150
  %v163 = vmul.f32 %v92, %v150
  %v164 = vmul.f32 %v93, %v150
  %v165 = vmul.f32 %v94, %v150
  %v166 = vmul.f32 %v95, %v150
  %v167 = vmul.f32 %v96, %v150
  %v168 = vmul.f32 %v97, %v150
  %v169 = vmul.f32 %v98, %v150
  %v170 = vmul.f32 %v99, %v150
  %v171 = vmul.f32 %v100, %v150
  %v172 = vmul.f32 %v101, %v150
  %v173 = vmul.f32 %v102, %v150
  %v174 = vmul.f32 %v103, %v150
  %v175 = vmul.f32 %v104, %v150
  %v176 = vmul.f32 %v105, %v150
  %v177 = vmul.f32 %v106, %v150
  %v178 = vmul.f32 %v107, %v150
  %v179 = vmul.f32 %v108, %v150
  %v180 = vmul.f32 %v109, %v150
  %v181 = vmul.f32 %v110, %v150
  %v182 = vmul.f32 %v111, %v150
  %v183 = vmul.f32 %v112, %v150
  %v184 = vmul.f32 %v113, %v150
  %v185 = vmul.f32 %v114, %v150
  %v186 = vmul.f32 %v115, %v150
  %v187 = vmul.f32 %v116, %v150
  %v188 = vmul.f32 %v117, %v150
  %v189 = vmul.f32 %v118, %v150
  %v190 = vmul.f32 %v119, %v150
  %v191 = vmul.f32 %v120, %v150
  %v192 = vmul.f32 %v121, %v150
  %v193 = vmul.f32 %v122, %v150
  %v194 = vmul.f32 %v123, %v150
  %v195 = vmul.f32 %v124, %v150
  %v196 = vmul.f32 %v125, %v150
  %v197 = vmul.f32 %v126, %v150
  %v198 = vmul.f32 %v127, %v150
  %v199 = vmul.f32 %v128, %v150
  %v200 = vmul.f32 %v129, %v150
  %v201 = vmul.f32 %v130, %v150
  %v202 = vmul.f32 %v131, %v150
  %v203 = vmul.f32 %v132, %v150
  %v204 = vmul.f32 %v133, %v150
  %v205 = vmul.f32 %v134, %v150
  %v206 = vmul.f32 %v135, %v150
  %v207 = vmul.f32 %v136, %v150
  %v208 = vmul.f32 %v137, %v150
  %v209 = vmul.f32 %v138, %v150
  %v210 = vmul.f32 %v139, %v150
  %v211 = vmul.f32 %v140, %v150
  %v212 = vmul.f32 %v141, %v150
  %v213 = vmul.f32 %v142, %v150
  %v214 = vmul.f32 %v143, %v150
  %v215 = vmul.f32 %v144, %v150
  %v216 = vld [vmem:[%s2] sm:$0x1]
  %v218 = vlaneseq
  %v219 = vshrl.u32 %v218, 7
  %v220 = vsub.s32 0, %v219
  %v221 = vrot.slane %v216, %v220
  %v223 = vadd.f32 %v152, %v221
  %v224 = vadd.f32 %v153, %v221
  %v225 = vadd.f32 %v154, %v221
  %v226 = vadd.f32 %v155, %v221
  %v227 = vadd.f32 %v156, %v221
  %v228 = vadd.f32 %v157, %v221
  %v229 = vadd.f32 %v158, %v221
  %v230 = vadd.f32 %v159, %v221
  %v231 = vadd.f32 %v160, %v221
  %v232 = vadd.f32 %v161, %v221
  %v233 = vadd.f32 %v162, %v221
  %v234 = vadd.f32 %v163, %v221
  %v235 = vadd.f32 %v164, %v221
  %v236 = vadd.f32 %v165, %v221
  %v237 = vadd.f32 %v166, %v221
  %v238 = vadd.f32 %v167, %v221
  %v239 = vadd.f32 %v168, %v221
  %v240 = vadd.f32 %v169, %v221
  %v241 = vadd.f32 %v170, %v221
  %v242 = vadd.f32 %v171, %v221
  %v243 = vadd.f32 %v172, %v221
  %v244 = vadd.f32 %v173, %v221
  %v245 = vadd.f32 %v174, %v221
  %v246 = vadd.f32 %v175, %v221
  %v247 = vadd.f32 %v176, %v221
  %v248 = vadd.f32 %v177, %v221
  %v249 = vadd.f32 %v178, %v221
  %v250 = vadd.f32 %v179, %v221
  %v251 = vadd.f32 %v180, %v221
  %v252 = vadd.f32 %v181, %v221
  %v253 = vadd.f32 %v182, %v221
  %v254 = vadd.f32 %v183, %v221
  %v255 = vadd.f32 %v184, %v221
  %v256 = vadd.f32 %v185, %v221
  %v257 = vadd.f32 %v186, %v221
  %v258 = vadd.f32 %v187, %v221
  %v259 = vadd.f32 %v188, %v221
  %v260 = vadd.f32 %v189, %v221
  %v261 = vadd.f32 %v190, %v221
  %v262 = vadd.f32 %v191, %v221
  %v263 = vadd.f32 %v192, %v221
  %v264 = vadd.f32 %v193, %v221
  %v265 = vadd.f32 %v194, %v221
  %v266 = vadd.f32 %v195, %v221
  %v267 = vadd.f32 %v196, %v221
  %v268 = vadd.f32 %v197, %v221
  %v269 = vadd.f32 %v198, %v221
  %v270 = vadd.f32 %v199, %v221
  %v271 = vadd.f32 %v200, %v221
  %v272 = vadd.f32 %v201, %v221
  %v273 = vadd.f32 %v202, %v221
  %v274 = vadd.f32 %v203, %v221
  %v275 = vadd.f32 %v204, %v221
  %v276 = vadd.f32 %v205, %v221
  %v277 = vadd.f32 %v206, %v221
  %v278 = vadd.f32 %v207, %v221
  %v279 = vadd.f32 %v208, %v221
  %v280 = vadd.f32 %v209, %v221
  %v281 = vadd.f32 %v210, %v221
  %v282 = vadd.f32 %v211, %v221
  %v283 = vadd.f32 %v212, %v221
  %v284 = vadd.f32 %v213, %v221
  %v285 = vadd.f32 %v214, %v221
  %v286 = vadd.f32 %v215, %v221
  %v287 = vld [vmem:[%s3] sm:$0xff]
  %v288 = vld [vmem:[%s3 + $0x8] sm:$0xff]
  %v289 = vld [vmem:[%s3 + $0x10] sm:$0xff]
  %v290 = vld [vmem:[%s3 + $0x18] sm:$0xff]
  %v291 = vld [vmem:[%s3 + $0x20] sm:$0xff]
  %v292 = vld [vmem:[%s3 + $0x28] sm:$0xff]
  %v293 = vld [vmem:[%s3 + $0x30] sm:$0xff]
  %v294 = vld [vmem:[%s3 + $0x38] sm:$0xff]
  %v295 = vld [vmem:[%s3 + $0x40] sm:$0xff]
  %v296 = vld [vmem:[%s3 + $0x48] sm:$0xff]
  %v297 = vld [vmem:[%s3 + $0x50] sm:$0xff]
  %v298 = vld [vmem:[%s3 + $0x58] sm:$0xff]
  %v299 = vld [vmem:[%s3 + $0x60] sm:$0xff]
  %v300 = vld [vmem:[%s3 + $0x68] sm:$0xff]
  %v301 = vld [vmem:[%s3 + $0x70] sm:$0xff]
  %v302 = vld [vmem:[%s3 + $0x78] sm:$0xff]
  %v303 = vld [vmem:[%s3 + $0x80] sm:$0xff]
  %v304 = vld [vmem:[%s3 + $0x88] sm:$0xff]
  %v305 = vld [vmem:[%s3 + $0x90] sm:$0xff]
  %v306 = vld [vmem:[%s3 + $0x98] sm:$0xff]
  %v307 = vld [vmem:[%s3 + $0xa0] sm:$0xff]
  %v308 = vld [vmem:[%s3 + $0xa8] sm:$0xff]
  %v309 = vld [vmem:[%s3 + $0xb0] sm:$0xff]
  %v310 = vld [vmem:[%s3 + $0xb8] sm:$0xff]
  %v311 = vld [vmem:[%s3 + $0xc0] sm:$0xff]
  %v312 = vld [vmem:[%s3 + $0xc8] sm:$0xff]
  %v313 = vld [vmem:[%s3 + $0xd0] sm:$0xff]
  %v314 = vld [vmem:[%s3 + $0xd8] sm:$0xff]
  %v315 = vld [vmem:[%s3 + $0xe0] sm:$0xff]
  %v316 = vld [vmem:[%s3 + $0xe8] sm:$0xff]
  %v317 = vld [vmem:[%s3 + $0xf0] sm:$0xff]
  %v318 = vld [vmem:[%s3 + $0xf8] sm:$0xff]
  %v319 = vld [vmem:[%s3 + $0x100] sm:$0xff]
  %v320 = vld [vmem:[%s3 + $0x108] sm:$0xff]
  %v321 = vld [vmem:[%s3 + $0x110] sm:$0xff]
  %v322 = vld [vmem:[%s3 + $0x118] sm:$0xff]
  %v323 = vld [vmem:[%s3 + $0x120] sm:$0xff]
  %v324 = vld [vmem:[%s3 + $0x128] sm:$0xff]
  %v325 = vld [vmem:[%s3 + $0x130] sm:$0xff]
  %v326 = vld [vmem:[%s3 + $0x138] sm:$0xff]
  %v327 = vld [vmem:[%s3 + $0x140] sm:$0xff]
  %v328 = vld [vmem:[%s3 + $0x148] sm:$0xff]
  %v329 = vld [vmem:[%s3 + $0x150] sm:$0xff]
  %v330 = vld [vmem:[%s3 + $0x158] sm:$0xff]
  %v331 = vld [vmem:[%s3 + $0x160] sm:$0xff]
  %v332 = vld [vmem:[%s3 + $0x168] sm:$0xff]
  %v333 = vld [vmem:[%s3 + $0x170] sm:$0xff]
  %v334 = vld [vmem:[%s3 + $0x178] sm:$0xff]
  %v335 = vld [vmem:[%s3 + $0x180] sm:$0xff]
  %v336 = vld [vmem:[%s3 + $0x188] sm:$0xff]
  %v337 = vld [vmem:[%s3 + $0x190] sm:$0xff]
  %v338 = vld [vmem:[%s3 + $0x198] sm:$0xff]
  %v339 = vld [vmem:[%s3 + $0x1a0] sm:$0xff]
  %v340 = vld [vmem:[%s3 + $0x1a8] sm:$0xff]
  %v341 = vld [vmem:[%s3 + $0x1b0] sm:$0xff]
  %v342 = vld [vmem:[%s3 + $0x1b8] sm:$0xff]
  %v343 = vld [vmem:[%s3 + $0x1c0] sm:$0xff]
  %v344 = vld [vmem:[%s3 + $0x1c8] sm:$0xff]
  %v345 = vld [vmem:[%s3 + $0x1d0] sm:$0xff]
  %v346 = vld [vmem:[%s3 + $0x1d8] sm:$0xff]
  %v347 = vld [vmem:[%s3 + $0x1e0] sm:$0xff]
  %v348 = vld [vmem:[%s3 + $0x1e8] sm:$0xff]
  %v349 = vld [vmem:[%s3 + $0x1f0] sm:$0xff]
  %v350 = vld [vmem:[%s3 + $0x1f8] sm:$0xff]
  %v351 = vadd.f32 %v223, %v287
  %v352 = vadd.f32 %v224, %v288
  %v353 = vadd.f32 %v225, %v289
  %v354 = vadd.f32 %v226, %v290
  %v355 = vadd.f32 %v227, %v291
  %v356 = vadd.f32 %v228, %v292
  %v357 = vadd.f32 %v229, %v293
  %v358 = vadd.f32 %v230, %v294
  %v359 = vadd.f32 %v231, %v295
  %v360 = vadd.f32 %v232, %v296
  %v361 = vadd.f32 %v233, %v297
  %v362 = vadd.f32 %v234, %v298
  %v363 = vadd.f32 %v235, %v299
  %v364 = vadd.f32 %v236, %v300
  %v365 = vadd.f32 %v237, %v301
  %v366 = vadd.f32 %v238, %v302
  %v367 = vadd.f32 %v239, %v303
  %v368 = vadd.f32 %v240, %v304
  %v369 = vadd.f32 %v241, %v305
  %v370 = vadd.f32 %v242, %v306
  %v371 = vadd.f32 %v243, %v307
  %v372 = vadd.f32 %v244, %v308
  %v373 = vadd.f32 %v245, %v309
  %v374 = vadd.f32 %v246, %v310
  %v375 = vadd.f32 %v247, %v311
  %v376 = vadd.f32 %v248, %v312
  %v377 = vadd.f32 %v249, %v313
  %v378 = vadd.f32 %v250, %v314
  %v379 = vadd.f32 %v251, %v315
  %v380 = vadd.f32 %v252, %v316
  %v381 = vadd.f32 %v253, %v317
  %v382 = vadd.f32 %v254, %v318
  %v383 = vadd.f32 %v255, %v319
  %v384 = vadd.f32 %v256, %v320
  %v385 = vadd.f32 %v257, %v321
  %v386 = vadd.f32 %v258, %v322
  %v387 = vadd.f32 %v259, %v323
  %v388 = vadd.f32 %v260, %v324
  %v389 = vadd.f32 %v261, %v325
  %v390 = vadd.f32 %v262, %v326
  %v391 = vadd.f32 %v263, %v327
  %v392 = vadd.f32 %v264, %v328
  %v393 = vadd.f32 %v265, %v329
  %v394 = vadd.f32 %v266, %v330
  %v395 = vadd.f32 %v267, %v331
  %v396 = vadd.f32 %v268, %v332
  %v397 = vadd.f32 %v269, %v333
  %v398 = vadd.f32 %v270, %v334
  %v399 = vadd.f32 %v271, %v335
  %v400 = vadd.f32 %v272, %v336
  %v401 = vadd.f32 %v273, %v337
  %v402 = vadd.f32 %v274, %v338
  %v403 = vadd.f32 %v275, %v339
  %v404 = vadd.f32 %v276, %v340
  %v405 = vadd.f32 %v277, %v341
  %v406 = vadd.f32 %v278, %v342
  %v407 = vadd.f32 %v279, %v343
  %v408 = vadd.f32 %v280, %v344
  %v409 = vadd.f32 %v281, %v345
  %v410 = vadd.f32 %v282, %v346
  %v411 = vadd.f32 %v283, %v347
  %v412 = vadd.f32 %v284, %v348
  %v413 = vadd.f32 %v285, %v349
  %v414 = vadd.f32 %v286, %v350
  %v415 = vmax.f32 %v351, 0.0
  %v416 = vmax.f32 %v352, 0.0
  %v417 = vmax.f32 %v353, 0.0
  %v418 = vmax.f32 %v354, 0.0
  %v419 = vmax.f32 %v355, 0.0
  %v420 = vmax.f32 %v356, 0.0
  %v421 = vmax.f32 %v357, 0.0
  %v422 = vmax.f32 %v358, 0.0
  %v423 = vmax.f32 %v359, 0.0
  %v424 = vmax.f32 %v360, 0.0
  %v425 = vmax.f32 %v361, 0.0
  %v426 = vmax.f32 %v362, 0.0
  %v427 = vmax.f32 %v363, 0.0
  %v428 = vmax.f32 %v364, 0.0
  %v429 = vmax.f32 %v365, 0.0
  %v430 = vmax.f32 %v366, 0.0
  %v431 = vmax.f32 %v367, 0.0
  %v432 = vmax.f32 %v368, 0.0
  %v433 = vmax.f32 %v369, 0.0
  %v434 = vmax.f32 %v370, 0.0
  %v435 = vmax.f32 %v371, 0.0
  %v436 = vmax.f32 %v372, 0.0
  %v437 = vmax.f32 %v373, 0.0
  %v438 = vmax.f32 %v374, 0.0
  %v439 = vmax.f32 %v375, 0.0
  %v440 = vmax.f32 %v376, 0.0
  %v441 = vmax.f32 %v377, 0.0
  %v442 = vmax.f32 %v378, 0.0
  %v443 = vmax.f32 %v379, 0.0
  %v444 = vmax.f32 %v380, 0.0
  %v445 = vmax.f32 %v381, 0.0
  %v446 = vmax.f32 %v382, 0.0
  %v447 = vmax.f32 %v383, 0.0
  %v448 = vmax.f32 %v384, 0.0
  %v449 = vmax.f32 %v385, 0.0
  %v450 = vmax.f32 %v386, 0.0
  %v451 = vmax.f32 %v387, 0.0
  %v452 = vmax.f32 %v388, 0.0
  %v453 = vmax.f32 %v389, 0.0
  %v454 = vmax.f32 %v390, 0.0
  %v455 = vmax.f32 %v391, 0.0
  %v456 = vmax.f32 %v392, 0.0
  %v457 = vmax.f32 %v393, 0.0
  %v458 = vmax.f32 %v394, 0.0
  %v459 = vmax.f32 %v395, 0.0
  %v460 = vmax.f32 %v396, 0.0
  %v461 = vmax.f32 %v397, 0.0
  %v462 = vmax.f32 %v398, 0.0
  %v463 = vmax.f32 %v399, 0.0
  %v464 = vmax.f32 %v400, 0.0
  %v465 = vmax.f32 %v401, 0.0
  %v466 = vmax.f32 %v402, 0.0
  %v467 = vmax.f32 %v403, 0.0
  %v468 = vmax.f32 %v404, 0.0
  %v469 = vmax.f32 %v405, 0.0
  %v470 = vmax.f32 %v406, 0.0
  %v471 = vmax.f32 %v407, 0.0
  %v472 = vmax.f32 %v408, 0.0
  %v473 = vmax.f32 %v409, 0.0
  %v474 = vmax.f32 %v410, 0.0
  %v475 = vmax.f32 %v411, 0.0
  %v476 = vmax.f32 %v412, 0.0
  %v477 = vmax.f32 %v413, 0.0
  %v478 = vmax.f32 %v414, 0.0
  %479 = vst [vmem:[%s4] sm:$0xff] %v415
  %480 = vst [vmem:[%s4 + $0x8] sm:$0xff] %v416
  %481 = vst [vmem:[%s4 + $0x10] sm:$0xff] %v417
  %482 = vst [vmem:[%s4 + $0x18] sm:$0xff] %v418
  %483 = vst [vmem:[%s4 + $0x20] sm:$0xff] %v419
  %484 = vst [vmem:[%s4 + $0x28] sm:$0xff] %v420
  %485 = vst [vmem:[%s4 + $0x30] sm:$0xff] %v421
  %486 = vst [vmem:[%s4 + $0x38] sm:$0xff] %v422
  %487 = vst [vmem:[%s4 + $0x40] sm:$0xff] %v423
  %488 = vst [vmem:[%s4 + $0x48] sm:$0xff] %v424
  %489 = vst [vmem:[%s4 + $0x50] sm:$0xff] %v425
  %490 = vst [vmem:[%s4 + $0x58] sm:$0xff] %v426
  %491 = vst [vmem:[%s4 + $0x60] sm:$0xff] %v427
  %492 = vst [vmem:[%s4 + $0x68] sm:$0xff] %v428
  %493 = vst [vmem:[%s4 + $0x70] sm:$0xff] %v429
  %494 = vst [vmem:[%s4 + $0x78] sm:$0xff] %v430
  %495 = vst [vmem:[%s4 + $0x80] sm:$0xff] %v431
  %496 = vst [vmem:[%s4 + $0x88] sm:$0xff] %v432
  %497 = vst [vmem:[%s4 + $0x90] sm:$0xff] %v433
  %498 = vst [vmem:[%s4 + $0x98] sm:$0xff] %v434
  %499 = vst [vmem:[%s4 + $0xa0] sm:$0xff] %v435
  %500 = vst [vmem:[%s4 + $0xa8] sm:$0xff] %v436
  %501 = vst [vmem:[%s4 + $0xb0] sm:$0xff] %v437
  %502 = vst [vmem:[%s4 + $0xb8] sm:$0xff] %v438
  %503 = vst [vmem:[%s4 + $0xc0] sm:$0xff] %v439
  %504 = vst [vmem:[%s4 + $0xc8] sm:$0xff] %v440
  %505 = vst [vmem:[%s4 + $0xd0] sm:$0xff] %v441
  %506 = vst [vmem:[%s4 + $0xd8] sm:$0xff] %v442
  %507 = vst [vmem:[%s4 + $0xe0] sm:$0xff] %v443
  %508 = vst [vmem:[%s4 + $0xe8] sm:$0xff] %v444
  %509 = vst [vmem:[%s4 + $0xf0] sm:$0xff] %v445
  %510 = vst [vmem:[%s4 + $0xf8] sm:$0xff] %v446
  %511 = vst [vmem:[%s4 + $0x100] sm:$0xff] %v447
  %512 = vst [vmem:[%s4 + $0x108] sm:$0xff] %v448
  %513 = vst [vmem:[%s4 + $0x110] sm:$0xff] %v449
  %514 = vst [vmem:[%s4 + $0x118] sm:$0xff] %v450
  %515 = vst [vmem:[%s4 + $0x120] sm:$0xff] %v451
  %516 = vst [vmem:[%s4 + $0x128] sm:$0xff] %v452
  %517 = vst [vmem:[%s4 + $0x130] sm:$0xff] %v453
  %518 = vst [vmem:[%s4 + $0x138] sm:$0xff] %v454
  %519 = vst [vmem:[%s4 + $0x140] sm:$0xff] %v455
  %520 = vst [vmem:[%s4 + $0x148] sm:$0xff] %v456
  %521 = vst [vmem:[%s4 + $0x150] sm:$0xff] %v457
  %522 = vst [vmem:[%s4 + $0x158] sm:$0xff] %v458
  %523 = vst [vmem:[%s4 + $0x160] sm:$0xff] %v459
  %524 = vst [vmem:[%s4 + $0x168] sm:$0xff] %v460
  %525 = vst [vmem:[%s4 + $0x170] sm:$0xff] %v461
  %526 = vst [vmem:[%s4 + $0x178] sm:$0xff] %v462
  %527 = vst [vmem:[%s4 + $0x180] sm:$0xff] %v463
  %528 = vst [vmem:[%s4 + $0x188] sm:$0xff] %v464
  %529 = vst [vmem:[%s4 + $0x190] sm:$0xff] %v465
  %530 = vst [vmem:[%s4 + $0x198] sm:$0xff] %v466
  %531 = vst [vmem:[%s4 + $0x1a0] sm:$0xff] %v467
  %532 = vst [vmem:[%s4 + $0x1a8] sm:$0xff] %v468
  %533 = vst [vmem:[%s4 + $0x1b0] sm:$0xff] %v469
  %534 = vst [vmem:[%s4 + $0x1b8] sm:$0xff] %v470
  %535 = vst [vmem:[%s4 + $0x1c0] sm:$0xff] %v471
  %536 = vst [vmem:[%s4 + $0x1c8] sm:$0xff] %v472
  %537 = vst [vmem:[%s4 + $0x1d0] sm:$0xff] %v473
  %538 = vst [vmem:[%s4 + $0x1d8] sm:$0xff] %v474
  %539 = vst [vmem:[%s4 + $0x1e0] sm:$0xff] %v475
  %540 = vst [vmem:[%s4 + $0x1e8] sm:$0xff] %v476
  %541 = vst [vmem:[%s4 + $0x1f0] sm:$0xff] %v477
  %542 = vst [vmem:[%s4 + $0x1f8] sm:$0xff] %v478
  // Predicated region
  $region18: #{_lambda_.5} parent=0 // pred_check
    _
  $region19: #{_lambda_.5} parent=0 // pred_check_branch
    %544 = sbr.rel (0) target = $region21
  $region20: #{_lambda_.5} parent=0 // pred_region
    _
  $region21: #{_lambda_.5} parent=0 // pred_fallthru
    _
  // Predicated region
  $region22: #{_lambda_.5} parent=0 // pred_check
    _
  $region23: #{_lambda_.5} parent=0 // pred_check_branch
    %546 = sbr.rel (0) target = $region25
  $region24: #{_lambda_.5} parent=0 // pred_region
    _
  $region25: #{_lambda_.5} parent=0 // pred_fallthru
    _

// kernel: _lambda_.3
$region0: #{_lambda_.3}
  #allocation0 [shape = 'u32[]', space=smem, size = 0x4, offset = 0x4, fixed_abs, tag = 'smem constant byte address 0x4 - core index']
  #allocation1 [shape = 'u32[144,128]{1,0:T(1,128)}', space=vmem, size = 0x12000, scoped, tag = 'internal scratch']
  %s0 = inlined_call_operand.vmem [shape: bf16[2,32,18,128], index: 0, kind: input, shape index: {}, may-alias: {0,1}]
  %s1 = inlined_call_operand.vmem [shape: bf16[2,32,18,128], index: 1, kind: input, shape index: {}, may-alias: {0,1}]
  %s2 = inlined_call_operand.vmem [shape: bf16[9,128,128], index: 2, kind: input, shape index: {}]
  %s3 = inlined_call_operand.vmem [shape: bf16[2,16,16,128], index: 3, kind: output, shape index: {0}]
  %s4 = inlined_call_operand.vmem [shape: f32[2,1,2,128], index: 4, kind: output, shape index: {1}]
  %5 = xla_tuple %s3, %s4
  %s6 = sld [smem:[#allocation0]]
  $region53: #{_lambda_.3} parent=0
    _
  %s8 = ssub.s32 1, %s6
  %s9 = scalar_select 0, %s8, %s6
  loop: start=0, step=1, limit=4
  $region2: #{_lambda_.3} parent=0 // loop_pre_header
    _
  $region3: #{_lambda_.3} parent=0 // loop_header
    %s11 = sphi 0, %s15
    %p12 = scmp.ge.s32.totalorder %s11, 4
    %s18 = sphi 0, %s30
    %s19 = sphi 0, %s26
    %s20 = sphi 0, %s18
    %s21 = sphi 0, %s19
    %s22 = sphi 0, %s20
    %s23 = sphi 0, %s21
    %s35 = sphi 0, %s37
    %s38 = sphi 0, %s35
    %s39 = sphi 0, %s38
    %s55 = sphi 0, %s39
    %s67 = sphi 0, %s69
    %s70 = sphi 0, %s67
    %s71 = sphi 0, %s70
    %s87 = sphi 0, %s71
    %s91 = sphi 0, %s91
    %s93 = sphi 0, %s91
    %s94 = sphi 0, %s93
    %s108 = sphi 0, %s94
    %s116 = sphi 0, %s118
    %s119 = sphi 0, %s116
    %s120 = sphi 0, %s119
    %s136 = sphi 0, %s120
    %s144 = sphi 0, %s146
    %s147 = sphi 0, %s144
    %s148 = sphi 0, %s147
    %s164 = sphi 0, %s148
  $region4: #{_lambda_.3} parent=0 // loop_header_branch
    %14 = sbr.rel (%p12) target = $region8
  $region5: #{_lambda_.3} parent=0 // loop_body
    %s16 = ssub.s32 %s11, 1
    %s17 = ssub.s32 %s11, 2
    %s24 = sadd.s32 1, %s19
    %p25 = scmp.ge.s32.totalorder %s24, 1
    %s26 = scalar_select %p25, 0, %s24
    %s27 = sadd.s32 1, %s18
    %s28 = scalar_select %p25, %s27, %s18
    %p29 = scmp.ge.s32.totalorder %s28, 2
    %s30 = scalar_select %p29, 0, %s28
    %s31 = ssub.s32 %s18, %s30
    %s32 = ssub.s32 %s19, %s26
    %s33 = sor.u32 %s31, %s32
    %p34 = scmp.eq.s32.totalorder %s33, 0
    %s36 = sadd.s32 %s35, 1
    %s37 = scalar_select %p34, %s35, %s36
    %p40 = pneg %p34
    %p41 = scmp.eq.s32.totalorder %s11, 1
    %p42 = por %p40, %p41
    %p43 = scmp.ne.s32.totalorder %s35, %s38
    %p44 = scmp.eq.s32.totalorder %s11, 0
    %p45 = por %p43, %p44
    %p46 = scmp.ne.s32.totalorder %s35, %s38
    %p47 = scmp.eq.s32.totalorder %s16, 1
    %p48 = por %p46, %p47
    %p49 = scmp.ne.s32.totalorder %s38, %s39
    %p50 = scmp.eq.s32.totalorder %s16, 0
    %p51 = por %p49, %p50
    %p52 = scmp.ne.s32.totalorder %s38, %s39
    %p53 = scmp.eq.s32.totalorder %s17, 1
    %p54 = por %p52, %p53
    %p56 = scmp.ne.s32.totalorder %s39, %s55
    %p57 = scmp.eq.s32.totalorder %s17, 0
    %p58 = por %p56, %p57
    %s59 = sadd.s32 %s19, 1
    %s60 = smul.u32 %s59, 8
    %s61 = sadd.s32 %s26, 1
    %s62 = smul.u32 %s61, 8
    %s63 = ssub.s32 %s18, %s30
    %s64 = ssub.s32 %s60, %s62
    %s65 = sor.u32 %s63, %s64
    %p66 = scmp.eq.s32.totalorder %s65, 0
    %s68 = sadd.s32 %s67, 1
    %s69 = scalar_select %p66, %s67, %s68
    %p72 = pneg %p66
    %p73 = scmp.eq.s32.totalorder %s11, 1
    %p74 = por %p72, %p73
    %p75 = scmp.ne.s32.totalorder %s67, %s70
    %p76 = scmp.eq.s32.totalorder %s11, 0
    %p77 = por %p75, %p76
    %p78 = scmp.ne.s32.totalorder %s67, %s70
    %p79 = scmp.eq.s32.totalorder %s16, 1
    %p80 = por %p78, %p79
    %p81 = scmp.ne.s32.totalorder %s70, %s71
    %p82 = scmp.eq.s32.totalorder %s16, 0
    %p83 = por %p81, %p82
    %p84 = scmp.ne.s32.totalorder %s70, %s71
    %p85 = scmp.eq.s32.totalorder %s17, 1
    %p86 = por %p84, %p85
    %p88 = scmp.ne.s32.totalorder %s71, %s87
    %p89 = scmp.eq.s32.totalorder %s17, 0
    %p90 = por %p88, %p89
    %s92 = sadd.s32 %s91, 1
    %p95 = scmp.eq.s32.totalorder %s11, 1
    %p96 = scmp.ne.s32.totalorder %s91, %s93
    %p97 = scmp.eq.s32.totalorder %s11, 0
    %p98 = por %p96, %p97
    %p99 = scmp.ne.s32.totalorder %s91, %s93
    %p100 = scmp.eq.s32.totalorder %s16, 1
    %p101 = por %p99, %p100
    %p102 = scmp.ne.s32.totalorder %s93, %s94
    %p103 = scmp.eq.s32.totalorder %s16, 0
    %p104 = por %p102, %p103
    %p105 = scmp.ne.s32.totalorder %s93, %s94
    %p106 = scmp.eq.s32.totalorder %s17, 1
    %p107 = por %p105, %p106
    %p109 = scmp.ne.s32.totalorder %s94, %s108
    %p110 = scmp.eq.s32.totalorder %s17, 0
    %p111 = por %p109, %p110
    %s112 = ssub.s32 %s18, %s30
    %s113 = ssub.s32 %s19, %s26
    %s114 = sor.u32 %s112, %s113
    %p115 = scmp.eq.s32.totalorder %s114, 0
    %s117 = sadd.s32 %s116, 1
    %s118 = scalar_select %p115, %s116, %s117
    %p121 = pneg %p115
    %p122 = scmp.eq.s32.totalorder %s11, 1
    %p123 = por %p121, %p122
    %p124 = scmp.ne.s32.totalorder %s116, %s119
    %p125 = scmp.eq.s32.totalorder %s11, 0
    %p126 = por %p124, %p125
    %p127 = scmp.ne.s32.totalorder %s116, %s119
    %p128 = scmp.eq.s32.totalorder %s16, 1
    %p129 = por %p127, %p128
    %p130 = scmp.ne.s32.totalorder %s119, %s120
    %p131 = scmp.eq.s32.totalorder %s16, 0
    %p132 = por %p130, %p131
    %p133 = scmp.ne.s32.totalorder %s119, %s120
    %p134 = scmp.eq.s32.totalorder %s17, 1
    %p135 = por %p133, %p134
    %p137 = scmp.ne.s32.totalorder %s120, %s136
    %p138 = scmp.eq.s32.totalorder %s17, 0
    %p139 = por %p137, %p138
    %s140 = ssub.s32 %s18, %s30
    %s141 = ssub.s32 %s19, %s26
    %s142 = sor.u32 %s140, %s141
    %p143 = scmp.eq.s32.totalorder %s142, 0
    %s145 = sadd.s32 %s144, 1
    %s146 = scalar_select %p143, %s144, %s145
    %p149 = pneg %p143
    %p150 = scmp.eq.s32.totalorder %s11, 1
    %p151 = por %p149, %p150
    %p152 = scmp.ne.s32.totalorder %s144, %s147
    %p153 = scmp.eq.s32.totalorder %s11, 0
    %p154 = por %p152, %p153
    %p155 = scmp.ne.s32.totalorder %s144, %s147
    %p156 = scmp.eq.s32.totalorder %s16, 1
    %p157 = por %p155, %p156
    %p158 = scmp.ne.s32.totalorder %s147, %s148
    %p159 = scmp.eq.s32.totalorder %s16, 0
    %p160 = por %p158, %p159
    %p161 = scmp.ne.s32.totalorder %s147, %s148
    %p162 = scmp.eq.s32.totalorder %s17, 1
    %p163 = por %p161, %p162
    %p165 = scmp.ne.s32.totalorder %s148, %s164
    %p166 = scmp.eq.s32.totalorder %s17, 0
    %p167 = por %p165, %p166
    %p168 = scmp.le.s32.totalorder 1, %s11
    %p169 = scmp.lt.s32.totalorder %s11, 3
    %p170 = pnand %p168, %p169
    %p171 = pneg %p170
    // Predicated region
    $region9: #{_lambda_.3} parent=5 // pred_check
      _
    $region10: #{_lambda_.3} parent=5 // pred_check_branch
      %173 = sbr.rel (%p170) target = $region12
    $region11: #{_lambda_.3} parent=5 // pred_region
      %s174 = ssub.s32 %s11, 1
      // Predicated region
      $region13: #{_lambda_.3} parent=11 // pred_check
        %p175 = pneg %p104
      $region14: #{_lambda_.3} parent=11 // pred_check_branch
        %177 = sbr.rel (%p175) target = $region16
      $region15: #{_lambda_.3} parent=11 // pred_region
        _
      $region16: #{_lambda_.3} parent=11 // pred_fallthru
        _
    $region12: #{_lambda_.3} parent=5 // pred_fallthru
      _
    %p178 = scmp.lt.s32.totalorder %s11, 2
    // Predicated region
    $region17: #{_lambda_.3} parent=5 // pred_check
      %p179 = pneg %p178
    $region18: #{_lambda_.3} parent=5 // pred_check_branch
      %181 = sbr.rel (%p179) target = $region20
    $region19: #{_lambda_.3} parent=5 // pred_region
      // Predicated region
      $region21: #{_lambda_.3} parent=19 // pred_check
        %p182 = pneg %p45
      $region22: #{_lambda_.3} parent=19 // pred_check_branch
        %184 = sbr.rel (%p182) target = $region24
      $region23: #{_lambda_.3} parent=19 // pred_region
        %s185 = smul.u32 16, %s19
        %p186 = scmp.lt.s32.totalorder %s18, 1
        %s187 = scalar_select %p186, %s18, 1
        %p188 = scmp.lt.s32.totalorder %s185, 31
        %s189 = scalar_select %p188, %s185, 31
        %s190 = smul.addr %s189, 3
        %s191 = smul.addr %s187, 96
        %s192 = sadd.s32 %s190, %s191
        %s193 = smul.addr %s192, 4
        %s194 = scalar_lea.vmem %s0, %s193
        %s195 = smul.u32 16, %s19
      $region24: #{_lambda_.3} parent=19 // pred_fallthru
        _
      // Predicated region
      $region25: #{_lambda_.3} parent=19 // pred_check
        %p196 = pneg %p77
      $region26: #{_lambda_.3} parent=19 // pred_check_branch
        %198 = sbr.rel (%p196) target = $region28
      $region27: #{_lambda_.3} parent=19 // pred_region
        %s199 = sadd.s32 %s19, 1
        %s200 = smul.u32 %s199, 8
        %s201 = smul.u32 2, %s200
        %p202 = scmp.lt.s32.totalorder %s18, 1
        %s203 = scalar_select %p202, %s18, 1
        %p204 = scmp.lt.s32.totalorder %s201, 31
        %s205 = scalar_select %p204, %s201, 31
        %s206 = smul.addr %s205, 3
        %s207 = smul.addr %s203, 96
        %s208 = sadd.s32 %s206, %s207
        %s209 = smul.addr %s208, 4
        %s210 = scalar_lea.vmem %s1, %s209
        %s211 = sadd.s32 %s19, 1
        %s212 = smul.u32 %s211, 8
        %s213 = smul.u32 2, %s212
      $region28: #{_lambda_.3} parent=19 // pred_fallthru
        _
    $region20: #{_lambda_.3} parent=5 // pred_fallthru
      _
    %p214 = scmp.le.s32.totalorder 1, %s11
    %p215 = scmp.lt.s32.totalorder %s11, 3
    %p216 = pnand %p214, %p215
    %p217 = pneg %p216
    // Predicated region
    $region29: #{_lambda_.3} parent=5 // pred_check
      _
    $region30: #{_lambda_.3} parent=5 // pred_check_branch
      %219 = sbr.rel (%p216) target = $region32
    $region31: #{_lambda_.3} parent=5 // pred_region
      %s220 = ssub.s32 %s11, 1
      %s221 = smul.u32 16, %s21
      %p222 = scmp.lt.s32.totalorder %s20, 1
      %s223 = scalar_select %p222, %s20, 1
      %p224 = scmp.lt.s32.totalorder %s221, 31
      %s225 = scalar_select %p224, %s221, 31
      %s226 = smul.addr %s225, 3
      %s227 = smul.addr %s223, 96
      %s228 = sadd.s32 %s226, %s227
      %s229 = smul.addr %s228, 4
      %s230 = scalar_lea.vmem %s0, %s229
      %p231 = pneg %p51
      %p232 = pneg %p48
      %s233 = sadd.s32 %s21, 1
      %s234 = smul.u32 %s233, 8
      %s235 = smul.u32 2, %s234
      %p236 = scmp.lt.s32.totalorder %s20, 1
      %s237 = scalar_select %p236, %s20, 1
      %p238 = scmp.lt.s32.totalorder %s235, 31
      %s239 = scalar_select %p238, %s235, 31
      %s240 = smul.addr %s239, 3
      %s241 = smul.addr %s237, 96
      %s242 = sadd.s32 %s240, %s241
      %s243 = smul.addr %s242, 4
      %s244 = scalar_lea.vmem %s1, %s243
      %p245 = pneg %p83
      %p246 = pneg %p80
      %p247 = pneg %p104
      %p248 = pneg %p101
      %p249 = pneg %p132
      %p250 = pneg %p129
      %s251 = smul.u32 16, %s21
      %p252 = scmp.lt.s32.totalorder %s20, 1
      %s253 = scalar_select %p252, %s20, 1
      %p254 = scmp.lt.s32.totalorder %s251, 15
      %s255 = scalar_select %p254, %s251, 15
      %s256 = smul.addr %s255, 2
      %s257 = smul.addr %s253, 32
      %s258 = sadd.s32 %s256, %s257
      %s259 = smul.addr %s258, 4
      %s260 = scalar_lea.vmem %s3, %s259
      %p261 = pneg %p160
      %p262 = pneg %p157
      %p263 = scmp.lt.s32.totalorder %s20, 1
      %s264 = scalar_select %p263, %s20, 1
      %p265 = scmp.lt.s32.totalorder %s21, 0
      %s266 = scalar_select %p265, %s21, 0
      %s267 = sadd.s32 %s266, %s264
      %s268 = smul.addr %s267, 2
      %s269 = scalar_lea.vmem %s4, %s268
      %s270 = smul.u32 16, %s21
      %p271 = scmp.lt.s32.totalorder %s20, 1
      %s272 = scalar_select %p271, %s20, 1
      %p273 = scmp.lt.s32.totalorder %s270, 31
      %s274 = scalar_select %p273, %s270, 31
      %s275 = smul.addr %s274, 3
      %s276 = smul.addr %s272, 96
      %s277 = sadd.s32 %s275, %s276
      %s278 = smul.addr %s277, 4
      %s279 = scalar_lea.vmem %s0, %s278
      %s280 = smul.u32 16, %s21
      %s281 = sadd.s32 %s21, 1
      %s282 = smul.u32 %s281, 8
      %s283 = smul.u32 2, %s282
      %p284 = scmp.lt.s32.totalorder %s20, 1
      %s285 = scalar_select %p284, %s20, 1
      %p286 = scmp.lt.s32.totalorder %s283, 31
      %s287 = scalar_select %p286, %s283, 31
      %s288 = smul.addr %s287, 3
      %s289 = smul.addr %s285, 96
      %s290 = sadd.s32 %s288, %s289
      %s291 = smul.addr %s290, 4
      %s292 = scalar_lea.vmem %s1, %s291
      %s293 = sadd.s32 %s21, 1
      %s294 = smul.u32 %s293, 8
      %s295 = smul.u32 2, %s294
      %s296 = smul.u32 16, %s21
      %p297 = scmp.lt.s32.totalorder %s20, 1
      %s298 = scalar_select %p297, %s20, 1
      %p299 = scmp.lt.s32.totalorder %s296, 15
      %s300 = scalar_select %p299, %s296, 15
      %s301 = smul.addr %s300, 2
      %s302 = smul.addr %s298, 32
      %s303 = sadd.s32 %s301, %s302
      %s304 = smul.addr %s303, 4
      %s305 = scalar_lea.vmem %s3, %s304
      %s306 = smul.u32 16, %s21
      %p307 = scmp.lt.s32.totalorder %s20, 1
      %s308 = scalar_select %p307, %s20, 1
      %p309 = scmp.lt.s32.totalorder %s21, 0
      %s310 = scalar_select %p309, %s21, 0
      %s311 = sadd.s32 %s310, %s308
      %s312 = smul.addr %s311, 2
      %s313 = scalar_lea.vmem %s4, %s312
      %v315 = vld [vmem:[%s279] sm:$0xf]
      %v316 = vld [vmem:[%s279 + $0x4] sm:$0xf]
      %v317 = vld [vmem:[%s279 + $0x8] sm:$0x1]
      %v318 = vld [vmem:[%s279 + $0xc] sm:$0xf]
      %v319 = vld [vmem:[%s279 + $0x10] sm:$0xf]
      %v320 = vld [vmem:[%s279 + $0x14] sm:$0x1]
      %v321 = vld [vmem:[%s279 + $0x18] sm:$0xf]
      %v322 = vld [vmem:[%s279 + $0x1c] sm:$0xf]
      %v323 = vld [vmem:[%s279 + $0x20] sm:$0x1]
      %v324 = vld [vmem:[%s279 + $0x24] sm:$0xf]
      %v325 = vld [vmem:[%s279 + $0x28] sm:$0xf]
      %v326 = vld [vmem:[%s279 + $0x2c] sm:$0x1]
      %v327 = vld [vmem:[%s279 + $0x30] sm:$0xf]
      %v328 = vld [vmem:[%s279 + $0x34] sm:$0xf]
      %v329 = vld [vmem:[%s279 + $0x38] sm:$0x1]
      %v330 = vld [vmem:[%s279 + $0x3c] sm:$0xf]
      %v331 = vld [vmem:[%s279 + $0x40] sm:$0xf]
      %v332 = vld [vmem:[%s279 + $0x44] sm:$0x1]
      %v333 = vld [vmem:[%s279 + $0x48] sm:$0xf]
      %v334 = vld [vmem:[%s279 + $0x4c] sm:$0xf]
      %v335 = vld [vmem:[%s279 + $0x50] sm:$0x1]
      %v336 = vld [vmem:[%s279 + $0x54] sm:$0xf]
      %v337 = vld [vmem:[%s279 + $0x58] sm:$0xf]
      %v338 = vld [vmem:[%s279 + $0x5c] sm:$0x1]
      %v339 = vld [vmem:[%s279 + $0x60] sm:$0xf]
      %v340 = vld [vmem:[%s279 + $0x64] sm:$0xf]
      %v341 = vld [vmem:[%s279 + $0x68] sm:$0x1]
      %v342 = vld [vmem:[%s279 + $0x6c] sm:$0xf]
      %v343 = vld [vmem:[%s279 + $0x70] sm:$0xf]
      %v344 = vld [vmem:[%s279 + $0x74] sm:$0x1]
      %v345 = vld [vmem:[%s279 + $0x78] sm:$0xf]
      %v346 = vld [vmem:[%s279 + $0x7c] sm:$0xf]
      %v347 = vld [vmem:[%s279 + $0x80] sm:$0x1]
      %v348 = vld [vmem:[%s279 + $0x84] sm:$0xf]
      %v349 = vld [vmem:[%s279 + $0x88] sm:$0xf]
      %v350 = vld [vmem:[%s279 + $0x8c] sm:$0x1]
      %v351 = vld [vmem:[%s279 + $0x90] sm:$0xf]
      %v352 = vld [vmem:[%s279 + $0x94] sm:$0xf]
      %v353 = vld [vmem:[%s279 + $0x98] sm:$0x1]
      %v354 = vld [vmem:[%s279 + $0x9c] sm:$0xf]
      %v355 = vld [vmem:[%s279 + $0xa0] sm:$0xf]
      %v356 = vld [vmem:[%s279 + $0xa4] sm:$0x1]
      %v357 = vld [vmem:[%s279 + $0xa8] sm:$0xf]
      %v358 = vld [vmem:[%s279 + $0xac] sm:$0xf]
      %v359 = vld [vmem:[%s279 + $0xb0] sm:$0x1]
      %v360 = vld [vmem:[%s279 + $0xb4] sm:$0xf]
      %v361 = vld [vmem:[%s279 + $0xb8] sm:$0xf]
      %v362 = vld [vmem:[%s279 + $0xbc] sm:$0x1]
      %v363 = vld [vmem:[%s292] sm:$0xf]
      %v364 = vld [vmem:[%s292 + $0x4] sm:$0xf]
      %v365 = vld [vmem:[%s292 + $0x8] sm:$0x1]
      %v366 = vld [vmem:[%s292 + $0xc] sm:$0xf]
      %v367 = vld [vmem:[%s292 + $0x10] sm:$0xf]
      %v368 = vld [vmem:[%s292 + $0x14] sm:$0x1]
      %v369 = vld [vmem:[%s2] sm:$0xf]
      %v370 = vld [vmem:[%s2 + $0x4] sm:$0xf]
      %v371 = vld [vmem:[%s2 + $0x8] sm:$0xf]
      %v372 = vld [vmem:[%s2 + $0xc] sm:$0xf]
      %v373 = vld [vmem:[%s2 + $0x10] sm:$0xf]
      %v374 = vld [vmem:[%s2 + $0x14] sm:$0xf]
      %v375 = vld [vmem:[%s2 + $0x18] sm:$0xf]
      %v376 = vld [vmem:[%s2 + $0x1c] sm:$0xf]
      %v377 = vld [vmem:[%s2 + $0x20] sm:$0xf]
      %v378 = vld [vmem:[%s2 + $0x24] sm:$0xf]
      %v379 = vld [vmem:[%s2 + $0x28] sm:$0xf]
      %v380 = vld [vmem:[%s2 + $0x2c] sm:$0xf]
      %v381 = vld [vmem:[%s2 + $0x30] sm:$0xf]
      %v382 = vld [vmem:[%s2 + $0x34] sm:$0xf]
      %v383 = vld [vmem:[%s2 + $0x38] sm:$0xf]
      %v384 = vld [vmem:[%s2 + $0x3c] sm:$0xf]
      %s385 = scalar_lea.vmem %s2, 192
      %v386 = vld [vmem:[%s385] sm:$0xf]
      %v387 = vld [vmem:[%s385 + $0x4] sm:$0xf]
      %v388 = vld [vmem:[%s385 + $0x8] sm:$0xf]
      %v389 = vld [vmem:[%s385 + $0xc] sm:$0xf]
      %v390 = vld [vmem:[%s385 + $0x10] sm:$0xf]
      %v391 = vld [vmem:[%s385 + $0x14] sm:$0xf]
      %v392 = vld [vmem:[%s385 + $0x18] sm:$0xf]
      %v393 = vld [vmem:[%s385 + $0x1c] sm:$0xf]
      %v394 = vld [vmem:[%s385 + $0x20] sm:$0xf]
      %v395 = vld [vmem:[%s385 + $0x24] sm:$0xf]
      %v396 = vld [vmem:[%s385 + $0x28] sm:$0xf]
      %v397 = vld [vmem:[%s385 + $0x2c] sm:$0xf]
      %v398 = vld [vmem:[%s385 + $0x30] sm:$0xf]
      %v399 = vld [vmem:[%s385 + $0x34] sm:$0xf]
      %v400 = vld [vmem:[%s385 + $0x38] sm:$0xf]
      %v401 = vld [vmem:[%s385 + $0x3c] sm:$0xf]
      %v434 = vunpack.c.l.b16 %v318
      %v435 = vunpack.c.l.b16 %v319
      %v436 = vunpack.c.l.b16 %v321
      %v437 = vunpack.c.l.b16 %v322
      %v438 = vunpack.c.l.b16 %v324
      %v439 = vunpack.c.l.b16 %v325
      %v440 = vunpack.c.l.b16 %v327
      %v441 = vunpack.c.l.b16 %v328
      %v442 = vunpack.c.l.b16 %v330
      %v443 = vunpack.c.l.b16 %v331
      %v444 = vunpack.c.l.b16 %v333
      %v445 = vunpack.c.l.b16 %v334
      %v446 = vunpack.c.l.b16 %v336
      %v447 = vunpack.c.l.b16 %v337
      %v448 = vunpack.c.l.b16 %v339
      %v449 = vunpack.c.l.b16 %v340
      %v450 = vunpack.c.l.b16 %v342
      %v451 = vunpack.c.l.b16 %v343
      %v452 = vunpack.c.l.b16 %v345
      %v453 = vunpack.c.l.b16 %v346
      %v454 = vunpack.c.l.b16 %v348
      %v455 = vunpack.c.l.b16 %v349
      %v456 = vunpack.c.l.b16 %v351
      %v457 = vunpack.c.l.b16 %v352
      %v458 = vunpack.c.l.b16 %v354
      %v459 = vunpack.c.l.b16 %v355
      %v460 = vunpack.c.l.b16 %v357
      %v461 = vunpack.c.l.b16 %v358
      %v462 = vunpack.c.l.b16 %v360
      %v463 = vunpack.c.l.b16 %v361
      %v464 = vunpack.c.l.b16 %v363
      %v465 = vunpack.c.l.b16 %v364
      %v466 = vpack.c.b16 %v435, %v434
      %v467 = vpack.c.b16 %v437, %v436
      %v468 = vpack.c.b16 %v439, %v438
      %v469 = vpack.c.b16 %v441, %v440
      %v470 = vpack.c.b16 %v443, %v442
      %v471 = vpack.c.b16 %v445, %v444
      %v472 = vpack.c.b16 %v447, %v446
      %v473 = vpack.c.b16 %v449, %v448
      %v474 = vpack.c.b16 %v451, %v450
      %v475 = vpack.c.b16 %v453, %v452
      %v476 = vpack.c.b16 %v455, %v454
      %v477 = vpack.c.b16 %v457, %v456
      %v478 = vpack.c.b16 %v459, %v458
      %v479 = vpack.c.b16 %v461, %v460
      %v480 = vpack.c.b16 %v463, %v462
      %v481 = vpack.c.b16 %v465, %v464
      %v514 = vunpack.c.l.b16 %v386
      %v515 = vunpack.c.l.b16 %v387
      %v516 = vunpack.c.l.b16 %v388
      %v517 = vunpack.c.l.b16 %v389
      %v518 = vunpack.c.l.b16 %v390
      %v519 = vunpack.c.l.b16 %v391
      %v520 = vunpack.c.l.b16 %v392
      %v521 = vunpack.c.l.b16 %v393
      %v522 = vunpack.c.l.b16 %v394
      %v523 = vunpack.c.l.b16 %v395
      %v524 = vunpack.c.l.b16 %v396
      %v525 = vunpack.c.l.b16 %v397
      %v526 = vunpack.c.l.b16 %v398
      %v527 = vunpack.c.l.b16 %v399
      %v528 = vunpack.c.l.b16 %v400
      %v529 = vunpack.c.l.b16 %v401
      %v530 = vpack.c.b16 %v515, %v514
      %v531 = vpack.c.b16 %v517, %v516
      %v532 = vpack.c.b16 %v519, %v518
      %v533 = vpack.c.b16 %v521, %v520
      %v534 = vpack.c.b16 %v523, %v522
      %v535 = vpack.c.b16 %v525, %v524
      %v536 = vpack.c.b16 %v527, %v526
      %v537 = vpack.c.b16 %v529, %v528
      %546 = vmatprep.subr.bf16.mxu0 0
      %547 = vmatpush1.bf16.msra.mxu0 %v537
      %548 = vmatprep.subr.bf16.mxu0 0
      %549 = vmatpush1.bf16.msra.mxu0 %v536
      %550 = vmatprep.subr.bf16.mxu0 0
      %551 = vmatpush1.bf16.msra.mxu0 %v535
      %552 = vmatprep.subr.bf16.mxu0 0
      %553 = vmatpush1.bf16.msra.mxu0 %v534
      %554 = vmatprep.subr.bf16.mxu0 0
      %555 = vmatpush1.bf16.msra.mxu0 %v533
      %556 = vmatprep.subr.bf16.mxu0 0
      %557 = vmatpush1.bf16.msra.mxu0 %v532
      %558 = vmatprep.subr.bf16.mxu0 0
      %559 = vmatpush1.bf16.msra.mxu0 %v531
      %560 = vmatprep.subr.bf16.mxu0 0
      %561 = vmatpush1.bf16.msra.mxu0 %v530
      %562 = vmatprep.subr.bf16.mxu0 0
      %563 = vmatpush2.bf16.msra.mxu0 0
      %564 = vmatprep.subr.bf16.mxu0 0
      %565 = vmatpush2.bf16.msra.mxu0 0
      %566 = vmatprep.subr.bf16.mxu0 0
      %567 = vmatpush2.bf16.msra.mxu0 0
      %568 = vmatprep.subr.bf16.mxu0 0
      %569 = vmatpush2.bf16.msra.mxu0 0
      %570 = vmatprep.subr.bf16.mxu0 0
      %571 = vmatpush2.bf16.msra.mxu0 0
      %572 = vmatprep.subr.bf16.mxu0 0
      %573 = vmatpush2.bf16.msra.mxu0 0
      %574 = vmatprep.subr.bf16.mxu0 0
      %575 = vmatpush2.bf16.msra.mxu0 0
      %576 = vmatprep.subr.bf16.mxu0 0
      %577 = vmatpush2.bf16.msra.mxu0 0
      %578 = vmatprep.mubr.bf16.mxu0 0
      %579 = vmatmul.mubr.bf16.gmra.mxu0 %v466
      %v580 = vpop.f32.mrf.mxu0
      %v581 = vadd.f32 0.0, %v580
      %v582 = vpop.f32.mrf.mxu0
      %v583 = vpop.f32.mrf.mxu0
      %v584 = vadd.f32 0.0, %v583
      %v585 = vpop.f32.mrf.mxu0
      %586 = vmatprep.mubr.bf16.mxu0 0
      %587 = vmatmul.mubr.bf16.gmra.mxu0 %v467
      %v588 = vpop.f32.mrf.mxu0
      %v589 = vadd.f32 0.0, %v588
      %v590 = vpop.f32.mrf.mxu0
      %v591 = vpop.f32.mrf.mxu0
      %v592 = vadd.f32 0.0, %v591
      %v593 = vpop.f32.mrf.mxu0
      %594 = vmatprep.mubr.bf16.mxu0 0
      %595 = vmatmul.mubr.bf16.gmra.mxu0 %v468
      %v596 = vpop.f32.mrf.mxu0
      %v597 = vadd.f32 0.0, %v596
      %v598 = vpop.f32.mrf.mxu0
      %v599 = vpop.f32.mrf.mxu0
      %v600 = vadd.f32 0.0, %v599
      %v601 = vpop.f32.mrf.mxu0
      %602 = vmatprep.mubr.bf16.mxu0 0
      %603 = vmatmul.mubr.bf16.gmra.mxu0 %v469
      %v604 = vpop.f32.mrf.mxu0
      %v605 = vadd.f32 0.0, %v604
      %v606 = vpop.f32.mrf.mxu0
      %v607 = vpop.f32.mrf.mxu0
      %v608 = vadd.f32 0.0, %v607
      %v609 = vpop.f32.mrf.mxu0
      %610 = vmatprep.mubr.bf16.mxu0 0
      %611 = vmatmul.mubr.bf16.gmra.mxu0 %v470
      %v612 = vpop.f32.mrf.mxu0
      %v613 = vadd.f32 0.0, %v612
      %v614 = vpop.f32.mrf.mxu0
      %v615 = vpop.f32.mrf.mxu0
      %v616 = vadd.f32 0.0, %v615
      %v617 = vpop.f32.mrf.mxu0
      %618 = vmatprep.mubr.bf16.mxu0 0
      %619 = vmatmul.mubr.bf16.gmra.mxu0 %v471
      %v620 = vpop.f32.mrf.mxu0
      %v621 = vadd.f32 0.0, %v620
      %v622 = vpop.f32.mrf.mxu0
      %v623 = vpop.f32.mrf.mxu0
      %v624 = vadd.f32 0.0, %v623
      %v625 = vpop.f32.mrf.mxu0
      %626 = vmatprep.mubr.bf16.mxu0 0
      %627 = vmatmul.mubr.bf16.gmra.mxu0 %v472
      %v628 = vpop.f32.mrf.mxu0
      %v629 = vadd.f32 0.0, %v628
      %v630 = vpop.f32.mrf.mxu0
      %v631 = vpop.f32.mrf.mxu0
      %v632 = vadd.f32 0.0, %v631
      %v633 = vpop.f32.mrf.mxu0
      %634 = vmatprep.mubr.bf16.mxu0 0
      %635 = vmatmul.mubr.bf16.gmra.mxu0 %v473
      %v636 = vpop.f32.mrf.mxu0
      %v637 = vadd.f32 0.0, %v636
      %v638 = vpop.f32.mrf.mxu0
      %v639 = vpop.f32.mrf.mxu0
      %v640 = vadd.f32 0.0, %v639
      %v641 = vpop.f32.mrf.mxu0
      %642 = vmatprep.mubr.bf16.mxu0 0
      %643 = vmatmul.mubr.bf16.gmra.mxu0 %v474
      %v644 = vpop.f32.mrf.mxu0
      %v645 = vadd.f32 0.0, %v644
      %v646 = vpop.f32.mrf.mxu0
      %v647 = vpop.f32.mrf.mxu0
      %v648 = vadd.f32 0.0, %v647
      %v649 = vpop.f32.mrf.mxu0
      %650 = vmatprep.mubr.bf16.mxu0 0
      %651 = vmatmul.mubr.bf16.gmra.mxu0 %v475
      %v652 = vpop.f32.mrf.mxu0
      %v653 = vadd.f32 0.0, %v652
      %v654 = vpop.f32.mrf.mxu0
      %v655 = vpop.f32.mrf.mxu0
      %v656 = vadd.f32 0.0, %v655
      %v657 = vpop.f32.mrf.mxu0
      %658 = vmatprep.mubr.bf16.mxu0 0
      %659 = vmatmul.mubr.bf16.gmra.mxu0 %v476
      %v660 = vpop.f32.mrf.mxu0
      %v661 = vadd.f32 0.0, %v660
      %v662 = vpop.f32.mrf.mxu0
      %v663 = vpop.f32.mrf.mxu0
      %v664 = vadd.f32 0.0, %v663
      %v665 = vpop.f32.mrf.mxu0
      %666 = vmatprep.mubr.bf16.mxu0 0
      %667 = vmatmul.mubr.bf16.gmra.mxu0 %v477
      %v668 = vpop.f32.mrf.mxu0
      %v669 = vadd.f32 0.0, %v668
      %v670 = vpop.f32.mrf.mxu0
      %v671 = vpop.f32.mrf.mxu0
      %v672 = vadd.f32 0.0, %v671
      %v673 = vpop.f32.mrf.mxu0
      %674 = vmatprep.mubr.bf16.mxu0 0
      %675 = vmatmul.mubr.bf16.gmra.mxu0 %v478
      %v676 = vpop.f32.mrf.mxu0
      %v677 = vadd.f32 0.0, %v676
      %v678 = vpop.f32.mrf.mxu0
      %v679 = vpop.f32.mrf.mxu0
      %v680 = vadd.f32 0.0, %v679
      %v681 = vpop.f32.mrf.mxu0
      %682 = vmatprep.mubr.bf16.mxu0 0
      %683 = vmatmul.mubr.bf16.gmra.mxu0 %v479
      %v684 = vpop.f32.mrf.mxu0
      %v685 = vadd.f32 0.0, %v684
      %v686 = vpop.f32.mrf.mxu0
      %v687 = vpop.f32.mrf.mxu0
      %v688 = vadd.f32 0.0, %v687
      %v689 = vpop.f32.mrf.mxu0
      %690 = vmatprep.mubr.bf16.mxu0 0
      %691 = vmatmul.mubr.bf16.gmra.mxu0 %v480
      %v692 = vpop.f32.mrf.mxu0
      %v693 = vadd.f32 0.0, %v692
      %v694 = vpop.f32.mrf.mxu0
      %v695 = vpop.f32.mrf.mxu0
      %v696 = vadd.f32 0.0, %v695
      %v697 = vpop.f32.mrf.mxu0
      %698 = vmatprep.mubr.bf16.mxu0 0
      %699 = vmatmul.mubr.bf16.gmra.mxu0 %v481
      %v700 = vpop.f32.mrf.mxu0
      %v701 = vadd.f32 0.0, %v700
      %v702 = vpop.f32.mrf.mxu0
      %v703 = vpop.f32.mrf.mxu0
      %v704 = vadd.f32 0.0, %v703
      %v705 = vpop.f32.mrf.mxu0
      %706 = vdwg.mxu0
      %v709 = vunpack.c.l.b16 %v315
      %v710 = vunpack.c.l.b16 %v316
      %v711 = vpack.c.b16 %v710, %v709
      %v729 = vunpack.c.l.b16 %v369
      %v730 = vunpack.c.l.b16 %v370
      %v731 = vunpack.c.l.b16 %v371
      %v732 = vunpack.c.l.b16 %v372
      %v733 = vunpack.c.l.b16 %v373
      %v734 = vunpack.c.l.b16 %v374
      %v735 = vunpack.c.l.b16 %v375
      %v736 = vunpack.c.l.b16 %v376
      %v737 = vunpack.c.l.b16 %v377
      %v738 = vunpack.c.l.b16 %v378
      %v739 = vunpack.c.l.b16 %v379
      %v740 = vunpack.c.l.b16 %v380
      %v741 = vunpack.c.l.b16 %v381
      %v742 = vunpack.c.l.b16 %v382
      %v743 = vunpack.c.l.b16 %v383
      %v744 = vunpack.c.l.b16 %v384
      %v745 = vpack.c.b16 %v730, %v729
      %v746 = vpack.c.b16 %v732, %v731
      %v747 = vpack.c.b16 %v734, %v733
      %v748 = vpack.c.b16 %v736, %v735
      %v749 = vpack.c.b16 %v738, %v737
      %v750 = vpack.c.b16 %v740, %v739
      %v751 = vpack.c.b16 %v742, %v741
      %v752 = vpack.c.b16 %v744, %v743
      %761 = vmatprep.subr.bf16.mxu0 0
      %762 = vmatpush1.bf16.msra.mxu0 %v752
      %763 = vmatprep.subr.bf16.mxu0 0
      %764 = vmatpush1.bf16.msra.mxu0 %v751
      %765 = vmatprep.subr.bf16.mxu0 0
      %766 = vmatpush1.bf16.msra.mxu0 %v750
      %767 = vmatprep.subr.bf16.mxu0 0
      %768 = vmatpush1.bf16.msra.mxu0 %v749
      %769 = vmatprep.subr.bf16.mxu0 0
      %770 = vmatpush1.bf16.msra.mxu0 %v748
      %771 = vmatprep.subr.bf16.mxu0 0
      %772 = vmatpush1.bf16.msra.mxu0 %v747
      %773 = vmatprep.subr.bf16.mxu0 0
      %774 = vmatpush1.bf16.msra.mxu0 %v746
      %775 = vmatprep.subr.bf16.mxu0 0
      %776 = vmatpush1.bf16.msra.mxu0 %v745
      %777 = vmatprep.subr.bf16.mxu0 0
      %778 = vmatpush2.bf16.msra.mxu0 0
      %779 = vmatprep.subr.bf16.mxu0 0
      %780 = vmatpush2.bf16.msra.mxu0 0
      %781 = vmatprep.subr.bf16.mxu0 0
      %782 = vmatpush2.bf16.msra.mxu0 0
      %783 = vmatprep.subr.bf16.mxu0 0
      %784 = vmatpush2.bf16.msra.mxu0 0
      %785 = vmatprep.subr.bf16.mxu0 0
      %786 = vmatpush2.bf16.msra.mxu0 0
      %787 = vmatprep.subr.bf16.mxu0 0
      %788 = vmatpush2.bf16.msra.mxu0 0
      %789 = vmatprep.subr.bf16.mxu0 0
      %790 = vmatpush2.bf16.msra.mxu0 0
      %791 = vmatprep.subr.bf16.mxu0 0
      %792 = vmatpush2.bf16.msra.mxu0 0
      %793 = vmatprep.mubr.bf16.mxu0 0
      %794 = vmatmul.mubr.bf16.gmra.mxu0 %v711
      %v795 = vpop.f32.mrf.mxu0
      %v796 = vadd.f32 %v581, %v795
      %v797 = vpop.f32.mrf.mxu0
      %v798 = vpop.f32.mrf.mxu0
      %v799 = vadd.f32 %v584, %v798
      %v800 = vpop.f32.mrf.mxu0
      %801 = vmatprep.mubr.bf16.mxu0 0
      %802 = vmatmul.mubr.bf16.gmra.mxu0 %v466
      %v803 = vpop.f32.mrf.mxu0
      %v804 = vadd.f32 %v589, %v803
      %v805 = vpop.f32.mrf.mxu0
      %v806 = vpop.f32.mrf.mxu0
      %v807 = vadd.f32 %v592, %v806
      %v808 = vpop.f32.mrf.mxu0
      %809 = vmatprep.mubr.bf16.mxu0 0
      %810 = vmatmul.mubr.bf16.gmra.mxu0 %v467
      %v811 = vpop.f32.mrf.mxu0
      %v812 = vadd.f32 %v597, %v811
      %v813 = vpop.f32.mrf.mxu0
      %v814 = vpop.f32.mrf.mxu0
      %v815 = vadd.f32 %v600, %v814
      %v816 = vpop.f32.mrf.mxu0
      %817 = vmatprep.mubr.bf16.mxu0 0
      %818 = vmatmul.mubr.bf16.gmra.mxu0 %v468
      %v819 = vpop.f32.mrf.mxu0
      %v820 = vadd.f32 %v605, %v819
      %v821 = vpop.f32.mrf.mxu0
      %v822 = vpop.f32.mrf.mxu0
      %v823 = vadd.f32 %v608, %v822
      %v824 = vpop.f32.mrf.mxu0
      %825 = vmatprep.mubr.bf16.mxu0 0
      %826 = vmatmul.mubr.bf16.gmra.mxu0 %v469
      %v827 = vpop.f32.mrf.mxu0
      %v828 = vadd.f32 %v613, %v827
      %v829 = vpop.f32.mrf.mxu0
      %v830 = vpop.f32.mrf.mxu0
      %v831 = vadd.f32 %v616, %v830
      %v832 = vpop.f32.mrf.mxu0
      %833 = vmatprep.mubr.bf16.mxu0 0
      %834 = vmatmul.mubr.bf16.gmra.mxu0 %v470
      %v835 = vpop.f32.mrf.mxu0
      %v836 = vadd.f32 %v621, %v835
      %v837 = vpop.f32.mrf.mxu0
      %v838 = vpop.f32.mrf.mxu0
      %v839 = vadd.f32 %v624, %v838
      %v840 = vpop.f32.mrf.mxu0
      %841 = vmatprep.mubr.bf16.mxu0 0
      %842 = vmatmul.mubr.bf16.gmra.mxu0 %v471
      %v843 = vpop.f32.mrf.mxu0
      %v844 = vadd.f32 %v629, %v843
      %v845 = vpop.f32.mrf.mxu0
      %v846 = vpop.f32.mrf.mxu0
      %v847 = vadd.f32 %v632, %v846
      %v848 = vpop.f32.mrf.mxu0
      %849 = vmatprep.mubr.bf16.mxu0 0
      %850 = vmatmul.mubr.bf16.gmra.mxu0 %v472
      %v851 = vpop.f32.mrf.mxu0
      %v852 = vadd.f32 %v637, %v851
      %v853 = vpop.f32.mrf.mxu0
      %v854 = vpop.f32.mrf.mxu0
      %v855 = vadd.f32 %v640, %v854
      %v856 = vpop.f32.mrf.mxu0
      %857 = vmatprep.mubr.bf16.mxu0 0
      %858 = vmatmul.mubr.bf16.gmra.mxu0 %v473
      %v859 = vpop.f32.mrf.mxu0
      %v860 = vadd.f32 %v645, %v859
      %v861 = vpop.f32.mrf.mxu0
      %v862 = vpop.f32.mrf.mxu0
      %v863 = vadd.f32 %v648, %v862
      %v864 = vpop.f32.mrf.mxu0
      %865 = vmatprep.mubr.bf16.mxu0 0
      %866 = vmatmul.mubr.bf16.gmra.mxu0 %v474
      %v867 = vpop.f32.mrf.mxu0
      %v868 = vadd.f32 %v653, %v867
      %v869 = vpop.f32.mrf.mxu0
      %v870 = vpop.f32.mrf.mxu0
      %v871 = vadd.f32 %v656, %v870
      %v872 = vpop.f32.mrf.mxu0
      %873 = vmatprep.mubr.bf16.mxu0 0
      %874 = vmatmul.mubr.bf16.gmra.mxu0 %v475
      %v875 = vpop.f32.mrf.mxu0
      %v876 = vadd.f32 %v661, %v875
      %v877 = vpop.f32.mrf.mxu0
      %v878 = vpop.f32.mrf.mxu0
      %v879 = vadd.f32 %v664, %v878
      %v880 = vpop.f32.mrf.mxu0
      %881 = vmatprep.mubr.bf16.mxu0 0
      %882 = vmatmul.mubr.bf16.gmra.mxu0 %v476
      %v883 = vpop.f32.mrf.mxu0
      %v884 = vadd.f32 %v669, %v883
      %v885 = vpop.f32.mrf.mxu0
      %v886 = vpop.f32.mrf.mxu0
      %v887 = vadd.f32 %v672, %v886
      %v888 = vpop.f32.mrf.mxu0
      %889 = vmatprep.mubr.bf16.mxu0 0
      %890 = vmatmul.mubr.bf16.gmra.mxu0 %v477
      %v891 = vpop.f32.mrf.mxu0
      %v892 = vadd.f32 %v677, %v891
      %v893 = vpop.f32.mrf.mxu0
      %v894 = vpop.f32.mrf.mxu0
      %v895 = vadd.f32 %v680, %v894
      %v896 = vpop.f32.mrf.mxu0
      %897 = vmatprep.mubr.bf16.mxu0 0
      %898 = vmatmul.mubr.bf16.gmra.mxu0 %v478
      %v899 = vpop.f32.mrf.mxu0
      %v900 = vadd.f32 %v685, %v899
      %v901 = vpop.f32.mrf.mxu0
      %v902 = vpop.f32.mrf.mxu0
      %v903 = vadd.f32 %v688, %v902
      %v904 = vpop.f32.mrf.mxu0
      %905 = vmatprep.mubr.bf16.mxu0 0
      %906 = vmatmul.mubr.bf16.gmra.mxu0 %v479
      %v907 = vpop.f32.mrf.mxu0
      %v908 = vadd.f32 %v693, %v907
      %v909 = vpop.f32.mrf.mxu0
      %v910 = vpop.f32.mrf.mxu0
      %v911 = vadd.f32 %v696, %v910
      %v912 = vpop.f32.mrf.mxu0
      %913 = vmatprep.mubr.bf16.mxu0 0
      %914 = vmatmul.mubr.bf16.gmra.mxu0 %v480
      %v915 = vpop.f32.mrf.mxu0
      %v916 = vadd.f32 %v701, %v915
      %v917 = vpop.f32.mrf.mxu0
      %v918 = vpop.f32.mrf.mxu0
      %v919 = vadd.f32 %v704, %v918
      %v920 = vpop.f32.mrf.mxu0
      %921 = vdwg.mxu0
      %s922 = scalar_lea.vmem %s2, 384
      %v923 = vld [vmem:[%s922] sm:$0xf]
      %v924 = vld [vmem:[%s922 + $0x4] sm:$0xf]
      %v925 = vld [vmem:[%s922 + $0x8] sm:$0xf]
      %v926 = vld [vmem:[%s922 + $0xc] sm:$0xf]
      %v927 = vld [vmem:[%s922 + $0x10] sm:$0xf]
      %v928 = vld [vmem:[%s922 + $0x14] sm:$0xf]
      %v929 = vld [vmem:[%s922 + $0x18] sm:$0xf]
      %v930 = vld [vmem:[%s922 + $0x1c] sm:$0xf]
      %v931 = vld [vmem:[%s922 + $0x20] sm:$0xf]
      %v932 = vld [vmem:[%s922 + $0x24] sm:$0xf]
      %v933 = vld [vmem:[%s922 + $0x28] sm:$0xf]
      %v934 = vld [vmem:[%s922 + $0x2c] sm:$0xf]
      %v935 = vld [vmem:[%s922 + $0x30] sm:$0xf]
      %v936 = vld [vmem:[%s922 + $0x34] sm:$0xf]
      %v937 = vld [vmem:[%s922 + $0x38] sm:$0xf]
      %v938 = vld [vmem:[%s922 + $0x3c] sm:$0xf]
      %v941 = vunpack.c.l.b16 %v366
      %v942 = vunpack.c.l.b16 %v367
      %v943 = vpack.c.b16 %v942, %v941
      %v961 = vunpack.c.l.b16 %v923
      %v962 = vunpack.c.l.b16 %v924
      %v963 = vunpack.c.l.b16 %v925
      %v964 = vunpack.c.l.b16 %v926
      %v965 = vunpack.c.l.b16 %v927
      %v966 = vunpack.c.l.b16 %v928
      %v967 = vunpack.c.l.b16 %v929
      %v968 = vunpack.c.l.b16 %v930
      %v969 = vunpack.c.l.b16 %v931
      %v970 = vunpack.c.l.b16 %v932
      %v971 = vunpack.c.l.b16 %v933
      %v972 = vunpack.c.l.b16 %v934
      %v973 = vunpack.c.l.b16 %v935
      %v974 = vunpack.c.l.b16 %v936
      %v975 = vunpack.c.l.b16 %v937
      %v976 = vunpack.c.l.b16 %v938
      %v977 = vpack.c.b16 %v962, %v961
      %v978 = vpack.c.b16 %v964, %v963
      %v979 = vpack.c.b16 %v966, %v965
      %v980 = vpack.c.b16 %v968, %v967
      %v981 = vpack.c.b16 %v970, %v969
      %v982 = vpack.c.b16 %v972, %v971
      %v983 = vpack.c.b16 %v974, %v973
      %v984 = vpack.c.b16 %v976, %v975
      %993 = vmatprep.subr.bf16.mxu0 0
      %994 = vmatpush1.bf16.msra.mxu0 %v984
      %995 = vmatprep.subr.bf16.mxu0 0
      %996 = vmatpush1.bf16.msra.mxu0 %v983
      %997 = vmatprep.subr.bf16.mxu0 0
      %998 = vmatpush1.bf16.msra.mxu0 %v982
      %999 = vmatprep.subr.bf16.mxu0 0
      %1000 = vmatpush1.bf16.msra.mxu0 %v981
      %1001 = vmatprep.subr.bf16.mxu0 0
      %1002 = vmatpush1.bf16.msra.mxu0 %v980
      %1003 = vmatprep.subr.bf16.mxu0 0
      %1004 = vmatpush1.bf16.msra.mxu0 %v979
      %1005 = vmatprep.subr.bf16.mxu0 0
      %1006 = vmatpush1.bf16.msra.mxu0 %v978
      %1007 = vmatprep.subr.bf16.mxu0 0
      %1008 = vmatpush1.bf16.msra.mxu0 %v977
      %1009 = vmatprep.subr.bf16.mxu0 0
      %1010 = vmatpush2.bf16.msra.mxu0 0
      %1011 = vmatprep.subr.bf16.mxu0 0
      %1012 = vmatpush2.bf16.msra.mxu0 0
      %1013 = vmatprep.subr.bf16.mxu0 0
      %1014 = vmatpush2.bf16.msra.mxu0 0
      %1015 = vmatprep.subr.bf16.mxu0 0
      %1016 = vmatpush2.bf16.msra.mxu0 0
      %1017 = vmatprep.subr.bf16.mxu0 0
      %1018 = vmatpush2.bf16.msra.mxu0 0
      %1019 = vmatprep.subr.bf16.mxu0 0
      %1020 = vmatpush2.bf16.msra.mxu0 0
      %1021 = vmatprep.subr.bf16.mxu0 0
      %1022 = vmatpush2.bf16.msra.mxu0 0
      %1023 = vmatprep.subr.bf16.mxu0 0
      %1024 = vmatpush2.bf16.msra.mxu0 0
      %1025 = vmatprep.mubr.bf16.mxu0 0
      %1026 = vmatmul.mubr.bf16.gmra.mxu0 %v467
      %v1027 = vpop.f32.mrf.mxu0
      %v1028 = vadd.f32 0.0, %v1027
      %v1029 = vpop.f32.mrf.mxu0
      %v1030 = vpop.f32.mrf.mxu0
      %v1031 = vadd.f32 0.0, %v1030
      %v1032 = vpop.f32.mrf.mxu0
      %1033 = vmatprep.mubr.bf16.mxu0 0
      %1034 = vmatmul.mubr.bf16.gmra.mxu0 %v468
      %v1035 = vpop.f32.mrf.mxu0
      %v1036 = vadd.f32 0.0, %v1035
      %v1037 = vpop.f32.mrf.mxu0
      %v1038 = vpop.f32.mrf.mxu0
      %v1039 = vadd.f32 0.0, %v1038
      %v1040 = vpop.f32.mrf.mxu0
      %1041 = vmatprep.mubr.bf16.mxu0 0
      %1042 = vmatmul.mubr.bf16.gmra.mxu0 %v469
      %v1043 = vpop.f32.mrf.mxu0
      %v1044 = vadd.f32 0.0, %v1043
      %v1045 = vpop.f32.mrf.mxu0
      %v1046 = vpop.f32.mrf.mxu0
      %v1047 = vadd.f32 0.0, %v1046
      %v1048 = vpop.f32.mrf.mxu0
      %1049 = vmatprep.mubr.bf16.mxu0 0
      %1050 = vmatmul.mubr.bf16.gmra.mxu0 %v470
      %v1051 = vpop.f32.mrf.mxu0
      %v1052 = vadd.f32 0.0, %v1051
      %v1053 = vpop.f32.mrf.mxu0
      %v1054 = vpop.f32.mrf.mxu0
      %v1055 = vadd.f32 0.0, %v1054
      %v1056 = vpop.f32.mrf.mxu0
      %1057 = vmatprep.mubr.bf16.mxu0 0
      %1058 = vmatmul.mubr.bf16.gmra.mxu0 %v471
      %v1059 = vpop.f32.mrf.mxu0
      %v1060 = vadd.f32 0.0, %v1059
      %v1061 = vpop.f32.mrf.mxu0
      %v1062 = vpop.f32.mrf.mxu0
      %v1063 = vadd.f32 0.0, %v1062
      %v1064 = vpop.f32.mrf.mxu0
      %1065 = vmatprep.mubr.bf16.mxu0 0
      %1066 = vmatmul.mubr.bf16.gmra.mxu0 %v472
      %v1067 = vpop.f32.mrf.mxu0
      %v1068 = vadd.f32 0.0, %v1067
      %v1069 = vpop.f32.mrf.mxu0
      %v1070 = vpop.f32.mrf.mxu0
      %v1071 = vadd.f32 0.0, %v1070
      %v1072 = vpop.f32.mrf.mxu0
      %1073 = vmatprep.mubr.bf16.mxu0 0
      %1074 = vmatmul.mubr.bf16.gmra.mxu0 %v473
      %v1075 = vpop.f32.mrf.mxu0
      %v1076 = vadd.f32 0.0, %v1075
      %v1077 = vpop.f32.mrf.mxu0
      %v1078 = vpop.f32.mrf.mxu0
      %v1079 = vadd.f32 0.0, %v1078
      %v1080 = vpop.f32.mrf.mxu0
      %1081 = vmatprep.mubr.bf16.mxu0 0
      %1082 = vmatmul.mubr.bf16.gmra.mxu0 %v474
      %v1083 = vpop.f32.mrf.mxu0
      %v1084 = vadd.f32 0.0, %v1083
      %v1085 = vpop.f32.mrf.mxu0
      %v1086 = vpop.f32.mrf.mxu0
      %v1087 = vadd.f32 0.0, %v1086
      %v1088 = vpop.f32.mrf.mxu0
      %1089 = vmatprep.mubr.bf16.mxu0 0
      %1090 = vmatmul.mubr.bf16.gmra.mxu0 %v475
      %v1091 = vpop.f32.mrf.mxu0
      %v1092 = vadd.f32 0.0, %v1091
      %v1093 = vpop.f32.mrf.mxu0
      %v1094 = vpop.f32.mrf.mxu0
      %v1095 = vadd.f32 0.0, %v1094
      %v1096 = vpop.f32.mrf.mxu0
      %1097 = vmatprep.mubr.bf16.mxu0 0
      %1098 = vmatmul.mubr.bf16.gmra.mxu0 %v476
      %v1099 = vpop.f32.mrf.mxu0
      %v1100 = vadd.f32 0.0, %v1099
      %v1101 = vpop.f32.mrf.mxu0
      %v1102 = vpop.f32.mrf.mxu0
      %v1103 = vadd.f32 0.0, %v1102
      %v1104 = vpop.f32.mrf.mxu0
      %1105 = vmatprep.mubr.bf16.mxu0 0
      %1106 = vmatmul.mubr.bf16.gmra.mxu0 %v477
      %v1107 = vpop.f32.mrf.mxu0
      %v1108 = vadd.f32 0.0, %v1107
      %v1109 = vpop.f32.mrf.mxu0
      %v1110 = vpop.f32.mrf.mxu0
      %v1111 = vadd.f32 0.0, %v1110
      %v1112 = vpop.f32.mrf.mxu0
      %1113 = vmatprep.mubr.bf16.mxu0 0
      %1114 = vmatmul.mubr.bf16.gmra.mxu0 %v478
      %v1115 = vpop.f32.mrf.mxu0
      %v1116 = vadd.f32 0.0, %v1115
      %v1117 = vpop.f32.mrf.mxu0
      %v1118 = vpop.f32.mrf.mxu0
      %v1119 = vadd.f32 0.0, %v1118
      %v1120 = vpop.f32.mrf.mxu0
      %1121 = vmatprep.mubr.bf16.mxu0 0
      %1122 = vmatmul.mubr.bf16.gmra.mxu0 %v479
      %v1123 = vpop.f32.mrf.mxu0
      %v1124 = vadd.f32 0.0, %v1123
      %v1125 = vpop.f32.mrf.mxu0
      %v1126 = vpop.f32.mrf.mxu0
      %v1127 = vadd.f32 0.0, %v1126
      %v1128 = vpop.f32.mrf.mxu0
      %1129 = vmatprep.mubr.bf16.mxu0 0
      %1130 = vmatmul.mubr.bf16.gmra.mxu0 %v480
      %v1131 = vpop.f32.mrf.mxu0
      %v1132 = vadd.f32 0.0, %v1131
      %v1133 = vpop.f32.mrf.mxu0
      %v1134 = vpop.f32.mrf.mxu0
      %v1135 = vadd.f32 0.0, %v1134
      %v1136 = vpop.f32.mrf.mxu0
      %1137 = vmatprep.mubr.bf16.mxu0 0
      %1138 = vmatmul.mubr.bf16.gmra.mxu0 %v481
      %v1139 = vpop.f32.mrf.mxu0
      %v1140 = vadd.f32 0.0, %v1139
      %v1141 = vpop.f32.mrf.mxu0
      %v1142 = vpop.f32.mrf.mxu0
      %v1143 = vadd.f32 0.0, %v1142
      %v1144 = vpop.f32.mrf.mxu0
      %1145 = vmatprep.mubr.bf16.mxu0 0
      %1146 = vmatmul.mubr.bf16.gmra.mxu0 %v943
      %v1147 = vpop.f32.mrf.mxu0
      %v1148 = vadd.f32 0.0, %v1147
      %v1149 = vpop.f32.mrf.mxu0
      %v1150 = vpop.f32.mrf.mxu0
      %v1151 = vadd.f32 0.0, %v1150
      %v1152 = vpop.f32.mrf.mxu0
      %1153 = vdwg.mxu0
      %v1154 = vadd.f32 %v796, %v1028
      %v1155 = vadd.f32 %v799, %v1031
      %v1156 = vadd.f32 %v804, %v1036
      %v1157 = vadd.f32 %v807, %v1039
      %v1158 = vadd.f32 %v812, %v1044
      %v1159 = vadd.f32 %v815, %v1047
      %v1160 = vadd.f32 %v820, %v1052
      %v1161 = vadd.f32 %v823, %v1055
      %v1162 = vadd.f32 %v828, %v1060
      %v1163 = vadd.f32 %v831, %v1063
      %v1164 = vadd.f32 %v836, %v1068
      %v1165 = vadd.f32 %v839, %v1071
      %v1166 = vadd.f32 %v844, %v1076
      %v1167 = vadd.f32 %v847, %v1079
      %v1168 = vadd.f32 %v852, %v1084
      %v1169 = vadd.f32 %v855, %v1087
      %v1170 = vadd.f32 %v860, %v1092
      %v1171 = vadd.f32 %v863, %v1095
      %v1172 = vadd.f32 %v868, %v1100
      %v1173 = vadd.f32 %v871, %v1103
      %v1174 = vadd.f32 %v876, %v1108
      %v1175 = vadd.f32 %v879, %v1111
      %v1176 = vadd.f32 %v884, %v1116
      %v1177 = vadd.f32 %v887, %v1119
      %v1178 = vadd.f32 %v892, %v1124
      %v1179 = vadd.f32 %v895, %v1127
      %v1180 = vadd.f32 %v900, %v1132
      %v1181 = vadd.f32 %v903, %v1135
      %v1182 = vadd.f32 %v908, %v1140
      %v1183 = vadd.f32 %v911, %v1143
      %v1184 = vadd.f32 %v916, %v1148
      %v1185 = vadd.f32 %v919, %v1151
      %vm1186 = vsmask.f32 3328
      %vm1187 = vsmask.f32 7440
      %vm1188 = vmor %vm1186, %vm1187
      %v1190 = vshrl.u32 %v315, 16
      %v1192 = vrot.slane %v1190, 4
      %v1193 = vshll.u32 %v315, 16
      %v1195 = vrot.slane %v1193, 5
      %v1196 = vor.u32 %v1192, %v1195
      %v1197 = vrot.slane %v1196, 4
      %v1199 = vshll.u32 %v316, 16
      %v1201 = vrot.slane %v1199, 5
      %v1202 = vsel %vm1188, %v1197, %v1201
      %v1203 = vshrl.u32 %v316, 16
      %v1205 = vrot.slane %v1203, 4
      %v1206 = vor.u32 %v1205, %v1201
      %v1207 = vrot.slane %v1206, 4
      %v1209 = vshll.u32 %v317, 16
      %v1211 = vrot.slane %v1209, 5
      %v1212 = vsel %vm1188, %v1207, %v1211
      %v1214 = vshrl.u32 %v318, 16
      %v1216 = vrot.slane %v1214, 4
      %v1217 = vshll.u32 %v318, 16
      %v1219 = vrot.slane %v1217, 5
      %v1220 = vor.u32 %v1216, %v1219
      %v1221 = vrot.slane %v1220, 4
      %v1223 = vshll.u32 %v319, 16
      %v1225 = vrot.slane %v1223, 5
      %v1226 = vsel %vm1188, %v1221, %v1225
      %v1227 = vshrl.u32 %v319, 16
      %v1229 = vrot.slane %v1227, 4
      %v1230 = vor.u32 %v1229, %v1225
      %v1231 = vrot.slane %v1230, 4
      %v1233 = vshll.u32 %v320, 16
      %v1235 = vrot.slane %v1233, 5
      %v1236 = vsel %vm1188, %v1231, %v1235
      %v1238 = vshrl.u32 %v321, 16
      %v1240 = vrot.slane %v1238, 4
      %v1241 = vshll.u32 %v321, 16
      %v1243 = vrot.slane %v1241, 5
      %v1244 = vor.u32 %v1240, %v1243
      %v1245 = vrot.slane %v1244, 4
      %v1247 = vshll.u32 %v322, 16
      %v1249 = vrot.slane %v1247, 5
      %v1250 = vsel %vm1188, %v1245, %v1249
      %v1251 = vshrl.u32 %v322, 16
      %v1253 = vrot.slane %v1251, 4
      %v1254 = vor.u32 %v1253, %v1249
      %v1255 = vrot.slane %v1254, 4
      %v1257 = vshll.u32 %v323, 16
      %v1259 = vrot.slane %v1257, 5
      %v1260 = vsel %vm1188, %v1255, %v1259
      %v1262 = vshrl.u32 %v324, 16
      %v1264 = vrot.slane %v1262, 4
      %v1265 = vshll.u32 %v324, 16
      %v1267 = vrot.slane %v1265, 5
      %v1268 = vor.u32 %v1264, %v1267
      %v1269 = vrot.slane %v1268, 4
      %v1271 = vshll.u32 %v325, 16
      %v1273 = vrot.slane %v1271, 5
      %v1274 = vsel %vm1188, %v1269, %v1273
      %v1275 = vshrl.u32 %v325, 16
      %v1277 = vrot.slane %v1275, 4
      %v1278 = vor.u32 %v1277, %v1273
      %v1279 = vrot.slane %v1278, 4
      %v1281 = vshll.u32 %v326, 16
      %v1283 = vrot.slane %v1281, 5
      %v1284 = vsel %vm1188, %v1279, %v1283
      %v1286 = vshrl.u32 %v327, 16
      %v1288 = vrot.slane %v1286, 4
      %v1289 = vshll.u32 %v327, 16
      %v1291 = vrot.slane %v1289, 5
      %v1292 = vor.u32 %v1288, %v1291
      %v1293 = vrot.slane %v1292, 4
      %v1295 = vshll.u32 %v328, 16
      %v1297 = vrot.slane %v1295, 5
      %v1298 = vsel %vm1188, %v1293, %v1297
      %v1299 = vshrl.u32 %v328, 16
      %v1301 = vrot.slane %v1299, 4
      %v1302 = vor.u32 %v1301, %v1297
      %v1303 = vrot.slane %v1302, 4
      %v1305 = vshll.u32 %v329, 16
      %v1307 = vrot.slane %v1305, 5
      %v1308 = vsel %vm1188, %v1303, %v1307
      %v1310 = vshrl.u32 %v330, 16
      %v1312 = vrot.slane %v1310, 4
      %v1313 = vshll.u32 %v330, 16
      %v1315 = vrot.slane %v1313, 5
      %v1316 = vor.u32 %v1312, %v1315
      %v1317 = vrot.slane %v1316, 4
      %v1319 = vshll.u32 %v331, 16
      %v1321 = vrot.slane %v1319, 5
      %v1322 = vsel %vm1188, %v1317, %v1321
      %v1323 = vshrl.u32 %v331, 16
      %v1325 = vrot.slane %v1323, 4
      %v1326 = vor.u32 %v1325, %v1321
      %v1327 = vrot.slane %v1326, 4
      %v1329 = vshll.u32 %v332, 16
      %v1331 = vrot.slane %v1329, 5
      %v1332 = vsel %vm1188, %v1327, %v1331
      %v1334 = vshrl.u32 %v333, 16
      %v1336 = vrot.slane %v1334, 4
      %v1337 = vshll.u32 %v333, 16
      %v1339 = vrot.slane %v1337, 5
      %v1340 = vor.u32 %v1336, %v1339
      %v1341 = vrot.slane %v1340, 4
      %v1343 = vshll.u32 %v334, 16
      %v1345 = vrot.slane %v1343, 5
      %v1346 = vsel %vm1188, %v1341, %v1345
      %v1347 = vshrl.u32 %v334, 16
      %v1349 = vrot.slane %v1347, 4
      %v1350 = vor.u32 %v1349, %v1345
      %v1351 = vrot.slane %v1350, 4
      %v1353 = vshll.u32 %v335, 16
      %v1355 = vrot.slane %v1353, 5
      %v1356 = vsel %vm1188, %v1351, %v1355
      %v1358 = vshrl.u32 %v336, 16
      %v1360 = vrot.slane %v1358, 4
      %v1361 = vshll.u32 %v336, 16
      %v1363 = vrot.slane %v1361, 5
      %v1364 = vor.u32 %v1360, %v1363
      %v1365 = vrot.slane %v1364, 4
      %v1367 = vshll.u32 %v337, 16
      %v1369 = vrot.slane %v1367, 5
      %v1370 = vsel %vm1188, %v1365, %v1369
      %v1371 = vshrl.u32 %v337, 16
      %v1373 = vrot.slane %v1371, 4
      %v1374 = vor.u32 %v1373, %v1369
      %v1375 = vrot.slane %v1374, 4
      %v1377 = vshll.u32 %v338, 16
      %v1379 = vrot.slane %v1377, 5
      %v1380 = vsel %vm1188, %v1375, %v1379
      %v1382 = vshrl.u32 %v339, 16
      %v1384 = vrot.slane %v1382, 4
      %v1385 = vshll.u32 %v339, 16
      %v1387 = vrot.slane %v1385, 5
      %v1388 = vor.u32 %v1384, %v1387
      %v1389 = vrot.slane %v1388, 4
      %v1391 = vshll.u32 %v340, 16
      %v1393 = vrot.slane %v1391, 5
      %v1394 = vsel %vm1188, %v1389, %v1393
      %v1395 = vshrl.u32 %v340, 16
      %v1397 = vrot.slane %v1395, 4
      %v1398 = vor.u32 %v1397, %v1393
      %v1399 = vrot.slane %v1398, 4
      %v1401 = vshll.u32 %v341, 16
      %v1403 = vrot.slane %v1401, 5
      %v1404 = vsel %vm1188, %v1399, %v1403
      %v1406 = vshrl.u32 %v342, 16
      %v1408 = vrot.slane %v1406, 4
      %v1409 = vshll.u32 %v342, 16
      %v1411 = vrot.slane %v1409, 5
      %v1412 = vor.u32 %v1408, %v1411
      %v1413 = vrot.slane %v1412, 4
      %v1415 = vshll.u32 %v343, 16
      %v1417 = vrot.slane %v1415, 5
      %v1418 = vsel %vm1188, %v1413, %v1417
      %v1419 = vshrl.u32 %v343, 16
      %v1421 = vrot.slane %v1419, 4
      %v1422 = vor.u32 %v1421, %v1417
      %v1423 = vrot.slane %v1422, 4
      %v1425 = vshll.u32 %v344, 16
      %v1427 = vrot.slane %v1425, 5
      %v1428 = vsel %vm1188, %v1423, %v1427
      %v1430 = vshrl.u32 %v345, 16
      %v1432 = vrot.slane %v1430, 4
      %v1433 = vshll.u32 %v345, 16
      %v1435 = vrot.slane %v1433, 5
      %v1436 = vor.u32 %v1432, %v1435
      %v1437 = vrot.slane %v1436, 4
      %v1439 = vshll.u32 %v346, 16
      %v1441 = vrot.slane %v1439, 5
      %v1442 = vsel %vm1188, %v1437, %v1441
      %v1443 = vshrl.u32 %v346, 16
      %v1445 = vrot.slane %v1443, 4
      %v1446 = vor.u32 %v1445, %v1441
      %v1447 = vrot.slane %v1446, 4
      %v1449 = vshll.u32 %v347, 16
      %v1451 = vrot.slane %v1449, 5
      %v1452 = vsel %vm1188, %v1447, %v1451
      %v1454 = vshrl.u32 %v348, 16
      %v1456 = vrot.slane %v1454, 4
      %v1457 = vshll.u32 %v348, 16
      %v1459 = vrot.slane %v1457, 5
      %v1460 = vor.u32 %v1456, %v1459
      %v1461 = vrot.slane %v1460, 4
      %v1463 = vshll.u32 %v349, 16
      %v1465 = vrot.slane %v1463, 5
      %v1466 = vsel %vm1188, %v1461, %v1465
      %v1467 = vshrl.u32 %v349, 16
      %v1469 = vrot.slane %v1467, 4
      %v1470 = vor.u32 %v1469, %v1465
      %v1471 = vrot.slane %v1470, 4
      %v1473 = vshll.u32 %v350, 16
      %v1475 = vrot.slane %v1473, 5
      %v1476 = vsel %vm1188, %v1471, %v1475
      %v1478 = vshrl.u32 %v351, 16
      %v1480 = vrot.slane %v1478, 4
      %v1481 = vshll.u32 %v351, 16
      %v1483 = vrot.slane %v1481, 5
      %v1484 = vor.u32 %v1480, %v1483
      %v1485 = vrot.slane %v1484, 4
      %v1487 = vshll.u32 %v352, 16
      %v1489 = vrot.slane %v1487, 5
      %v1490 = vsel %vm1188, %v1485, %v1489
      %v1491 = vshrl.u32 %v352, 16
      %v1493 = vrot.slane %v1491, 4
      %v1494 = vor.u32 %v1493, %v1489
      %v1495 = vrot.slane %v1494, 4
      %v1497 = vshll.u32 %v353, 16
      %v1499 = vrot.slane %v1497, 5
      %v1500 = vsel %vm1188, %v1495, %v1499
      %v1502 = vshrl.u32 %v354, 16
      %v1504 = vrot.slane %v1502, 4
      %v1505 = vshll.u32 %v354, 16
      %v1507 = vrot.slane %v1505, 5
      %v1508 = vor.u32 %v1504, %v1507
      %v1509 = vrot.slane %v1508, 4
      %v1511 = vshll.u32 %v355, 16
      %v1513 = vrot.slane %v1511, 5
      %v1514 = vsel %vm1188, %v1509, %v1513
      %v1515 = vshrl.u32 %v355, 16
      %v1517 = vrot.slane %v1515, 4
      %v1518 = vor.u32 %v1517, %v1513
      %v1519 = vrot.slane %v1518, 4
      %v1521 = vshll.u32 %v356, 16
      %v1523 = vrot.slane %v1521, 5
      %v1524 = vsel %vm1188, %v1519, %v1523
      %v1526 = vshrl.u32 %v357, 16
      %v1528 = vrot.slane %v1526, 4
      %v1529 = vshll.u32 %v357, 16
      %v1531 = vrot.slane %v1529, 5
      %v1532 = vor.u32 %v1528, %v1531
      %v1533 = vrot.slane %v1532, 4
      %v1535 = vshll.u32 %v358, 16
      %v1537 = vrot.slane %v1535, 5
      %v1538 = vsel %vm1188, %v1533, %v1537
      %v1539 = vshrl.u32 %v358, 16
      %v1541 = vrot.slane %v1539, 4
      %v1542 = vor.u32 %v1541, %v1537
      %v1543 = vrot.slane %v1542, 4
      %v1545 = vshll.u32 %v359, 16
      %v1547 = vrot.slane %v1545, 5
      %v1548 = vsel %vm1188, %v1543, %v1547
      %v1550 = vshrl.u32 %v360, 16
      %v1552 = vrot.slane %v1550, 4
      %v1553 = vshll.u32 %v360, 16
      %v1555 = vrot.slane %v1553, 5
      %v1556 = vor.u32 %v1552, %v1555
      %v1557 = vrot.slane %v1556, 4
      %v1559 = vshll.u32 %v361, 16
      %v1561 = vrot.slane %v1559, 5
      %v1562 = vsel %vm1188, %v1557, %v1561
      %v1563 = vshrl.u32 %v361, 16
      %v1565 = vrot.slane %v1563, 4
      %v1566 = vor.u32 %v1565, %v1561
      %v1567 = vrot.slane %v1566, 4
      %v1569 = vshll.u32 %v362, 16
      %v1571 = vrot.slane %v1569, 5
      %v1572 = vsel %vm1188, %v1567, %v1571
      %v1574 = vshrl.u32 %v363, 16
      %v1576 = vrot.slane %v1574, 4
      %v1577 = vshll.u32 %v363, 16
      %v1579 = vrot.slane %v1577, 5
      %v1580 = vor.u32 %v1576, %v1579
      %v1581 = vrot.slane %v1580, 4
      %v1583 = vshll.u32 %v364, 16
      %v1585 = vrot.slane %v1583, 5
      %v1586 = vsel %vm1188, %v1581, %v1585
      %v1587 = vshrl.u32 %v364, 16
      %v1589 = vrot.slane %v1587, 4
      %v1590 = vor.u32 %v1589, %v1585
      %v1591 = vrot.slane %v1590, 4
      %v1593 = vshll.u32 %v365, 16
      %v1595 = vrot.slane %v1593, 5
      %v1596 = vsel %vm1188, %v1591, %v1595
      %v1598 = vshrl.u32 %v366, 16
      %v1600 = vrot.slane %v1598, 4
      %v1601 = vshll.u32 %v366, 16
      %v1603 = vrot.slane %v1601, 5
      %v1604 = vor.u32 %v1600, %v1603
      %v1605 = vrot.slane %v1604, 4
      %v1607 = vshll.u32 %v367, 16
      %v1609 = vrot.slane %v1607, 5
      %v1610 = vsel %vm1188, %v1605, %v1609
      %v1611 = vshrl.u32 %v367, 16
      %v1613 = vrot.slane %v1611, 4
      %v1614 = vor.u32 %v1613, %v1609
      %v1615 = vrot.slane %v1614, 4
      %v1617 = vshll.u32 %v368, 16
      %v1619 = vrot.slane %v1617, 5
      %v1620 = vsel %vm1188, %v1615, %v1619
      %s1621 = scalar_lea.vmem %s2, 64
      %v1622 = vld [vmem:[%s1621] sm:$0xf]
      %v1623 = vld [vmem:[%s1621 + $0x4] sm:$0xf]
      %v1624 = vld [vmem:[%s1621 + $0x8] sm:$0xf]
      %v1625 = vld [vmem:[%s1621 + $0xc] sm:$0xf]
      %v1626 = vld [vmem:[%s1621 + $0x10] sm:$0xf]
      %v1627 = vld [vmem:[%s1621 + $0x14] sm:$0xf]
      %v1628 = vld [vmem:[%s1621 + $0x18] sm:$0xf]
      %v1629 = vld [vmem:[%s1621 + $0x1c] sm:$0xf]
      %v1630 = vld [vmem:[%s1621 + $0x20] sm:$0xf]
      %v1631 = vld [vmem:[%s1621 + $0x24] sm:$0xf]
      %v1632 = vld [vmem:[%s1621 + $0x28] sm:$0xf]
      %v1633 = vld [vmem:[%s1621 + $0x2c] sm:$0xf]
      %v1634 = vld [vmem:[%s1621 + $0x30] sm:$0xf]
      %v1635 = vld [vmem:[%s1621 + $0x34] sm:$0xf]
      %v1636 = vld [vmem:[%s1621 + $0x38] sm:$0xf]
      %v1637 = vld [vmem:[%s1621 + $0x3c] sm:$0xf]
      %v1638 = vunpack.c.l.b16 %v1202
      %v1639 = vunpack.c.l.b16 %v1212
      %v1640 = vunpack.c.l.b16 %v1226
      %v1641 = vunpack.c.l.b16 %v1236
      %v1642 = vunpack.c.l.b16 %v1250
      %v1643 = vunpack.c.l.b16 %v1260
      %v1644 = vunpack.c.l.b16 %v1274
      %v1645 = vunpack.c.l.b16 %v1284
      %v1646 = vunpack.c.l.b16 %v1298
      %v1647 = vunpack.c.l.b16 %v1308
      %v1648 = vunpack.c.l.b16 %v1322
      %v1649 = vunpack.c.l.b16 %v1332
      %v1650 = vunpack.c.l.b16 %v1346
      %v1651 = vunpack.c.l.b16 %v1356
      %v1652 = vunpack.c.l.b16 %v1370
      %v1653 = vunpack.c.l.b16 %v1380
      %v1654 = vunpack.c.l.b16 %v1394
      %v1655 = vunpack.c.l.b16 %v1404
      %v1656 = vunpack.c.l.b16 %v1418
      %v1657 = vunpack.c.l.b16 %v1428
      %v1658 = vunpack.c.l.b16 %v1442
      %v1659 = vunpack.c.l.b16 %v1452
      %v1660 = vunpack.c.l.b16 %v1466
      %v1661 = vunpack.c.l.b16 %v1476
      %v1662 = vunpack.c.l.b16 %v1490
      %v1663 = vunpack.c.l.b16 %v1500
      %v1664 = vunpack.c.l.b16 %v1514
      %v1665 = vunpack.c.l.b16 %v1524
      %v1666 = vunpack.c.l.b16 %v1538
      %v1667 = vunpack.c.l.b16 %v1548
      %v1668 = vunpack.c.l.b16 %v1562
      %v1669 = vunpack.c.l.b16 %v1572
      %v1670 = vpack.c.b16 %v1639, %v1638
      %v1671 = vpack.c.b16 %v1641, %v1640
      %v1672 = vpack.c.b16 %v1643, %v1642
      %v1673 = vpack.c.b16 %v1645, %v1644
      %v1674 = vpack.c.b16 %v1647, %v1646
      %v1675 = vpack.c.b16 %v1649, %v1648
      %v1676 = vpack.c.b16 %v1651, %v1650
      %v1677 = vpack.c.b16 %v1653, %v1652
      %v1678 = vpack.c.b16 %v1655, %v1654
      %v1679 = vpack.c.b16 %v1657, %v1656
      %v1680 = vpack.c.b16 %v1659, %v1658
      %v1681 = vpack.c.b16 %v1661, %v1660
      %v1682 = vpack.c.b16 %v1663, %v1662
      %v1683 = vpack.c.b16 %v1665, %v1664
      %v1684 = vpack.c.b16 %v1667, %v1666
      %v1685 = vpack.c.b16 %v1669, %v1668
      %v1718 = vunpack.c.l.b16 %v1622
      %v1719 = vunpack.c.l.b16 %v1623
      %v1720 = vunpack.c.l.b16 %v1624
      %v1721 = vunpack.c.l.b16 %v1625
      %v1722 = vunpack.c.l.b16 %v1626
      %v1723 = vunpack.c.l.b16 %v1627
      %v1724 = vunpack.c.l.b16 %v1628
      %v1725 = vunpack.c.l.b16 %v1629
      %v1726 = vunpack.c.l.b16 %v1630
      %v1727 = vunpack.c.l.b16 %v1631
      %v1728 = vunpack.c.l.b16 %v1632
      %v1729 = vunpack.c.l.b16 %v1633
      %v1730 = vunpack.c.l.b16 %v1634
      %v1731 = vunpack.c.l.b16 %v1635
      %v1732 = vunpack.c.l.b16 %v1636
      %v1733 = vunpack.c.l.b16 %v1637
      %v1734 = vpack.c.b16 %v1719, %v1718
      %v1735 = vpack.c.b16 %v1721, %v1720
      %v1736 = vpack.c.b16 %v1723, %v1722
      %v1737 = vpack.c.b16 %v1725, %v1724
      %v1738 = vpack.c.b16 %v1727, %v1726
      %v1739 = vpack.c.b16 %v1729, %v1728
      %v1740 = vpack.c.b16 %v1731, %v1730
      %v1741 = vpack.c.b16 %v1733, %v1732
      %1750 = vmatprep.subr.bf16.mxu0 0
      %1751 = vmatpush1.bf16.msra.mxu0 %v1741
      %1752 = vmatprep.subr.bf16.mxu0 0
      %1753 = vmatpush1.bf16.msra.mxu0 %v1740
      %1754 = vmatprep.subr.bf16.mxu0 0
      %1755 = vmatpush1.bf16.msra.mxu0 %v1739
      %1756 = vmatprep.subr.bf16.mxu0 0
      %1757 = vmatpush1.bf16.msra.mxu0 %v1738
      %1758 = vmatprep.subr.bf16.mxu0 0
      %1759 = vmatpush1.bf16.msra.mxu0 %v1737
      %1760 = vmatprep.subr.bf16.mxu0 0
      %1761 = vmatpush1.bf16.msra.mxu0 %v1736
      %1762 = vmatprep.subr.bf16.mxu0 0
      %1763 = vmatpush1.bf16.msra.mxu0 %v1735
      %1764 = vmatprep.subr.bf16.mxu0 0
      %1765 = vmatpush1.bf16.msra.mxu0 %v1734
      %1766 = vmatprep.subr.bf16.mxu0 0
      %1767 = vmatpush2.bf16.msra.mxu0 0
      %1768 = vmatprep.subr.bf16.mxu0 0
      %1769 = vmatpush2.bf16.msra.mxu0 0
      %1770 = vmatprep.subr.bf16.mxu0 0
      %1771 = vmatpush2.bf16.msra.mxu0 0
      %1772 = vmatprep.subr.bf16.mxu0 0
      %1773 = vmatpush2.bf16.msra.mxu0 0
      %1774 = vmatprep.subr.bf16.mxu0 0
      %1775 = vmatpush2.bf16.msra.mxu0 0
      %1776 = vmatprep.subr.bf16.mxu0 0
      %1777 = vmatpush2.bf16.msra.mxu0 0
      %1778 = vmatprep.subr.bf16.mxu0 0
      %1779 = vmatpush2.bf16.msra.mxu0 0
      %1780 = vmatprep.subr.bf16.mxu0 0
      %1781 = vmatpush2.bf16.msra.mxu0 0
      %1782 = vmatprep.mubr.bf16.mxu0 0
      %1783 = vmatmul.mubr.bf16.gmra.mxu0 %v1670
      %v1784 = vpop.f32.mrf.mxu0
      %v1785 = vadd.f32 0.0, %v1784
      %v1786 = vpop.f32.mrf.mxu0
      %v1787 = vpop.f32.mrf.mxu0
      %v1788 = vadd.f32 0.0, %v1787
      %v1789 = vpop.f32.mrf.mxu0
      %1790 = vmatprep.mubr.bf16.mxu0 0
      %1791 = vmatmul.mubr.bf16.gmra.mxu0 %v1671
      %v1792 = vpop.f32.mrf.mxu0
      %v1793 = vadd.f32 0.0, %v1792
      %v1794 = vpop.f32.mrf.mxu0
      %v1795 = vpop.f32.mrf.mxu0
      %v1796 = vadd.f32 0.0, %v1795
      %v1797 = vpop.f32.mrf.mxu0
      %1798 = vmatprep.mubr.bf16.mxu0 0
      %1799 = vmatmul.mubr.bf16.gmra.mxu0 %v1672
      %v1800 = vpop.f32.mrf.mxu0
      %v1801 = vadd.f32 0.0, %v1800
      %v1802 = vpop.f32.mrf.mxu0
      %v1803 = vpop.f32.mrf.mxu0
      %v1804 = vadd.f32 0.0, %v1803
      %v1805 = vpop.f32.mrf.mxu0
      %1806 = vmatprep.mubr.bf16.mxu0 0
      %1807 = vmatmul.mubr.bf16.gmra.mxu0 %v1673
      %v1808 = vpop.f32.mrf.mxu0
      %v1809 = vadd.f32 0.0, %v1808
      %v1810 = vpop.f32.mrf.mxu0
      %v1811 = vpop.f32.mrf.mxu0
      %v1812 = vadd.f32 0.0, %v1811
      %v1813 = vpop.f32.mrf.mxu0
      %1814 = vmatprep.mubr.bf16.mxu0 0
      %1815 = vmatmul.mubr.bf16.gmra.mxu0 %v1674
      %v1816 = vpop.f32.mrf.mxu0
      %v1817 = vadd.f32 0.0, %v1816
      %v1818 = vpop.f32.mrf.mxu0
      %v1819 = vpop.f32.mrf.mxu0
      %v1820 = vadd.f32 0.0, %v1819
      %v1821 = vpop.f32.mrf.mxu0
      %1822 = vmatprep.mubr.bf16.mxu0 0
      %1823 = vmatmul.mubr.bf16.gmra.mxu0 %v1675
      %v1824 = vpop.f32.mrf.mxu0
      %v1825 = vadd.f32 0.0, %v1824
      %v1826 = vpop.f32.mrf.mxu0
      %v1827 = vpop.f32.mrf.mxu0
      %v1828 = vadd.f32 0.0, %v1827
      %v1829 = vpop.f32.mrf.mxu0
      %1830 = vmatprep.mubr.bf16.mxu0 0
      %1831 = vmatmul.mubr.bf16.gmra.mxu0 %v1676
      %v1832 = vpop.f32.mrf.mxu0
      %v1833 = vadd.f32 0.0, %v1832
      %v1834 = vpop.f32.mrf.mxu0
      %v1835 = vpop.f32.mrf.mxu0
      %v1836 = vadd.f32 0.0, %v1835
      %v1837 = vpop.f32.mrf.mxu0
      %1838 = vmatprep.mubr.bf16.mxu0 0
      %1839 = vmatmul.mubr.bf16.gmra.mxu0 %v1677
      %v1840 = vpop.f32.mrf.mxu0
      %v1841 = vadd.f32 0.0, %v1840
      %v1842 = vpop.f32.mrf.mxu0
      %v1843 = vpop.f32.mrf.mxu0
      %v1844 = vadd.f32 0.0, %v1843
      %v1845 = vpop.f32.mrf.mxu0
      %1846 = vmatprep.mubr.bf16.mxu0 0
      %1847 = vmatmul.mubr.bf16.gmra.mxu0 %v1678
      %v1848 = vpop.f32.mrf.mxu0
      %v1849 = vadd.f32 0.0, %v1848
      %v1850 = vpop.f32.mrf.mxu0
      %v1851 = vpop.f32.mrf.mxu0
      %v1852 = vadd.f32 0.0, %v1851
      %v1853 = vpop.f32.mrf.mxu0
      %1854 = vmatprep.mubr.bf16.mxu0 0
      %1855 = vmatmul.mubr.bf16.gmra.mxu0 %v1679
      %v1856 = vpop.f32.mrf.mxu0
      %v1857 = vadd.f32 0.0, %v1856
      %v1858 = vpop.f32.mrf.mxu0
      %v1859 = vpop.f32.mrf.mxu0
      %v1860 = vadd.f32 0.0, %v1859
      %v1861 = vpop.f32.mrf.mxu0
      %1862 = vmatprep.mubr.bf16.mxu0 0
      %1863 = vmatmul.mubr.bf16.gmra.mxu0 %v1680
      %v1864 = vpop.f32.mrf.mxu0
      %v1865 = vadd.f32 0.0, %v1864
      %v1866 = vpop.f32.mrf.mxu0
      %v1867 = vpop.f32.mrf.mxu0
      %v1868 = vadd.f32 0.0, %v1867
      %v1869 = vpop.f32.mrf.mxu0
      %1870 = vmatprep.mubr.bf16.mxu0 0
      %1871 = vmatmul.mubr.bf16.gmra.mxu0 %v1681
      %v1872 = vpop.f32.mrf.mxu0
      %v1873 = vadd.f32 0.0, %v1872
      %v1874 = vpop.f32.mrf.mxu0
      %v1875 = vpop.f32.mrf.mxu0
      %v1876 = vadd.f32 0.0, %v1875
      %v1877 = vpop.f32.mrf.mxu0
      %1878 = vmatprep.mubr.bf16.mxu0 0
      %1879 = vmatmul.mubr.bf16.gmra.mxu0 %v1682
      %v1880 = vpop.f32.mrf.mxu0
      %v1881 = vadd.f32 0.0, %v1880
      %v1882 = vpop.f32.mrf.mxu0
      %v1883 = vpop.f32.mrf.mxu0
      %v1884 = vadd.f32 0.0, %v1883
      %v1885 = vpop.f32.mrf.mxu0
      %1886 = vmatprep.mubr.bf16.mxu0 0
      %1887 = vmatmul.mubr.bf16.gmra.mxu0 %v1683
      %v1888 = vpop.f32.mrf.mxu0
      %v1889 = vadd.f32 0.0, %v1888
      %v1890 = vpop.f32.mrf.mxu0
      %v1891 = vpop.f32.mrf.mxu0
      %v1892 = vadd.f32 0.0, %v1891
      %v1893 = vpop.f32.mrf.mxu0
      %1894 = vmatprep.mubr.bf16.mxu0 0
      %1895 = vmatmul.mubr.bf16.gmra.mxu0 %v1684
      %v1896 = vpop.f32.mrf.mxu0
      %v1897 = vadd.f32 0.0, %v1896
      %v1898 = vpop.f32.mrf.mxu0
      %v1899 = vpop.f32.mrf.mxu0
      %v1900 = vadd.f32 0.0, %v1899
      %v1901 = vpop.f32.mrf.mxu0
      %1902 = vmatprep.mubr.bf16.mxu0 0
      %1903 = vmatmul.mubr.bf16.gmra.mxu0 %v1685
      %v1904 = vpop.f32.mrf.mxu0
      %v1905 = vadd.f32 0.0, %v1904
      %v1906 = vpop.f32.mrf.mxu0
      %v1907 = vpop.f32.mrf.mxu0
      %v1908 = vadd.f32 0.0, %v1907
      %v1909 = vpop.f32.mrf.mxu0
      %1910 = vdwg.mxu0
      %v1911 = vadd.f32 %v1154, %v1785
      %v1912 = vadd.f32 %v1155, %v1788
      %v1913 = vadd.f32 %v1156, %v1793
      %v1914 = vadd.f32 %v1157, %v1796
      %v1915 = vadd.f32 %v1158, %v1801
      %v1916 = vadd.f32 %v1159, %v1804
      %v1917 = vadd.f32 %v1160, %v1809
      %v1918 = vadd.f32 %v1161, %v1812
      %v1919 = vadd.f32 %v1162, %v1817
      %v1920 = vadd.f32 %v1163, %v1820
      %v1921 = vadd.f32 %v1164, %v1825
      %v1922 = vadd.f32 %v1165, %v1828
      %v1923 = vadd.f32 %v1166, %v1833
      %v1924 = vadd.f32 %v1167, %v1836
      %v1925 = vadd.f32 %v1168, %v1841
      %v1926 = vadd.f32 %v1169, %v1844
      %v1927 = vadd.f32 %v1170, %v1849
      %v1928 = vadd.f32 %v1171, %v1852
      %v1929 = vadd.f32 %v1172, %v1857
      %v1930 = vadd.f32 %v1173, %v1860
      %v1931 = vadd.f32 %v1174, %v1865
      %v1932 = vadd.f32 %v1175, %v1868
      %v1933 = vadd.f32 %v1176, %v1873
      %v1934 = vadd.f32 %v1177, %v1876
      %v1935 = vadd.f32 %v1178, %v1881
      %v1936 = vadd.f32 %v1179, %v1884
      %v1937 = vadd.f32 %v1180, %v1889
      %v1938 = vadd.f32 %v1181, %v1892
      %v1939 = vadd.f32 %v1182, %v1897
      %v1940 = vadd.f32 %v1183, %v1900
      %v1941 = vadd.f32 %v1184, %v1905
      %v1942 = vadd.f32 %v1185, %v1908
      %s1943 = scalar_lea.vmem %s2, 256
      %v1944 = vld [vmem:[%s1943] sm:$0xf]
      %v1945 = vld [vmem:[%s1943 + $0x4] sm:$0xf]
      %v1946 = vld [vmem:[%s1943 + $0x8] sm:$0xf]
      %v1947 = vld [vmem:[%s1943 + $0xc] sm:$0xf]
      %v1948 = vld [vmem:[%s1943 + $0x10] sm:$0xf]
      %v1949 = vld [vmem:[%s1943 + $0x14] sm:$0xf]
      %v1950 = vld [vmem:[%s1943 + $0x18] sm:$0xf]
      %v1951 = vld [vmem:[%s1943 + $0x1c] sm:$0xf]
      %v1952 = vld [vmem:[%s1943 + $0x20] sm:$0xf]
      %v1953 = vld [vmem:[%s1943 + $0x24] sm:$0xf]
      %v1954 = vld [vmem:[%s1943 + $0x28] sm:$0xf]
      %v1955 = vld [vmem:[%s1943 + $0x2c] sm:$0xf]
      %v1956 = vld [vmem:[%s1943 + $0x30] sm:$0xf]
      %v1957 = vld [vmem:[%s1943 + $0x34] sm:$0xf]
      %v1958 = vld [vmem:[%s1943 + $0x38] sm:$0xf]
      %v1959 = vld [vmem:[%s1943 + $0x3c] sm:$0xf]
      %v1960 = vunpack.c.l.b16 %v1586
      %v1961 = vunpack.c.l.b16 %v1596
      %v1962 = vpack.c.b16 %v1961, %v1960
      %v1980 = vunpack.c.l.b16 %v1944
      %v1981 = vunpack.c.l.b16 %v1945
      %v1982 = vunpack.c.l.b16 %v1946
      %v1983 = vunpack.c.l.b16 %v1947
      %v1984 = vunpack.c.l.b16 %v1948
      %v1985 = vunpack.c.l.b16 %v1949
      %v1986 = vunpack.c.l.b16 %v1950
      %v1987 = vunpack.c.l.b16 %v1951
      %v1988 = vunpack.c.l.b16 %v1952
      %v1989 = vunpack.c.l.b16 %v1953
      %v1990 = vunpack.c.l.b16 %v1954
      %v1991 = vunpack.c.l.b16 %v1955
      %v1992 = vunpack.c.l.b16 %v1956
      %v1993 = vunpack.c.l.b16 %v1957
      %v1994 = vunpack.c.l.b16 %v1958
      %v1995 = vunpack.c.l.b16 %v1959
      %v1996 = vpack.c.b16 %v1981, %v1980
      %v1997 = vpack.c.b16 %v1983, %v1982
      %v1998 = vpack.c.b16 %v1985, %v1984
      %v1999 = vpack.c.b16 %v1987, %v1986
      %v2000 = vpack.c.b16 %v1989, %v1988
      %v2001 = vpack.c.b16 %v1991, %v1990
      %v2002 = vpack.c.b16 %v1993, %v1992
      %v2003 = vpack.c.b16 %v1995, %v1994
      %2012 = vmatprep.subr.bf16.mxu0 0
      %2013 = vmatpush1.bf16.msra.mxu0 %v2003
      %2014 = vmatprep.subr.bf16.mxu0 0
      %2015 = vmatpush1.bf16.msra.mxu0 %v2002
      %2016 = vmatprep.subr.bf16.mxu0 0
      %2017 = vmatpush1.bf16.msra.mxu0 %v2001
      %2018 = vmatprep.subr.bf16.mxu0 0
      %2019 = vmatpush1.bf16.msra.mxu0 %v2000
      %2020 = vmatprep.subr.bf16.mxu0 0
      %2021 = vmatpush1.bf16.msra.mxu0 %v1999
      %2022 = vmatprep.subr.bf16.mxu0 0
      %2023 = vmatpush1.bf16.msra.mxu0 %v1998
      %2024 = vmatprep.subr.bf16.mxu0 0
      %2025 = vmatpush1.bf16.msra.mxu0 %v1997
      %2026 = vmatprep.subr.bf16.mxu0 0
      %2027 = vmatpush1.bf16.msra.mxu0 %v1996
      %2028 = vmatprep.subr.bf16.mxu0 0
      %2029 = vmatpush2.bf16.msra.mxu0 0
      %2030 = vmatprep.subr.bf16.mxu0 0
      %2031 = vmatpush2.bf16.msra.mxu0 0
      %2032 = vmatprep.subr.bf16.mxu0 0
      %2033 = vmatpush2.bf16.msra.mxu0 0
      %2034 = vmatprep.subr.bf16.mxu0 0
      %2035 = vmatpush2.bf16.msra.mxu0 0
      %2036 = vmatprep.subr.bf16.mxu0 0
      %2037 = vmatpush2.bf16.msra.mxu0 0
      %2038 = vmatprep.subr.bf16.mxu0 0
      %2039 = vmatpush2.bf16.msra.mxu0 0
      %2040 = vmatprep.subr.bf16.mxu0 0
      %2041 = vmatpush2.bf16.msra.mxu0 0
      %2042 = vmatprep.subr.bf16.mxu0 0
      %2043 = vmatpush2.bf16.msra.mxu0 0
      %2044 = vmatprep.mubr.bf16.mxu0 0
      %2045 = vmatmul.mubr.bf16.gmra.mxu0 %v1671
      %v2046 = vpop.f32.mrf.mxu0
      %v2047 = vadd.f32 0.0, %v2046
      %v2048 = vpop.f32.mrf.mxu0
      %v2049 = vpop.f32.mrf.mxu0
      %v2050 = vadd.f32 0.0, %v2049
      %v2051 = vpop.f32.mrf.mxu0
      %2052 = vmatprep.mubr.bf16.mxu0 0
      %2053 = vmatmul.mubr.bf16.gmra.mxu0 %v1672
      %v2054 = vpop.f32.mrf.mxu0
      %v2055 = vadd.f32 0.0, %v2054
      %v2056 = vpop.f32.mrf.mxu0
      %v2057 = vpop.f32.mrf.mxu0
      %v2058 = vadd.f32 0.0, %v2057
      %v2059 = vpop.f32.mrf.mxu0
      %2060 = vmatprep.mubr.bf16.mxu0 0
      %2061 = vmatmul.mubr.bf16.gmra.mxu0 %v1673
      %v2062 = vpop.f32.mrf.mxu0
      %v2063 = vadd.f32 0.0, %v2062
      %v2064 = vpop.f32.mrf.mxu0
      %v2065 = vpop.f32.mrf.mxu0
      %v2066 = vadd.f32 0.0, %v2065
      %v2067 = vpop.f32.mrf.mxu0
      %2068 = vmatprep.mubr.bf16.mxu0 0
      %2069 = vmatmul.mubr.bf16.gmra.mxu0 %v1674
      %v2070 = vpop.f32.mrf.mxu0
      %v2071 = vadd.f32 0.0, %v2070
      %v2072 = vpop.f32.mrf.mxu0
      %v2073 = vpop.f32.mrf.mxu0
      %v2074 = vadd.f32 0.0, %v2073
      %v2075 = vpop.f32.mrf.mxu0
      %2076 = vmatprep.mubr.bf16.mxu0 0
      %2077 = vmatmul.mubr.bf16.gmra.mxu0 %v1675
      %v2078 = vpop.f32.mrf.mxu0
      %v2079 = vadd.f32 0.0, %v2078
      %v2080 = vpop.f32.mrf.mxu0
      %v2081 = vpop.f32.mrf.mxu0
      %v2082 = vadd.f32 0.0, %v2081
      %v2083 = vpop.f32.mrf.mxu0
      %2084 = vmatprep.mubr.bf16.mxu0 0
      %2085 = vmatmul.mubr.bf16.gmra.mxu0 %v1676
      %v2086 = vpop.f32.mrf.mxu0
      %v2087 = vadd.f32 0.0, %v2086
      %v2088 = vpop.f32.mrf.mxu0
      %v2089 = vpop.f32.mrf.mxu0
      %v2090 = vadd.f32 0.0, %v2089
      %v2091 = vpop.f32.mrf.mxu0
      %2092 = vmatprep.mubr.bf16.mxu0 0
      %2093 = vmatmul.mubr.bf16.gmra.mxu0 %v1677
      %v2094 = vpop.f32.mrf.mxu0
      %v2095 = vadd.f32 0.0, %v2094
      %v2096 = vpop.f32.mrf.mxu0
      %v2097 = vpop.f32.mrf.mxu0
      %v2098 = vadd.f32 0.0, %v2097
      %v2099 = vpop.f32.mrf.mxu0
      %2100 = vmatprep.mubr.bf16.mxu0 0
      %2101 = vmatmul.mubr.bf16.gmra.mxu0 %v1678
      %v2102 = vpop.f32.mrf.mxu0
      %v2103 = vadd.f32 0.0, %v2102
      %v2104 = vpop.f32.mrf.mxu0
      %v2105 = vpop.f32.mrf.mxu0
      %v2106 = vadd.f32 0.0, %v2105
      %v2107 = vpop.f32.mrf.mxu0
      %2108 = vmatprep.mubr.bf16.mxu0 0
      %2109 = vmatmul.mubr.bf16.gmra.mxu0 %v1679
      %v2110 = vpop.f32.mrf.mxu0
      %v2111 = vadd.f32 0.0, %v2110
      %v2112 = vpop.f32.mrf.mxu0
      %v2113 = vpop.f32.mrf.mxu0
      %v2114 = vadd.f32 0.0, %v2113
      %v2115 = vpop.f32.mrf.mxu0
      %2116 = vmatprep.mubr.bf16.mxu0 0
      %2117 = vmatmul.mubr.bf16.gmra.mxu0 %v1680
      %v2118 = vpop.f32.mrf.mxu0
      %v2119 = vadd.f32 0.0, %v2118
      %v2120 = vpop.f32.mrf.mxu0
      %v2121 = vpop.f32.mrf.mxu0
      %v2122 = vadd.f32 0.0, %v2121
      %v2123 = vpop.f32.mrf.mxu0
      %2124 = vmatprep.mubr.bf16.mxu0 0
      %2125 = vmatmul.mubr.bf16.gmra.mxu0 %v1681
      %v2126 = vpop.f32.mrf.mxu0
      %v2127 = vadd.f32 0.0, %v2126
      %v2128 = vpop.f32.mrf.mxu0
      %v2129 = vpop.f32.mrf.mxu0
      %v2130 = vadd.f32 0.0, %v2129
      %v2131 = vpop.f32.mrf.mxu0
      %2132 = vmatprep.mubr.bf16.mxu0 0
      %2133 = vmatmul.mubr.bf16.gmra.mxu0 %v1682
      %v2134 = vpop.f32.mrf.mxu0
      %v2135 = vadd.f32 0.0, %v2134
      %v2136 = vpop.f32.mrf.mxu0
      %v2137 = vpop.f32.mrf.mxu0
      %v2138 = vadd.f32 0.0, %v2137
      %v2139 = vpop.f32.mrf.mxu0
      %2140 = vmatprep.mubr.bf16.mxu0 0
      %2141 = vmatmul.mubr.bf16.gmra.mxu0 %v1683
      %v2142 = vpop.f32.mrf.mxu0
      %v2143 = vadd.f32 0.0, %v2142
      %v2144 = vpop.f32.mrf.mxu0
      %v2145 = vpop.f32.mrf.mxu0
      %v2146 = vadd.f32 0.0, %v2145
      %v2147 = vpop.f32.mrf.mxu0
      %2148 = vmatprep.mubr.bf16.mxu0 0
      %2149 = vmatmul.mubr.bf16.gmra.mxu0 %v1684
      %v2150 = vpop.f32.mrf.mxu0
      %v2151 = vadd.f32 0.0, %v2150
      %v2152 = vpop.f32.mrf.mxu0
      %v2153 = vpop.f32.mrf.mxu0
      %v2154 = vadd.f32 0.0, %v2153
      %v2155 = vpop.f32.mrf.mxu0
      %2156 = vmatprep.mubr.bf16.mxu0 0
      %2157 = vmatmul.mubr.bf16.gmra.mxu0 %v1685
      %v2158 = vpop.f32.mrf.mxu0
      %v2159 = vadd.f32 0.0, %v2158
      %v2160 = vpop.f32.mrf.mxu0
      %v2161 = vpop.f32.mrf.mxu0
      %v2162 = vadd.f32 0.0, %v2161
      %v2163 = vpop.f32.mrf.mxu0
      %2164 = vmatprep.mubr.bf16.mxu0 0
      %2165 = vmatmul.mubr.bf16.gmra.mxu0 %v1962
      %v2166 = vpop.f32.mrf.mxu0
      %v2167 = vadd.f32 0.0, %v2166
      %v2168 = vpop.f32.mrf.mxu0
      %v2169 = vpop.f32.mrf.mxu0
      %v2170 = vadd.f32 0.0, %v2169
      %v2171 = vpop.f32.mrf.mxu0
      %2172 = vdwg.mxu0
      %v2173 = vadd.f32 %v1911, %v2047
      %v2174 = vadd.f32 %v1912, %v2050
      %v2175 = vadd.f32 %v1913, %v2055
      %v2176 = vadd.f32 %v1914, %v2058
      %v2177 = vadd.f32 %v1915, %v2063
      %v2178 = vadd.f32 %v1916, %v2066
      %v2179 = vadd.f32 %v1917, %v2071
      %v2180 = vadd.f32 %v1918, %v2074
      %v2181 = vadd.f32 %v1919, %v2079
      %v2182 = vadd.f32 %v1920, %v2082
      %v2183 = vadd.f32 %v1921, %v2087
      %v2184 = vadd.f32 %v1922, %v2090
      %v2185 = vadd.f32 %v1923, %v2095
      %v2186 = vadd.f32 %v1924, %v2098
      %v2187 = vadd.f32 %v1925, %v2103
      %v2188 = vadd.f32 %v1926, %v2106
      %v2189 = vadd.f32 %v1927, %v2111
      %v2190 = vadd.f32 %v1928, %v2114
      %v2191 = vadd.f32 %v1929, %v2119
      %v2192 = vadd.f32 %v1930, %v2122
      %v2193 = vadd.f32 %v1931, %v2127
      %v2194 = vadd.f32 %v1932, %v2130
      %v2195 = vadd.f32 %v1933, %v2135
      %v2196 = vadd.f32 %v1934, %v2138
      %v2197 = vadd.f32 %v1935, %v2143
      %v2198 = vadd.f32 %v1936, %v2146
      %v2199 = vadd.f32 %v1937, %v2151
      %v2200 = vadd.f32 %v1938, %v2154
      %v2201 = vadd.f32 %v1939, %v2159
      %v2202 = vadd.f32 %v1940, %v2162
      %v2203 = vadd.f32 %v1941, %v2167
      %v2204 = vadd.f32 %v1942, %v2170
      %s2205 = scalar_lea.vmem %s2, 448
      %v2206 = vld [vmem:[%s2205] sm:$0xf]
      %v2207 = vld [vmem:[%s2205 + $0x4] sm:$0xf]
      %v2208 = vld [vmem:[%s2205 + $0x8] sm:$0xf]
      %v2209 = vld [vmem:[%s2205 + $0xc] sm:$0xf]
      %v2210 = vld [vmem:[%s2205 + $0x10] sm:$0xf]
      %v2211 = vld [vmem:[%s2205 + $0x14] sm:$0xf]
      %v2212 = vld [vmem:[%s2205 + $0x18] sm:$0xf]
      %v2213 = vld [vmem:[%s2205 + $0x1c] sm:$0xf]
      %v2214 = vld [vmem:[%s2205 + $0x20] sm:$0xf]
      %v2215 = vld [vmem:[%s2205 + $0x24] sm:$0xf]
      %v2216 = vld [vmem:[%s2205 + $0x28] sm:$0xf]
      %v2217 = vld [vmem:[%s2205 + $0x2c] sm:$0xf]
      %v2218 = vld [vmem:[%s2205 + $0x30] sm:$0xf]
      %v2219 = vld [vmem:[%s2205 + $0x34] sm:$0xf]
      %v2220 = vld [vmem:[%s2205 + $0x38] sm:$0xf]
      %v2221 = vld [vmem:[%s2205 + $0x3c] sm:$0xf]
      %v2222 = vunpack.c.l.b16 %v1610
      %v2223 = vunpack.c.l.b16 %v1620
      %v2224 = vpack.c.b16 %v2223, %v2222
      %v2242 = vunpack.c.l.b16 %v2206
      %v2243 = vunpack.c.l.b16 %v2207
      %v2244 = vunpack.c.l.b16 %v2208
      %v2245 = vunpack.c.l.b16 %v2209
      %v2246 = vunpack.c.l.b16 %v2210
      %v2247 = vunpack.c.l.b16 %v2211
      %v2248 = vunpack.c.l.b16 %v2212
      %v2249 = vunpack.c.l.b16 %v2213
      %v2250 = vunpack.c.l.b16 %v2214
      %v2251 = vunpack.c.l.b16 %v2215
      %v2252 = vunpack.c.l.b16 %v2216
      %v2253 = vunpack.c.l.b16 %v2217
      %v2254 = vunpack.c.l.b16 %v2218
      %v2255 = vunpack.c.l.b16 %v2219
      %v2256 = vunpack.c.l.b16 %v2220
      %v2257 = vunpack.c.l.b16 %v2221
      %v2258 = vpack.c.b16 %v2243, %v2242
      %v2259 = vpack.c.b16 %v2245, %v2244
      %v2260 = vpack.c.b16 %v2247, %v2246
      %v2261 = vpack.c.b16 %v2249, %v2248
      %v2262 = vpack.c.b16 %v2251, %v2250
      %v2263 = vpack.c.b16 %v2253, %v2252
      %v2264 = vpack.c.b16 %v2255, %v2254
      %v2265 = vpack.c.b16 %v2257, %v2256
      %2274 = vmatprep.subr.bf16.mxu0 0
      %2275 = vmatpush1.bf16.msra.mxu0 %v2265
      %2276 = vmatprep.subr.bf16.mxu0 0
      %2277 = vmatpush1.bf16.msra.mxu0 %v2264
      %2278 = vmatprep.subr.bf16.mxu0 0
      %2279 = vmatpush1.bf16.msra.mxu0 %v2263
      %2280 = vmatprep.subr.bf16.mxu0 0
      %2281 = vmatpush1.bf16.msra.mxu0 %v2262
      %2282 = vmatprep.subr.bf16.mxu0 0
      %2283 = vmatpush1.bf16.msra.mxu0 %v2261
      %2284 = vmatprep.subr.bf16.mxu0 0
      %2285 = vmatpush1.bf16.msra.mxu0 %v2260
      %2286 = vmatprep.subr.bf16.mxu0 0
      %2287 = vmatpush1.bf16.msra.mxu0 %v2259
      %2288 = vmatprep.subr.bf16.mxu0 0
      %2289 = vmatpush1.bf16.msra.mxu0 %v2258
      %2290 = vmatprep.subr.bf16.mxu0 0
      %2291 = vmatpush2.bf16.msra.mxu0 0
      %2292 = vmatprep.subr.bf16.mxu0 0
      %2293 = vmatpush2.bf16.msra.mxu0 0
      %2294 = vmatprep.subr.bf16.mxu0 0
      %2295 = vmatpush2.bf16.msra.mxu0 0
      %2296 = vmatprep.subr.bf16.mxu0 0
      %2297 = vmatpush2.bf16.msra.mxu0 0
      %2298 = vmatprep.subr.bf16.mxu0 0
      %2299 = vmatpush2.bf16.msra.mxu0 0
      %2300 = vmatprep.subr.bf16.mxu0 0
      %2301 = vmatpush2.bf16.msra.mxu0 0
      %2302 = vmatprep.subr.bf16.mxu0 0
      %2303 = vmatpush2.bf16.msra.mxu0 0
      %2304 = vmatprep.subr.bf16.mxu0 0
      %2305 = vmatpush2.bf16.msra.mxu0 0
      %2306 = vmatprep.mubr.bf16.mxu0 0
      %2307 = vmatmul.mubr.bf16.gmra.mxu0 %v1672
      %v2308 = vpop.f32.mrf.mxu0
      %v2309 = vadd.f32 0.0, %v2308
      %v2310 = vpop.f32.mrf.mxu0
      %v2311 = vpop.f32.mrf.mxu0
      %v2312 = vadd.f32 0.0, %v2311
      %v2313 = vpop.f32.mrf.mxu0
      %2314 = vmatprep.mubr.bf16.mxu0 0
      %2315 = vmatmul.mubr.bf16.gmra.mxu0 %v1673
      %v2316 = vpop.f32.mrf.mxu0
      %v2317 = vadd.f32 0.0, %v2316
      %v2318 = vpop.f32.mrf.mxu0
      %v2319 = vpop.f32.mrf.mxu0
      %v2320 = vadd.f32 0.0, %v2319
      %v2321 = vpop.f32.mrf.mxu0
      %2322 = vmatprep.mubr.bf16.mxu0 0
      %2323 = vmatmul.mubr.bf16.gmra.mxu0 %v1674
      %v2324 = vpop.f32.mrf.mxu0
      %v2325 = vadd.f32 0.0, %v2324
      %v2326 = vpop.f32.mrf.mxu0
      %v2327 = vpop.f32.mrf.mxu0
      %v2328 = vadd.f32 0.0, %v2327
      %v2329 = vpop.f32.mrf.mxu0
      %2330 = vmatprep.mubr.bf16.mxu0 0
      %2331 = vmatmul.mubr.bf16.gmra.mxu0 %v1675
      %v2332 = vpop.f32.mrf.mxu0
      %v2333 = vadd.f32 0.0, %v2332
      %v2334 = vpop.f32.mrf.mxu0
      %v2335 = vpop.f32.mrf.mxu0
      %v2336 = vadd.f32 0.0, %v2335
      %v2337 = vpop.f32.mrf.mxu0
      %2338 = vmatprep.mubr.bf16.mxu0 0
      %2339 = vmatmul.mubr.bf16.gmra.mxu0 %v1676
      %v2340 = vpop.f32.mrf.mxu0
      %v2341 = vadd.f32 0.0, %v2340
      %v2342 = vpop.f32.mrf.mxu0
      %v2343 = vpop.f32.mrf.mxu0
      %v2344 = vadd.f32 0.0, %v2343
      %v2345 = vpop.f32.mrf.mxu0
      %2346 = vmatprep.mubr.bf16.mxu0 0
      %2347 = vmatmul.mubr.bf16.gmra.mxu0 %v1677
      %v2348 = vpop.f32.mrf.mxu0
      %v2349 = vadd.f32 0.0, %v2348
      %v2350 = vpop.f32.mrf.mxu0
      %v2351 = vpop.f32.mrf.mxu0
      %v2352 = vadd.f32 0.0, %v2351
      %v2353 = vpop.f32.mrf.mxu0
      %2354 = vmatprep.mubr.bf16.mxu0 0
      %2355 = vmatmul.mubr.bf16.gmra.mxu0 %v1678
      %v2356 = vpop.f32.mrf.mxu0
      %v2357 = vadd.f32 0.0, %v2356
      %v2358 = vpop.f32.mrf.mxu0
      %v2359 = vpop.f32.mrf.mxu0
      %v2360 = vadd.f32 0.0, %v2359
      %v2361 = vpop.f32.mrf.mxu0
      %2362 = vmatprep.mubr.bf16.mxu0 0
      %2363 = vmatmul.mubr.bf16.gmra.mxu0 %v1679
      %v2364 = vpop.f32.mrf.mxu0
      %v2365 = vadd.f32 0.0, %v2364
      %v2366 = vpop.f32.mrf.mxu0
      %v2367 = vpop.f32.mrf.mxu0
      %v2368 = vadd.f32 0.0, %v2367
      %v2369 = vpop.f32.mrf.mxu0
      %2370 = vmatprep.mubr.bf16.mxu0 0
      %2371 = vmatmul.mubr.bf16.gmra.mxu0 %v1680
      %v2372 = vpop.f32.mrf.mxu0
      %v2373 = vadd.f32 0.0, %v2372
      %v2374 = vpop.f32.mrf.mxu0
      %v2375 = vpop.f32.mrf.mxu0
      %v2376 = vadd.f32 0.0, %v2375
      %v2377 = vpop.f32.mrf.mxu0
      %2378 = vmatprep.mubr.bf16.mxu0 0
      %2379 = vmatmul.mubr.bf16.gmra.mxu0 %v1681
      %v2380 = vpop.f32.mrf.mxu0
      %v2381 = vadd.f32 0.0, %v2380
      %v2382 = vpop.f32.mrf.mxu0
      %v2383 = vpop.f32.mrf.mxu0
      %v2384 = vadd.f32 0.0, %v2383
      %v2385 = vpop.f32.mrf.mxu0
      %2386 = vmatprep.mubr.bf16.mxu0 0
      %2387 = vmatmul.mubr.bf16.gmra.mxu0 %v1682
      %v2388 = vpop.f32.mrf.mxu0
      %v2389 = vadd.f32 0.0, %v2388
      %v2390 = vpop.f32.mrf.mxu0
      %v2391 = vpop.f32.mrf.mxu0
      %v2392 = vadd.f32 0.0, %v2391
      %v2393 = vpop.f32.mrf.mxu0
      %2394 = vmatprep.mubr.bf16.mxu0 0
      %2395 = vmatmul.mubr.bf16.gmra.mxu0 %v1683
      %v2396 = vpop.f32.mrf.mxu0
      %v2397 = vadd.f32 0.0, %v2396
      %v2398 = vpop.f32.mrf.mxu0
      %v2399 = vpop.f32.mrf.mxu0
      %v2400 = vadd.f32 0.0, %v2399
      %v2401 = vpop.f32.mrf.mxu0
      %2402 = vmatprep.mubr.bf16.mxu0 0
      %2403 = vmatmul.mubr.bf16.gmra.mxu0 %v1684
      %v2404 = vpop.f32.mrf.mxu0
      %v2405 = vadd.f32 0.0, %v2404
      %v2406 = vpop.f32.mrf.mxu0
      %v2407 = vpop.f32.mrf.mxu0
      %v2408 = vadd.f32 0.0, %v2407
      %v2409 = vpop.f32.mrf.mxu0
      %2410 = vmatprep.mubr.bf16.mxu0 0
      %2411 = vmatmul.mubr.bf16.gmra.mxu0 %v1685
      %v2412 = vpop.f32.mrf.mxu0
      %v2413 = vadd.f32 0.0, %v2412
      %v2414 = vpop.f32.mrf.mxu0
      %v2415 = vpop.f32.mrf.mxu0
      %v2416 = vadd.f32 0.0, %v2415
      %v2417 = vpop.f32.mrf.mxu0
      %2418 = vmatprep.mubr.bf16.mxu0 0
      %2419 = vmatmul.mubr.bf16.gmra.mxu0 %v1962
      %v2420 = vpop.f32.mrf.mxu0
      %v2421 = vadd.f32 0.0, %v2420
      %v2422 = vpop.f32.mrf.mxu0
      %v2423 = vpop.f32.mrf.mxu0
      %v2424 = vadd.f32 0.0, %v2423
      %v2425 = vpop.f32.mrf.mxu0
      %2426 = vmatprep.mubr.bf16.mxu0 0
      %2427 = vmatmul.mubr.bf16.gmra.mxu0 %v2224
      %v2428 = vpop.f32.mrf.mxu0
      %v2429 = vadd.f32 0.0, %v2428
      %v2430 = vpop.f32.mrf.mxu0
      %v2431 = vpop.f32.mrf.mxu0
      %v2432 = vadd.f32 0.0, %v2431
      %v2433 = vpop.f32.mrf.mxu0
      %2434 = vdwg.mxu0
      %v2435 = vadd.f32 %v2173, %v2309
      %v2436 = vadd.f32 %v2174, %v2312
      %v2437 = vadd.f32 %v2175, %v2317
      %v2438 = vadd.f32 %v2176, %v2320
      %v2439 = vadd.f32 %v2177, %v2325
      %v2440 = vadd.f32 %v2178, %v2328
      %v2441 = vadd.f32 %v2179, %v2333
      %v2442 = vadd.f32 %v2180, %v2336
      %v2443 = vadd.f32 %v2181, %v2341
      %v2444 = vadd.f32 %v2182, %v2344
      %v2445 = vadd.f32 %v2183, %v2349
      %v2446 = vadd.f32 %v2184, %v2352
      %v2447 = vadd.f32 %v2185, %v2357
      %v2448 = vadd.f32 %v2186, %v2360
      %v2449 = vadd.f32 %v2187, %v2365
      %v2450 = vadd.f32 %v2188, %v2368
      %v2451 = vadd.f32 %v2189, %v2373
      %v2452 = vadd.f32 %v2190, %v2376
      %v2453 = vadd.f32 %v2191, %v2381
      %v2454 = vadd.f32 %v2192, %v2384
      %v2455 = vadd.f32 %v2193, %v2389
      %v2456 = vadd.f32 %v2194, %v2392
      %v2457 = vadd.f32 %v2195, %v2397
      %v2458 = vadd.f32 %v2196, %v2400
      %v2459 = vadd.f32 %v2197, %v2405
      %v2460 = vadd.f32 %v2198, %v2408
      %v2461 = vadd.f32 %v2199, %v2413
      %v2462 = vadd.f32 %v2200, %v2416
      %v2463 = vadd.f32 %v2201, %v2421
      %v2464 = vadd.f32 %v2202, %v2424
      %v2465 = vadd.f32 %v2203, %v2429
      %v2466 = vadd.f32 %v2204, %v2432
      %vm2485 = vcmask 1042432
      %vm2486 = vcmask 1046532
      %vm2487 = vmor %vm2485, %vm2486
      %v2488 = vrot.slane %v315, 5
      %v2489 = vrot.slane %v2488, 4
      %v2490 = vrot.slane %v316, 5
      %v2491 = vsel %vm2487, %v2489, %v2490
      %v2492 = vrot.slane %v2490, 4
      %v2493 = vrot.slane %v317, 5
      %v2494 = vsel %vm2487, %v2492, %v2493
      %v2495 = vrot.slane %v318, 5
      %v2496 = vrot.slane %v2495, 4
      %v2497 = vrot.slane %v319, 5
      %v2498 = vsel %vm2487, %v2496, %v2497
      %v2499 = vrot.slane %v2497, 4
      %v2500 = vrot.slane %v320, 5
      %v2501 = vsel %vm2487, %v2499, %v2500
      %v2502 = vrot.slane %v321, 5
      %v2503 = vrot.slane %v2502, 4
      %v2504 = vrot.slane %v322, 5
      %v2505 = vsel %vm2487, %v2503, %v2504
      %v2506 = vrot.slane %v2504, 4
      %v2507 = vrot.slane %v323, 5
      %v2508 = vsel %vm2487, %v2506, %v2507
      %v2509 = vrot.slane %v324, 5
      %v2510 = vrot.slane %v2509, 4
      %v2511 = vrot.slane %v325, 5
      %v2512 = vsel %vm2487, %v2510, %v2511
      %v2513 = vrot.slane %v2511, 4
      %v2514 = vrot.slane %v326, 5
      %v2515 = vsel %vm2487, %v2513, %v2514
      %v2516 = vrot.slane %v327, 5
      %v2517 = vrot.slane %v2516, 4
      %v2518 = vrot.slane %v328, 5
      %v2519 = vsel %vm2487, %v2517, %v2518
      %v2520 = vrot.slane %v2518, 4
      %v2521 = vrot.slane %v329, 5
      %v2522 = vsel %vm2487, %v2520, %v2521
      %v2523 = vrot.slane %v330, 5
      %v2524 = vrot.slane %v2523, 4
      %v2525 = vrot.slane %v331, 5
      %v2526 = vsel %vm2487, %v2524, %v2525
      %v2527 = vrot.slane %v2525, 4
      %v2528 = vrot.slane %v332, 5
      %v2529 = vsel %vm2487, %v2527, %v2528
      %v2530 = vrot.slane %v333, 5
      %v2531 = vrot.slane %v2530, 4
      %v2532 = vrot.slane %v334, 5
      %v2533 = vsel %vm2487, %v2531, %v2532
      %v2534 = vrot.slane %v2532, 4
      %v2535 = vrot.slane %v335, 5
      %v2536 = vsel %vm2487, %v2534, %v2535
      %v2537 = vrot.slane %v336, 5
      %v2538 = vrot.slane %v2537, 4
      %v2539 = vrot.slane %v337, 5
      %v2540 = vsel %vm2487, %v2538, %v2539
      %v2541 = vrot.slane %v2539, 4
      %v2542 = vrot.slane %v338, 5
      %v2543 = vsel %vm2487, %v2541, %v2542
      %v2544 = vrot.slane %v339, 5
      %v2545 = vrot.slane %v2544, 4
      %v2546 = vrot.slane %v340, 5
      %v2547 = vsel %vm2487, %v2545, %v2546
      %v2548 = vrot.slane %v2546, 4
      %v2549 = vrot.slane %v341, 5
      %v2550 = vsel %vm2487, %v2548, %v2549
      %v2551 = vrot.slane %v342, 5
      %v2552 = vrot.slane %v2551, 4
      %v2553 = vrot.slane %v343, 5
      %v2554 = vsel %vm2487, %v2552, %v2553
      %v2555 = vrot.slane %v2553, 4
      %v2556 = vrot.slane %v344, 5
      %v2557 = vsel %vm2487, %v2555, %v2556
      %v2558 = vrot.slane %v345, 5
      %v2559 = vrot.slane %v2558, 4
      %v2560 = vrot.slane %v346, 5
      %v2561 = vsel %vm2487, %v2559, %v2560
      %v2562 = vrot.slane %v2560, 4
      %v2563 = vrot.slane %v347, 5
      %v2564 = vsel %vm2487, %v2562, %v2563
      %v2565 = vrot.slane %v348, 5
      %v2566 = vrot.slane %v2565, 4
      %v2567 = vrot.slane %v349, 5
      %v2568 = vsel %vm2487, %v2566, %v2567
      %v2569 = vrot.slane %v2567, 4
      %v2570 = vrot.slane %v350, 5
      %v2571 = vsel %vm2487, %v2569, %v2570
      %v2572 = vrot.slane %v351, 5
      %v2573 = vrot.slane %v2572, 4
      %v2574 = vrot.slane %v352, 5
      %v2575 = vsel %vm2487, %v2573, %v2574
      %v2576 = vrot.slane %v2574, 4
      %v2577 = vrot.slane %v353, 5
      %v2578 = vsel %vm2487, %v2576, %v2577
      %v2579 = vrot.slane %v354, 5
      %v2580 = vrot.slane %v2579, 4
      %v2581 = vrot.slane %v355, 5
      %v2582 = vsel %vm2487, %v2580, %v2581
      %v2583 = vrot.slane %v2581, 4
      %v2584 = vrot.slane %v356, 5
      %v2585 = vsel %vm2487, %v2583, %v2584
      %v2586 = vrot.slane %v357, 5
      %v2587 = vrot.slane %v2586, 4
      %v2588 = vrot.slane %v358, 5
      %v2589 = vsel %vm2487, %v2587, %v2588
      %v2590 = vrot.slane %v2588, 4
      %v2591 = vrot.slane %v359, 5
      %v2592 = vsel %vm2487, %v2590, %v2591
      %v2593 = vrot.slane %v360, 5
      %v2594 = vrot.slane %v2593, 4
      %v2595 = vrot.slane %v361, 5
      %v2596 = vsel %vm2487, %v2594, %v2595
      %v2597 = vrot.slane %v2595, 4
      %v2598 = vrot.slane %v362, 5
      %v2599 = vsel %vm2487, %v2597, %v2598
      %v2600 = vrot.slane %v363, 5
      %v2601 = vrot.slane %v2600, 4
      %v2602 = vrot.slane %v364, 5
      %v2603 = vsel %vm2487, %v2601, %v2602
      %v2604 = vrot.slane %v2602, 4
      %v2605 = vrot.slane %v365, 5
      %v2606 = vsel %vm2487, %v2604, %v2605
      %v2607 = vrot.slane %v366, 5
      %v2608 = vrot.slane %v2607, 4
      %v2609 = vrot.slane %v367, 5
      %v2610 = vsel %vm2487, %v2608, %v2609
      %v2611 = vrot.slane %v2609, 4
      %v2612 = vrot.slane %v368, 5
      %v2613 = vsel %vm2487, %v2611, %v2612
      %s2614 = scalar_lea.vmem %s2, 128
      %v2615 = vld [vmem:[%s2614] sm:$0xf]
      %v2616 = vld [vmem:[%s2614 + $0x4] sm:$0xf]
      %v2617 = vld [vmem:[%s2614 + $0x8] sm:$0xf]
      %v2618 = vld [vmem:[%s2614 + $0xc] sm:$0xf]
      %v2619 = vld [vmem:[%s2614 + $0x10] sm:$0xf]
      %v2620 = vld [vmem:[%s2614 + $0x14] sm:$0xf]
      %v2621 = vld [vmem:[%s2614 + $0x18] sm:$0xf]
      %v2622 = vld [vmem:[%s2614 + $0x1c] sm:$0xf]
      %v2623 = vld [vmem:[%s2614 + $0x20] sm:$0xf]
      %v2624 = vld [vmem:[%s2614 + $0x24] sm:$0xf]
      %v2625 = vld [vmem:[%s2614 + $0x28] sm:$0xf]
      %v2626 = vld [vmem:[%s2614 + $0x2c] sm:$0xf]
      %v2627 = vld [vmem:[%s2614 + $0x30] sm:$0xf]
      %v2628 = vld [vmem:[%s2614 + $0x34] sm:$0xf]
      %v2629 = vld [vmem:[%s2614 + $0x38] sm:$0xf]
      %v2630 = vld [vmem:[%s2614 + $0x3c] sm:$0xf]
      %v2631 = vunpack.c.l.b16 %v2491
      %v2632 = vunpack.c.l.b16 %v2494
      %v2633 = vunpack.c.l.b16 %v2498
      %v2634 = vunpack.c.l.b16 %v2501
      %v2635 = vunpack.c.l.b16 %v2505
      %v2636 = vunpack.c.l.b16 %v2508
      %v2637 = vunpack.c.l.b16 %v2512
      %v2638 = vunpack.c.l.b16 %v2515
      %v2639 = vunpack.c.l.b16 %v2519
      %v2640 = vunpack.c.l.b16 %v2522
      %v2641 = vunpack.c.l.b16 %v2526
      %v2642 = vunpack.c.l.b16 %v2529
      %v2643 = vunpack.c.l.b16 %v2533
      %v2644 = vunpack.c.l.b16 %v2536
      %v2645 = vunpack.c.l.b16 %v2540
      %v2646 = vunpack.c.l.b16 %v2543
      %v2647 = vunpack.c.l.b16 %v2547
      %v2648 = vunpack.c.l.b16 %v2550
      %v2649 = vunpack.c.l.b16 %v2554
      %v2650 = vunpack.c.l.b16 %v2557
      %v2651 = vunpack.c.l.b16 %v2561
      %v2652 = vunpack.c.l.b16 %v2564
      %v2653 = vunpack.c.l.b16 %v2568
      %v2654 = vunpack.c.l.b16 %v2571
      %v2655 = vunpack.c.l.b16 %v2575
      %v2656 = vunpack.c.l.b16 %v2578
      %v2657 = vunpack.c.l.b16 %v2582
      %v2658 = vunpack.c.l.b16 %v2585
      %v2659 = vunpack.c.l.b16 %v2589
      %v2660 = vunpack.c.l.b16 %v2592
      %v2661 = vunpack.c.l.b16 %v2596
      %v2662 = vunpack.c.l.b16 %v2599
      %v2663 = vpack.c.b16 %v2632, %v2631
      %v2664 = vpack.c.b16 %v2634, %v2633
      %v2665 = vpack.c.b16 %v2636, %v2635
      %v2666 = vpack.c.b16 %v2638, %v2637
      %v2667 = vpack.c.b16 %v2640, %v2639
      %v2668 = vpack.c.b16 %v2642, %v2641
      %v2669 = vpack.c.b16 %v2644, %v2643
      %v2670 = vpack.c.b16 %v2646, %v2645
      %v2671 = vpack.c.b16 %v2648, %v2647
      %v2672 = vpack.c.b16 %v2650, %v2649
      %v2673 = vpack.c.b16 %v2652, %v2651
      %v2674 = vpack.c.b16 %v2654, %v2653
      %v2675 = vpack.c.b16 %v2656, %v2655
      %v2676 = vpack.c.b16 %v2658, %v2657
      %v2677 = vpack.c.b16 %v2660, %v2659
      %v2678 = vpack.c.b16 %v2662, %v2661
      %v2711 = vunpack.c.l.b16 %v2615
      %v2712 = vunpack.c.l.b16 %v2616
      %v2713 = vunpack.c.l.b16 %v2617
      %v2714 = vunpack.c.l.b16 %v2618
      %v2715 = vunpack.c.l.b16 %v2619
      %v2716 = vunpack.c.l.b16 %v2620
      %v2717 = vunpack.c.l.b16 %v2621
      %v2718 = vunpack.c.l.b16 %v2622
      %v2719 = vunpack.c.l.b16 %v2623
      %v2720 = vunpack.c.l.b16 %v2624
      %v2721 = vunpack.c.l.b16 %v2625
      %v2722 = vunpack.c.l.b16 %v2626
      %v2723 = vunpack.c.l.b16 %v2627
      %v2724 = vunpack.c.l.b16 %v2628
      %v2725 = vunpack.c.l.b16 %v2629
      %v2726 = vunpack.c.l.b16 %v2630
      %v2727 = vpack.c.b16 %v2712, %v2711
      %v2728 = vpack.c.b16 %v2714, %v2713
      %v2729 = vpack.c.b16 %v2716, %v2715
      %v2730 = vpack.c.b16 %v2718, %v2717
      %v2731 = vpack.c.b16 %v2720, %v2719
      %v2732 = vpack.c.b16 %v2722, %v2721
      %v2733 = vpack.c.b16 %v2724, %v2723
      %v2734 = vpack.c.b16 %v2726, %v2725
      %2743 = vmatprep.subr.bf16.mxu0 0
      %2744 = vmatpush1.bf16.msra.mxu0 %v2734
      %2745 = vmatprep.subr.bf16.mxu0 0
      %2746 = vmatpush1.bf16.msra.mxu0 %v2733
      %2747 = vmatprep.subr.bf16.mxu0 0
      %2748 = vmatpush1.bf16.msra.mxu0 %v2732
      %2749 = vmatprep.subr.bf16.mxu0 0
      %2750 = vmatpush1.bf16.msra.mxu0 %v2731
      %2751 = vmatprep.subr.bf16.mxu0 0
      %2752 = vmatpush1.bf16.msra.mxu0 %v2730
      %2753 = vmatprep.subr.bf16.mxu0 0
      %2754 = vmatpush1.bf16.msra.mxu0 %v2729
      %2755 = vmatprep.subr.bf16.mxu0 0
      %2756 = vmatpush1.bf16.msra.mxu0 %v2728
      %2757 = vmatprep.subr.bf16.mxu0 0
      %2758 = vmatpush1.bf16.msra.mxu0 %v2727
      %2759 = vmatprep.subr.bf16.mxu0 0
      %2760 = vmatpush2.bf16.msra.mxu0 0
      %2761 = vmatprep.subr.bf16.mxu0 0
      %2762 = vmatpush2.bf16.msra.mxu0 0
      %2763 = vmatprep.subr.bf16.mxu0 0
      %2764 = vmatpush2.bf16.msra.mxu0 0
      %2765 = vmatprep.subr.bf16.mxu0 0
      %2766 = vmatpush2.bf16.msra.mxu0 0
      %2767 = vmatprep.subr.bf16.mxu0 0
      %2768 = vmatpush2.bf16.msra.mxu0 0
      %2769 = vmatprep.subr.bf16.mxu0 0
      %2770 = vmatpush2.bf16.msra.mxu0 0
      %2771 = vmatprep.subr.bf16.mxu0 0
      %2772 = vmatpush2.bf16.msra.mxu0 0
      %2773 = vmatprep.subr.bf16.mxu0 0
      %2774 = vmatpush2.bf16.msra.mxu0 0
      %2775 = vmatprep.mubr.bf16.mxu0 0
      %2776 = vmatmul.mubr.bf16.gmra.mxu0 %v2663
      %v2777 = vpop.f32.mrf.mxu0
      %v2778 = vadd.f32 0.0, %v2777
      %v2779 = vpop.f32.mrf.mxu0
      %v2780 = vpop.f32.mrf.mxu0
      %v2781 = vadd.f32 0.0, %v2780
      %v2782 = vpop.f32.mrf.mxu0
      %2783 = vmatprep.mubr.bf16.mxu0 0
      %2784 = vmatmul.mubr.bf16.gmra.mxu0 %v2664
      %v2785 = vpop.f32.mrf.mxu0
      %v2786 = vadd.f32 0.0, %v2785
      %v2787 = vpop.f32.mrf.mxu0
      %v2788 = vpop.f32.mrf.mxu0
      %v2789 = vadd.f32 0.0, %v2788
      %v2790 = vpop.f32.mrf.mxu0
      %2791 = vmatprep.mubr.bf16.mxu0 0
      %2792 = vmatmul.mubr.bf16.gmra.mxu0 %v2665
      %v2793 = vpop.f32.mrf.mxu0
      %v2794 = vadd.f32 0.0, %v2793
      %v2795 = vpop.f32.mrf.mxu0
      %v2796 = vpop.f32.mrf.mxu0
      %v2797 = vadd.f32 0.0, %v2796
      %v2798 = vpop.f32.mrf.mxu0
      %2799 = vmatprep.mubr.bf16.mxu0 0
      %2800 = vmatmul.mubr.bf16.gmra.mxu0 %v2666
      %v2801 = vpop.f32.mrf.mxu0
      %v2802 = vadd.f32 0.0, %v2801
      %v2803 = vpop.f32.mrf.mxu0
      %v2804 = vpop.f32.mrf.mxu0
      %v2805 = vadd.f32 0.0, %v2804
      %v2806 = vpop.f32.mrf.mxu0
      %2807 = vmatprep.mubr.bf16.mxu0 0
      %2808 = vmatmul.mubr.bf16.gmra.mxu0 %v2667
      %v2809 = vpop.f32.mrf.mxu0
      %v2810 = vadd.f32 0.0, %v2809
      %v2811 = vpop.f32.mrf.mxu0
      %v2812 = vpop.f32.mrf.mxu0
      %v2813 = vadd.f32 0.0, %v2812
      %v2814 = vpop.f32.mrf.mxu0
      %2815 = vmatprep.mubr.bf16.mxu0 0
      %2816 = vmatmul.mubr.bf16.gmra.mxu0 %v2668
      %v2817 = vpop.f32.mrf.mxu0
      %v2818 = vadd.f32 0.0, %v2817
      %v2819 = vpop.f32.mrf.mxu0
      %v2820 = vpop.f32.mrf.mxu0
      %v2821 = vadd.f32 0.0, %v2820
      %v2822 = vpop.f32.mrf.mxu0
      %2823 = vmatprep.mubr.bf16.mxu0 0
      %2824 = vmatmul.mubr.bf16.gmra.mxu0 %v2669
      %v2825 = vpop.f32.mrf.mxu0
      %v2826 = vadd.f32 0.0, %v2825
      %v2827 = vpop.f32.mrf.mxu0
      %v2828 = vpop.f32.mrf.mxu0
      %v2829 = vadd.f32 0.0, %v2828
      %v2830 = vpop.f32.mrf.mxu0
      %2831 = vmatprep.mubr.bf16.mxu0 0
      %2832 = vmatmul.mubr.bf16.gmra.mxu0 %v2670
      %v2833 = vpop.f32.mrf.mxu0
      %v2834 = vadd.f32 0.0, %v2833
      %v2835 = vpop.f32.mrf.mxu0
      %v2836 = vpop.f32.mrf.mxu0
      %v2837 = vadd.f32 0.0, %v2836
      %v2838 = vpop.f32.mrf.mxu0
      %2839 = vmatprep.mubr.bf16.mxu0 0
      %2840 = vmatmul.mubr.bf16.gmra.mxu0 %v2671
      %v2841 = vpop.f32.mrf.mxu0
      %v2842 = vadd.f32 0.0, %v2841
      %v2843 = vpop.f32.mrf.mxu0
      %v2844 = vpop.f32.mrf.mxu0
      %v2845 = vadd.f32 0.0, %v2844
      %v2846 = vpop.f32.mrf.mxu0
      %2847 = vmatprep.mubr.bf16.mxu0 0
      %2848 = vmatmul.mubr.bf16.gmra.mxu0 %v2672
      %v2849 = vpop.f32.mrf.mxu0
      %v2850 = vadd.f32 0.0, %v2849
      %v2851 = vpop.f32.mrf.mxu0
      %v2852 = vpop.f32.mrf.mxu0
      %v2853 = vadd.f32 0.0, %v2852
      %v2854 = vpop.f32.mrf.mxu0
      %2855 = vmatprep.mubr.bf16.mxu0 0
      %2856 = vmatmul.mubr.bf16.gmra.mxu0 %v2673
      %v2857 = vpop.f32.mrf.mxu0
      %v2858 = vadd.f32 0.0, %v2857
      %v2859 = vpop.f32.mrf.mxu0
      %v2860 = vpop.f32.mrf.mxu0
      %v2861 = vadd.f32 0.0, %v2860
      %v2862 = vpop.f32.mrf.mxu0
      %2863 = vmatprep.mubr.bf16.mxu0 0
      %2864 = vmatmul.mubr.bf16.gmra.mxu0 %v2674
      %v2865 = vpop.f32.mrf.mxu0
      %v2866 = vadd.f32 0.0, %v2865
      %v2867 = vpop.f32.mrf.mxu0
      %v2868 = vpop.f32.mrf.mxu0
      %v2869 = vadd.f32 0.0, %v2868
      %v2870 = vpop.f32.mrf.mxu0
      %2871 = vmatprep.mubr.bf16.mxu0 0
      %2872 = vmatmul.mubr.bf16.gmra.mxu0 %v2675
      %v2873 = vpop.f32.mrf.mxu0
      %v2874 = vadd.f32 0.0, %v2873
      %v2875 = vpop.f32.mrf.mxu0
      %v2876 = vpop.f32.mrf.mxu0
      %v2877 = vadd.f32 0.0, %v2876
      %v2878 = vpop.f32.mrf.mxu0
      %2879 = vmatprep.mubr.bf16.mxu0 0
      %2880 = vmatmul.mubr.bf16.gmra.mxu0 %v2676
      %v2881 = vpop.f32.mrf.mxu0
      %v2882 = vadd.f32 0.0, %v2881
      %v2883 = vpop.f32.mrf.mxu0
      %v2884 = vpop.f32.mrf.mxu0
      %v2885 = vadd.f32 0.0, %v2884
      %v2886 = vpop.f32.mrf.mxu0
      %2887 = vmatprep.mubr.bf16.mxu0 0
      %2888 = vmatmul.mubr.bf16.gmra.mxu0 %v2677
      %v2889 = vpop.f32.mrf.mxu0
      %v2890 = vadd.f32 0.0, %v2889
      %v2891 = vpop.f32.mrf.mxu0
      %v2892 = vpop.f32.mrf.mxu0
      %v2893 = vadd.f32 0.0, %v2892
      %v2894 = vpop.f32.mrf.mxu0
      %2895 = vmatprep.mubr.bf16.mxu0 0
      %2896 = vmatmul.mubr.bf16.gmra.mxu0 %v2678
      %v2897 = vpop.f32.mrf.mxu0
      %v2898 = vadd.f32 0.0, %v2897
      %v2899 = vpop.f32.mrf.mxu0
      %v2900 = vpop.f32.mrf.mxu0
      %v2901 = vadd.f32 0.0, %v2900
      %v2902 = vpop.f32.mrf.mxu0
      %2903 = vdwg.mxu0
      %v2904 = vadd.f32 %v2435, %v2778
      %v2905 = vadd.f32 %v2436, %v2781
      %v2906 = vadd.f32 %v2437, %v2786
      %v2907 = vadd.f32 %v2438, %v2789
      %v2908 = vadd.f32 %v2439, %v2794
      %v2909 = vadd.f32 %v2440, %v2797
      %v2910 = vadd.f32 %v2441, %v2802
      %v2911 = vadd.f32 %v2442, %v2805
      %v2912 = vadd.f32 %v2443, %v2810
      %v2913 = vadd.f32 %v2444, %v2813
      %v2914 = vadd.f32 %v2445, %v2818
      %v2915 = vadd.f32 %v2446, %v2821
      %v2916 = vadd.f32 %v2447, %v2826
      %v2917 = vadd.f32 %v2448, %v2829
      %v2918 = vadd.f32 %v2449, %v2834
      %v2919 = vadd.f32 %v2450, %v2837
      %v2920 = vadd.f32 %v2451, %v2842
      %v2921 = vadd.f32 %v2452, %v2845
      %v2922 = vadd.f32 %v2453, %v2850
      %v2923 = vadd.f32 %v2454, %v2853
      %v2924 = vadd.f32 %v2455, %v2858
      %v2925 = vadd.f32 %v2456, %v2861
      %v2926 = vadd.f32 %v2457, %v2866
      %v2927 = vadd.f32 %v2458, %v2869
      %v2928 = vadd.f32 %v2459, %v2874
      %v2929 = vadd.f32 %v2460, %v2877
      %v2930 = vadd.f32 %v2461, %v2882
      %v2931 = vadd.f32 %v2462, %v2885
      %v2932 = vadd.f32 %v2463, %v2890
      %v2933 = vadd.f32 %v2464, %v2893
      %v2934 = vadd.f32 %v2465, %v2898
      %v2935 = vadd.f32 %v2466, %v2901
      %s2936 = scalar_lea.vmem %s2, 320
      %v2937 = vld [vmem:[%s2936] sm:$0xf]
      %v2938 = vld [vmem:[%s2936 + $0x4] sm:$0xf]
      %v2939 = vld [vmem:[%s2936 + $0x8] sm:$0xf]
      %v2940 = vld [vmem:[%s2936 + $0xc] sm:$0xf]
      %v2941 = vld [vmem:[%s2936 + $0x10] sm:$0xf]
      %v2942 = vld [vmem:[%s2936 + $0x14] sm:$0xf]
      %v2943 = vld [vmem:[%s2936 + $0x18] sm:$0xf]
      %v2944 = vld [vmem:[%s2936 + $0x1c] sm:$0xf]
      %v2945 = vld [vmem:[%s2936 + $0x20] sm:$0xf]
      %v2946 = vld [vmem:[%s2936 + $0x24] sm:$0xf]
      %v2947 = vld [vmem:[%s2936 + $0x28] sm:$0xf]
      %v2948 = vld [vmem:[%s2936 + $0x2c] sm:$0xf]
      %v2949 = vld [vmem:[%s2936 + $0x30] sm:$0xf]
      %v2950 = vld [vmem:[%s2936 + $0x34] sm:$0xf]
      %v2951 = vld [vmem:[%s2936 + $0x38] sm:$0xf]
      %v2952 = vld [vmem:[%s2936 + $0x3c] sm:$0xf]
      %v2953 = vunpack.c.l.b16 %v2603
      %v2954 = vunpack.c.l.b16 %v2606
      %v2955 = vpack.c.b16 %v2954, %v2953
      %v2973 = vunpack.c.l.b16 %v2937
      %v2974 = vunpack.c.l.b16 %v2938
      %v2975 = vunpack.c.l.b16 %v2939
      %v2976 = vunpack.c.l.b16 %v2940
      %v2977 = vunpack.c.l.b16 %v2941
      %v2978 = vunpack.c.l.b16 %v2942
      %v2979 = vunpack.c.l.b16 %v2943
      %v2980 = vunpack.c.l.b16 %v2944
      %v2981 = vunpack.c.l.b16 %v2945
      %v2982 = vunpack.c.l.b16 %v2946
      %v2983 = vunpack.c.l.b16 %v2947
      %v2984 = vunpack.c.l.b16 %v2948
      %v2985 = vunpack.c.l.b16 %v2949
      %v2986 = vunpack.c.l.b16 %v2950
      %v2987 = vunpack.c.l.b16 %v2951
      %v2988 = vunpack.c.l.b16 %v2952
      %v2989 = vpack.c.b16 %v2974, %v2973
      %v2990 = vpack.c.b16 %v2976, %v2975
      %v2991 = vpack.c.b16 %v2978, %v2977
      %v2992 = vpack.c.b16 %v2980, %v2979
      %v2993 = vpack.c.b16 %v2982, %v2981
      %v2994 = vpack.c.b16 %v2984, %v2983
      %v2995 = vpack.c.b16 %v2986, %v2985
      %v2996 = vpack.c.b16 %v2988, %v2987
      %3005 = vmatprep.subr.bf16.mxu0 0
      %3006 = vmatpush1.bf16.msra.mxu0 %v2996
      %3007 = vmatprep.subr.bf16.mxu0 0
      %3008 = vmatpush1.bf16.msra.mxu0 %v2995
      %3009 = vmatprep.subr.bf16.mxu0 0
      %3010 = vmatpush1.bf16.msra.mxu0 %v2994
      %3011 = vmatprep.subr.bf16.mxu0 0
      %3012 = vmatpush1.bf16.msra.mxu0 %v2993
      %3013 = vmatprep.subr.bf16.mxu0 0
      %3014 = vmatpush1.bf16.msra.mxu0 %v2992
      %3015 = vmatprep.subr.bf16.mxu0 0
      %3016 = vmatpush1.bf16.msra.mxu0 %v2991
      %3017 = vmatprep.subr.bf16.mxu0 0
      %3018 = vmatpush1.bf16.msra.mxu0 %v2990
      %3019 = vmatprep.subr.bf16.mxu0 0
      %3020 = vmatpush1.bf16.msra.mxu0 %v2989
      %3021 = vmatprep.subr.bf16.mxu0 0
      %3022 = vmatpush2.bf16.msra.mxu0 0
      %3023 = vmatprep.subr.bf16.mxu0 0
      %3024 = vmatpush2.bf16.msra.mxu0 0
      %3025 = vmatprep.subr.bf16.mxu0 0
      %3026 = vmatpush2.bf16.msra.mxu0 0
      %3027 = vmatprep.subr.bf16.mxu0 0
      %3028 = vmatpush2.bf16.msra.mxu0 0
      %3029 = vmatprep.subr.bf16.mxu0 0
      %3030 = vmatpush2.bf16.msra.mxu0 0
      %3031 = vmatprep.subr.bf16.mxu0 0
      %3032 = vmatpush2.bf16.msra.mxu0 0
      %3033 = vmatprep.subr.bf16.mxu0 0
      %3034 = vmatpush2.bf16.msra.mxu0 0
      %3035 = vmatprep.subr.bf16.mxu0 0
      %3036 = vmatpush2.bf16.msra.mxu0 0
      %3037 = vmatprep.mubr.bf16.mxu0 0
      %3038 = vmatmul.mubr.bf16.gmra.mxu0 %v2664
      %v3039 = vpop.f32.mrf.mxu0
      %v3040 = vadd.f32 0.0, %v3039
      %v3041 = vpop.f32.mrf.mxu0
      %v3042 = vpop.f32.mrf.mxu0
      %v3043 = vadd.f32 0.0, %v3042
      %v3044 = vpop.f32.mrf.mxu0
      %3045 = vmatprep.mubr.bf16.mxu0 0
      %3046 = vmatmul.mubr.bf16.gmra.mxu0 %v2665
      %v3047 = vpop.f32.mrf.mxu0
      %v3048 = vadd.f32 0.0, %v3047
      %v3049 = vpop.f32.mrf.mxu0
      %v3050 = vpop.f32.mrf.mxu0
      %v3051 = vadd.f32 0.0, %v3050
      %v3052 = vpop.f32.mrf.mxu0
      %3053 = vmatprep.mubr.bf16.mxu0 0
      %3054 = vmatmul.mubr.bf16.gmra.mxu0 %v2666
      %v3055 = vpop.f32.mrf.mxu0
      %v3056 = vadd.f32 0.0, %v3055
      %v3057 = vpop.f32.mrf.mxu0
      %v3058 = vpop.f32.mrf.mxu0
      %v3059 = vadd.f32 0.0, %v3058
      %v3060 = vpop.f32.mrf.mxu0
      %3061 = vmatprep.mubr.bf16.mxu0 0
      %3062 = vmatmul.mubr.bf16.gmra.mxu0 %v2667
      %v3063 = vpop.f32.mrf.mxu0
      %v3064 = vadd.f32 0.0, %v3063
      %v3065 = vpop.f32.mrf.mxu0
      %v3066 = vpop.f32.mrf.mxu0
      %v3067 = vadd.f32 0.0, %v3066
      %v3068 = vpop.f32.mrf.mxu0
      %3069 = vmatprep.mubr.bf16.mxu0 0
      %3070 = vmatmul.mubr.bf16.gmra.mxu0 %v2668
      %v3071 = vpop.f32.mrf.mxu0
      %v3072 = vadd.f32 0.0, %v3071
      %v3073 = vpop.f32.mrf.mxu0
      %v3074 = vpop.f32.mrf.mxu0
      %v3075 = vadd.f32 0.0, %v3074
      %v3076 = vpop.f32.mrf.mxu0
      %3077 = vmatprep.mubr.bf16.mxu0 0
      %3078 = vmatmul.mubr.bf16.gmra.mxu0 %v2669
      %v3079 = vpop.f32.mrf.mxu0
      %v3080 = vadd.f32 0.0, %v3079
      %v3081 = vpop.f32.mrf.mxu0
      %v3082 = vpop.f32.mrf.mxu0
      %v3083 = vadd.f32 0.0, %v3082
      %v3084 = vpop.f32.mrf.mxu0
      %3085 = vmatprep.mubr.bf16.mxu0 0
      %3086 = vmatmul.mubr.bf16.gmra.mxu0 %v2670
      %v3087 = vpop.f32.mrf.mxu0
      %v3088 = vadd.f32 0.0, %v3087
      %v3089 = vpop.f32.mrf.mxu0
      %v3090 = vpop.f32.mrf.mxu0
      %v3091 = vadd.f32 0.0, %v3090
      %v3092 = vpop.f32.mrf.mxu0
      %3093 = vmatprep.mubr.bf16.mxu0 0
      %3094 = vmatmul.mubr.bf16.gmra.mxu0 %v2671
      %v3095 = vpop.f32.mrf.mxu0
      %v3096 = vadd.f32 0.0, %v3095
      %v3097 = vpop.f32.mrf.mxu0
      %v3098 = vpop.f32.mrf.mxu0
      %v3099 = vadd.f32 0.0, %v3098
      %v3100 = vpop.f32.mrf.mxu0
      %3101 = vmatprep.mubr.bf16.mxu0 0
      %3102 = vmatmul.mubr.bf16.gmra.mxu0 %v2672
      %v3103 = vpop.f32.mrf.mxu0
      %v3104 = vadd.f32 0.0, %v3103
      %v3105 = vpop.f32.mrf.mxu0
      %v3106 = vpop.f32.mrf.mxu0
      %v3107 = vadd.f32 0.0, %v3106
      %v3108 = vpop.f32.mrf.mxu0
      %3109 = vmatprep.mubr.bf16.mxu0 0
      %3110 = vmatmul.mubr.bf16.gmra.mxu0 %v2673
      %v3111 = vpop.f32.mrf.mxu0
      %v3112 = vadd.f32 0.0, %v3111
      %v3113 = vpop.f32.mrf.mxu0
      %v3114 = vpop.f32.mrf.mxu0
      %v3115 = vadd.f32 0.0, %v3114
      %v3116 = vpop.f32.mrf.mxu0
      %3117 = vmatprep.mubr.bf16.mxu0 0
      %3118 = vmatmul.mubr.bf16.gmra.mxu0 %v2674
      %v3119 = vpop.f32.mrf.mxu0
      %v3120 = vadd.f32 0.0, %v3119
      %v3121 = vpop.f32.mrf.mxu0
      %v3122 = vpop.f32.mrf.mxu0
      %v3123 = vadd.f32 0.0, %v3122
      %v3124 = vpop.f32.mrf.mxu0
      %3125 = vmatprep.mubr.bf16.mxu0 0
      %3126 = vmatmul.mubr.bf16.gmra.mxu0 %v2675
      %v3127 = vpop.f32.mrf.mxu0
      %v3128 = vadd.f32 0.0, %v3127
      %v3129 = vpop.f32.mrf.mxu0
      %v3130 = vpop.f32.mrf.mxu0
      %v3131 = vadd.f32 0.0, %v3130
      %v3132 = vpop.f32.mrf.mxu0
      %3133 = vmatprep.mubr.bf16.mxu0 0
      %3134 = vmatmul.mubr.bf16.gmra.mxu0 %v2676
      %v3135 = vpop.f32.mrf.mxu0
      %v3136 = vadd.f32 0.0, %v3135
      %v3137 = vpop.f32.mrf.mxu0
      %v3138 = vpop.f32.mrf.mxu0
      %v3139 = vadd.f32 0.0, %v3138
      %v3140 = vpop.f32.mrf.mxu0
      %3141 = vmatprep.mubr.bf16.mxu0 0
      %3142 = vmatmul.mubr.bf16.gmra.mxu0 %v2677
      %v3143 = vpop.f32.mrf.mxu0
      %v3144 = vadd.f32 0.0, %v3143
      %v3145 = vpop.f32.mrf.mxu0
      %v3146 = vpop.f32.mrf.mxu0
      %v3147 = vadd.f32 0.0, %v3146
      %v3148 = vpop.f32.mrf.mxu0
      %3149 = vmatprep.mubr.bf16.mxu0 0
      %3150 = vmatmul.mubr.bf16.gmra.mxu0 %v2678
      %v3151 = vpop.f32.mrf.mxu0
      %v3152 = vadd.f32 0.0, %v3151
      %v3153 = vpop.f32.mrf.mxu0
      %v3154 = vpop.f32.mrf.mxu0
      %v3155 = vadd.f32 0.0, %v3154
      %v3156 = vpop.f32.mrf.mxu0
      %3157 = vmatprep.mubr.bf16.mxu0 0
      %3158 = vmatmul.mubr.bf16.gmra.mxu0 %v2955
      %v3159 = vpop.f32.mrf.mxu0
      %v3160 = vadd.f32 0.0, %v3159
      %v3161 = vpop.f32.mrf.mxu0
      %v3162 = vpop.f32.mrf.mxu0
      %v3163 = vadd.f32 0.0, %v3162
      %v3164 = vpop.f32.mrf.mxu0
      %3165 = vdwg.mxu0
      %v3166 = vadd.f32 %v2904, %v3040
      %v3167 = vadd.f32 %v2905, %v3043
      %v3168 = vadd.f32 %v2906, %v3048
      %v3169 = vadd.f32 %v2907, %v3051
      %v3170 = vadd.f32 %v2908, %v3056
      %v3171 = vadd.f32 %v2909, %v3059
      %v3172 = vadd.f32 %v2910, %v3064
      %v3173 = vadd.f32 %v2911, %v3067
      %v3174 = vadd.f32 %v2912, %v3072
      %v3175 = vadd.f32 %v2913, %v3075
      %v3176 = vadd.f32 %v2914, %v3080
      %v3177 = vadd.f32 %v2915, %v3083
      %v3178 = vadd.f32 %v2916, %v3088
      %v3179 = vadd.f32 %v2917, %v3091
      %v3180 = vadd.f32 %v2918, %v3096
      %v3181 = vadd.f32 %v2919, %v3099
      %v3182 = vadd.f32 %v2920, %v3104
      %v3183 = vadd.f32 %v2921, %v3107
      %v3184 = vadd.f32 %v2922, %v3112
      %v3185 = vadd.f32 %v2923, %v3115
      %v3186 = vadd.f32 %v2924, %v3120
      %v3187 = vadd.f32 %v2925, %v3123
      %v3188 = vadd.f32 %v2926, %v3128
      %v3189 = vadd.f32 %v2927, %v3131
      %v3190 = vadd.f32 %v2928, %v3136
      %v3191 = vadd.f32 %v2929, %v3139
      %v3192 = vadd.f32 %v2930, %v3144
      %v3193 = vadd.f32 %v2931, %v3147
      %v3194 = vadd.f32 %v2932, %v3152
      %v3195 = vadd.f32 %v2933, %v3155
      %v3196 = vadd.f32 %v2934, %v3160
      %v3197 = vadd.f32 %v2935, %v3163
      %s3198 = scalar_lea.vmem %s2, 512
      %v3199 = vld [vmem:[%s3198] sm:$0xf]
      %v3200 = vld [vmem:[%s3198 + $0x4] sm:$0xf]
      %v3201 = vld [vmem:[%s3198 + $0x8] sm:$0xf]
      %v3202 = vld [vmem:[%s3198 + $0xc] sm:$0xf]
      %v3203 = vld [vmem:[%s3198 + $0x10] sm:$0xf]
      %v3204 = vld [vmem:[%s3198 + $0x14] sm:$0xf]
      %v3205 = vld [vmem:[%s3198 + $0x18] sm:$0xf]
      %v3206 = vld [vmem:[%s3198 + $0x1c] sm:$0xf]
      %v3207 = vld [vmem:[%s3198 + $0x20] sm:$0xf]
      %v3208 = vld [vmem:[%s3198 + $0x24] sm:$0xf]
      %v3209 = vld [vmem:[%s3198 + $0x28] sm:$0xf]
      %v3210 = vld [vmem:[%s3198 + $0x2c] sm:$0xf]
      %v3211 = vld [vmem:[%s3198 + $0x30] sm:$0xf]
      %v3212 = vld [vmem:[%s3198 + $0x34] sm:$0xf]
      %v3213 = vld [vmem:[%s3198 + $0x38] sm:$0xf]
      %v3214 = vld [vmem:[%s3198 + $0x3c] sm:$0xf]
      %v3215 = vunpack.c.l.b16 %v2610
      %v3216 = vunpack.c.l.b16 %v2613
      %v3217 = vpack.c.b16 %v3216, %v3215
      %v3235 = vunpack.c.l.b16 %v3199
      %v3236 = vunpack.c.l.b16 %v3200
      %v3237 = vunpack.c.l.b16 %v3201
      %v3238 = vunpack.c.l.b16 %v3202
      %v3239 = vunpack.c.l.b16 %v3203
      %v3240 = vunpack.c.l.b16 %v3204
      %v3241 = vunpack.c.l.b16 %v3205
      %v3242 = vunpack.c.l.b16 %v3206
      %v3243 = vunpack.c.l.b16 %v3207
      %v3244 = vunpack.c.l.b16 %v3208
      %v3245 = vunpack.c.l.b16 %v3209
      %v3246 = vunpack.c.l.b16 %v3210
      %v3247 = vunpack.c.l.b16 %v3211
      %v3248 = vunpack.c.l.b16 %v3212
      %v3249 = vunpack.c.l.b16 %v3213
      %v3250 = vunpack.c.l.b16 %v3214
      %v3251 = vpack.c.b16 %v3236, %v3235
      %v3252 = vpack.c.b16 %v3238, %v3237
      %v3253 = vpack.c.b16 %v3240, %v3239
      %v3254 = vpack.c.b16 %v3242, %v3241
      %v3255 = vpack.c.b16 %v3244, %v3243
      %v3256 = vpack.c.b16 %v3246, %v3245
      %v3257 = vpack.c.b16 %v3248, %v3247
      %v3258 = vpack.c.b16 %v3250, %v3249
      %3267 = vmatprep.subr.bf16.mxu0 0
      %3268 = vmatpush1.bf16.msra.mxu0 %v3258
      %3269 = vmatprep.subr.bf16.mxu0 0
      %3270 = vmatpush1.bf16.msra.mxu0 %v3257
      %3271 = vmatprep.subr.bf16.mxu0 0
      %3272 = vmatpush1.bf16.msra.mxu0 %v3256
      %3273 = vmatprep.subr.bf16.mxu0 0
      %3274 = vmatpush1.bf16.msra.mxu0 %v3255
      %3275 = vmatprep.subr.bf16.mxu0 0
      %3276 = vmatpush1.bf16.msra.mxu0 %v3254
      %3277 = vmatprep.subr.bf16.mxu0 0
      %3278 = vmatpush1.bf16.msra.mxu0 %v3253
      %3279 = vmatprep.subr.bf16.mxu0 0
      %3280 = vmatpush1.bf16.msra.mxu0 %v3252
      %3281 = vmatprep.subr.bf16.mxu0 0
      %3282 = vmatpush1.bf16.msra.mxu0 %v3251
      %3283 = vmatprep.subr.bf16.mxu0 0
      %3284 = vmatpush2.bf16.msra.mxu0 0
      %3285 = vmatprep.subr.bf16.mxu0 0
      %3286 = vmatpush2.bf16.msra.mxu0 0
      %3287 = vmatprep.subr.bf16.mxu0 0
      %3288 = vmatpush2.bf16.msra.mxu0 0
      %3289 = vmatprep.subr.bf16.mxu0 0
      %3290 = vmatpush2.bf16.msra.mxu0 0
      %3291 = vmatprep.subr.bf16.mxu0 0
      %3292 = vmatpush2.bf16.msra.mxu0 0
      %3293 = vmatprep.subr.bf16.mxu0 0
      %3294 = vmatpush2.bf16.msra.mxu0 0
      %3295 = vmatprep.subr.bf16.mxu0 0
      %3296 = vmatpush2.bf16.msra.mxu0 0
      %3297 = vmatprep.subr.bf16.mxu0 0
      %3298 = vmatpush2.bf16.msra.mxu0 0
      %3299 = vmatprep.mubr.bf16.mxu0 0
      %3300 = vmatmul.mubr.bf16.gmra.mxu0 %v2665
      %v3301 = vpop.f32.mrf.mxu0
      %v3302 = vadd.f32 0.0, %v3301
      %v3303 = vpop.f32.mrf.mxu0
      %v3304 = vpop.f32.mrf.mxu0
      %v3305 = vadd.f32 0.0, %v3304
      %v3306 = vpop.f32.mrf.mxu0
      %3307 = vmatprep.mubr.bf16.mxu0 0
      %3308 = vmatmul.mubr.bf16.gmra.mxu0 %v2666
      %v3309 = vpop.f32.mrf.mxu0
      %v3310 = vadd.f32 0.0, %v3309
      %v3311 = vpop.f32.mrf.mxu0
      %v3312 = vpop.f32.mrf.mxu0
      %v3313 = vadd.f32 0.0, %v3312
      %v3314 = vpop.f32.mrf.mxu0
      %3315 = vmatprep.mubr.bf16.mxu0 0
      %3316 = vmatmul.mubr.bf16.gmra.mxu0 %v2667
      %v3317 = vpop.f32.mrf.mxu0
      %v3318 = vadd.f32 0.0, %v3317
      %v3319 = vpop.f32.mrf.mxu0
      %v3320 = vpop.f32.mrf.mxu0
      %v3321 = vadd.f32 0.0, %v3320
      %v3322 = vpop.f32.mrf.mxu0
      %3323 = vmatprep.mubr.bf16.mxu0 0
      %3324 = vmatmul.mubr.bf16.gmra.mxu0 %v2668
      %v3325 = vpop.f32.mrf.mxu0
      %v3326 = vadd.f32 0.0, %v3325
      %v3327 = vpop.f32.mrf.mxu0
      %v3328 = vpop.f32.mrf.mxu0
      %v3329 = vadd.f32 0.0, %v3328
      %v3330 = vpop.f32.mrf.mxu0
      %3331 = vmatprep.mubr.bf16.mxu0 0
      %3332 = vmatmul.mubr.bf16.gmra.mxu0 %v2669
      %v3333 = vpop.f32.mrf.mxu0
      %v3334 = vadd.f32 0.0, %v3333
      %v3335 = vpop.f32.mrf.mxu0
      %v3336 = vpop.f32.mrf.mxu0
      %v3337 = vadd.f32 0.0, %v3336
      %v3338 = vpop.f32.mrf.mxu0
      %3339 = vmatprep.mubr.bf16.mxu0 0
      %3340 = vmatmul.mubr.bf16.gmra.mxu0 %v2670
      %v3341 = vpop.f32.mrf.mxu0
      %v3342 = vadd.f32 0.0, %v3341
      %v3343 = vpop.f32.mrf.mxu0
      %v3344 = vpop.f32.mrf.mxu0
      %v3345 = vadd.f32 0.0, %v3344
      %v3346 = vpop.f32.mrf.mxu0
      %3347 = vmatprep.mubr.bf16.mxu0 0
      %3348 = vmatmul.mubr.bf16.gmra.mxu0 %v2671
      %v3349 = vpop.f32.mrf.mxu0
      %v3350 = vadd.f32 0.0, %v3349
      %v3351 = vpop.f32.mrf.mxu0
      %v3352 = vpop.f32.mrf.mxu0
      %v3353 = vadd.f32 0.0, %v3352
      %v3354 = vpop.f32.mrf.mxu0
      %3355 = vmatprep.mubr.bf16.mxu0 0
      %3356 = vmatmul.mubr.bf16.gmra.mxu0 %v2672
      %v3357 = vpop.f32.mrf.mxu0
      %v3358 = vadd.f32 0.0, %v3357
      %v3359 = vpop.f32.mrf.mxu0
      %v3360 = vpop.f32.mrf.mxu0
      %v3361 = vadd.f32 0.0, %v3360
      %v3362 = vpop.f32.mrf.mxu0
      %3363 = vmatprep.mubr.bf16.mxu0 0
      %3364 = vmatmul.mubr.bf16.gmra.mxu0 %v2673
      %v3365 = vpop.f32.mrf.mxu0
      %v3366 = vadd.f32 0.0, %v3365
      %v3367 = vpop.f32.mrf.mxu0
      %v3368 = vpop.f32.mrf.mxu0
      %v3369 = vadd.f32 0.0, %v3368
      %v3370 = vpop.f32.mrf.mxu0
      %3371 = vmatprep.mubr.bf16.mxu0 0
      %3372 = vmatmul.mubr.bf16.gmra.mxu0 %v2674
      %v3373 = vpop.f32.mrf.mxu0
      %v3374 = vadd.f32 0.0, %v3373
      %v3375 = vpop.f32.mrf.mxu0
      %v3376 = vpop.f32.mrf.mxu0
      %v3377 = vadd.f32 0.0, %v3376
      %v3378 = vpop.f32.mrf.mxu0
      %3379 = vmatprep.mubr.bf16.mxu0 0
      %3380 = vmatmul.mubr.bf16.gmra.mxu0 %v2675
      %v3381 = vpop.f32.mrf.mxu0
      %v3382 = vadd.f32 0.0, %v3381
      %v3383 = vpop.f32.mrf.mxu0
      %v3384 = vpop.f32.mrf.mxu0
      %v3385 = vadd.f32 0.0, %v3384
      %v3386 = vpop.f32.mrf.mxu0
      %3387 = vmatprep.mubr.bf16.mxu0 0
      %3388 = vmatmul.mubr.bf16.gmra.mxu0 %v2676
      %v3389 = vpop.f32.mrf.mxu0
      %v3390 = vadd.f32 0.0, %v3389
      %v3391 = vpop.f32.mrf.mxu0
      %v3392 = vpop.f32.mrf.mxu0
      %v3393 = vadd.f32 0.0, %v3392
      %v3394 = vpop.f32.mrf.mxu0
      %3395 = vmatprep.mubr.bf16.mxu0 0
      %3396 = vmatmul.mubr.bf16.gmra.mxu0 %v2677
      %v3397 = vpop.f32.mrf.mxu0
      %v3398 = vadd.f32 0.0, %v3397
      %v3399 = vpop.f32.mrf.mxu0
      %v3400 = vpop.f32.mrf.mxu0
      %v3401 = vadd.f32 0.0, %v3400
      %v3402 = vpop.f32.mrf.mxu0
      %3403 = vmatprep.mubr.bf16.mxu0 0
      %3404 = vmatmul.mubr.bf16.gmra.mxu0 %v2678
      %v3405 = vpop.f32.mrf.mxu0
      %v3406 = vadd.f32 0.0, %v3405
      %v3407 = vpop.f32.mrf.mxu0
      %v3408 = vpop.f32.mrf.mxu0
      %v3409 = vadd.f32 0.0, %v3408
      %v3410 = vpop.f32.mrf.mxu0
      %3411 = vmatprep.mubr.bf16.mxu0 0
      %3412 = vmatmul.mubr.bf16.gmra.mxu0 %v2955
      %v3413 = vpop.f32.mrf.mxu0
      %v3414 = vadd.f32 0.0, %v3413
      %v3415 = vpop.f32.mrf.mxu0
      %v3416 = vpop.f32.mrf.mxu0
      %v3417 = vadd.f32 0.0, %v3416
      %v3418 = vpop.f32.mrf.mxu0
      %3419 = vmatprep.mubr.bf16.mxu0 0
      %3420 = vmatmul.mubr.bf16.gmra.mxu0 %v3217
      %v3421 = vpop.f32.mrf.mxu0
      %v3422 = vadd.f32 0.0, %v3421
      %v3423 = vpop.f32.mrf.mxu0
      %v3424 = vpop.f32.mrf.mxu0
      %v3425 = vadd.f32 0.0, %v3424
      %v3426 = vpop.f32.mrf.mxu0
      %3427 = vdwg.mxu0
      %v3428 = vadd.f32 %v3166, %v3302
      %v3429 = vadd.f32 %v3167, %v3305
      %v3430 = vadd.f32 %v3168, %v3310
      %v3431 = vadd.f32 %v3169, %v3313
      %v3432 = vadd.f32 %v3170, %v3318
      %v3433 = vadd.f32 %v3171, %v3321
      %v3434 = vadd.f32 %v3172, %v3326
      %v3435 = vadd.f32 %v3173, %v3329
      %v3436 = vadd.f32 %v3174, %v3334
      %v3437 = vadd.f32 %v3175, %v3337
      %v3438 = vadd.f32 %v3176, %v3342
      %v3439 = vadd.f32 %v3177, %v3345
      %v3440 = vadd.f32 %v3178, %v3350
      %v3441 = vadd.f32 %v3179, %v3353
      %v3442 = vadd.f32 %v3180, %v3358
      %v3443 = vadd.f32 %v3181, %v3361
      %v3444 = vadd.f32 %v3182, %v3366
      %v3445 = vadd.f32 %v3183, %v3369
      %v3446 = vadd.f32 %v3184, %v3374
      %v3447 = vadd.f32 %v3185, %v3377
      %v3448 = vadd.f32 %v3186, %v3382
      %v3449 = vadd.f32 %v3187, %v3385
      %v3450 = vadd.f32 %v3188, %v3390
      %v3451 = vadd.f32 %v3189, %v3393
      %v3452 = vadd.f32 %v3190, %v3398
      %v3453 = vadd.f32 %v3191, %v3401
      %v3454 = vadd.f32 %v3192, %v3406
      %v3455 = vadd.f32 %v3193, %v3409
      %v3456 = vadd.f32 %v3194, %v3414
      %v3457 = vadd.f32 %v3195, %v3417
      %v3458 = vadd.f32 %v3196, %v3422
      %v3459 = vadd.f32 %v3197, %v3425
      %v3460 = vpack.c.bf16 %v3429, %v3428
      %v3461 = vpack.c.bf16 %v3431, %v3430
      %v3462 = vpack.c.bf16 %v3433, %v3432
      %v3463 = vpack.c.bf16 %v3435, %v3434
      %v3464 = vpack.c.bf16 %v3437, %v3436
      %v3465 = vpack.c.bf16 %v3439, %v3438
      %v3466 = vpack.c.bf16 %v3441, %v3440
      %v3467 = vpack.c.bf16 %v3443, %v3442
      %v3468 = vpack.c.bf16 %v3445, %v3444
      %v3469 = vpack.c.bf16 %v3447, %v3446
      %v3470 = vpack.c.bf16 %v3449, %v3448
      %v3471 = vpack.c.bf16 %v3451, %v3450
      %v3472 = vpack.c.bf16 %v3453, %v3452
      %v3473 = vpack.c.bf16 %v3455, %v3454
      %v3474 = vpack.c.bf16 %v3457, %v3456
      %v3475 = vpack.c.bf16 %v3459, %v3458
      %v3492 = vunpack.c.l.b16 %v3460
      %v3493 = vunpack.c.h.b16 %v3460
      %v3494 = vunpack.c.l.b16 %v3461
      %v3495 = vunpack.c.h.b16 %v3461
      %v3496 = vunpack.c.l.b16 %v3462
      %v3497 = vunpack.c.h.b16 %v3462
      %v3498 = vunpack.c.l.b16 %v3463
      %v3499 = vunpack.c.h.b16 %v3463
      %v3500 = vunpack.c.l.b16 %v3464
      %v3501 = vunpack.c.h.b16 %v3464
      %v3502 = vunpack.c.l.b16 %v3465
      %v3503 = vunpack.c.h.b16 %v3465
      %v3504 = vunpack.c.l.b16 %v3466
      %v3505 = vunpack.c.h.b16 %v3466
      %v3506 = vunpack.c.l.b16 %v3467
      %v3507 = vunpack.c.h.b16 %v3467
      %v3508 = vunpack.c.l.b16 %v3468
      %v3509 = vunpack.c.h.b16 %v3468
      %v3510 = vunpack.c.l.b16 %v3469
      %v3511 = vunpack.c.h.b16 %v3469
      %v3512 = vunpack.c.l.b16 %v3470
      %v3513 = vunpack.c.h.b16 %v3470
      %v3514 = vunpack.c.l.b16 %v3471
      %v3515 = vunpack.c.h.b16 %v3471
      %v3516 = vunpack.c.l.b16 %v3472
      %v3517 = vunpack.c.h.b16 %v3472
      %v3518 = vunpack.c.l.b16 %v3473
      %v3519 = vunpack.c.h.b16 %v3473
      %v3520 = vunpack.c.l.b16 %v3474
      %v3521 = vunpack.c.h.b16 %v3474
      %v3522 = vunpack.c.l.b16 %v3475
      %v3523 = vunpack.c.h.b16 %v3475
      %v3524 = vpack.c.b16 %v3492, %v3492
      %v3525 = vpack.c.b16 %v3493, %v3493
      %v3526 = vpack.c.b16 %v3494, %v3494
      %v3527 = vpack.c.b16 %v3495, %v3495
      %v3528 = vpack.c.b16 %v3496, %v3496
      %v3529 = vpack.c.b16 %v3497, %v3497
      %v3530 = vpack.c.b16 %v3498, %v3498
      %v3531 = vpack.c.b16 %v3499, %v3499
      %v3532 = vpack.c.b16 %v3500, %v3500
      %v3533 = vpack.c.b16 %v3501, %v3501
      %v3534 = vpack.c.b16 %v3502, %v3502
      %v3535 = vpack.c.b16 %v3503, %v3503
      %v3536 = vpack.c.b16 %v3504, %v3504
      %v3537 = vpack.c.b16 %v3505, %v3505
      %v3538 = vpack.c.b16 %v3506, %v3506
      %v3539 = vpack.c.b16 %v3507, %v3507
      %v3540 = vpack.c.b16 %v3508, %v3508
      %v3541 = vpack.c.b16 %v3509, %v3509
      %v3542 = vpack.c.b16 %v3510, %v3510
      %v3543 = vpack.c.b16 %v3511, %v3511
      %v3544 = vpack.c.b16 %v3512, %v3512
      %v3545 = vpack.c.b16 %v3513, %v3513
      %v3546 = vpack.c.b16 %v3514, %v3514
      %v3547 = vpack.c.b16 %v3515, %v3515
      %v3548 = vpack.c.b16 %v3516, %v3516
      %v3549 = vpack.c.b16 %v3517, %v3517
      %v3550 = vpack.c.b16 %v3518, %v3518
      %v3551 = vpack.c.b16 %v3519, %v3519
      %v3552 = vpack.c.b16 %v3520, %v3520
      %v3553 = vpack.c.b16 %v3521, %v3521
      %v3554 = vpack.c.b16 %v3522, %v3522
      %v3555 = vpack.c.b16 %v3523, %v3523
      %3588 = vst [vmem:[%s305] sm:$0xf] %v3524
      %3589 = vst [vmem:[%s305 + $0x4] sm:$0xf] %v3525
      %3590 = vst [vmem:[%s305 + $0x8] sm:$0xf] %v3526
      %3591 = vst [vmem:[%s305 + $0xc] sm:$0xf] %v3527
      %3592 = vst [vmem:[%s305 + $0x10] sm:$0xf] %v3528
      %3593 = vst [vmem:[%s305 + $0x14] sm:$0xf] %v3529
      %3594 = vst [vmem:[%s305 + $0x18] sm:$0xf] %v3530
      %3595 = vst [vmem:[%s305 + $0x1c] sm:$0xf] %v3531
      %3596 = vst [vmem:[%s305 + $0x20] sm:$0xf] %v3532
      %3597 = vst [vmem:[%s305 + $0x24] sm:$0xf] %v3533
      %3598 = vst [vmem:[%s305 + $0x28] sm:$0xf] %v3534
      %3599 = vst [vmem:[%s305 + $0x2c] sm:$0xf] %v3535
      %3600 = vst [vmem:[%s305 + $0x30] sm:$0xf] %v3536
      %3601 = vst [vmem:[%s305 + $0x34] sm:$0xf] %v3537
      %3602 = vst [vmem:[%s305 + $0x38] sm:$0xf] %v3538
      %3603 = vst [vmem:[%s305 + $0x3c] sm:$0xf] %v3539
      %3604 = vst [vmem:[%s305 + $0x40] sm:$0xf] %v3540
      %3605 = vst [vmem:[%s305 + $0x44] sm:$0xf] %v3541
      %3606 = vst [vmem:[%s305 + $0x48] sm:$0xf] %v3542
      %3607 = vst [vmem:[%s305 + $0x4c] sm:$0xf] %v3543
      %3608 = vst [vmem:[%s305 + $0x50] sm:$0xf] %v3544
      %3609 = vst [vmem:[%s305 + $0x54] sm:$0xf] %v3545
      %3610 = vst [vmem:[%s305 + $0x58] sm:$0xf] %v3546
      %3611 = vst [vmem:[%s305 + $0x5c] sm:$0xf] %v3547
      %3612 = vst [vmem:[%s305 + $0x60] sm:$0xf] %v3548
      %3613 = vst [vmem:[%s305 + $0x64] sm:$0xf] %v3549
      %3614 = vst [vmem:[%s305 + $0x68] sm:$0xf] %v3550
      %3615 = vst [vmem:[%s305 + $0x6c] sm:$0xf] %v3551
      %3616 = vst [vmem:[%s305 + $0x70] sm:$0xf] %v3552
      %3617 = vst [vmem:[%s305 + $0x74] sm:$0xf] %v3553
      %3618 = vst [vmem:[%s305 + $0x78] sm:$0xf] %v3554
      %3619 = vst [vmem:[%s305 + $0x7c] sm:$0xf] %v3555
      %v3620 = vadd.f32 %v3428, %v3429
      %v3621 = vadd.f32 %v3620, %v3430
      %v3622 = vadd.f32 %v3621, %v3431
      %v3623 = vadd.f32 %v3622, %v3432
      %v3624 = vadd.f32 %v3623, %v3433
      %v3625 = vadd.f32 %v3624, %v3434
      %v3626 = vadd.f32 %v3625, %v3435
      %v3627 = vadd.f32 %v3626, %v3436
      %v3628 = vadd.f32 %v3627, %v3437
      %v3629 = vadd.f32 %v3628, %v3438
      %v3630 = vadd.f32 %v3629, %v3439
      %v3631 = vadd.f32 %v3630, %v3440
      %v3632 = vadd.f32 %v3631, %v3441
      %v3633 = vadd.f32 %v3632, %v3442
      %v3634 = vadd.f32 %v3633, %v3443
      %v3635 = vadd.f32 %v3634, %v3444
      %v3636 = vadd.f32 %v3635, %v3445
      %v3637 = vadd.f32 %v3636, %v3446
      %v3638 = vadd.f32 %v3637, %v3447
      %v3639 = vadd.f32 %v3638, %v3448
      %v3640 = vadd.f32 %v3639, %v3449
      %v3641 = vadd.f32 %v3640, %v3450
      %v3642 = vadd.f32 %v3641, %v3451
      %v3643 = vadd.f32 %v3642, %v3452
      %v3644 = vadd.f32 %v3643, %v3453
      %v3645 = vadd.f32 %v3644, %v3454
      %v3646 = vadd.f32 %v3645, %v3455
      %v3647 = vadd.f32 %v3646, %v3456
      %v3648 = vadd.f32 %v3647, %v3457
      %v3649 = vadd.f32 %v3648, %v3458
      %v3650 = vadd.f32 %v3649, %v3459
      %v3651 = vrot.slane %v3650, 4
      %v3652 = vadd.f32 %v3650, %v3651
      %v3653 = vrot.slane %v3652, 2
      %v3654 = vadd.f32 %v3652, %v3653
      %v3655 = vrot.slane %v3654, 1
      %v3656 = vadd.f32 %v3654, %v3655
      %v3657 = vmul.f32 %v3656, 0.00390625
      %v3658 = vsub.f32 %v3428, %v3657
      %v3659 = vsub.f32 %v3429, %v3657
      %v3660 = vsub.f32 %v3430, %v3657
      %v3661 = vsub.f32 %v3431, %v3657
      %v3662 = vsub.f32 %v3432, %v3657
      %v3663 = vsub.f32 %v3433, %v3657
      %v3664 = vsub.f32 %v3434, %v3657
      %v3665 = vsub.f32 %v3435, %v3657
      %v3666 = vsub.f32 %v3436, %v3657
      %v3667 = vsub.f32 %v3437, %v3657
      %v3668 = vsub.f32 %v3438, %v3657
      %v3669 = vsub.f32 %v3439, %v3657
      %v3670 = vsub.f32 %v3440, %v3657
      %v3671 = vsub.f32 %v3441, %v3657
      %v3672 = vsub.f32 %v3442, %v3657
      %v3673 = vsub.f32 %v3443, %v3657
      %v3674 = vsub.f32 %v3444, %v3657
      %v3675 = vsub.f32 %v3445, %v3657
      %v3676 = vsub.f32 %v3446, %v3657
      %v3677 = vsub.f32 %v3447, %v3657
      %v3678 = vsub.f32 %v3448, %v3657
      %v3679 = vsub.f32 %v3449, %v3657
      %v3680 = vsub.f32 %v3450, %v3657
      %v3681 = vsub.f32 %v3451, %v3657
      %v3682 = vsub.f32 %v3452, %v3657
      %v3683 = vsub.f32 %v3453, %v3657
      %v3684 = vsub.f32 %v3454, %v3657
      %v3685 = vsub.f32 %v3455, %v3657
      %v3686 = vsub.f32 %v3456, %v3657
      %v3687 = vsub.f32 %v3457, %v3657
      %v3688 = vsub.f32 %v3458, %v3657
      %v3689 = vsub.f32 %v3459, %v3657
      %v3690 = vmul.f32 %v3658, %v3658
      %v3691 = vmul.f32 %v3659, %v3659
      %v3692 = vmul.f32 %v3660, %v3660
      %v3693 = vmul.f32 %v3661, %v3661
      %v3694 = vmul.f32 %v3662, %v3662
      %v3695 = vmul.f32 %v3663, %v3663
      %v3696 = vmul.f32 %v3664, %v3664
      %v3697 = vmul.f32 %v3665, %v3665
      %v3698 = vmul.f32 %v3666, %v3666
      %v3699 = vmul.f32 %v3667, %v3667
      %v3700 = vmul.f32 %v3668, %v3668
      %v3701 = vmul.f32 %v3669, %v3669
      %v3702 = vmul.f32 %v3670, %v3670
      %v3703 = vmul.f32 %v3671, %v3671
      %v3704 = vmul.f32 %v3672, %v3672
      %v3705 = vmul.f32 %v3673, %v3673
      %v3706 = vmul.f32 %v3674, %v3674
      %v3707 = vmul.f32 %v3675, %v3675
      %v3708 = vmul.f32 %v3676, %v3676
      %v3709 = vmul.f32 %v3677, %v3677
      %v3710 = vmul.f32 %v3678, %v3678
      %v3711 = vmul.f32 %v3679, %v3679
      %v3712 = vmul.f32 %v3680, %v3680
      %v3713 = vmul.f32 %v3681, %v3681
      %v3714 = vmul.f32 %v3682, %v3682
      %v3715 = vmul.f32 %v3683, %v3683
      %v3716 = vmul.f32 %v3684, %v3684
      %v3717 = vmul.f32 %v3685, %v3685
      %v3718 = vmul.f32 %v3686, %v3686
      %v3719 = vmul.f32 %v3687, %v3687
      %v3720 = vmul.f32 %v3688, %v3688
      %v3721 = vmul.f32 %v3689, %v3689
      %v3722 = vadd.f32 %v3690, %v3691
      %v3723 = vadd.f32 %v3722, %v3692
      %v3724 = vadd.f32 %v3723, %v3693
      %v3725 = vadd.f32 %v3724, %v3694
      %v3726 = vadd.f32 %v3725, %v3695
      %v3727 = vadd.f32 %v3726, %v3696
      %v3728 = vadd.f32 %v3727, %v3697
      %v3729 = vadd.f32 %v3728, %v3698
      %v3730 = vadd.f32 %v3729, %v3699
      %v3731 = vadd.f32 %v3730, %v3700
      %v3732 = vadd.f32 %v3731, %v3701
      %v3733 = vadd.f32 %v3732, %v3702
      %v3734 = vadd.f32 %v3733, %v3703
      %v3735 = vadd.f32 %v3734, %v3704
      %v3736 = vadd.f32 %v3735, %v3705
      %v3737 = vadd.f32 %v3736, %v3706
      %v3738 = vadd.f32 %v3737, %v3707
      %v3739 = vadd.f32 %v3738, %v3708
      %v3740 = vadd.f32 %v3739, %v3709
      %v3741 = vadd.f32 %v3740, %v3710
      %v3742 = vadd.f32 %v3741, %v3711
      %v3743 = vadd.f32 %v3742, %v3712
      %v3744 = vadd.f32 %v3743, %v3713
      %v3745 = vadd.f32 %v3744, %v3714
      %v3746 = vadd.f32 %v3745, %v3715
      %v3747 = vadd.f32 %v3746, %v3716
      %v3748 = vadd.f32 %v3747, %v3717
      %v3749 = vadd.f32 %v3748, %v3718
      %v3750 = vadd.f32 %v3749, %v3719
      %v3751 = vadd.f32 %v3750, %v3720
      %v3752 = vadd.f32 %v3751, %v3721
      %v3753 = vrot.slane %v3752, 4
      %v3754 = vadd.f32 %v3752, %v3753
      %v3755 = vrot.slane %v3754, 2
      %v3756 = vadd.f32 %v3754, %v3755
      %v3757 = vrot.slane %v3756, 1
      %v3758 = vadd.f32 %v3756, %v3757
      %vm3759 = vcmask 1040384
      %v3760 = vsel %vm3759, %v3656, %v3758
      %3761 = vst [vmem:[%s313] sm:$0x3] %v3760
      %s3762 = smul.u32 16, %s21
      %p3763 = scmp.lt.s32.totalorder %s20, 1
      %s3764 = scalar_select %p3763, %s20, 1
      %p3765 = scmp.lt.s32.totalorder %s3762, 15
      %s3766 = scalar_select %p3765, %s3762, 15
      %s3767 = smul.addr %s3766, 2
      %s3768 = smul.addr %s3764, 32
      %s3769 = sadd.s32 %s3767, %s3768
      %s3770 = smul.addr %s3769, 4
      %s3771 = scalar_lea.vmem %s3, %s3770
      %p3772 = scmp.lt.s32.totalorder %s20, 1
      %s3773 = scalar_select %p3772, %s20, 1
      %p3774 = scmp.lt.s32.totalorder %s21, 0
      %s3775 = scalar_select %p3774, %s21, 0
      %s3776 = sadd.s32 %s3775, %s3773
      %s3777 = smul.addr %s3776, 2
      %s3778 = scalar_lea.vmem %s4, %s3777
      // Predicated region
      $region33: #{_lambda_.3} parent=31 // pred_check
        %p3779 = pneg %p129
      $region34: #{_lambda_.3} parent=31 // pred_check_branch
        %3781 = sbr.rel (%p3779) target = $region36
      $region35: #{_lambda_.3} parent=31 // pred_region
        %s3782 = smul.u32 16, %s21
      $region36: #{_lambda_.3} parent=31 // pred_fallthru
        _
      // Predicated region
      $region37: #{_lambda_.3} parent=31 // pred_check
        %p3783 = pneg %p157
      $region38: #{_lambda_.3} parent=31 // pred_check_branch
        %3785 = sbr.rel (%p3783) target = $region40
      $region39: #{_lambda_.3} parent=31 // pred_region
        _
      $region40: #{_lambda_.3} parent=31 // pred_fallthru
        _
    $region32: #{_lambda_.3} parent=5 // pred_fallthru
      _
    %p3786 = scmp.le.s32.totalorder 2, %s11
    // Predicated region
    $region41: #{_lambda_.3} parent=5 // pred_check
      %p3787 = pneg %p3786
    $region42: #{_lambda_.3} parent=5 // pred_check_branch
      %3789 = sbr.rel (%p3787) target = $region44
    $region43: #{_lambda_.3} parent=5 // pred_region
      %s3790 = ssub.s32 %s11, 2
      // Predicated region
      $region45: #{_lambda_.3} parent=43 // pred_check
        %p3791 = pneg %p135
      $region46: #{_lambda_.3} parent=43 // pred_check_branch
        %3793 = sbr.rel (%p3791) target = $region48
      $region47: #{_lambda_.3} parent=43 // pred_region
        %s3794 = smul.u32 16, %s23
        %p3795 = scmp.lt.s32.totalorder %s22, 1
        %s3796 = scalar_select %p3795, %s22, 1
        %p3797 = scmp.lt.s32.totalorder %s3794, 15
        %s3798 = scalar_select %p3797, %s3794, 15
        %s3799 = smul.addr %s3798, 2
        %s3800 = smul.addr %s3796, 32
        %s3801 = sadd.s32 %s3799, %s3800
        %s3802 = smul.addr %s3801, 4
        %s3803 = scalar_lea.vmem %s3, %s3802
      $region48: #{_lambda_.3} parent=43 // pred_fallthru
        _
      // Predicated region
      $region49: #{_lambda_.3} parent=43 // pred_check
        %p3804 = pneg %p163
      $region50: #{_lambda_.3} parent=43 // pred_check_branch
        %3806 = sbr.rel (%p3804) target = $region52
      $region51: #{_lambda_.3} parent=43 // pred_region
        %p3807 = scmp.lt.s32.totalorder %s22, 1
        %s3808 = scalar_select %p3807, %s22, 1
        %p3809 = scmp.lt.s32.totalorder %s23, 0
        %s3810 = scalar_select %p3809, %s23, 0
        %s3811 = sadd.s32 %s3810, %s3808
        %s3812 = smul.addr %s3811, 2
        %s3813 = scalar_lea.vmem %s4, %s3812
      $region52: #{_lambda_.3} parent=43 // pred_fallthru
        _
    $region44: #{_lambda_.3} parent=5 // pred_fallthru
      _
  $region6: #{_lambda_.3} parent=0 // loop_footer
    %s15 = sadd.s32 1, %s11
  $region7: #{_lambda_.3} parent=0 // loop_footer_branch
    %10 = sbr.rel target = $region3
  $region8: #{_lambda_.3} parent=0 // loop_exit
    _

// kernel: _lambda_.4
$region0: #{_lambda_.4}
  #allocation0 [shape = 'u32[]', space=smem, size = 0x4, offset = 0x4, fixed_abs, tag = 'smem constant byte address 0x4 - core index']
  #allocation1 [shape = 'u32[144,128]{1,0:T(1,128)}', space=vmem, size = 0x12000, scoped, tag = 'internal scratch']
  %s0 = inlined_call_operand.vmem [shape: bf16[2,32,18,128], index: 0, kind: input, shape index: {}, may-alias: {0,1}]
  %s1 = inlined_call_operand.vmem [shape: bf16[2,32,18,128], index: 1, kind: input, shape index: {}, may-alias: {0,1}]
  %s2 = inlined_call_operand.vmem [shape: bf16[9,128,128], index: 2, kind: input, shape index: {}]
  %s3 = inlined_call_operand.vmem [shape: f32[1,128], index: 3, kind: input, shape index: {}]
  %s4 = inlined_call_operand.vmem [shape: f32[1,128], index: 4, kind: input, shape index: {}]
  %s5 = inlined_call_operand.vmem [shape: bf16[2,16,16,128], index: 5, kind: output, shape index: {0}]
  %s6 = inlined_call_operand.vmem [shape: f32[2,1,2,128], index: 6, kind: output, shape index: {1}]
  %7 = xla_tuple %s5, %s6
  %s8 = sld [smem:[#allocation0]]
  $region61: #{_lambda_.4} parent=0
    _
  %s10 = ssub.s32 1, %s8
  %s11 = scalar_select 0, %s10, %s8
  loop: start=0, step=1, limit=4
  $region2: #{_lambda_.4} parent=0 // loop_pre_header
    _
  $region3: #{_lambda_.4} parent=0 // loop_header
    %s13 = sphi 0, %s17
    %p14 = scmp.ge.s32.totalorder %s13, 4
    %s20 = sphi 0, %s32
    %s21 = sphi 0, %s28
    %s22 = sphi 0, %s20
    %s23 = sphi 0, %s21
    %s24 = sphi 0, %s22
    %s25 = sphi 0, %s23
    %s37 = sphi 0, %s39
    %s40 = sphi 0, %s37
    %s41 = sphi 0, %s40
    %s57 = sphi 0, %s41
    %s69 = sphi 0, %s71
    %s72 = sphi 0, %s69
    %s73 = sphi 0, %s72
    %s89 = sphi 0, %s73
    %s93 = sphi 0, %s93
    %s95 = sphi 0, %s93
    %s96 = sphi 0, %s95
    %s110 = sphi 0, %s96
    %s114 = sphi 0, %s114
    %s116 = sphi 0, %s114
    %s117 = sphi 0, %s116
    %s131 = sphi 0, %s117
    %s135 = sphi 0, %s135
    %s137 = sphi 0, %s135
    %s138 = sphi 0, %s137
    %s152 = sphi 0, %s138
    %s160 = sphi 0, %s162
    %s163 = sphi 0, %s160
    %s164 = sphi 0, %s163
    %s180 = sphi 0, %s164
    %s188 = sphi 0, %s190
    %s191 = sphi 0, %s188
    %s192 = sphi 0, %s191
    %s208 = sphi 0, %s192
  $region4: #{_lambda_.4} parent=0 // loop_header_branch
    %16 = sbr.rel (%p14) target = $region8
  $region5: #{_lambda_.4} parent=0 // loop_body
    %s18 = ssub.s32 %s13, 1
    %s19 = ssub.s32 %s13, 2
    %s26 = sadd.s32 1, %s21
    %p27 = scmp.ge.s32.totalorder %s26, 1
    %s28 = scalar_select %p27, 0, %s26
    %s29 = sadd.s32 1, %s20
    %s30 = scalar_select %p27, %s29, %s20
    %p31 = scmp.ge.s32.totalorder %s30, 2
    %s32 = scalar_select %p31, 0, %s30
    %s33 = ssub.s32 %s20, %s32
    %s34 = ssub.s32 %s21, %s28
    %s35 = sor.u32 %s33, %s34
    %p36 = scmp.eq.s32.totalorder %s35, 0
    %s38 = sadd.s32 %s37, 1
    %s39 = scalar_select %p36, %s37, %s38
    %p42 = pneg %p36
    %p43 = scmp.eq.s32.totalorder %s13, 1
    %p44 = por %p42, %p43
    %p45 = scmp.ne.s32.totalorder %s37, %s40
    %p46 = scmp.eq.s32.totalorder %s13, 0
    %p47 = por %p45, %p46
    %p48 = scmp.ne.s32.totalorder %s37, %s40
    %p49 = scmp.eq.s32.totalorder %s18, 1
    %p50 = por %p48, %p49
    %p51 = scmp.ne.s32.totalorder %s40, %s41
    %p52 = scmp.eq.s32.totalorder %s18, 0
    %p53 = por %p51, %p52
    %p54 = scmp.ne.s32.totalorder %s40, %s41
    %p55 = scmp.eq.s32.totalorder %s19, 1
    %p56 = por %p54, %p55
    %p58 = scmp.ne.s32.totalorder %s41, %s57
    %p59 = scmp.eq.s32.totalorder %s19, 0
    %p60 = por %p58, %p59
    %s61 = sadd.s32 %s21, 1
    %s62 = smul.u32 %s61, 8
    %s63 = sadd.s32 %s28, 1
    %s64 = smul.u32 %s63, 8
    %s65 = ssub.s32 %s20, %s32
    %s66 = ssub.s32 %s62, %s64
    %s67 = sor.u32 %s65, %s66
    %p68 = scmp.eq.s32.totalorder %s67, 0
    %s70 = sadd.s32 %s69, 1
    %s71 = scalar_select %p68, %s69, %s70
    %p74 = pneg %p68
    %p75 = scmp.eq.s32.totalorder %s13, 1
    %p76 = por %p74, %p75
    %p77 = scmp.ne.s32.totalorder %s69, %s72
    %p78 = scmp.eq.s32.totalorder %s13, 0
    %p79 = por %p77, %p78
    %p80 = scmp.ne.s32.totalorder %s69, %s72
    %p81 = scmp.eq.s32.totalorder %s18, 1
    %p82 = por %p80, %p81
    %p83 = scmp.ne.s32.totalorder %s72, %s73
    %p84 = scmp.eq.s32.totalorder %s18, 0
    %p85 = por %p83, %p84
    %p86 = scmp.ne.s32.totalorder %s72, %s73
    %p87 = scmp.eq.s32.totalorder %s19, 1
    %p88 = por %p86, %p87
    %p90 = scmp.ne.s32.totalorder %s73, %s89
    %p91 = scmp.eq.s32.totalorder %s19, 0
    %p92 = por %p90, %p91
    %s94 = sadd.s32 %s93, 1
    %p97 = scmp.eq.s32.totalorder %s13, 1
    %p98 = scmp.ne.s32.totalorder %s93, %s95
    %p99 = scmp.eq.s32.totalorder %s13, 0
    %p100 = por %p98, %p99
    %p101 = scmp.ne.s32.totalorder %s93, %s95
    %p102 = scmp.eq.s32.totalorder %s18, 1
    %p103 = por %p101, %p102
    %p104 = scmp.ne.s32.totalorder %s95, %s96
    %p105 = scmp.eq.s32.totalorder %s18, 0
    %p106 = por %p104, %p105
    %p107 = scmp.ne.s32.totalorder %s95, %s96
    %p108 = scmp.eq.s32.totalorder %s19, 1
    %p109 = por %p107, %p108
    %p111 = scmp.ne.s32.totalorder %s96, %s110
    %p112 = scmp.eq.s32.totalorder %s19, 0
    %p113 = por %p111, %p112
    %s115 = sadd.s32 %s114, 1
    %p118 = scmp.eq.s32.totalorder %s13, 1
    %p119 = scmp.ne.s32.totalorder %s114, %s116
    %p120 = scmp.eq.s32.totalorder %s13, 0
    %p121 = por %p119, %p120
    %p122 = scmp.ne.s32.totalorder %s114, %s116
    %p123 = scmp.eq.s32.totalorder %s18, 1
    %p124 = por %p122, %p123
    %p125 = scmp.ne.s32.totalorder %s116, %s117
    %p126 = scmp.eq.s32.totalorder %s18, 0
    %p127 = por %p125, %p126
    %p128 = scmp.ne.s32.totalorder %s116, %s117
    %p129 = scmp.eq.s32.totalorder %s19, 1
    %p130 = por %p128, %p129
    %p132 = scmp.ne.s32.totalorder %s117, %s131
    %p133 = scmp.eq.s32.totalorder %s19, 0
    %p134 = por %p132, %p133
    %s136 = sadd.s32 %s135, 1
    %p139 = scmp.eq.s32.totalorder %s13, 1
    %p140 = scmp.ne.s32.totalorder %s135, %s137
    %p141 = scmp.eq.s32.totalorder %s13, 0
    %p142 = por %p140, %p141
    %p143 = scmp.ne.s32.totalorder %s135, %s137
    %p144 = scmp.eq.s32.totalorder %s18, 1
    %p145 = por %p143, %p144
    %p146 = scmp.ne.s32.totalorder %s137, %s138
    %p147 = scmp.eq.s32.totalorder %s18, 0
    %p148 = por %p146, %p147
    %p149 = scmp.ne.s32.totalorder %s137, %s138
    %p150 = scmp.eq.s32.totalorder %s19, 1
    %p151 = por %p149, %p150
    %p153 = scmp.ne.s32.totalorder %s138, %s152
    %p154 = scmp.eq.s32.totalorder %s19, 0
    %p155 = por %p153, %p154
    %s156 = ssub.s32 %s20, %s32
    %s157 = ssub.s32 %s21, %s28
    %s158 = sor.u32 %s156, %s157
    %p159 = scmp.eq.s32.totalorder %s158, 0
    %s161 = sadd.s32 %s160, 1
    %s162 = scalar_select %p159, %s160, %s161
    %p165 = pneg %p159
    %p166 = scmp.eq.s32.totalorder %s13, 1
    %p167 = por %p165, %p166
    %p168 = scmp.ne.s32.totalorder %s160, %s163
    %p169 = scmp.eq.s32.totalorder %s13, 0
    %p170 = por %p168, %p169
    %p171 = scmp.ne.s32.totalorder %s160, %s163
    %p172 = scmp.eq.s32.totalorder %s18, 1
    %p173 = por %p171, %p172
    %p174 = scmp.ne.s32.totalorder %s163, %s164
    %p175 = scmp.eq.s32.totalorder %s18, 0
    %p176 = por %p174, %p175
    %p177 = scmp.ne.s32.totalorder %s163, %s164
    %p178 = scmp.eq.s32.totalorder %s19, 1
    %p179 = por %p177, %p178
    %p181 = scmp.ne.s32.totalorder %s164, %s180
    %p182 = scmp.eq.s32.totalorder %s19, 0
    %p183 = por %p181, %p182
    %s184 = ssub.s32 %s20, %s32
    %s185 = ssub.s32 %s21, %s28
    %s186 = sor.u32 %s184, %s185
    %p187 = scmp.eq.s32.totalorder %s186, 0
    %s189 = sadd.s32 %s188, 1
    %s190 = scalar_select %p187, %s188, %s189
    %p193 = pneg %p187
    %p194 = scmp.eq.s32.totalorder %s13, 1
    %p195 = por %p193, %p194
    %p196 = scmp.ne.s32.totalorder %s188, %s191
    %p197 = scmp.eq.s32.totalorder %s13, 0
    %p198 = por %p196, %p197
    %p199 = scmp.ne.s32.totalorder %s188, %s191
    %p200 = scmp.eq.s32.totalorder %s18, 1
    %p201 = por %p199, %p200
    %p202 = scmp.ne.s32.totalorder %s191, %s192
    %p203 = scmp.eq.s32.totalorder %s18, 0
    %p204 = por %p202, %p203
    %p205 = scmp.ne.s32.totalorder %s191, %s192
    %p206 = scmp.eq.s32.totalorder %s19, 1
    %p207 = por %p205, %p206
    %p209 = scmp.ne.s32.totalorder %s192, %s208
    %p210 = scmp.eq.s32.totalorder %s19, 0
    %p211 = por %p209, %p210
    %p212 = scmp.le.s32.totalorder 1, %s13
    %p213 = scmp.lt.s32.totalorder %s13, 3
    %p214 = pnand %p212, %p213
    %p215 = pneg %p214
    // Predicated region
    $region9: #{_lambda_.4} parent=5 // pred_check
      _
    $region10: #{_lambda_.4} parent=5 // pred_check_branch
      %217 = sbr.rel (%p214) target = $region12
    $region11: #{_lambda_.4} parent=5 // pred_region
      %s218 = ssub.s32 %s13, 1
      // Predicated region
      $region13: #{_lambda_.4} parent=11 // pred_check
        %p219 = pneg %p106
      $region14: #{_lambda_.4} parent=11 // pred_check_branch
        %221 = sbr.rel (%p219) target = $region16
      $region15: #{_lambda_.4} parent=11 // pred_region
        _
      $region16: #{_lambda_.4} parent=11 // pred_fallthru
        _
      // Predicated region
      $region17: #{_lambda_.4} parent=11 // pred_check
        %p222 = pneg %p127
      $region18: #{_lambda_.4} parent=11 // pred_check_branch
        %224 = sbr.rel (%p222) target = $region20
      $region19: #{_lambda_.4} parent=11 // pred_region
        _
      $region20: #{_lambda_.4} parent=11 // pred_fallthru
        _
      // Predicated region
      $region21: #{_lambda_.4} parent=11 // pred_check
        %p225 = pneg %p148
      $region22: #{_lambda_.4} parent=11 // pred_check_branch
        %227 = sbr.rel (%p225) target = $region24
      $region23: #{_lambda_.4} parent=11 // pred_region
        _
      $region24: #{_lambda_.4} parent=11 // pred_fallthru
        _
    $region12: #{_lambda_.4} parent=5 // pred_fallthru
      _
    %p228 = scmp.lt.s32.totalorder %s13, 2
    // Predicated region
    $region25: #{_lambda_.4} parent=5 // pred_check
      %p229 = pneg %p228
    $region26: #{_lambda_.4} parent=5 // pred_check_branch
      %231 = sbr.rel (%p229) target = $region28
    $region27: #{_lambda_.4} parent=5 // pred_region
      // Predicated region
      $region29: #{_lambda_.4} parent=27 // pred_check
        %p232 = pneg %p47
      $region30: #{_lambda_.4} parent=27 // pred_check_branch
        %234 = sbr.rel (%p232) target = $region32
      $region31: #{_lambda_.4} parent=27 // pred_region
        %s235 = smul.u32 16, %s21
        %p236 = scmp.lt.s32.totalorder %s20, 1
        %s237 = scalar_select %p236, %s20, 1
        %p238 = scmp.lt.s32.totalorder %s235, 31
        %s239 = scalar_select %p238, %s235, 31
        %s240 = smul.addr %s239, 3
        %s241 = smul.addr %s237, 96
        %s242 = sadd.s32 %s240, %s241
        %s243 = smul.addr %s242, 4
        %s244 = scalar_lea.vmem %s0, %s243
        %s245 = smul.u32 16, %s21
      $region32: #{_lambda_.4} parent=27 // pred_fallthru
        _
      // Predicated region
      $region33: #{_lambda_.4} parent=27 // pred_check
        %p246 = pneg %p79
      $region34: #{_lambda_.4} parent=27 // pred_check_branch
        %248 = sbr.rel (%p246) target = $region36
      $region35: #{_lambda_.4} parent=27 // pred_region
        %s249 = sadd.s32 %s21, 1
        %s250 = smul.u32 %s249, 8
        %s251 = smul.u32 2, %s250
        %p252 = scmp.lt.s32.totalorder %s20, 1
        %s253 = scalar_select %p252, %s20, 1
        %p254 = scmp.lt.s32.totalorder %s251, 31
        %s255 = scalar_select %p254, %s251, 31
        %s256 = smul.addr %s255, 3
        %s257 = smul.addr %s253, 96
        %s258 = sadd.s32 %s256, %s257
        %s259 = smul.addr %s258, 4
        %s260 = scalar_lea.vmem %s1, %s259
        %s261 = sadd.s32 %s21, 1
        %s262 = smul.u32 %s261, 8
        %s263 = smul.u32 2, %s262
      $region36: #{_lambda_.4} parent=27 // pred_fallthru
        _
    $region28: #{_lambda_.4} parent=5 // pred_fallthru
      _
    %p264 = scmp.le.s32.totalorder 1, %s13
    %p265 = scmp.lt.s32.totalorder %s13, 3
    %p266 = pnand %p264, %p265
    %p267 = pneg %p266
    // Predicated region
    $region37: #{_lambda_.4} parent=5 // pred_check
      _
    $region38: #{_lambda_.4} parent=5 // pred_check_branch
      %269 = sbr.rel (%p266) target = $region40
    $region39: #{_lambda_.4} parent=5 // pred_region
      %s270 = ssub.s32 %s13, 1
      %s271 = smul.u32 16, %s23
      %p272 = scmp.lt.s32.totalorder %s22, 1
      %s273 = scalar_select %p272, %s22, 1
      %p274 = scmp.lt.s32.totalorder %s271, 31
      %s275 = scalar_select %p274, %s271, 31
      %s276 = smul.addr %s275, 3
      %s277 = smul.addr %s273, 96
      %s278 = sadd.s32 %s276, %s277
      %s279 = smul.addr %s278, 4
      %s280 = scalar_lea.vmem %s0, %s279
      %p281 = pneg %p53
      %p282 = pneg %p50
      %s283 = sadd.s32 %s23, 1
      %s284 = smul.u32 %s283, 8
      %s285 = smul.u32 2, %s284
      %p286 = scmp.lt.s32.totalorder %s22, 1
      %s287 = scalar_select %p286, %s22, 1
      %p288 = scmp.lt.s32.totalorder %s285, 31
      %s289 = scalar_select %p288, %s285, 31
      %s290 = smul.addr %s289, 3
      %s291 = smul.addr %s287, 96
      %s292 = sadd.s32 %s290, %s291
      %s293 = smul.addr %s292, 4
      %s294 = scalar_lea.vmem %s1, %s293
      %p295 = pneg %p85
      %p296 = pneg %p82
      %p297 = pneg %p106
      %p298 = pneg %p103
      %p299 = pneg %p127
      %p300 = pneg %p124
      %p301 = pneg %p148
      %p302 = pneg %p145
      %p303 = pneg %p176
      %p304 = pneg %p173
      %s305 = smul.u32 16, %s23
      %p306 = scmp.lt.s32.totalorder %s22, 1
      %s307 = scalar_select %p306, %s22, 1
      %p308 = scmp.lt.s32.totalorder %s305, 15
      %s309 = scalar_select %p308, %s305, 15
      %s310 = smul.addr %s309, 2
      %s311 = smul.addr %s307, 32
      %s312 = sadd.s32 %s310, %s311
      %s313 = smul.addr %s312, 4
      %s314 = scalar_lea.vmem %s5, %s313
      %p315 = pneg %p204
      %p316 = pneg %p201
      %p317 = scmp.lt.s32.totalorder %s22, 1
      %s318 = scalar_select %p317, %s22, 1
      %p319 = scmp.lt.s32.totalorder %s23, 0
      %s320 = scalar_select %p319, %s23, 0
      %s321 = sadd.s32 %s320, %s318
      %s322 = smul.addr %s321, 2
      %s323 = scalar_lea.vmem %s6, %s322
      %s324 = smul.u32 16, %s23
      %p325 = scmp.lt.s32.totalorder %s22, 1
      %s326 = scalar_select %p325, %s22, 1
      %p327 = scmp.lt.s32.totalorder %s324, 31
      %s328 = scalar_select %p327, %s324, 31
      %s329 = smul.addr %s328, 3
      %s330 = smul.addr %s326, 96
      %s331 = sadd.s32 %s329, %s330
      %s332 = smul.addr %s331, 4
      %s333 = scalar_lea.vmem %s0, %s332
      %s334 = smul.u32 16, %s23
      %s335 = sadd.s32 %s23, 1
      %s336 = smul.u32 %s335, 8
      %s337 = smul.u32 2, %s336
      %p338 = scmp.lt.s32.totalorder %s22, 1
      %s339 = scalar_select %p338, %s22, 1
      %p340 = scmp.lt.s32.totalorder %s337, 31
      %s341 = scalar_select %p340, %s337, 31
      %s342 = smul.addr %s341, 3
      %s343 = smul.addr %s339, 96
      %s344 = sadd.s32 %s342, %s343
      %s345 = smul.addr %s344, 4
      %s346 = scalar_lea.vmem %s1, %s345
      %s347 = sadd.s32 %s23, 1
      %s348 = smul.u32 %s347, 8
      %s349 = smul.u32 2, %s348
      %s350 = smul.u32 16, %s23
      %p351 = scmp.lt.s32.totalorder %s22, 1
      %s352 = scalar_select %p351, %s22, 1
      %p353 = scmp.lt.s32.totalorder %s350, 15
      %s354 = scalar_select %p353, %s350, 15
      %s355 = smul.addr %s354, 2
      %s356 = smul.addr %s352, 32
      %s357 = sadd.s32 %s355, %s356
      %s358 = smul.addr %s357, 4
      %s359 = scalar_lea.vmem %s5, %s358
      %s360 = smul.u32 16, %s23
      %p361 = scmp.lt.s32.totalorder %s22, 1
      %s362 = scalar_select %p361, %s22, 1
      %p363 = scmp.lt.s32.totalorder %s23, 0
      %s364 = scalar_select %p363, %s23, 0
      %s365 = sadd.s32 %s364, %s362
      %s366 = smul.addr %s365, 2
      %s367 = scalar_lea.vmem %s6, %s366
      %v369 = vld [vmem:[%s333] sm:$0xf]
      %v370 = vld [vmem:[%s333 + $0x4] sm:$0xf]
      %v371 = vld [vmem:[%s333 + $0x8] sm:$0x1]
      %v372 = vld [vmem:[%s333 + $0xc] sm:$0xf]
      %v373 = vld [vmem:[%s333 + $0x10] sm:$0xf]
      %v374 = vld [vmem:[%s333 + $0x14] sm:$0x1]
      %v375 = vld [vmem:[%s333 + $0x18] sm:$0xf]
      %v376 = vld [vmem:[%s333 + $0x1c] sm:$0xf]
      %v377 = vld [vmem:[%s333 + $0x20] sm:$0x1]
      %v378 = vld [vmem:[%s333 + $0x24] sm:$0xf]
      %v379 = vld [vmem:[%s333 + $0x28] sm:$0xf]
      %v380 = vld [vmem:[%s333 + $0x2c] sm:$0x1]
      %v381 = vld [vmem:[%s333 + $0x30] sm:$0xf]
      %v382 = vld [vmem:[%s333 + $0x34] sm:$0xf]
      %v383 = vld [vmem:[%s333 + $0x38] sm:$0x1]
      %v384 = vld [vmem:[%s333 + $0x3c] sm:$0xf]
      %v385 = vld [vmem:[%s333 + $0x40] sm:$0xf]
      %v386 = vld [vmem:[%s333 + $0x44] sm:$0x1]
      %v387 = vld [vmem:[%s333 + $0x48] sm:$0xf]
      %v388 = vld [vmem:[%s333 + $0x4c] sm:$0xf]
      %v389 = vld [vmem:[%s333 + $0x50] sm:$0x1]
      %v390 = vld [vmem:[%s333 + $0x54] sm:$0xf]
      %v391 = vld [vmem:[%s333 + $0x58] sm:$0xf]
      %v392 = vld [vmem:[%s333 + $0x5c] sm:$0x1]
      %v393 = vld [vmem:[%s333 + $0x60] sm:$0xf]
      %v394 = vld [vmem:[%s333 + $0x64] sm:$0xf]
      %v395 = vld [vmem:[%s333 + $0x68] sm:$0x1]
      %v396 = vld [vmem:[%s333 + $0x6c] sm:$0xf]
      %v397 = vld [vmem:[%s333 + $0x70] sm:$0xf]
      %v398 = vld [vmem:[%s333 + $0x74] sm:$0x1]
      %v399 = vld [vmem:[%s333 + $0x78] sm:$0xf]
      %v400 = vld [vmem:[%s333 + $0x7c] sm:$0xf]
      %v401 = vld [vmem:[%s333 + $0x80] sm:$0x1]
      %v402 = vld [vmem:[%s333 + $0x84] sm:$0xf]
      %v403 = vld [vmem:[%s333 + $0x88] sm:$0xf]
      %v404 = vld [vmem:[%s333 + $0x8c] sm:$0x1]
      %v405 = vld [vmem:[%s333 + $0x90] sm:$0xf]
      %v406 = vld [vmem:[%s333 + $0x94] sm:$0xf]
      %v407 = vld [vmem:[%s333 + $0x98] sm:$0x1]
      %v408 = vld [vmem:[%s333 + $0x9c] sm:$0xf]
      %v409 = vld [vmem:[%s333 + $0xa0] sm:$0xf]
      %v410 = vld [vmem:[%s333 + $0xa4] sm:$0x1]
      %v411 = vld [vmem:[%s333 + $0xa8] sm:$0xf]
      %v412 = vld [vmem:[%s333 + $0xac] sm:$0xf]
      %v413 = vld [vmem:[%s333 + $0xb0] sm:$0x1]
      %v414 = vld [vmem:[%s333 + $0xb4] sm:$0xf]
      %v415 = vld [vmem:[%s333 + $0xb8] sm:$0xf]
      %v416 = vld [vmem:[%s333 + $0xbc] sm:$0x1]
      %v417 = vld [vmem:[%s346] sm:$0xf]
      %v418 = vld [vmem:[%s346 + $0x4] sm:$0xf]
      %v419 = vld [vmem:[%s346 + $0x8] sm:$0x1]
      %v420 = vld [vmem:[%s346 + $0xc] sm:$0xf]
      %v421 = vld [vmem:[%s346 + $0x10] sm:$0xf]
      %v422 = vld [vmem:[%s346 + $0x14] sm:$0x1]
      %s423 = smul.u32 %s23, 16
      %v424 = vstv %s423
      %v425 = vadd.s32 %v424, 1
      %v426 = vadd.s32 %v424, 2
      %v427 = vadd.s32 %v424, 3
      %v428 = vadd.s32 %v424, 4
      %v429 = vadd.s32 %v424, 5
      %v430 = vadd.s32 %v424, 6
      %v431 = vadd.s32 %v424, 7
      %v432 = vadd.s32 %v424, 8
      %v433 = vadd.s32 %v424, 9
      %v434 = vadd.s32 %v424, 10
      %v435 = vadd.s32 %v424, 11
      %v436 = vadd.s32 %v424, 12
      %v437 = vadd.s32 %v424, 13
      %v438 = vadd.s32 %v424, 14
      %v439 = vadd.s32 %v424, 15
      %v440 = vadd.s32 %v424, 16
      %v441 = vadd.s32 %v424, 17
      %v442 = vlaneseq
      %v443 = vshrl.u32 %v442, 7
      %v444 = vadd.s32 %v443, 8
      %v445 = vadd.s32 %v443, 16
      %vm446 = vcmp.ge.s32.totalorder %v424, 1
      %vm447 = vcmp.ge.s32.totalorder %v425, 1
      %vm448 = vcmp.ge.s32.totalorder %v426, 1
      %vm449 = vcmp.ge.s32.totalorder %v427, 1
      %vm450 = vcmp.ge.s32.totalorder %v428, 1
      %vm451 = vcmp.ge.s32.totalorder %v429, 1
      %vm452 = vcmp.ge.s32.totalorder %v430, 1
      %vm453 = vcmp.ge.s32.totalorder %v431, 1
      %vm454 = vcmp.ge.s32.totalorder %v432, 1
      %vm455 = vcmp.ge.s32.totalorder %v433, 1
      %vm456 = vcmp.ge.s32.totalorder %v434, 1
      %vm457 = vcmp.ge.s32.totalorder %v435, 1
      %vm458 = vcmp.ge.s32.totalorder %v436, 1
      %vm459 = vcmp.ge.s32.totalorder %v437, 1
      %vm460 = vcmp.ge.s32.totalorder %v438, 1
      %vm461 = vcmp.ge.s32.totalorder %v439, 1
      %vm462 = vcmp.ge.s32.totalorder %v440, 1
      %vm463 = vcmp.ge.s32.totalorder %v441, 1
      %vm464 = vcmp.lt.s32.totalorder %v424, 17
      %vm465 = vcmp.lt.s32.totalorder %v425, 17
      %vm466 = vcmp.lt.s32.totalorder %v426, 17
      %vm467 = vcmp.lt.s32.totalorder %v427, 17
      %vm468 = vcmp.lt.s32.totalorder %v428, 17
      %vm469 = vcmp.lt.s32.totalorder %v429, 17
      %vm470 = vcmp.lt.s32.totalorder %v430, 17
      %vm471 = vcmp.lt.s32.totalorder %v431, 17
      %vm472 = vcmp.lt.s32.totalorder %v432, 17
      %vm473 = vcmp.lt.s32.totalorder %v433, 17
      %vm474 = vcmp.lt.s32.totalorder %v434, 17
      %vm475 = vcmp.lt.s32.totalorder %v435, 17
      %vm476 = vcmp.lt.s32.totalorder %v436, 17
      %vm477 = vcmp.lt.s32.totalorder %v437, 17
      %vm478 = vcmp.lt.s32.totalorder %v438, 17
      %vm479 = vcmp.lt.s32.totalorder %v439, 17
      %vm480 = vcmp.lt.s32.totalorder %v440, 17
      %vm481 = vcmp.lt.s32.totalorder %v441, 17
      %vm482 = vmand %vm446, %vm464
      %vm483 = vmand %vm447, %vm465
      %vm484 = vmand %vm448, %vm466
      %vm485 = vmand %vm449, %vm467
      %vm486 = vmand %vm450, %vm468
      %vm487 = vmand %vm451, %vm469
      %vm488 = vmand %vm452, %vm470
      %vm489 = vmand %vm453, %vm471
      %vm490 = vmand %vm454, %vm472
      %vm491 = vmand %vm455, %vm473
      %vm492 = vmand %vm456, %vm474
      %vm493 = vmand %vm457, %vm475
      %vm494 = vmand %vm458, %vm476
      %vm495 = vmand %vm459, %vm477
      %vm496 = vmand %vm460, %vm478
      %vm497 = vmand %vm461, %vm479
      %vm498 = vmand %vm462, %vm480
      %vm499 = vmand %vm463, %vm481
      %vm500 = vcmp.ge.s32.totalorder %v443, 1
      %vm501 = vcmp.ge.s32.totalorder %v444, 1
      %vm502 = vcmp.ge.s32.totalorder %v445, 1
      %vm503 = vmand %vm482, %vm500
      %vm504 = vmand %vm482, %vm501
      %vm505 = vmand %vm482, %vm502
      %vm506 = vmand %vm483, %vm500
      %vm507 = vmand %vm483, %vm501
      %vm508 = vmand %vm483, %vm502
      %vm509 = vmand %vm484, %vm500
      %vm510 = vmand %vm484, %vm501
      %vm511 = vmand %vm484, %vm502
      %vm512 = vmand %vm485, %vm500
      %vm513 = vmand %vm485, %vm501
      %vm514 = vmand %vm485, %vm502
      %vm515 = vmand %vm486, %vm500
      %vm516 = vmand %vm486, %vm501
      %vm517 = vmand %vm486, %vm502
      %vm518 = vmand %vm487, %vm500
      %vm519 = vmand %vm487, %vm501
      %vm520 = vmand %vm487, %vm502
      %vm521 = vmand %vm488, %vm500
      %vm522 = vmand %vm488, %vm501
      %vm523 = vmand %vm488, %vm502
      %vm524 = vmand %vm489, %vm500
      %vm525 = vmand %vm489, %vm501
      %vm526 = vmand %vm489, %vm502
      %vm527 = vmand %vm490, %vm500
      %vm528 = vmand %vm490, %vm501
      %vm529 = vmand %vm490, %vm502
      %vm530 = vmand %vm491, %vm500
      %vm531 = vmand %vm491, %vm501
      %vm532 = vmand %vm491, %vm502
      %vm533 = vmand %vm492, %vm500
      %vm534 = vmand %vm492, %vm501
      %vm535 = vmand %vm492, %vm502
      %vm536 = vmand %vm493, %vm500
      %vm537 = vmand %vm493, %vm501
      %vm538 = vmand %vm493, %vm502
      %vm539 = vmand %vm494, %vm500
      %vm540 = vmand %vm494, %vm501
      %vm541 = vmand %vm494, %vm502
      %vm542 = vmand %vm495, %vm500
      %vm543 = vmand %vm495, %vm501
      %vm544 = vmand %vm495, %vm502
      %vm545 = vmand %vm496, %vm500
      %vm546 = vmand %vm496, %vm501
      %vm547 = vmand %vm496, %vm502
      %vm548 = vmand %vm497, %vm500
      %vm549 = vmand %vm497, %vm501
      %vm550 = vmand %vm497, %vm502
      %vm551 = vmand %vm498, %vm500
      %vm552 = vmand %vm498, %vm501
      %vm553 = vmand %vm498, %vm502
      %vm554 = vmand %vm499, %vm500
      %vm555 = vmand %vm499, %vm501
      %vm556 = vmand %vm499, %vm502
      %vm557 = vcmp.lt.s32.totalorder %v443, 17
      %vm558 = vcmp.lt.s32.totalorder %v444, 17
      %vm559 = vcmp.lt.s32.totalorder %v445, 17
      %vm560 = vmand %vm503, %vm557
      %vm561 = vmand %vm504, %vm558
      %vm562 = vmand %vm505, %vm559
      %vm563 = vmand %vm506, %vm557
      %vm564 = vmand %vm507, %vm558
      %vm565 = vmand %vm508, %vm559
      %vm566 = vmand %vm509, %vm557
      %vm567 = vmand %vm510, %vm558
      %vm568 = vmand %vm511, %vm559
      %vm569 = vmand %vm512, %vm557
      %vm570 = vmand %vm513, %vm558
      %vm571 = vmand %vm514, %vm559
      %vm572 = vmand %vm515, %vm557
      %vm573 = vmand %vm516, %vm558
      %vm574 = vmand %vm517, %vm559
      %vm575 = vmand %vm518, %vm557
      %vm576 = vmand %vm519, %vm558
      %vm577 = vmand %vm520, %vm559
      %vm578 = vmand %vm521, %vm557
      %vm579 = vmand %vm522, %vm558
      %vm580 = vmand %vm523, %vm559
      %vm581 = vmand %vm524, %vm557
      %vm582 = vmand %vm525, %vm558
      %vm583 = vmand %vm526, %vm559
      %vm584 = vmand %vm527, %vm557
      %vm585 = vmand %vm528, %vm558
      %vm586 = vmand %vm529, %vm559
      %vm587 = vmand %vm530, %vm557
      %vm588 = vmand %vm531, %vm558
      %vm589 = vmand %vm532, %vm559
      %vm590 = vmand %vm533, %vm557
      %vm591 = vmand %vm534, %vm558
      %vm592 = vmand %vm535, %vm559
      %vm593 = vmand %vm536, %vm557
      %vm594 = vmand %vm537, %vm558
      %vm595 = vmand %vm538, %vm559
      %vm596 = vmand %vm539, %vm557
      %vm597 = vmand %vm540, %vm558
      %vm598 = vmand %vm541, %vm559
      %vm599 = vmand %vm542, %vm557
      %vm600 = vmand %vm543, %vm558
      %vm601 = vmand %vm544, %vm559
      %vm602 = vmand %vm545, %vm557
      %vm603 = vmand %vm546, %vm558
      %vm604 = vmand %vm547, %vm559
      %vm605 = vmand %vm548, %vm557
      %vm606 = vmand %vm549, %vm558
      %vm607 = vmand %vm550, %vm559
      %vm608 = vmand %vm551, %vm557
      %vm609 = vmand %vm552, %vm558
      %vm610 = vmand %vm553, %vm559
      %vm611 = vmand %vm554, %vm557
      %vm612 = vmand %vm555, %vm558
      %vm613 = vmand %vm556, %vm559
      %v614 = vunpack.c.l.bf16 %v369
      %v615 = vunpack.c.l.bf16 %v370
      %v616 = vunpack.c.l.bf16 %v371
      %v617 = vunpack.c.l.bf16 %v372
      %v618 = vunpack.c.l.bf16 %v373
      %v619 = vunpack.c.l.bf16 %v374
      %v620 = vunpack.c.l.bf16 %v375
      %v621 = vunpack.c.l.bf16 %v376
      %v622 = vunpack.c.l.bf16 %v377
      %v623 = vunpack.c.l.bf16 %v378
      %v624 = vunpack.c.l.bf16 %v379
      %v625 = vunpack.c.l.bf16 %v380
      %v626 = vunpack.c.l.bf16 %v381
      %v627 = vunpack.c.l.bf16 %v382
      %v628 = vunpack.c.l.bf16 %v383
      %v629 = vunpack.c.l.bf16 %v384
      %v630 = vunpack.c.l.bf16 %v385
      %v631 = vunpack.c.l.bf16 %v386
      %v632 = vunpack.c.l.bf16 %v387
      %v633 = vunpack.c.l.bf16 %v388
      %v634 = vunpack.c.l.bf16 %v389
      %v635 = vunpack.c.l.bf16 %v390
      %v636 = vunpack.c.l.bf16 %v391
      %v637 = vunpack.c.l.bf16 %v392
      %v638 = vunpack.c.l.bf16 %v393
      %v639 = vunpack.c.l.bf16 %v394
      %v640 = vunpack.c.l.bf16 %v395
      %v641 = vunpack.c.l.bf16 %v396
      %v642 = vunpack.c.l.bf16 %v397
      %v643 = vunpack.c.l.bf16 %v398
      %v644 = vunpack.c.l.bf16 %v399
      %v645 = vunpack.c.l.bf16 %v400
      %v646 = vunpack.c.l.bf16 %v401
      %v647 = vunpack.c.l.bf16 %v402
      %v648 = vunpack.c.l.bf16 %v403
      %v649 = vunpack.c.l.bf16 %v404
      %v650 = vunpack.c.l.bf16 %v405
      %v651 = vunpack.c.l.bf16 %v406
      %v652 = vunpack.c.l.bf16 %v407
      %v653 = vunpack.c.l.bf16 %v408
      %v654 = vunpack.c.l.bf16 %v409
      %v655 = vunpack.c.l.bf16 %v410
      %v656 = vunpack.c.l.bf16 %v411
      %v657 = vunpack.c.l.bf16 %v412
      %v658 = vunpack.c.l.bf16 %v413
      %v659 = vunpack.c.l.bf16 %v414
      %v660 = vunpack.c.l.bf16 %v415
      %v661 = vunpack.c.l.bf16 %v416
      %v662 = vunpack.c.l.bf16 %v417
      %v663 = vunpack.c.l.bf16 %v418
      %v664 = vunpack.c.l.bf16 %v419
      %v665 = vunpack.c.l.bf16 %v420
      %v666 = vunpack.c.l.bf16 %v421
      %v667 = vunpack.c.l.bf16 %v422
      %v668 = vld [vmem:[%s3] sm:$0x1]
      %v670 = vlaneseq
      %v671 = vshrl.u32 %v670, 7
      %v672 = vsub.s32 0, %v671
      %v673 = vrot.slane %v668, %v672
      %v675 = vmul.f32 %v614, %v673
      %v676 = vmul.f32 %v615, %v673
      %v677 = vmul.f32 %v616, %v673
      %v678 = vmul.f32 %v617, %v673
      %v679 = vmul.f32 %v618, %v673
      %v680 = vmul.f32 %v619, %v673
      %v681 = vmul.f32 %v620, %v673
      %v682 = vmul.f32 %v621, %v673
      %v683 = vmul.f32 %v622, %v673
      %v684 = vmul.f32 %v623, %v673
      %v685 = vmul.f32 %v624, %v673
      %v686 = vmul.f32 %v625, %v673
      %v687 = vmul.f32 %v626, %v673
      %v688 = vmul.f32 %v627, %v673
      %v689 = vmul.f32 %v628, %v673
      %v690 = vmul.f32 %v629, %v673
      %v691 = vmul.f32 %v630, %v673
      %v692 = vmul.f32 %v631, %v673
      %v693 = vmul.f32 %v632, %v673
      %v694 = vmul.f32 %v633, %v673
      %v695 = vmul.f32 %v634, %v673
      %v696 = vmul.f32 %v635, %v673
      %v697 = vmul.f32 %v636, %v673
      %v698 = vmul.f32 %v637, %v673
      %v699 = vmul.f32 %v638, %v673
      %v700 = vmul.f32 %v639, %v673
      %v701 = vmul.f32 %v640, %v673
      %v702 = vmul.f32 %v641, %v673
      %v703 = vmul.f32 %v642, %v673
      %v704 = vmul.f32 %v643, %v673
      %v705 = vmul.f32 %v644, %v673
      %v706 = vmul.f32 %v645, %v673
      %v707 = vmul.f32 %v646, %v673
      %v708 = vmul.f32 %v647, %v673
      %v709 = vmul.f32 %v648, %v673
      %v710 = vmul.f32 %v649, %v673
      %v711 = vmul.f32 %v650, %v673
      %v712 = vmul.f32 %v651, %v673
      %v713 = vmul.f32 %v652, %v673
      %v714 = vmul.f32 %v653, %v673
      %v715 = vmul.f32 %v654, %v673
      %v716 = vmul.f32 %v655, %v673
      %v717 = vmul.f32 %v656, %v673
      %v718 = vmul.f32 %v657, %v673
      %v719 = vmul.f32 %v658, %v673
      %v720 = vmul.f32 %v659, %v673
      %v721 = vmul.f32 %v660, %v673
      %v722 = vmul.f32 %v661, %v673
      %v723 = vmul.f32 %v662, %v673
      %v724 = vmul.f32 %v663, %v673
      %v725 = vmul.f32 %v664, %v673
      %v726 = vmul.f32 %v665, %v673
      %v727 = vmul.f32 %v666, %v673
      %v728 = vmul.f32 %v667, %v673
      %v729 = vld [vmem:[%s4] sm:$0x1]
      %v731 = vlaneseq
      %v732 = vshrl.u32 %v731, 7
      %v733 = vsub.s32 0, %v732
      %v734 = vrot.slane %v729, %v733
      %v736 = vadd.f32 %v675, %v734
      %v737 = vadd.f32 %v676, %v734
      %v738 = vadd.f32 %v677, %v734
      %v739 = vadd.f32 %v678, %v734
      %v740 = vadd.f32 %v679, %v734
      %v741 = vadd.f32 %v680, %v734
      %v742 = vadd.f32 %v681, %v734
      %v743 = vadd.f32 %v682, %v734
      %v744 = vadd.f32 %v683, %v734
      %v745 = vadd.f32 %v684, %v734
      %v746 = vadd.f32 %v685, %v734
      %v747 = vadd.f32 %v686, %v734
      %v748 = vadd.f32 %v687, %v734
      %v749 = vadd.f32 %v688, %v734
      %v750 = vadd.f32 %v689, %v734
      %v751 = vadd.f32 %v690, %v734
      %v752 = vadd.f32 %v691, %v734
      %v753 = vadd.f32 %v692, %v734
      %v754 = vadd.f32 %v693, %v734
      %v755 = vadd.f32 %v694, %v734
      %v756 = vadd.f32 %v695, %v734
      %v757 = vadd.f32 %v696, %v734
      %v758 = vadd.f32 %v697, %v734
      %v759 = vadd.f32 %v698, %v734
      %v760 = vadd.f32 %v699, %v734
      %v761 = vadd.f32 %v700, %v734
      %v762 = vadd.f32 %v701, %v734
      %v763 = vadd.f32 %v702, %v734
      %v764 = vadd.f32 %v703, %v734
      %v765 = vadd.f32 %v704, %v734
      %v766 = vadd.f32 %v705, %v734
      %v767 = vadd.f32 %v706, %v734
      %v768 = vadd.f32 %v707, %v734
      %v769 = vadd.f32 %v708, %v734
      %v770 = vadd.f32 %v709, %v734
      %v771 = vadd.f32 %v710, %v734
      %v772 = vadd.f32 %v711, %v734
      %v773 = vadd.f32 %v712, %v734
      %v774 = vadd.f32 %v713, %v734
      %v775 = vadd.f32 %v714, %v734
      %v776 = vadd.f32 %v715, %v734
      %v777 = vadd.f32 %v716, %v734
      %v778 = vadd.f32 %v717, %v734
      %v779 = vadd.f32 %v718, %v734
      %v780 = vadd.f32 %v719, %v734
      %v781 = vadd.f32 %v720, %v734
      %v782 = vadd.f32 %v721, %v734
      %v783 = vadd.f32 %v722, %v734
      %v784 = vadd.f32 %v723, %v734
      %v785 = vadd.f32 %v724, %v734
      %v786 = vadd.f32 %v725, %v734
      %v787 = vadd.f32 %v726, %v734
      %v788 = vadd.f32 %v727, %v734
      %v789 = vadd.f32 %v728, %v734
      %v790 = vmax.f32 %v736, 0.0
      %v791 = vmax.f32 %v737, 0.0
      %v792 = vmax.f32 %v738, 0.0
      %v793 = vmax.f32 %v739, 0.0
      %v794 = vmax.f32 %v740, 0.0
      %v795 = vmax.f32 %v741, 0.0
      %v796 = vmax.f32 %v742, 0.0
      %v797 = vmax.f32 %v743, 0.0
      %v798 = vmax.f32 %v744, 0.0
      %v799 = vmax.f32 %v745, 0.0
      %v800 = vmax.f32 %v746, 0.0
      %v801 = vmax.f32 %v747, 0.0
      %v802 = vmax.f32 %v748, 0.0
      %v803 = vmax.f32 %v749, 0.0
      %v804 = vmax.f32 %v750, 0.0
      %v805 = vmax.f32 %v751, 0.0
      %v806 = vmax.f32 %v752, 0.0
      %v807 = vmax.f32 %v753, 0.0
      %v808 = vmax.f32 %v754, 0.0
      %v809 = vmax.f32 %v755, 0.0
      %v810 = vmax.f32 %v756, 0.0
      %v811 = vmax.f32 %v757, 0.0
      %v812 = vmax.f32 %v758, 0.0
      %v813 = vmax.f32 %v759, 0.0
      %v814 = vmax.f32 %v760, 0.0
      %v815 = vmax.f32 %v761, 0.0
      %v816 = vmax.f32 %v762, 0.0
      %v817 = vmax.f32 %v763, 0.0
      %v818 = vmax.f32 %v764, 0.0
      %v819 = vmax.f32 %v765, 0.0
      %v820 = vmax.f32 %v766, 0.0
      %v821 = vmax.f32 %v767, 0.0
      %v822 = vmax.f32 %v768, 0.0
      %v823 = vmax.f32 %v769, 0.0
      %v824 = vmax.f32 %v770, 0.0
      %v825 = vmax.f32 %v771, 0.0
      %v826 = vmax.f32 %v772, 0.0
      %v827 = vmax.f32 %v773, 0.0
      %v828 = vmax.f32 %v774, 0.0
      %v829 = vmax.f32 %v775, 0.0
      %v830 = vmax.f32 %v776, 0.0
      %v831 = vmax.f32 %v777, 0.0
      %v832 = vmax.f32 %v778, 0.0
      %v833 = vmax.f32 %v779, 0.0
      %v834 = vmax.f32 %v780, 0.0
      %v835 = vmax.f32 %v781, 0.0
      %v836 = vmax.f32 %v782, 0.0
      %v837 = vmax.f32 %v783, 0.0
      %v838 = vmax.f32 %v784, 0.0
      %v839 = vmax.f32 %v785, 0.0
      %v840 = vmax.f32 %v786, 0.0
      %v841 = vmax.f32 %v787, 0.0
      %v842 = vmax.f32 %v788, 0.0
      %v843 = vmax.f32 %v789, 0.0
      %v844 = vsel %vm560, %v790, 0.0
      %v845 = vsel %vm561, %v791, 0.0
      %v846 = vsel %vm562, %v792, 0.0
      %v847 = vsel %vm563, %v793, 0.0
      %v848 = vsel %vm564, %v794, 0.0
      %v849 = vsel %vm565, %v795, 0.0
      %v850 = vsel %vm566, %v796, 0.0
      %v851 = vsel %vm567, %v797, 0.0
      %v852 = vsel %vm568, %v798, 0.0
      %v853 = vsel %vm569, %v799, 0.0
      %v854 = vsel %vm570, %v800, 0.0
      %v855 = vsel %vm571, %v801, 0.0
      %v856 = vsel %vm572, %v802, 0.0
      %v857 = vsel %vm573, %v803, 0.0
      %v858 = vsel %vm574, %v804, 0.0
      %v859 = vsel %vm575, %v805, 0.0
      %v860 = vsel %vm576, %v806, 0.0
      %v861 = vsel %vm577, %v807, 0.0
      %v862 = vsel %vm578, %v808, 0.0
      %v863 = vsel %vm579, %v809, 0.0
      %v864 = vsel %vm580, %v810, 0.0
      %v865 = vsel %vm581, %v811, 0.0
      %v866 = vsel %vm582, %v812, 0.0
      %v867 = vsel %vm583, %v813, 0.0
      %v868 = vsel %vm584, %v814, 0.0
      %v869 = vsel %vm585, %v815, 0.0
      %v870 = vsel %vm586, %v816, 0.0
      %v871 = vsel %vm587, %v817, 0.0
      %v872 = vsel %vm588, %v818, 0.0
      %v873 = vsel %vm589, %v819, 0.0
      %v874 = vsel %vm590, %v820, 0.0
      %v875 = vsel %vm591, %v821, 0.0
      %v876 = vsel %vm592, %v822, 0.0
      %v877 = vsel %vm593, %v823, 0.0
      %v878 = vsel %vm594, %v824, 0.0
      %v879 = vsel %vm595, %v825, 0.0
      %v880 = vsel %vm596, %v826, 0.0
      %v881 = vsel %vm597, %v827, 0.0
      %v882 = vsel %vm598, %v828, 0.0
      %v883 = vsel %vm599, %v829, 0.0
      %v884 = vsel %vm600, %v830, 0.0
      %v885 = vsel %vm601, %v831, 0.0
      %v886 = vsel %vm602, %v832, 0.0
      %v887 = vsel %vm603, %v833, 0.0
      %v888 = vsel %vm604, %v834, 0.0
      %v889 = vsel %vm605, %v835, 0.0
      %v890 = vsel %vm606, %v836, 0.0
      %v891 = vsel %vm607, %v837, 0.0
      %v892 = vsel %vm608, %v838, 0.0
      %v893 = vsel %vm609, %v839, 0.0
      %v894 = vsel %vm610, %v840, 0.0
      %v895 = vsel %vm611, %v841, 0.0
      %v896 = vsel %vm612, %v842, 0.0
      %v897 = vsel %vm613, %v843, 0.0
      %v898 = vpack.c.bf16 %v845, %v844
      %v899 = vpack.c.bf16 %v846, %v846
      %v900 = vpack.c.bf16 %v848, %v847
      %v901 = vpack.c.bf16 %v849, %v849
      %v902 = vpack.c.bf16 %v851, %v850
      %v903 = vpack.c.bf16 %v852, %v852
      %v904 = vpack.c.bf16 %v854, %v853
      %v905 = vpack.c.bf16 %v855, %v855
      %v906 = vpack.c.bf16 %v857, %v856
      %v907 = vpack.c.bf16 %v858, %v858
      %v908 = vpack.c.bf16 %v860, %v859
      %v909 = vpack.c.bf16 %v861, %v861
      %v910 = vpack.c.bf16 %v863, %v862
      %v911 = vpack.c.bf16 %v864, %v864
      %v912 = vpack.c.bf16 %v866, %v865
      %v913 = vpack.c.bf16 %v867, %v867
      %v914 = vpack.c.bf16 %v869, %v868
      %v915 = vpack.c.bf16 %v870, %v870
      %v916 = vpack.c.bf16 %v872, %v871
      %v917 = vpack.c.bf16 %v873, %v873
      %v918 = vpack.c.bf16 %v875, %v874
      %v919 = vpack.c.bf16 %v876, %v876
      %v920 = vpack.c.bf16 %v878, %v877
      %v921 = vpack.c.bf16 %v879, %v879
      %v922 = vpack.c.bf16 %v881, %v880
      %v923 = vpack.c.bf16 %v882, %v882
      %v924 = vpack.c.bf16 %v884, %v883
      %v925 = vpack.c.bf16 %v885, %v885
      %v926 = vpack.c.bf16 %v887, %v886
      %v927 = vpack.c.bf16 %v888, %v888
      %v928 = vpack.c.bf16 %v890, %v889
      %v929 = vpack.c.bf16 %v891, %v891
      %v930 = vpack.c.bf16 %v893, %v892
      %v931 = vpack.c.bf16 %v894, %v894
      %v932 = vpack.c.bf16 %v896, %v895
      %v933 = vpack.c.bf16 %v897, %v897
      %v934 = vld [vmem:[%s2] sm:$0xf]
      %v935 = vld [vmem:[%s2 + $0x4] sm:$0xf]
      %v936 = vld [vmem:[%s2 + $0x8] sm:$0xf]
      %v937 = vld [vmem:[%s2 + $0xc] sm:$0xf]
      %v938 = vld [vmem:[%s2 + $0x10] sm:$0xf]
      %v939 = vld [vmem:[%s2 + $0x14] sm:$0xf]
      %v940 = vld [vmem:[%s2 + $0x18] sm:$0xf]
      %v941 = vld [vmem:[%s2 + $0x1c] sm:$0xf]
      %v942 = vld [vmem:[%s2 + $0x20] sm:$0xf]
      %v943 = vld [vmem:[%s2 + $0x24] sm:$0xf]
      %v944 = vld [vmem:[%s2 + $0x28] sm:$0xf]
      %v945 = vld [vmem:[%s2 + $0x2c] sm:$0xf]
      %v946 = vld [vmem:[%s2 + $0x30] sm:$0xf]
      %v947 = vld [vmem:[%s2 + $0x34] sm:$0xf]
      %v948 = vld [vmem:[%s2 + $0x38] sm:$0xf]
      %v949 = vld [vmem:[%s2 + $0x3c] sm:$0xf]
      %s950 = scalar_lea.vmem %s2, 192
      %v951 = vld [vmem:[%s950] sm:$0xf]
      %v952 = vld [vmem:[%s950 + $0x4] sm:$0xf]
      %v953 = vld [vmem:[%s950 + $0x8] sm:$0xf]
      %v954 = vld [vmem:[%s950 + $0xc] sm:$0xf]
      %v955 = vld [vmem:[%s950 + $0x10] sm:$0xf]
      %v956 = vld [vmem:[%s950 + $0x14] sm:$0xf]
      %v957 = vld [vmem:[%s950 + $0x18] sm:$0xf]
      %v958 = vld [vmem:[%s950 + $0x1c] sm:$0xf]
      %v959 = vld [vmem:[%s950 + $0x20] sm:$0xf]
      %v960 = vld [vmem:[%s950 + $0x24] sm:$0xf]
      %v961 = vld [vmem:[%s950 + $0x28] sm:$0xf]
      %v962 = vld [vmem:[%s950 + $0x2c] sm:$0xf]
      %v963 = vld [vmem:[%s950 + $0x30] sm:$0xf]
      %v964 = vld [vmem:[%s950 + $0x34] sm:$0xf]
      %v965 = vld [vmem:[%s950 + $0x38] sm:$0xf]
      %v966 = vld [vmem:[%s950 + $0x3c] sm:$0xf]
      %v983 = vunpack.c.l.b16 %v951
      %v984 = vunpack.c.l.b16 %v952
      %v985 = vunpack.c.l.b16 %v953
      %v986 = vunpack.c.l.b16 %v954
      %v987 = vunpack.c.l.b16 %v955
      %v988 = vunpack.c.l.b16 %v956
      %v989 = vunpack.c.l.b16 %v957
      %v990 = vunpack.c.l.b16 %v958
      %v991 = vunpack.c.l.b16 %v959
      %v992 = vunpack.c.l.b16 %v960
      %v993 = vunpack.c.l.b16 %v961
      %v994 = vunpack.c.l.b16 %v962
      %v995 = vunpack.c.l.b16 %v963
      %v996 = vunpack.c.l.b16 %v964
      %v997 = vunpack.c.l.b16 %v965
      %v998 = vunpack.c.l.b16 %v966
      %v999 = vpack.c.b16 %v984, %v983
      %v1000 = vpack.c.b16 %v986, %v985
      %v1001 = vpack.c.b16 %v988, %v987
      %v1002 = vpack.c.b16 %v990, %v989
      %v1003 = vpack.c.b16 %v992, %v991
      %v1004 = vpack.c.b16 %v994, %v993
      %v1005 = vpack.c.b16 %v996, %v995
      %v1006 = vpack.c.b16 %v998, %v997
      %1015 = vmatprep.subr.bf16.mxu0 0
      %1016 = vmatpush1.bf16.msra.mxu0 %v1006
      %1017 = vmatprep.subr.bf16.mxu0 0
      %1018 = vmatpush1.bf16.msra.mxu0 %v1005
      %1019 = vmatprep.subr.bf16.mxu0 0
      %1020 = vmatpush1.bf16.msra.mxu0 %v1004
      %1021 = vmatprep.subr.bf16.mxu0 0
      %1022 = vmatpush1.bf16.msra.mxu0 %v1003
      %1023 = vmatprep.subr.bf16.mxu0 0
      %1024 = vmatpush1.bf16.msra.mxu0 %v1002
      %1025 = vmatprep.subr.bf16.mxu0 0
      %1026 = vmatpush1.bf16.msra.mxu0 %v1001
      %1027 = vmatprep.subr.bf16.mxu0 0
      %1028 = vmatpush1.bf16.msra.mxu0 %v1000
      %1029 = vmatprep.subr.bf16.mxu0 0
      %1030 = vmatpush1.bf16.msra.mxu0 %v999
      %1031 = vmatprep.subr.bf16.mxu0 0
      %1032 = vmatpush2.bf16.msra.mxu0 0
      %1033 = vmatprep.subr.bf16.mxu0 0
      %1034 = vmatpush2.bf16.msra.mxu0 0
      %1035 = vmatprep.subr.bf16.mxu0 0
      %1036 = vmatpush2.bf16.msra.mxu0 0
      %1037 = vmatprep.subr.bf16.mxu0 0
      %1038 = vmatpush2.bf16.msra.mxu0 0
      %1039 = vmatprep.subr.bf16.mxu0 0
      %1040 = vmatpush2.bf16.msra.mxu0 0
      %1041 = vmatprep.subr.bf16.mxu0 0
      %1042 = vmatpush2.bf16.msra.mxu0 0
      %1043 = vmatprep.subr.bf16.mxu0 0
      %1044 = vmatpush2.bf16.msra.mxu0 0
      %1045 = vmatprep.subr.bf16.mxu0 0
      %1046 = vmatpush2.bf16.msra.mxu0 0
      %1047 = vmatprep.mubr.bf16.mxu0 0
      %1048 = vmatmul.mubr.bf16.gmra.mxu0 %v900
      %v1049 = vpop.f32.mrf.mxu0
      %v1050 = vadd.f32 0.0, %v1049
      %v1051 = vpop.f32.mrf.mxu0
      %v1052 = vpop.f32.mrf.mxu0
      %v1053 = vadd.f32 0.0, %v1052
      %v1054 = vpop.f32.mrf.mxu0
      %1055 = vmatprep.mubr.bf16.mxu0 0
      %1056 = vmatmul.mubr.bf16.gmra.mxu0 %v902
      %v1057 = vpop.f32.mrf.mxu0
      %v1058 = vadd.f32 0.0, %v1057
      %v1059 = vpop.f32.mrf.mxu0
      %v1060 = vpop.f32.mrf.mxu0
      %v1061 = vadd.f32 0.0, %v1060
      %v1062 = vpop.f32.mrf.mxu0
      %1063 = vmatprep.mubr.bf16.mxu0 0
      %1064 = vmatmul.mubr.bf16.gmra.mxu0 %v904
      %v1065 = vpop.f32.mrf.mxu0
      %v1066 = vadd.f32 0.0, %v1065
      %v1067 = vpop.f32.mrf.mxu0
      %v1068 = vpop.f32.mrf.mxu0
      %v1069 = vadd.f32 0.0, %v1068
      %v1070 = vpop.f32.mrf.mxu0
      %1071 = vmatprep.mubr.bf16.mxu0 0
      %1072 = vmatmul.mubr.bf16.gmra.mxu0 %v906
      %v1073 = vpop.f32.mrf.mxu0
      %v1074 = vadd.f32 0.0, %v1073
      %v1075 = vpop.f32.mrf.mxu0
      %v1076 = vpop.f32.mrf.mxu0
      %v1077 = vadd.f32 0.0, %v1076
      %v1078 = vpop.f32.mrf.mxu0
      %1079 = vmatprep.mubr.bf16.mxu0 0
      %1080 = vmatmul.mubr.bf16.gmra.mxu0 %v908
      %v1081 = vpop.f32.mrf.mxu0
      %v1082 = vadd.f32 0.0, %v1081
      %v1083 = vpop.f32.mrf.mxu0
      %v1084 = vpop.f32.mrf.mxu0
      %v1085 = vadd.f32 0.0, %v1084
      %v1086 = vpop.f32.mrf.mxu0
      %1087 = vmatprep.mubr.bf16.mxu0 0
      %1088 = vmatmul.mubr.bf16.gmra.mxu0 %v910
      %v1089 = vpop.f32.mrf.mxu0
      %v1090 = vadd.f32 0.0, %v1089
      %v1091 = vpop.f32.mrf.mxu0
      %v1092 = vpop.f32.mrf.mxu0
      %v1093 = vadd.f32 0.0, %v1092
      %v1094 = vpop.f32.mrf.mxu0
      %1095 = vmatprep.mubr.bf16.mxu0 0
      %1096 = vmatmul.mubr.bf16.gmra.mxu0 %v912
      %v1097 = vpop.f32.mrf.mxu0
      %v1098 = vadd.f32 0.0, %v1097
      %v1099 = vpop.f32.mrf.mxu0
      %v1100 = vpop.f32.mrf.mxu0
      %v1101 = vadd.f32 0.0, %v1100
      %v1102 = vpop.f32.mrf.mxu0
      %1103 = vmatprep.mubr.bf16.mxu0 0
      %1104 = vmatmul.mubr.bf16.gmra.mxu0 %v914
      %v1105 = vpop.f32.mrf.mxu0
      %v1106 = vadd.f32 0.0, %v1105
      %v1107 = vpop.f32.mrf.mxu0
      %v1108 = vpop.f32.mrf.mxu0
      %v1109 = vadd.f32 0.0, %v1108
      %v1110 = vpop.f32.mrf.mxu0
      %1111 = vmatprep.mubr.bf16.mxu0 0
      %1112 = vmatmul.mubr.bf16.gmra.mxu0 %v916
      %v1113 = vpop.f32.mrf.mxu0
      %v1114 = vadd.f32 0.0, %v1113
      %v1115 = vpop.f32.mrf.mxu0
      %v1116 = vpop.f32.mrf.mxu0
      %v1117 = vadd.f32 0.0, %v1116
      %v1118 = vpop.f32.mrf.mxu0
      %1119 = vmatprep.mubr.bf16.mxu0 0
      %1120 = vmatmul.mubr.bf16.gmra.mxu0 %v918
      %v1121 = vpop.f32.mrf.mxu0
      %v1122 = vadd.f32 0.0, %v1121
      %v1123 = vpop.f32.mrf.mxu0
      %v1124 = vpop.f32.mrf.mxu0
      %v1125 = vadd.f32 0.0, %v1124
      %v1126 = vpop.f32.mrf.mxu0
      %1127 = vmatprep.mubr.bf16.mxu0 0
      %1128 = vmatmul.mubr.bf16.gmra.mxu0 %v920
      %v1129 = vpop.f32.mrf.mxu0
      %v1130 = vadd.f32 0.0, %v1129
      %v1131 = vpop.f32.mrf.mxu0
      %v1132 = vpop.f32.mrf.mxu0
      %v1133 = vadd.f32 0.0, %v1132
      %v1134 = vpop.f32.mrf.mxu0
      %1135 = vmatprep.mubr.bf16.mxu0 0
      %1136 = vmatmul.mubr.bf16.gmra.mxu0 %v922
      %v1137 = vpop.f32.mrf.mxu0
      %v1138 = vadd.f32 0.0, %v1137
      %v1139 = vpop.f32.mrf.mxu0
      %v1140 = vpop.f32.mrf.mxu0
      %v1141 = vadd.f32 0.0, %v1140
      %v1142 = vpop.f32.mrf.mxu0
      %1143 = vmatprep.mubr.bf16.mxu0 0
      %1144 = vmatmul.mubr.bf16.gmra.mxu0 %v924
      %v1145 = vpop.f32.mrf.mxu0
      %v1146 = vadd.f32 0.0, %v1145
      %v1147 = vpop.f32.mrf.mxu0
      %v1148 = vpop.f32.mrf.mxu0
      %v1149 = vadd.f32 0.0, %v1148
      %v1150 = vpop.f32.mrf.mxu0
      %1151 = vmatprep.mubr.bf16.mxu0 0
      %1152 = vmatmul.mubr.bf16.gmra.mxu0 %v926
      %v1153 = vpop.f32.mrf.mxu0
      %v1154 = vadd.f32 0.0, %v1153
      %v1155 = vpop.f32.mrf.mxu0
      %v1156 = vpop.f32.mrf.mxu0
      %v1157 = vadd.f32 0.0, %v1156
      %v1158 = vpop.f32.mrf.mxu0
      %1159 = vmatprep.mubr.bf16.mxu0 0
      %1160 = vmatmul.mubr.bf16.gmra.mxu0 %v928
      %v1161 = vpop.f32.mrf.mxu0
      %v1162 = vadd.f32 0.0, %v1161
      %v1163 = vpop.f32.mrf.mxu0
      %v1164 = vpop.f32.mrf.mxu0
      %v1165 = vadd.f32 0.0, %v1164
      %v1166 = vpop.f32.mrf.mxu0
      %1167 = vmatprep.mubr.bf16.mxu0 0
      %1168 = vmatmul.mubr.bf16.gmra.mxu0 %v930
      %v1169 = vpop.f32.mrf.mxu0
      %v1170 = vadd.f32 0.0, %v1169
      %v1171 = vpop.f32.mrf.mxu0
      %v1172 = vpop.f32.mrf.mxu0
      %v1173 = vadd.f32 0.0, %v1172
      %v1174 = vpop.f32.mrf.mxu0
      %1175 = vdwg.mxu0
      %v1192 = vunpack.c.l.b16 %v934
      %v1193 = vunpack.c.l.b16 %v935
      %v1194 = vunpack.c.l.b16 %v936
      %v1195 = vunpack.c.l.b16 %v937
      %v1196 = vunpack.c.l.b16 %v938
      %v1197 = vunpack.c.l.b16 %v939
      %v1198 = vunpack.c.l.b16 %v940
      %v1199 = vunpack.c.l.b16 %v941
      %v1200 = vunpack.c.l.b16 %v942
      %v1201 = vunpack.c.l.b16 %v943
      %v1202 = vunpack.c.l.b16 %v944
      %v1203 = vunpack.c.l.b16 %v945
      %v1204 = vunpack.c.l.b16 %v946
      %v1205 = vunpack.c.l.b16 %v947
      %v1206 = vunpack.c.l.b16 %v948
      %v1207 = vunpack.c.l.b16 %v949
      %v1208 = vpack.c.b16 %v1193, %v1192
      %v1209 = vpack.c.b16 %v1195, %v1194
      %v1210 = vpack.c.b16 %v1197, %v1196
      %v1211 = vpack.c.b16 %v1199, %v1198
      %v1212 = vpack.c.b16 %v1201, %v1200
      %v1213 = vpack.c.b16 %v1203, %v1202
      %v1214 = vpack.c.b16 %v1205, %v1204
      %v1215 = vpack.c.b16 %v1207, %v1206
      %1224 = vmatprep.subr.bf16.mxu0 0
      %1225 = vmatpush1.bf16.msra.mxu0 %v1215
      %1226 = vmatprep.subr.bf16.mxu0 0
      %1227 = vmatpush1.bf16.msra.mxu0 %v1214
      %1228 = vmatprep.subr.bf16.mxu0 0
      %1229 = vmatpush1.bf16.msra.mxu0 %v1213
      %1230 = vmatprep.subr.bf16.mxu0 0
      %1231 = vmatpush1.bf16.msra.mxu0 %v1212
      %1232 = vmatprep.subr.bf16.mxu0 0
      %1233 = vmatpush1.bf16.msra.mxu0 %v1211
      %1234 = vmatprep.subr.bf16.mxu0 0
      %1235 = vmatpush1.bf16.msra.mxu0 %v1210
      %1236 = vmatprep.subr.bf16.mxu0 0
      %1237 = vmatpush1.bf16.msra.mxu0 %v1209
      %1238 = vmatprep.subr.bf16.mxu0 0
      %1239 = vmatpush1.bf16.msra.mxu0 %v1208
      %1240 = vmatprep.subr.bf16.mxu0 0
      %1241 = vmatpush2.bf16.msra.mxu0 0
      %1242 = vmatprep.subr.bf16.mxu0 0
      %1243 = vmatpush2.bf16.msra.mxu0 0
      %1244 = vmatprep.subr.bf16.mxu0 0
      %1245 = vmatpush2.bf16.msra.mxu0 0
      %1246 = vmatprep.subr.bf16.mxu0 0
      %1247 = vmatpush2.bf16.msra.mxu0 0
      %1248 = vmatprep.subr.bf16.mxu0 0
      %1249 = vmatpush2.bf16.msra.mxu0 0
      %1250 = vmatprep.subr.bf16.mxu0 0
      %1251 = vmatpush2.bf16.msra.mxu0 0
      %1252 = vmatprep.subr.bf16.mxu0 0
      %1253 = vmatpush2.bf16.msra.mxu0 0
      %1254 = vmatprep.subr.bf16.mxu0 0
      %1255 = vmatpush2.bf16.msra.mxu0 0
      %1256 = vmatprep.mubr.bf16.mxu0 0
      %1257 = vmatmul.mubr.bf16.gmra.mxu0 %v898
      %v1258 = vpop.f32.mrf.mxu0
      %v1259 = vadd.f32 %v1050, %v1258
      %v1260 = vpop.f32.mrf.mxu0
      %v1261 = vpop.f32.mrf.mxu0
      %v1262 = vadd.f32 %v1053, %v1261
      %v1263 = vpop.f32.mrf.mxu0
      %1264 = vmatprep.mubr.bf16.mxu0 0
      %1265 = vmatmul.mubr.bf16.gmra.mxu0 %v900
      %v1266 = vpop.f32.mrf.mxu0
      %v1267 = vadd.f32 %v1058, %v1266
      %v1268 = vpop.f32.mrf.mxu0
      %v1269 = vpop.f32.mrf.mxu0
      %v1270 = vadd.f32 %v1061, %v1269
      %v1271 = vpop.f32.mrf.mxu0
      %1272 = vmatprep.mubr.bf16.mxu0 0
      %1273 = vmatmul.mubr.bf16.gmra.mxu0 %v902
      %v1274 = vpop.f32.mrf.mxu0
      %v1275 = vadd.f32 %v1066, %v1274
      %v1276 = vpop.f32.mrf.mxu0
      %v1277 = vpop.f32.mrf.mxu0
      %v1278 = vadd.f32 %v1069, %v1277
      %v1279 = vpop.f32.mrf.mxu0
      %1280 = vmatprep.mubr.bf16.mxu0 0
      %1281 = vmatmul.mubr.bf16.gmra.mxu0 %v904
      %v1282 = vpop.f32.mrf.mxu0
      %v1283 = vadd.f32 %v1074, %v1282
      %v1284 = vpop.f32.mrf.mxu0
      %v1285 = vpop.f32.mrf.mxu0
      %v1286 = vadd.f32 %v1077, %v1285
      %v1287 = vpop.f32.mrf.mxu0
      %1288 = vmatprep.mubr.bf16.mxu0 0
      %1289 = vmatmul.mubr.bf16.gmra.mxu0 %v906
      %v1290 = vpop.f32.mrf.mxu0
      %v1291 = vadd.f32 %v1082, %v1290
      %v1292 = vpop.f32.mrf.mxu0
      %v1293 = vpop.f32.mrf.mxu0
      %v1294 = vadd.f32 %v1085, %v1293
      %v1295 = vpop.f32.mrf.mxu0
      %1296 = vmatprep.mubr.bf16.mxu0 0
      %1297 = vmatmul.mubr.bf16.gmra.mxu0 %v908
      %v1298 = vpop.f32.mrf.mxu0
      %v1299 = vadd.f32 %v1090, %v1298
      %v1300 = vpop.f32.mrf.mxu0
      %v1301 = vpop.f32.mrf.mxu0
      %v1302 = vadd.f32 %v1093, %v1301
      %v1303 = vpop.f32.mrf.mxu0
      %1304 = vmatprep.mubr.bf16.mxu0 0
      %1305 = vmatmul.mubr.bf16.gmra.mxu0 %v910
      %v1306 = vpop.f32.mrf.mxu0
      %v1307 = vadd.f32 %v1098, %v1306
      %v1308 = vpop.f32.mrf.mxu0
      %v1309 = vpop.f32.mrf.mxu0
      %v1310 = vadd.f32 %v1101, %v1309
      %v1311 = vpop.f32.mrf.mxu0
      %1312 = vmatprep.mubr.bf16.mxu0 0
      %1313 = vmatmul.mubr.bf16.gmra.mxu0 %v912
      %v1314 = vpop.f32.mrf.mxu0
      %v1315 = vadd.f32 %v1106, %v1314
      %v1316 = vpop.f32.mrf.mxu0
      %v1317 = vpop.f32.mrf.mxu0
      %v1318 = vadd.f32 %v1109, %v1317
      %v1319 = vpop.f32.mrf.mxu0
      %1320 = vmatprep.mubr.bf16.mxu0 0
      %1321 = vmatmul.mubr.bf16.gmra.mxu0 %v914
      %v1322 = vpop.f32.mrf.mxu0
      %v1323 = vadd.f32 %v1114, %v1322
      %v1324 = vpop.f32.mrf.mxu0
      %v1325 = vpop.f32.mrf.mxu0
      %v1326 = vadd.f32 %v1117, %v1325
      %v1327 = vpop.f32.mrf.mxu0
      %1328 = vmatprep.mubr.bf16.mxu0 0
      %1329 = vmatmul.mubr.bf16.gmra.mxu0 %v916
      %v1330 = vpop.f32.mrf.mxu0
      %v1331 = vadd.f32 %v1122, %v1330
      %v1332 = vpop.f32.mrf.mxu0
      %v1333 = vpop.f32.mrf.mxu0
      %v1334 = vadd.f32 %v1125, %v1333
      %v1335 = vpop.f32.mrf.mxu0
      %1336 = vmatprep.mubr.bf16.mxu0 0
      %1337 = vmatmul.mubr.bf16.gmra.mxu0 %v918
      %v1338 = vpop.f32.mrf.mxu0
      %v1339 = vadd.f32 %v1130, %v1338
      %v1340 = vpop.f32.mrf.mxu0
      %v1341 = vpop.f32.mrf.mxu0
      %v1342 = vadd.f32 %v1133, %v1341
      %v1343 = vpop.f32.mrf.mxu0
      %1344 = vmatprep.mubr.bf16.mxu0 0
      %1345 = vmatmul.mubr.bf16.gmra.mxu0 %v920
      %v1346 = vpop.f32.mrf.mxu0
      %v1347 = vadd.f32 %v1138, %v1346
      %v1348 = vpop.f32.mrf.mxu0
      %v1349 = vpop.f32.mrf.mxu0
      %v1350 = vadd.f32 %v1141, %v1349
      %v1351 = vpop.f32.mrf.mxu0
      %1352 = vmatprep.mubr.bf16.mxu0 0
      %1353 = vmatmul.mubr.bf16.gmra.mxu0 %v922
      %v1354 = vpop.f32.mrf.mxu0
      %v1355 = vadd.f32 %v1146, %v1354
      %v1356 = vpop.f32.mrf.mxu0
      %v1357 = vpop.f32.mrf.mxu0
      %v1358 = vadd.f32 %v1149, %v1357
      %v1359 = vpop.f32.mrf.mxu0
      %1360 = vmatprep.mubr.bf16.mxu0 0
      %1361 = vmatmul.mubr.bf16.gmra.mxu0 %v924
      %v1362 = vpop.f32.mrf.mxu0
      %v1363 = vadd.f32 %v1154, %v1362
      %v1364 = vpop.f32.mrf.mxu0
      %v1365 = vpop.f32.mrf.mxu0
      %v1366 = vadd.f32 %v1157, %v1365
      %v1367 = vpop.f32.mrf.mxu0
      %1368 = vmatprep.mubr.bf16.mxu0 0
      %1369 = vmatmul.mubr.bf16.gmra.mxu0 %v926
      %v1370 = vpop.f32.mrf.mxu0
      %v1371 = vadd.f32 %v1162, %v1370
      %v1372 = vpop.f32.mrf.mxu0
      %v1373 = vpop.f32.mrf.mxu0
      %v1374 = vadd.f32 %v1165, %v1373
      %v1375 = vpop.f32.mrf.mxu0
      %1376 = vmatprep.mubr.bf16.mxu0 0
      %1377 = vmatmul.mubr.bf16.gmra.mxu0 %v928
      %v1378 = vpop.f32.mrf.mxu0
      %v1379 = vadd.f32 %v1170, %v1378
      %v1380 = vpop.f32.mrf.mxu0
      %v1381 = vpop.f32.mrf.mxu0
      %v1382 = vadd.f32 %v1173, %v1381
      %v1383 = vpop.f32.mrf.mxu0
      %1384 = vdwg.mxu0
      %s1385 = scalar_lea.vmem %s2, 384
      %v1386 = vld [vmem:[%s1385] sm:$0xf]
      %v1387 = vld [vmem:[%s1385 + $0x4] sm:$0xf]
      %v1388 = vld [vmem:[%s1385 + $0x8] sm:$0xf]
      %v1389 = vld [vmem:[%s1385 + $0xc] sm:$0xf]
      %v1390 = vld [vmem:[%s1385 + $0x10] sm:$0xf]
      %v1391 = vld [vmem:[%s1385 + $0x14] sm:$0xf]
      %v1392 = vld [vmem:[%s1385 + $0x18] sm:$0xf]
      %v1393 = vld [vmem:[%s1385 + $0x1c] sm:$0xf]
      %v1394 = vld [vmem:[%s1385 + $0x20] sm:$0xf]
      %v1395 = vld [vmem:[%s1385 + $0x24] sm:$0xf]
      %v1396 = vld [vmem:[%s1385 + $0x28] sm:$0xf]
      %v1397 = vld [vmem:[%s1385 + $0x2c] sm:$0xf]
      %v1398 = vld [vmem:[%s1385 + $0x30] sm:$0xf]
      %v1399 = vld [vmem:[%s1385 + $0x34] sm:$0xf]
      %v1400 = vld [vmem:[%s1385 + $0x38] sm:$0xf]
      %v1401 = vld [vmem:[%s1385 + $0x3c] sm:$0xf]
      %v1418 = vunpack.c.l.b16 %v1386
      %v1419 = vunpack.c.l.b16 %v1387
      %v1420 = vunpack.c.l.b16 %v1388
      %v1421 = vunpack.c.l.b16 %v1389
      %v1422 = vunpack.c.l.b16 %v1390
      %v1423 = vunpack.c.l.b16 %v1391
      %v1424 = vunpack.c.l.b16 %v1392
      %v1425 = vunpack.c.l.b16 %v1393
      %v1426 = vunpack.c.l.b16 %v1394
      %v1427 = vunpack.c.l.b16 %v1395
      %v1428 = vunpack.c.l.b16 %v1396
      %v1429 = vunpack.c.l.b16 %v1397
      %v1430 = vunpack.c.l.b16 %v1398
      %v1431 = vunpack.c.l.b16 %v1399
      %v1432 = vunpack.c.l.b16 %v1400
      %v1433 = vunpack.c.l.b16 %v1401
      %v1434 = vpack.c.b16 %v1419, %v1418
      %v1435 = vpack.c.b16 %v1421, %v1420
      %v1436 = vpack.c.b16 %v1423, %v1422
      %v1437 = vpack.c.b16 %v1425, %v1424
      %v1438 = vpack.c.b16 %v1427, %v1426
      %v1439 = vpack.c.b16 %v1429, %v1428
      %v1440 = vpack.c.b16 %v1431, %v1430
      %v1441 = vpack.c.b16 %v1433, %v1432
      %1450 = vmatprep.subr.bf16.mxu0 0
      %1451 = vmatpush1.bf16.msra.mxu0 %v1441
      %1452 = vmatprep.subr.bf16.mxu0 0
      %1453 = vmatpush1.bf16.msra.mxu0 %v1440
      %1454 = vmatprep.subr.bf16.mxu0 0
      %1455 = vmatpush1.bf16.msra.mxu0 %v1439
      %1456 = vmatprep.subr.bf16.mxu0 0
      %1457 = vmatpush1.bf16.msra.mxu0 %v1438
      %1458 = vmatprep.subr.bf16.mxu0 0
      %1459 = vmatpush1.bf16.msra.mxu0 %v1437
      %1460 = vmatprep.subr.bf16.mxu0 0
      %1461 = vmatpush1.bf16.msra.mxu0 %v1436
      %1462 = vmatprep.subr.bf16.mxu0 0
      %1463 = vmatpush1.bf16.msra.mxu0 %v1435
      %1464 = vmatprep.subr.bf16.mxu0 0
      %1465 = vmatpush1.bf16.msra.mxu0 %v1434
      %1466 = vmatprep.subr.bf16.mxu0 0
      %1467 = vmatpush2.bf16.msra.mxu0 0
      %1468 = vmatprep.subr.bf16.mxu0 0
      %1469 = vmatpush2.bf16.msra.mxu0 0
      %1470 = vmatprep.subr.bf16.mxu0 0
      %1471 = vmatpush2.bf16.msra.mxu0 0
      %1472 = vmatprep.subr.bf16.mxu0 0
      %1473 = vmatpush2.bf16.msra.mxu0 0
      %1474 = vmatprep.subr.bf16.mxu0 0
      %1475 = vmatpush2.bf16.msra.mxu0 0
      %1476 = vmatprep.subr.bf16.mxu0 0
      %1477 = vmatpush2.bf16.msra.mxu0 0
      %1478 = vmatprep.subr.bf16.mxu0 0
      %1479 = vmatpush2.bf16.msra.mxu0 0
      %1480 = vmatprep.subr.bf16.mxu0 0
      %1481 = vmatpush2.bf16.msra.mxu0 0
      %1482 = vmatprep.mubr.bf16.mxu0 0
      %1483 = vmatmul.mubr.bf16.gmra.mxu0 %v902
      %v1484 = vpop.f32.mrf.mxu0
      %v1485 = vadd.f32 0.0, %v1484
      %v1486 = vpop.f32.mrf.mxu0
      %v1487 = vpop.f32.mrf.mxu0
      %v1488 = vadd.f32 0.0, %v1487
      %v1489 = vpop.f32.mrf.mxu0
      %1490 = vmatprep.mubr.bf16.mxu0 0
      %1491 = vmatmul.mubr.bf16.gmra.mxu0 %v904
      %v1492 = vpop.f32.mrf.mxu0
      %v1493 = vadd.f32 0.0, %v1492
      %v1494 = vpop.f32.mrf.mxu0
      %v1495 = vpop.f32.mrf.mxu0
      %v1496 = vadd.f32 0.0, %v1495
      %v1497 = vpop.f32.mrf.mxu0
      %1498 = vmatprep.mubr.bf16.mxu0 0
      %1499 = vmatmul.mubr.bf16.gmra.mxu0 %v906
      %v1500 = vpop.f32.mrf.mxu0
      %v1501 = vadd.f32 0.0, %v1500
      %v1502 = vpop.f32.mrf.mxu0
      %v1503 = vpop.f32.mrf.mxu0
      %v1504 = vadd.f32 0.0, %v1503
      %v1505 = vpop.f32.mrf.mxu0
      %1506 = vmatprep.mubr.bf16.mxu0 0
      %1507 = vmatmul.mubr.bf16.gmra.mxu0 %v908
      %v1508 = vpop.f32.mrf.mxu0
      %v1509 = vadd.f32 0.0, %v1508
      %v1510 = vpop.f32.mrf.mxu0
      %v1511 = vpop.f32.mrf.mxu0
      %v1512 = vadd.f32 0.0, %v1511
      %v1513 = vpop.f32.mrf.mxu0
      %1514 = vmatprep.mubr.bf16.mxu0 0
      %1515 = vmatmul.mubr.bf16.gmra.mxu0 %v910
      %v1516 = vpop.f32.mrf.mxu0
      %v1517 = vadd.f32 0.0, %v1516
      %v1518 = vpop.f32.mrf.mxu0
      %v1519 = vpop.f32.mrf.mxu0
      %v1520 = vadd.f32 0.0, %v1519
      %v1521 = vpop.f32.mrf.mxu0
      %1522 = vmatprep.mubr.bf16.mxu0 0
      %1523 = vmatmul.mubr.bf16.gmra.mxu0 %v912
      %v1524 = vpop.f32.mrf.mxu0
      %v1525 = vadd.f32 0.0, %v1524
      %v1526 = vpop.f32.mrf.mxu0
      %v1527 = vpop.f32.mrf.mxu0
      %v1528 = vadd.f32 0.0, %v1527
      %v1529 = vpop.f32.mrf.mxu0
      %1530 = vmatprep.mubr.bf16.mxu0 0
      %1531 = vmatmul.mubr.bf16.gmra.mxu0 %v914
      %v1532 = vpop.f32.mrf.mxu0
      %v1533 = vadd.f32 0.0, %v1532
      %v1534 = vpop.f32.mrf.mxu0
      %v1535 = vpop.f32.mrf.mxu0
      %v1536 = vadd.f32 0.0, %v1535
      %v1537 = vpop.f32.mrf.mxu0
      %1538 = vmatprep.mubr.bf16.mxu0 0
      %1539 = vmatmul.mubr.bf16.gmra.mxu0 %v916
      %v1540 = vpop.f32.mrf.mxu0
      %v1541 = vadd.f32 0.0, %v1540
      %v1542 = vpop.f32.mrf.mxu0
      %v1543 = vpop.f32.mrf.mxu0
      %v1544 = vadd.f32 0.0, %v1543
      %v1545 = vpop.f32.mrf.mxu0
      %1546 = vmatprep.mubr.bf16.mxu0 0
      %1547 = vmatmul.mubr.bf16.gmra.mxu0 %v918
      %v1548 = vpop.f32.mrf.mxu0
      %v1549 = vadd.f32 0.0, %v1548
      %v1550 = vpop.f32.mrf.mxu0
      %v1551 = vpop.f32.mrf.mxu0
      %v1552 = vadd.f32 0.0, %v1551
      %v1553 = vpop.f32.mrf.mxu0
      %1554 = vmatprep.mubr.bf16.mxu0 0
      %1555 = vmatmul.mubr.bf16.gmra.mxu0 %v920
      %v1556 = vpop.f32.mrf.mxu0
      %v1557 = vadd.f32 0.0, %v1556
      %v1558 = vpop.f32.mrf.mxu0
      %v1559 = vpop.f32.mrf.mxu0
      %v1560 = vadd.f32 0.0, %v1559
      %v1561 = vpop.f32.mrf.mxu0
      %1562 = vmatprep.mubr.bf16.mxu0 0
      %1563 = vmatmul.mubr.bf16.gmra.mxu0 %v922
      %v1564 = vpop.f32.mrf.mxu0
      %v1565 = vadd.f32 0.0, %v1564
      %v1566 = vpop.f32.mrf.mxu0
      %v1567 = vpop.f32.mrf.mxu0
      %v1568 = vadd.f32 0.0, %v1567
      %v1569 = vpop.f32.mrf.mxu0
      %1570 = vmatprep.mubr.bf16.mxu0 0
      %1571 = vmatmul.mubr.bf16.gmra.mxu0 %v924
      %v1572 = vpop.f32.mrf.mxu0
      %v1573 = vadd.f32 0.0, %v1572
      %v1574 = vpop.f32.mrf.mxu0
      %v1575 = vpop.f32.mrf.mxu0
      %v1576 = vadd.f32 0.0, %v1575
      %v1577 = vpop.f32.mrf.mxu0
      %1578 = vmatprep.mubr.bf16.mxu0 0
      %1579 = vmatmul.mubr.bf16.gmra.mxu0 %v926
      %v1580 = vpop.f32.mrf.mxu0
      %v1581 = vadd.f32 0.0, %v1580
      %v1582 = vpop.f32.mrf.mxu0
      %v1583 = vpop.f32.mrf.mxu0
      %v1584 = vadd.f32 0.0, %v1583
      %v1585 = vpop.f32.mrf.mxu0
      %1586 = vmatprep.mubr.bf16.mxu0 0
      %1587 = vmatmul.mubr.bf16.gmra.mxu0 %v928
      %v1588 = vpop.f32.mrf.mxu0
      %v1589 = vadd.f32 0.0, %v1588
      %v1590 = vpop.f32.mrf.mxu0
      %v1591 = vpop.f32.mrf.mxu0
      %v1592 = vadd.f32 0.0, %v1591
      %v1593 = vpop.f32.mrf.mxu0
      %1594 = vmatprep.mubr.bf16.mxu0 0
      %1595 = vmatmul.mubr.bf16.gmra.mxu0 %v930
      %v1596 = vpop.f32.mrf.mxu0
      %v1597 = vadd.f32 0.0, %v1596
      %v1598 = vpop.f32.mrf.mxu0
      %v1599 = vpop.f32.mrf.mxu0
      %v1600 = vadd.f32 0.0, %v1599
      %v1601 = vpop.f32.mrf.mxu0
      %1602 = vmatprep.mubr.bf16.mxu0 0
      %1603 = vmatmul.mubr.bf16.gmra.mxu0 %v932
      %v1604 = vpop.f32.mrf.mxu0
      %v1605 = vadd.f32 0.0, %v1604
      %v1606 = vpop.f32.mrf.mxu0
      %v1607 = vpop.f32.mrf.mxu0
      %v1608 = vadd.f32 0.0, %v1607
      %v1609 = vpop.f32.mrf.mxu0
      %1610 = vdwg.mxu0
      %v1611 = vadd.f32 %v1259, %v1485
      %v1612 = vadd.f32 %v1262, %v1488
      %v1613 = vadd.f32 %v1267, %v1493
      %v1614 = vadd.f32 %v1270, %v1496
      %v1615 = vadd.f32 %v1275, %v1501
      %v1616 = vadd.f32 %v1278, %v1504
      %v1617 = vadd.f32 %v1283, %v1509
      %v1618 = vadd.f32 %v1286, %v1512
      %v1619 = vadd.f32 %v1291, %v1517
      %v1620 = vadd.f32 %v1294, %v1520
      %v1621 = vadd.f32 %v1299, %v1525
      %v1622 = vadd.f32 %v1302, %v1528
      %v1623 = vadd.f32 %v1307, %v1533
      %v1624 = vadd.f32 %v1310, %v1536
      %v1625 = vadd.f32 %v1315, %v1541
      %v1626 = vadd.f32 %v1318, %v1544
      %v1627 = vadd.f32 %v1323, %v1549
      %v1628 = vadd.f32 %v1326, %v1552
      %v1629 = vadd.f32 %v1331, %v1557
      %v1630 = vadd.f32 %v1334, %v1560
      %v1631 = vadd.f32 %v1339, %v1565
      %v1632 = vadd.f32 %v1342, %v1568
      %v1633 = vadd.f32 %v1347, %v1573
      %v1634 = vadd.f32 %v1350, %v1576
      %v1635 = vadd.f32 %v1355, %v1581
      %v1636 = vadd.f32 %v1358, %v1584
      %v1637 = vadd.f32 %v1363, %v1589
      %v1638 = vadd.f32 %v1366, %v1592
      %v1639 = vadd.f32 %v1371, %v1597
      %v1640 = vadd.f32 %v1374, %v1600
      %v1641 = vadd.f32 %v1379, %v1605
      %v1642 = vadd.f32 %v1382, %v1608
      %vm1643 = vsmask.f32 7424
      %v1645 = vshrl.u32 %v898, 16
      %v1647 = vshll.u32 %v898, 16
      %v1649 = vrot.slane %v1647, 1
      %v1650 = vor.u32 %v1645, %v1649
      %v1652 = vshll.u32 %v899, 16
      %v1654 = vrot.slane %v1652, 1
      %v1655 = vsel %vm1643, %v1650, %v1654
      %v1657 = vshrl.u32 %v900, 16
      %v1659 = vshll.u32 %v900, 16
      %v1661 = vrot.slane %v1659, 1
      %v1662 = vor.u32 %v1657, %v1661
      %v1664 = vshll.u32 %v901, 16
      %v1666 = vrot.slane %v1664, 1
      %v1667 = vsel %vm1643, %v1662, %v1666
      %v1669 = vshrl.u32 %v902, 16
      %v1671 = vshll.u32 %v902, 16
      %v1673 = vrot.slane %v1671, 1
      %v1674 = vor.u32 %v1669, %v1673
      %v1676 = vshll.u32 %v903, 16
      %v1678 = vrot.slane %v1676, 1
      %v1679 = vsel %vm1643, %v1674, %v1678
      %v1681 = vshrl.u32 %v904, 16
      %v1683 = vshll.u32 %v904, 16
      %v1685 = vrot.slane %v1683, 1
      %v1686 = vor.u32 %v1681, %v1685
      %v1688 = vshll.u32 %v905, 16
      %v1690 = vrot.slane %v1688, 1
      %v1691 = vsel %vm1643, %v1686, %v1690
      %v1693 = vshrl.u32 %v906, 16
      %v1695 = vshll.u32 %v906, 16
      %v1697 = vrot.slane %v1695, 1
      %v1698 = vor.u32 %v1693, %v1697
      %v1700 = vshll.u32 %v907, 16
      %v1702 = vrot.slane %v1700, 1
      %v1703 = vsel %vm1643, %v1698, %v1702
      %v1705 = vshrl.u32 %v908, 16
      %v1707 = vshll.u32 %v908, 16
      %v1709 = vrot.slane %v1707, 1
      %v1710 = vor.u32 %v1705, %v1709
      %v1712 = vshll.u32 %v909, 16
      %v1714 = vrot.slane %v1712, 1
      %v1715 = vsel %vm1643, %v1710, %v1714
      %v1717 = vshrl.u32 %v910, 16
      %v1719 = vshll.u32 %v910, 16
      %v1721 = vrot.slane %v1719, 1
      %v1722 = vor.u32 %v1717, %v1721
      %v1724 = vshll.u32 %v911, 16
      %v1726 = vrot.slane %v1724, 1
      %v1727 = vsel %vm1643, %v1722, %v1726
      %v1729 = vshrl.u32 %v912, 16
      %v1731 = vshll.u32 %v912, 16
      %v1733 = vrot.slane %v1731, 1
      %v1734 = vor.u32 %v1729, %v1733
      %v1736 = vshll.u32 %v913, 16
      %v1738 = vrot.slane %v1736, 1
      %v1739 = vsel %vm1643, %v1734, %v1738
      %v1741 = vshrl.u32 %v914, 16
      %v1743 = vshll.u32 %v914, 16
      %v1745 = vrot.slane %v1743, 1
      %v1746 = vor.u32 %v1741, %v1745
      %v1748 = vshll.u32 %v915, 16
      %v1750 = vrot.slane %v1748, 1
      %v1751 = vsel %vm1643, %v1746, %v1750
      %v1753 = vshrl.u32 %v916, 16
      %v1755 = vshll.u32 %v916, 16
      %v1757 = vrot.slane %v1755, 1
      %v1758 = vor.u32 %v1753, %v1757
      %v1760 = vshll.u32 %v917, 16
      %v1762 = vrot.slane %v1760, 1
      %v1763 = vsel %vm1643, %v1758, %v1762
      %v1765 = vshrl.u32 %v918, 16
      %v1767 = vshll.u32 %v918, 16
      %v1769 = vrot.slane %v1767, 1
      %v1770 = vor.u32 %v1765, %v1769
      %v1772 = vshll.u32 %v919, 16
      %v1774 = vrot.slane %v1772, 1
      %v1775 = vsel %vm1643, %v1770, %v1774
      %v1777 = vshrl.u32 %v920, 16
      %v1779 = vshll.u32 %v920, 16
      %v1781 = vrot.slane %v1779, 1
      %v1782 = vor.u32 %v1777, %v1781
      %v1784 = vshll.u32 %v921, 16
      %v1786 = vrot.slane %v1784, 1
      %v1787 = vsel %vm1643, %v1782, %v1786
      %v1789 = vshrl.u32 %v922, 16
      %v1791 = vshll.u32 %v922, 16
      %v1793 = vrot.slane %v1791, 1
      %v1794 = vor.u32 %v1789, %v1793
      %v1796 = vshll.u32 %v923, 16
      %v1798 = vrot.slane %v1796, 1
      %v1799 = vsel %vm1643, %v1794, %v1798
      %v1801 = vshrl.u32 %v924, 16
      %v1803 = vshll.u32 %v924, 16
      %v1805 = vrot.slane %v1803, 1
      %v1806 = vor.u32 %v1801, %v1805
      %v1808 = vshll.u32 %v925, 16
      %v1810 = vrot.slane %v1808, 1
      %v1811 = vsel %vm1643, %v1806, %v1810
      %v1813 = vshrl.u32 %v926, 16
      %v1815 = vshll.u32 %v926, 16
      %v1817 = vrot.slane %v1815, 1
      %v1818 = vor.u32 %v1813, %v1817
      %v1820 = vshll.u32 %v927, 16
      %v1822 = vrot.slane %v1820, 1
      %v1823 = vsel %vm1643, %v1818, %v1822
      %v1825 = vshrl.u32 %v928, 16
      %v1827 = vshll.u32 %v928, 16
      %v1829 = vrot.slane %v1827, 1
      %v1830 = vor.u32 %v1825, %v1829
      %v1832 = vshll.u32 %v929, 16
      %v1834 = vrot.slane %v1832, 1
      %v1835 = vsel %vm1643, %v1830, %v1834
      %v1837 = vshrl.u32 %v930, 16
      %v1839 = vshll.u32 %v930, 16
      %v1841 = vrot.slane %v1839, 1
      %v1842 = vor.u32 %v1837, %v1841
      %v1844 = vshll.u32 %v931, 16
      %v1846 = vrot.slane %v1844, 1
      %v1847 = vsel %vm1643, %v1842, %v1846
      %v1849 = vshrl.u32 %v932, 16
      %v1851 = vshll.u32 %v932, 16
      %v1853 = vrot.slane %v1851, 1
      %v1854 = vor.u32 %v1849, %v1853
      %v1856 = vshll.u32 %v933, 16
      %v1858 = vrot.slane %v1856, 1
      %v1859 = vsel %vm1643, %v1854, %v1858
      %s1878 = scalar_lea.vmem %s2, 64
      %v1879 = vld [vmem:[%s1878] sm:$0xf]
      %v1880 = vld [vmem:[%s1878 + $0x4] sm:$0xf]
      %v1881 = vld [vmem:[%s1878 + $0x8] sm:$0xf]
      %v1882 = vld [vmem:[%s1878 + $0xc] sm:$0xf]
      %v1883 = vld [vmem:[%s1878 + $0x10] sm:$0xf]
      %v1884 = vld [vmem:[%s1878 + $0x14] sm:$0xf]
      %v1885 = vld [vmem:[%s1878 + $0x18] sm:$0xf]
      %v1886 = vld [vmem:[%s1878 + $0x1c] sm:$0xf]
      %v1887 = vld [vmem:[%s1878 + $0x20] sm:$0xf]
      %v1888 = vld [vmem:[%s1878 + $0x24] sm:$0xf]
      %v1889 = vld [vmem:[%s1878 + $0x28] sm:$0xf]
      %v1890 = vld [vmem:[%s1878 + $0x2c] sm:$0xf]
      %v1891 = vld [vmem:[%s1878 + $0x30] sm:$0xf]
      %v1892 = vld [vmem:[%s1878 + $0x34] sm:$0xf]
      %v1893 = vld [vmem:[%s1878 + $0x38] sm:$0xf]
      %v1894 = vld [vmem:[%s1878 + $0x3c] sm:$0xf]
      %v1911 = vunpack.c.l.b16 %v1879
      %v1912 = vunpack.c.l.b16 %v1880
      %v1913 = vunpack.c.l.b16 %v1881
      %v1914 = vunpack.c.l.b16 %v1882
      %v1915 = vunpack.c.l.b16 %v1883
      %v1916 = vunpack.c.l.b16 %v1884
      %v1917 = vunpack.c.l.b16 %v1885
      %v1918 = vunpack.c.l.b16 %v1886
      %v1919 = vunpack.c.l.b16 %v1887
      %v1920 = vunpack.c.l.b16 %v1888
      %v1921 = vunpack.c.l.b16 %v1889
      %v1922 = vunpack.c.l.b16 %v1890
      %v1923 = vunpack.c.l.b16 %v1891
      %v1924 = vunpack.c.l.b16 %v1892
      %v1925 = vunpack.c.l.b16 %v1893
      %v1926 = vunpack.c.l.b16 %v1894
      %v1927 = vpack.c.b16 %v1912, %v1911
      %v1928 = vpack.c.b16 %v1914, %v1913
      %v1929 = vpack.c.b16 %v1916, %v1915
      %v1930 = vpack.c.b16 %v1918, %v1917
      %v1931 = vpack.c.b16 %v1920, %v1919
      %v1932 = vpack.c.b16 %v1922, %v1921
      %v1933 = vpack.c.b16 %v1924, %v1923
      %v1934 = vpack.c.b16 %v1926, %v1925
      %1943 = vmatprep.subr.bf16.mxu0 0
      %1944 = vmatpush1.bf16.msra.mxu0 %v1934
      %1945 = vmatprep.subr.bf16.mxu0 0
      %1946 = vmatpush1.bf16.msra.mxu0 %v1933
      %1947 = vmatprep.subr.bf16.mxu0 0
      %1948 = vmatpush1.bf16.msra.mxu0 %v1932
      %1949 = vmatprep.subr.bf16.mxu0 0
      %1950 = vmatpush1.bf16.msra.mxu0 %v1931
      %1951 = vmatprep.subr.bf16.mxu0 0
      %1952 = vmatpush1.bf16.msra.mxu0 %v1930
      %1953 = vmatprep.subr.bf16.mxu0 0
      %1954 = vmatpush1.bf16.msra.mxu0 %v1929
      %1955 = vmatprep.subr.bf16.mxu0 0
      %1956 = vmatpush1.bf16.msra.mxu0 %v1928
      %1957 = vmatprep.subr.bf16.mxu0 0
      %1958 = vmatpush1.bf16.msra.mxu0 %v1927
      %1959 = vmatprep.subr.bf16.mxu0 0
      %1960 = vmatpush2.bf16.msra.mxu0 0
      %1961 = vmatprep.subr.bf16.mxu0 0
      %1962 = vmatpush2.bf16.msra.mxu0 0
      %1963 = vmatprep.subr.bf16.mxu0 0
      %1964 = vmatpush2.bf16.msra.mxu0 0
      %1965 = vmatprep.subr.bf16.mxu0 0
      %1966 = vmatpush2.bf16.msra.mxu0 0
      %1967 = vmatprep.subr.bf16.mxu0 0
      %1968 = vmatpush2.bf16.msra.mxu0 0
      %1969 = vmatprep.subr.bf16.mxu0 0
      %1970 = vmatpush2.bf16.msra.mxu0 0
      %1971 = vmatprep.subr.bf16.mxu0 0
      %1972 = vmatpush2.bf16.msra.mxu0 0
      %1973 = vmatprep.subr.bf16.mxu0 0
      %1974 = vmatpush2.bf16.msra.mxu0 0
      %1975 = vmatprep.mubr.bf16.mxu0 0
      %1976 = vmatmul.mubr.bf16.gmra.mxu0 %v1655
      %v1977 = vpop.f32.mrf.mxu0
      %v1978 = vadd.f32 0.0, %v1977
      %v1979 = vpop.f32.mrf.mxu0
      %v1980 = vpop.f32.mrf.mxu0
      %v1981 = vadd.f32 0.0, %v1980
      %v1982 = vpop.f32.mrf.mxu0
      %1983 = vmatprep.mubr.bf16.mxu0 0
      %1984 = vmatmul.mubr.bf16.gmra.mxu0 %v1667
      %v1985 = vpop.f32.mrf.mxu0
      %v1986 = vadd.f32 0.0, %v1985
      %v1987 = vpop.f32.mrf.mxu0
      %v1988 = vpop.f32.mrf.mxu0
      %v1989 = vadd.f32 0.0, %v1988
      %v1990 = vpop.f32.mrf.mxu0
      %1991 = vmatprep.mubr.bf16.mxu0 0
      %1992 = vmatmul.mubr.bf16.gmra.mxu0 %v1679
      %v1993 = vpop.f32.mrf.mxu0
      %v1994 = vadd.f32 0.0, %v1993
      %v1995 = vpop.f32.mrf.mxu0
      %v1996 = vpop.f32.mrf.mxu0
      %v1997 = vadd.f32 0.0, %v1996
      %v1998 = vpop.f32.mrf.mxu0
      %1999 = vmatprep.mubr.bf16.mxu0 0
      %2000 = vmatmul.mubr.bf16.gmra.mxu0 %v1691
      %v2001 = vpop.f32.mrf.mxu0
      %v2002 = vadd.f32 0.0, %v2001
      %v2003 = vpop.f32.mrf.mxu0
      %v2004 = vpop.f32.mrf.mxu0
      %v2005 = vadd.f32 0.0, %v2004
      %v2006 = vpop.f32.mrf.mxu0
      %2007 = vmatprep.mubr.bf16.mxu0 0
      %2008 = vmatmul.mubr.bf16.gmra.mxu0 %v1703
      %v2009 = vpop.f32.mrf.mxu0
      %v2010 = vadd.f32 0.0, %v2009
      %v2011 = vpop.f32.mrf.mxu0
      %v2012 = vpop.f32.mrf.mxu0
      %v2013 = vadd.f32 0.0, %v2012
      %v2014 = vpop.f32.mrf.mxu0
      %2015 = vmatprep.mubr.bf16.mxu0 0
      %2016 = vmatmul.mubr.bf16.gmra.mxu0 %v1715
      %v2017 = vpop.f32.mrf.mxu0
      %v2018 = vadd.f32 0.0, %v2017
      %v2019 = vpop.f32.mrf.mxu0
      %v2020 = vpop.f32.mrf.mxu0
      %v2021 = vadd.f32 0.0, %v2020
      %v2022 = vpop.f32.mrf.mxu0
      %2023 = vmatprep.mubr.bf16.mxu0 0
      %2024 = vmatmul.mubr.bf16.gmra.mxu0 %v1727
      %v2025 = vpop.f32.mrf.mxu0
      %v2026 = vadd.f32 0.0, %v2025
      %v2027 = vpop.f32.mrf.mxu0
      %v2028 = vpop.f32.mrf.mxu0
      %v2029 = vadd.f32 0.0, %v2028
      %v2030 = vpop.f32.mrf.mxu0
      %2031 = vmatprep.mubr.bf16.mxu0 0
      %2032 = vmatmul.mubr.bf16.gmra.mxu0 %v1739
      %v2033 = vpop.f32.mrf.mxu0
      %v2034 = vadd.f32 0.0, %v2033
      %v2035 = vpop.f32.mrf.mxu0
      %v2036 = vpop.f32.mrf.mxu0
      %v2037 = vadd.f32 0.0, %v2036
      %v2038 = vpop.f32.mrf.mxu0
      %2039 = vmatprep.mubr.bf16.mxu0 0
      %2040 = vmatmul.mubr.bf16.gmra.mxu0 %v1751
      %v2041 = vpop.f32.mrf.mxu0
      %v2042 = vadd.f32 0.0, %v2041
      %v2043 = vpop.f32.mrf.mxu0
      %v2044 = vpop.f32.mrf.mxu0
      %v2045 = vadd.f32 0.0, %v2044
      %v2046 = vpop.f32.mrf.mxu0
      %2047 = vmatprep.mubr.bf16.mxu0 0
      %2048 = vmatmul.mubr.bf16.gmra.mxu0 %v1763
      %v2049 = vpop.f32.mrf.mxu0
      %v2050 = vadd.f32 0.0, %v2049
      %v2051 = vpop.f32.mrf.mxu0
      %v2052 = vpop.f32.mrf.mxu0
      %v2053 = vadd.f32 0.0, %v2052
      %v2054 = vpop.f32.mrf.mxu0
      %2055 = vmatprep.mubr.bf16.mxu0 0
      %2056 = vmatmul.mubr.bf16.gmra.mxu0 %v1775
      %v2057 = vpop.f32.mrf.mxu0
      %v2058 = vadd.f32 0.0, %v2057
      %v2059 = vpop.f32.mrf.mxu0
      %v2060 = vpop.f32.mrf.mxu0
      %v2061 = vadd.f32 0.0, %v2060
      %v2062 = vpop.f32.mrf.mxu0
      %2063 = vmatprep.mubr.bf16.mxu0 0
      %2064 = vmatmul.mubr.bf16.gmra.mxu0 %v1787
      %v2065 = vpop.f32.mrf.mxu0
      %v2066 = vadd.f32 0.0, %v2065
      %v2067 = vpop.f32.mrf.mxu0
      %v2068 = vpop.f32.mrf.mxu0
      %v2069 = vadd.f32 0.0, %v2068
      %v2070 = vpop.f32.mrf.mxu0
      %2071 = vmatprep.mubr.bf16.mxu0 0
      %2072 = vmatmul.mubr.bf16.gmra.mxu0 %v1799
      %v2073 = vpop.f32.mrf.mxu0
      %v2074 = vadd.f32 0.0, %v2073
      %v2075 = vpop.f32.mrf.mxu0
      %v2076 = vpop.f32.mrf.mxu0
      %v2077 = vadd.f32 0.0, %v2076
      %v2078 = vpop.f32.mrf.mxu0
      %2079 = vmatprep.mubr.bf16.mxu0 0
      %2080 = vmatmul.mubr.bf16.gmra.mxu0 %v1811
      %v2081 = vpop.f32.mrf.mxu0
      %v2082 = vadd.f32 0.0, %v2081
      %v2083 = vpop.f32.mrf.mxu0
      %v2084 = vpop.f32.mrf.mxu0
      %v2085 = vadd.f32 0.0, %v2084
      %v2086 = vpop.f32.mrf.mxu0
      %2087 = vmatprep.mubr.bf16.mxu0 0
      %2088 = vmatmul.mubr.bf16.gmra.mxu0 %v1823
      %v2089 = vpop.f32.mrf.mxu0
      %v2090 = vadd.f32 0.0, %v2089
      %v2091 = vpop.f32.mrf.mxu0
      %v2092 = vpop.f32.mrf.mxu0
      %v2093 = vadd.f32 0.0, %v2092
      %v2094 = vpop.f32.mrf.mxu0
      %2095 = vmatprep.mubr.bf16.mxu0 0
      %2096 = vmatmul.mubr.bf16.gmra.mxu0 %v1835
      %v2097 = vpop.f32.mrf.mxu0
      %v2098 = vadd.f32 0.0, %v2097
      %v2099 = vpop.f32.mrf.mxu0
      %v2100 = vpop.f32.mrf.mxu0
      %v2101 = vadd.f32 0.0, %v2100
      %v2102 = vpop.f32.mrf.mxu0
      %2103 = vdwg.mxu0
      %v2104 = vadd.f32 %v1611, %v1978
      %v2105 = vadd.f32 %v1612, %v1981
      %v2106 = vadd.f32 %v1613, %v1986
      %v2107 = vadd.f32 %v1614, %v1989
      %v2108 = vadd.f32 %v1615, %v1994
      %v2109 = vadd.f32 %v1616, %v1997
      %v2110 = vadd.f32 %v1617, %v2002
      %v2111 = vadd.f32 %v1618, %v2005
      %v2112 = vadd.f32 %v1619, %v2010
      %v2113 = vadd.f32 %v1620, %v2013
      %v2114 = vadd.f32 %v1621, %v2018
      %v2115 = vadd.f32 %v1622, %v2021
      %v2116 = vadd.f32 %v1623, %v2026
      %v2117 = vadd.f32 %v1624, %v2029
      %v2118 = vadd.f32 %v1625, %v2034
      %v2119 = vadd.f32 %v1626, %v2037
      %v2120 = vadd.f32 %v1627, %v2042
      %v2121 = vadd.f32 %v1628, %v2045
      %v2122 = vadd.f32 %v1629, %v2050
      %v2123 = vadd.f32 %v1630, %v2053
      %v2124 = vadd.f32 %v1631, %v2058
      %v2125 = vadd.f32 %v1632, %v2061
      %v2126 = vadd.f32 %v1633, %v2066
      %v2127 = vadd.f32 %v1634, %v2069
      %v2128 = vadd.f32 %v1635, %v2074
      %v2129 = vadd.f32 %v1636, %v2077
      %v2130 = vadd.f32 %v1637, %v2082
      %v2131 = vadd.f32 %v1638, %v2085
      %v2132 = vadd.f32 %v1639, %v2090
      %v2133 = vadd.f32 %v1640, %v2093
      %v2134 = vadd.f32 %v1641, %v2098
      %v2135 = vadd.f32 %v1642, %v2101
      %s2136 = scalar_lea.vmem %s2, 256
      %v2137 = vld [vmem:[%s2136] sm:$0xf]
      %v2138 = vld [vmem:[%s2136 + $0x4] sm:$0xf]
      %v2139 = vld [vmem:[%s2136 + $0x8] sm:$0xf]
      %v2140 = vld [vmem:[%s2136 + $0xc] sm:$0xf]
      %v2141 = vld [vmem:[%s2136 + $0x10] sm:$0xf]
      %v2142 = vld [vmem:[%s2136 + $0x14] sm:$0xf]
      %v2143 = vld [vmem:[%s2136 + $0x18] sm:$0xf]
      %v2144 = vld [vmem:[%s2136 + $0x1c] sm:$0xf]
      %v2145 = vld [vmem:[%s2136 + $0x20] sm:$0xf]
      %v2146 = vld [vmem:[%s2136 + $0x24] sm:$0xf]
      %v2147 = vld [vmem:[%s2136 + $0x28] sm:$0xf]
      %v2148 = vld [vmem:[%s2136 + $0x2c] sm:$0xf]
      %v2149 = vld [vmem:[%s2136 + $0x30] sm:$0xf]
      %v2150 = vld [vmem:[%s2136 + $0x34] sm:$0xf]
      %v2151 = vld [vmem:[%s2136 + $0x38] sm:$0xf]
      %v2152 = vld [vmem:[%s2136 + $0x3c] sm:$0xf]
      %v2169 = vunpack.c.l.b16 %v2137
      %v2170 = vunpack.c.l.b16 %v2138
      %v2171 = vunpack.c.l.b16 %v2139
      %v2172 = vunpack.c.l.b16 %v2140
      %v2173 = vunpack.c.l.b16 %v2141
      %v2174 = vunpack.c.l.b16 %v2142
      %v2175 = vunpack.c.l.b16 %v2143
      %v2176 = vunpack.c.l.b16 %v2144
      %v2177 = vunpack.c.l.b16 %v2145
      %v2178 = vunpack.c.l.b16 %v2146
      %v2179 = vunpack.c.l.b16 %v2147
      %v2180 = vunpack.c.l.b16 %v2148
      %v2181 = vunpack.c.l.b16 %v2149
      %v2182 = vunpack.c.l.b16 %v2150
      %v2183 = vunpack.c.l.b16 %v2151
      %v2184 = vunpack.c.l.b16 %v2152
      %v2185 = vpack.c.b16 %v2170, %v2169
      %v2186 = vpack.c.b16 %v2172, %v2171
      %v2187 = vpack.c.b16 %v2174, %v2173
      %v2188 = vpack.c.b16 %v2176, %v2175
      %v2189 = vpack.c.b16 %v2178, %v2177
      %v2190 = vpack.c.b16 %v2180, %v2179
      %v2191 = vpack.c.b16 %v2182, %v2181
      %v2192 = vpack.c.b16 %v2184, %v2183
      %2201 = vmatprep.subr.bf16.mxu0 0
      %2202 = vmatpush1.bf16.msra.mxu0 %v2192
      %2203 = vmatprep.subr.bf16.mxu0 0
      %2204 = vmatpush1.bf16.msra.mxu0 %v2191
      %2205 = vmatprep.subr.bf16.mxu0 0
      %2206 = vmatpush1.bf16.msra.mxu0 %v2190
      %2207 = vmatprep.subr.bf16.mxu0 0
      %2208 = vmatpush1.bf16.msra.mxu0 %v2189
      %2209 = vmatprep.subr.bf16.mxu0 0
      %2210 = vmatpush1.bf16.msra.mxu0 %v2188
      %2211 = vmatprep.subr.bf16.mxu0 0
      %2212 = vmatpush1.bf16.msra.mxu0 %v2187
      %2213 = vmatprep.subr.bf16.mxu0 0
      %2214 = vmatpush1.bf16.msra.mxu0 %v2186
      %2215 = vmatprep.subr.bf16.mxu0 0
      %2216 = vmatpush1.bf16.msra.mxu0 %v2185
      %2217 = vmatprep.subr.bf16.mxu0 0
      %2218 = vmatpush2.bf16.msra.mxu0 0
      %2219 = vmatprep.subr.bf16.mxu0 0
      %2220 = vmatpush2.bf16.msra.mxu0 0
      %2221 = vmatprep.subr.bf16.mxu0 0
      %2222 = vmatpush2.bf16.msra.mxu0 0
      %2223 = vmatprep.subr.bf16.mxu0 0
      %2224 = vmatpush2.bf16.msra.mxu0 0
      %2225 = vmatprep.subr.bf16.mxu0 0
      %2226 = vmatpush2.bf16.msra.mxu0 0
      %2227 = vmatprep.subr.bf16.mxu0 0
      %2228 = vmatpush2.bf16.msra.mxu0 0
      %2229 = vmatprep.subr.bf16.mxu0 0
      %2230 = vmatpush2.bf16.msra.mxu0 0
      %2231 = vmatprep.subr.bf16.mxu0 0
      %2232 = vmatpush2.bf16.msra.mxu0 0
      %2233 = vmatprep.mubr.bf16.mxu0 0
      %2234 = vmatmul.mubr.bf16.gmra.mxu0 %v1667
      %v2235 = vpop.f32.mrf.mxu0
      %v2236 = vadd.f32 0.0, %v2235
      %v2237 = vpop.f32.mrf.mxu0
      %v2238 = vpop.f32.mrf.mxu0
      %v2239 = vadd.f32 0.0, %v2238
      %v2240 = vpop.f32.mrf.mxu0
      %2241 = vmatprep.mubr.bf16.mxu0 0
      %2242 = vmatmul.mubr.bf16.gmra.mxu0 %v1679
      %v2243 = vpop.f32.mrf.mxu0
      %v2244 = vadd.f32 0.0, %v2243
      %v2245 = vpop.f32.mrf.mxu0
      %v2246 = vpop.f32.mrf.mxu0
      %v2247 = vadd.f32 0.0, %v2246
      %v2248 = vpop.f32.mrf.mxu0
      %2249 = vmatprep.mubr.bf16.mxu0 0
      %2250 = vmatmul.mubr.bf16.gmra.mxu0 %v1691
      %v2251 = vpop.f32.mrf.mxu0
      %v2252 = vadd.f32 0.0, %v2251
      %v2253 = vpop.f32.mrf.mxu0
      %v2254 = vpop.f32.mrf.mxu0
      %v2255 = vadd.f32 0.0, %v2254
      %v2256 = vpop.f32.mrf.mxu0
      %2257 = vmatprep.mubr.bf16.mxu0 0
      %2258 = vmatmul.mubr.bf16.gmra.mxu0 %v1703
      %v2259 = vpop.f32.mrf.mxu0
      %v2260 = vadd.f32 0.0, %v2259
      %v2261 = vpop.f32.mrf.mxu0
      %v2262 = vpop.f32.mrf.mxu0
      %v2263 = vadd.f32 0.0, %v2262
      %v2264 = vpop.f32.mrf.mxu0
      %2265 = vmatprep.mubr.bf16.mxu0 0
      %2266 = vmatmul.mubr.bf16.gmra.mxu0 %v1715
      %v2267 = vpop.f32.mrf.mxu0
      %v2268 = vadd.f32 0.0, %v2267
      %v2269 = vpop.f32.mrf.mxu0
      %v2270 = vpop.f32.mrf.mxu0
      %v2271 = vadd.f32 0.0, %v2270
      %v2272 = vpop.f32.mrf.mxu0
      %2273 = vmatprep.mubr.bf16.mxu0 0
      %2274 = vmatmul.mubr.bf16.gmra.mxu0 %v1727
      %v2275 = vpop.f32.mrf.mxu0
      %v2276 = vadd.f32 0.0, %v2275
      %v2277 = vpop.f32.mrf.mxu0
      %v2278 = vpop.f32.mrf.mxu0
      %v2279 = vadd.f32 0.0, %v2278
      %v2280 = vpop.f32.mrf.mxu0
      %2281 = vmatprep.mubr.bf16.mxu0 0
      %2282 = vmatmul.mubr.bf16.gmra.mxu0 %v1739
      %v2283 = vpop.f32.mrf.mxu0
      %v2284 = vadd.f32 0.0, %v2283
      %v2285 = vpop.f32.mrf.mxu0
      %v2286 = vpop.f32.mrf.mxu0
      %v2287 = vadd.f32 0.0, %v2286
      %v2288 = vpop.f32.mrf.mxu0
      %2289 = vmatprep.mubr.bf16.mxu0 0
      %2290 = vmatmul.mubr.bf16.gmra.mxu0 %v1751
      %v2291 = vpop.f32.mrf.mxu0
      %v2292 = vadd.f32 0.0, %v2291
      %v2293 = vpop.f32.mrf.mxu0
      %v2294 = vpop.f32.mrf.mxu0
      %v2295 = vadd.f32 0.0, %v2294
      %v2296 = vpop.f32.mrf.mxu0
      %2297 = vmatprep.mubr.bf16.mxu0 0
      %2298 = vmatmul.mubr.bf16.gmra.mxu0 %v1763
      %v2299 = vpop.f32.mrf.mxu0
      %v2300 = vadd.f32 0.0, %v2299
      %v2301 = vpop.f32.mrf.mxu0
      %v2302 = vpop.f32.mrf.mxu0
      %v2303 = vadd.f32 0.0, %v2302
      %v2304 = vpop.f32.mrf.mxu0
      %2305 = vmatprep.mubr.bf16.mxu0 0
      %2306 = vmatmul.mubr.bf16.gmra.mxu0 %v1775
      %v2307 = vpop.f32.mrf.mxu0
      %v2308 = vadd.f32 0.0, %v2307
      %v2309 = vpop.f32.mrf.mxu0
      %v2310 = vpop.f32.mrf.mxu0
      %v2311 = vadd.f32 0.0, %v2310
      %v2312 = vpop.f32.mrf.mxu0
      %2313 = vmatprep.mubr.bf16.mxu0 0
      %2314 = vmatmul.mubr.bf16.gmra.mxu0 %v1787
      %v2315 = vpop.f32.mrf.mxu0
      %v2316 = vadd.f32 0.0, %v2315
      %v2317 = vpop.f32.mrf.mxu0
      %v2318 = vpop.f32.mrf.mxu0
      %v2319 = vadd.f32 0.0, %v2318
      %v2320 = vpop.f32.mrf.mxu0
      %2321 = vmatprep.mubr.bf16.mxu0 0
      %2322 = vmatmul.mubr.bf16.gmra.mxu0 %v1799
      %v2323 = vpop.f32.mrf.mxu0
      %v2324 = vadd.f32 0.0, %v2323
      %v2325 = vpop.f32.mrf.mxu0
      %v2326 = vpop.f32.mrf.mxu0
      %v2327 = vadd.f32 0.0, %v2326
      %v2328 = vpop.f32.mrf.mxu0
      %2329 = vmatprep.mubr.bf16.mxu0 0
      %2330 = vmatmul.mubr.bf16.gmra.mxu0 %v1811
      %v2331 = vpop.f32.mrf.mxu0
      %v2332 = vadd.f32 0.0, %v2331
      %v2333 = vpop.f32.mrf.mxu0
      %v2334 = vpop.f32.mrf.mxu0
      %v2335 = vadd.f32 0.0, %v2334
      %v2336 = vpop.f32.mrf.mxu0
      %2337 = vmatprep.mubr.bf16.mxu0 0
      %2338 = vmatmul.mubr.bf16.gmra.mxu0 %v1823
      %v2339 = vpop.f32.mrf.mxu0
      %v2340 = vadd.f32 0.0, %v2339
      %v2341 = vpop.f32.mrf.mxu0
      %v2342 = vpop.f32.mrf.mxu0
      %v2343 = vadd.f32 0.0, %v2342
      %v2344 = vpop.f32.mrf.mxu0
      %2345 = vmatprep.mubr.bf16.mxu0 0
      %2346 = vmatmul.mubr.bf16.gmra.mxu0 %v1835
      %v2347 = vpop.f32.mrf.mxu0
      %v2348 = vadd.f32 0.0, %v2347
      %v2349 = vpop.f32.mrf.mxu0
      %v2350 = vpop.f32.mrf.mxu0
      %v2351 = vadd.f32 0.0, %v2350
      %v2352 = vpop.f32.mrf.mxu0
      %2353 = vmatprep.mubr.bf16.mxu0 0
      %2354 = vmatmul.mubr.bf16.gmra.mxu0 %v1847
      %v2355 = vpop.f32.mrf.mxu0
      %v2356 = vadd.f32 0.0, %v2355
      %v2357 = vpop.f32.mrf.mxu0
      %v2358 = vpop.f32.mrf.mxu0
      %v2359 = vadd.f32 0.0, %v2358
      %v2360 = vpop.f32.mrf.mxu0
      %2361 = vdwg.mxu0
      %v2362 = vadd.f32 %v2104, %v2236
      %v2363 = vadd.f32 %v2105, %v2239
      %v2364 = vadd.f32 %v2106, %v2244
      %v2365 = vadd.f32 %v2107, %v2247
      %v2366 = vadd.f32 %v2108, %v2252
      %v2367 = vadd.f32 %v2109, %v2255
      %v2368 = vadd.f32 %v2110, %v2260
      %v2369 = vadd.f32 %v2111, %v2263
      %v2370 = vadd.f32 %v2112, %v2268
      %v2371 = vadd.f32 %v2113, %v2271
      %v2372 = vadd.f32 %v2114, %v2276
      %v2373 = vadd.f32 %v2115, %v2279
      %v2374 = vadd.f32 %v2116, %v2284
      %v2375 = vadd.f32 %v2117, %v2287
      %v2376 = vadd.f32 %v2118, %v2292
      %v2377 = vadd.f32 %v2119, %v2295
      %v2378 = vadd.f32 %v2120, %v2300
      %v2379 = vadd.f32 %v2121, %v2303
      %v2380 = vadd.f32 %v2122, %v2308
      %v2381 = vadd.f32 %v2123, %v2311
      %v2382 = vadd.f32 %v2124, %v2316
      %v2383 = vadd.f32 %v2125, %v2319
      %v2384 = vadd.f32 %v2126, %v2324
      %v2385 = vadd.f32 %v2127, %v2327
      %v2386 = vadd.f32 %v2128, %v2332
      %v2387 = vadd.f32 %v2129, %v2335
      %v2388 = vadd.f32 %v2130, %v2340
      %v2389 = vadd.f32 %v2131, %v2343
      %v2390 = vadd.f32 %v2132, %v2348
      %v2391 = vadd.f32 %v2133, %v2351
      %v2392 = vadd.f32 %v2134, %v2356
      %v2393 = vadd.f32 %v2135, %v2359
      %s2394 = scalar_lea.vmem %s2, 448
      %v2395 = vld [vmem:[%s2394] sm:$0xf]
      %v2396 = vld [vmem:[%s2394 + $0x4] sm:$0xf]
      %v2397 = vld [vmem:[%s2394 + $0x8] sm:$0xf]
      %v2398 = vld [vmem:[%s2394 + $0xc] sm:$0xf]
      %v2399 = vld [vmem:[%s2394 + $0x10] sm:$0xf]
      %v2400 = vld [vmem:[%s2394 + $0x14] sm:$0xf]
      %v2401 = vld [vmem:[%s2394 + $0x18] sm:$0xf]
      %v2402 = vld [vmem:[%s2394 + $0x1c] sm:$0xf]
      %v2403 = vld [vmem:[%s2394 + $0x20] sm:$0xf]
      %v2404 = vld [vmem:[%s2394 + $0x24] sm:$0xf]
      %v2405 = vld [vmem:[%s2394 + $0x28] sm:$0xf]
      %v2406 = vld [vmem:[%s2394 + $0x2c] sm:$0xf]
      %v2407 = vld [vmem:[%s2394 + $0x30] sm:$0xf]
      %v2408 = vld [vmem:[%s2394 + $0x34] sm:$0xf]
      %v2409 = vld [vmem:[%s2394 + $0x38] sm:$0xf]
      %v2410 = vld [vmem:[%s2394 + $0x3c] sm:$0xf]
      %v2427 = vunpack.c.l.b16 %v2395
      %v2428 = vunpack.c.l.b16 %v2396
      %v2429 = vunpack.c.l.b16 %v2397
      %v2430 = vunpack.c.l.b16 %v2398
      %v2431 = vunpack.c.l.b16 %v2399
      %v2432 = vunpack.c.l.b16 %v2400
      %v2433 = vunpack.c.l.b16 %v2401
      %v2434 = vunpack.c.l.b16 %v2402
      %v2435 = vunpack.c.l.b16 %v2403
      %v2436 = vunpack.c.l.b16 %v2404
      %v2437 = vunpack.c.l.b16 %v2405
      %v2438 = vunpack.c.l.b16 %v2406
      %v2439 = vunpack.c.l.b16 %v2407
      %v2440 = vunpack.c.l.b16 %v2408
      %v2441 = vunpack.c.l.b16 %v2409
      %v2442 = vunpack.c.l.b16 %v2410
      %v2443 = vpack.c.b16 %v2428, %v2427
      %v2444 = vpack.c.b16 %v2430, %v2429
      %v2445 = vpack.c.b16 %v2432, %v2431
      %v2446 = vpack.c.b16 %v2434, %v2433
      %v2447 = vpack.c.b16 %v2436, %v2435
      %v2448 = vpack.c.b16 %v2438, %v2437
      %v2449 = vpack.c.b16 %v2440, %v2439
      %v2450 = vpack.c.b16 %v2442, %v2441
      %2459 = vmatprep.subr.bf16.mxu0 0
      %2460 = vmatpush1.bf16.msra.mxu0 %v2450
      %2461 = vmatprep.subr.bf16.mxu0 0
      %2462 = vmatpush1.bf16.msra.mxu0 %v2449
      %2463 = vmatprep.subr.bf16.mxu0 0
      %2464 = vmatpush1.bf16.msra.mxu0 %v2448
      %2465 = vmatprep.subr.bf16.mxu0 0
      %2466 = vmatpush1.bf16.msra.mxu0 %v2447
      %2467 = vmatprep.subr.bf16.mxu0 0
      %2468 = vmatpush1.bf16.msra.mxu0 %v2446
      %2469 = vmatprep.subr.bf16.mxu0 0
      %2470 = vmatpush1.bf16.msra.mxu0 %v2445
      %2471 = vmatprep.subr.bf16.mxu0 0
      %2472 = vmatpush1.bf16.msra.mxu0 %v2444
      %2473 = vmatprep.subr.bf16.mxu0 0
      %2474 = vmatpush1.bf16.msra.mxu0 %v2443
      %2475 = vmatprep.subr.bf16.mxu0 0
      %2476 = vmatpush2.bf16.msra.mxu0 0
      %2477 = vmatprep.subr.bf16.mxu0 0
      %2478 = vmatpush2.bf16.msra.mxu0 0
      %2479 = vmatprep.subr.bf16.mxu0 0
      %2480 = vmatpush2.bf16.msra.mxu0 0
      %2481 = vmatprep.subr.bf16.mxu0 0
      %2482 = vmatpush2.bf16.msra.mxu0 0
      %2483 = vmatprep.subr.bf16.mxu0 0
      %2484 = vmatpush2.bf16.msra.mxu0 0
      %2485 = vmatprep.subr.bf16.mxu0 0
      %2486 = vmatpush2.bf16.msra.mxu0 0
      %2487 = vmatprep.subr.bf16.mxu0 0
      %2488 = vmatpush2.bf16.msra.mxu0 0
      %2489 = vmatprep.subr.bf16.mxu0 0
      %2490 = vmatpush2.bf16.msra.mxu0 0
      %2491 = vmatprep.mubr.bf16.mxu0 0
      %2492 = vmatmul.mubr.bf16.gmra.mxu0 %v1679
      %v2493 = vpop.f32.mrf.mxu0
      %v2494 = vadd.f32 0.0, %v2493
      %v2495 = vpop.f32.mrf.mxu0
      %v2496 = vpop.f32.mrf.mxu0
      %v2497 = vadd.f32 0.0, %v2496
      %v2498 = vpop.f32.mrf.mxu0
      %2499 = vmatprep.mubr.bf16.mxu0 0
      %2500 = vmatmul.mubr.bf16.gmra.mxu0 %v1691
      %v2501 = vpop.f32.mrf.mxu0
      %v2502 = vadd.f32 0.0, %v2501
      %v2503 = vpop.f32.mrf.mxu0
      %v2504 = vpop.f32.mrf.mxu0
      %v2505 = vadd.f32 0.0, %v2504
      %v2506 = vpop.f32.mrf.mxu0
      %2507 = vmatprep.mubr.bf16.mxu0 0
      %2508 = vmatmul.mubr.bf16.gmra.mxu0 %v1703
      %v2509 = vpop.f32.mrf.mxu0
      %v2510 = vadd.f32 0.0, %v2509
      %v2511 = vpop.f32.mrf.mxu0
      %v2512 = vpop.f32.mrf.mxu0
      %v2513 = vadd.f32 0.0, %v2512
      %v2514 = vpop.f32.mrf.mxu0
      %2515 = vmatprep.mubr.bf16.mxu0 0
      %2516 = vmatmul.mubr.bf16.gmra.mxu0 %v1715
      %v2517 = vpop.f32.mrf.mxu0
      %v2518 = vadd.f32 0.0, %v2517
      %v2519 = vpop.f32.mrf.mxu0
      %v2520 = vpop.f32.mrf.mxu0
      %v2521 = vadd.f32 0.0, %v2520
      %v2522 = vpop.f32.mrf.mxu0
      %2523 = vmatprep.mubr.bf16.mxu0 0
      %2524 = vmatmul.mubr.bf16.gmra.mxu0 %v1727
      %v2525 = vpop.f32.mrf.mxu0
      %v2526 = vadd.f32 0.0, %v2525
      %v2527 = vpop.f32.mrf.mxu0
      %v2528 = vpop.f32.mrf.mxu0
      %v2529 = vadd.f32 0.0, %v2528
      %v2530 = vpop.f32.mrf.mxu0
      %2531 = vmatprep.mubr.bf16.mxu0 0
      %2532 = vmatmul.mubr.bf16.gmra.mxu0 %v1739
      %v2533 = vpop.f32.mrf.mxu0
      %v2534 = vadd.f32 0.0, %v2533
      %v2535 = vpop.f32.mrf.mxu0
      %v2536 = vpop.f32.mrf.mxu0
      %v2537 = vadd.f32 0.0, %v2536
      %v2538 = vpop.f32.mrf.mxu0
      %2539 = vmatprep.mubr.bf16.mxu0 0
      %2540 = vmatmul.mubr.bf16.gmra.mxu0 %v1751
      %v2541 = vpop.f32.mrf.mxu0
      %v2542 = vadd.f32 0.0, %v2541
      %v2543 = vpop.f32.mrf.mxu0
      %v2544 = vpop.f32.mrf.mxu0
      %v2545 = vadd.f32 0.0, %v2544
      %v2546 = vpop.f32.mrf.mxu0
      %2547 = vmatprep.mubr.bf16.mxu0 0
      %2548 = vmatmul.mubr.bf16.gmra.mxu0 %v1763
      %v2549 = vpop.f32.mrf.mxu0
      %v2550 = vadd.f32 0.0, %v2549
      %v2551 = vpop.f32.mrf.mxu0
      %v2552 = vpop.f32.mrf.mxu0
      %v2553 = vadd.f32 0.0, %v2552
      %v2554 = vpop.f32.mrf.mxu0
      %2555 = vmatprep.mubr.bf16.mxu0 0
      %2556 = vmatmul.mubr.bf16.gmra.mxu0 %v1775
      %v2557 = vpop.f32.mrf.mxu0
      %v2558 = vadd.f32 0.0, %v2557
      %v2559 = vpop.f32.mrf.mxu0
      %v2560 = vpop.f32.mrf.mxu0
      %v2561 = vadd.f32 0.0, %v2560
      %v2562 = vpop.f32.mrf.mxu0
      %2563 = vmatprep.mubr.bf16.mxu0 0
      %2564 = vmatmul.mubr.bf16.gmra.mxu0 %v1787
      %v2565 = vpop.f32.mrf.mxu0
      %v2566 = vadd.f32 0.0, %v2565
      %v2567 = vpop.f32.mrf.mxu0
      %v2568 = vpop.f32.mrf.mxu0
      %v2569 = vadd.f32 0.0, %v2568
      %v2570 = vpop.f32.mrf.mxu0
      %2571 = vmatprep.mubr.bf16.mxu0 0
      %2572 = vmatmul.mubr.bf16.gmra.mxu0 %v1799
      %v2573 = vpop.f32.mrf.mxu0
      %v2574 = vadd.f32 0.0, %v2573
      %v2575 = vpop.f32.mrf.mxu0
      %v2576 = vpop.f32.mrf.mxu0
      %v2577 = vadd.f32 0.0, %v2576
      %v2578 = vpop.f32.mrf.mxu0
      %2579 = vmatprep.mubr.bf16.mxu0 0
      %2580 = vmatmul.mubr.bf16.gmra.mxu0 %v1811
      %v2581 = vpop.f32.mrf.mxu0
      %v2582 = vadd.f32 0.0, %v2581
      %v2583 = vpop.f32.mrf.mxu0
      %v2584 = vpop.f32.mrf.mxu0
      %v2585 = vadd.f32 0.0, %v2584
      %v2586 = vpop.f32.mrf.mxu0
      %2587 = vmatprep.mubr.bf16.mxu0 0
      %2588 = vmatmul.mubr.bf16.gmra.mxu0 %v1823
      %v2589 = vpop.f32.mrf.mxu0
      %v2590 = vadd.f32 0.0, %v2589
      %v2591 = vpop.f32.mrf.mxu0
      %v2592 = vpop.f32.mrf.mxu0
      %v2593 = vadd.f32 0.0, %v2592
      %v2594 = vpop.f32.mrf.mxu0
      %2595 = vmatprep.mubr.bf16.mxu0 0
      %2596 = vmatmul.mubr.bf16.gmra.mxu0 %v1835
      %v2597 = vpop.f32.mrf.mxu0
      %v2598 = vadd.f32 0.0, %v2597
      %v2599 = vpop.f32.mrf.mxu0
      %v2600 = vpop.f32.mrf.mxu0
      %v2601 = vadd.f32 0.0, %v2600
      %v2602 = vpop.f32.mrf.mxu0
      %2603 = vmatprep.mubr.bf16.mxu0 0
      %2604 = vmatmul.mubr.bf16.gmra.mxu0 %v1847
      %v2605 = vpop.f32.mrf.mxu0
      %v2606 = vadd.f32 0.0, %v2605
      %v2607 = vpop.f32.mrf.mxu0
      %v2608 = vpop.f32.mrf.mxu0
      %v2609 = vadd.f32 0.0, %v2608
      %v2610 = vpop.f32.mrf.mxu0
      %2611 = vmatprep.mubr.bf16.mxu0 0
      %2612 = vmatmul.mubr.bf16.gmra.mxu0 %v1859
      %v2613 = vpop.f32.mrf.mxu0
      %v2614 = vadd.f32 0.0, %v2613
      %v2615 = vpop.f32.mrf.mxu0
      %v2616 = vpop.f32.mrf.mxu0
      %v2617 = vadd.f32 0.0, %v2616
      %v2618 = vpop.f32.mrf.mxu0
      %2619 = vdwg.mxu0
      %v2620 = vadd.f32 %v2362, %v2494
      %v2621 = vadd.f32 %v2363, %v2497
      %v2622 = vadd.f32 %v2364, %v2502
      %v2623 = vadd.f32 %v2365, %v2505
      %v2624 = vadd.f32 %v2366, %v2510
      %v2625 = vadd.f32 %v2367, %v2513
      %v2626 = vadd.f32 %v2368, %v2518
      %v2627 = vadd.f32 %v2369, %v2521
      %v2628 = vadd.f32 %v2370, %v2526
      %v2629 = vadd.f32 %v2371, %v2529
      %v2630 = vadd.f32 %v2372, %v2534
      %v2631 = vadd.f32 %v2373, %v2537
      %v2632 = vadd.f32 %v2374, %v2542
      %v2633 = vadd.f32 %v2375, %v2545
      %v2634 = vadd.f32 %v2376, %v2550
      %v2635 = vadd.f32 %v2377, %v2553
      %v2636 = vadd.f32 %v2378, %v2558
      %v2637 = vadd.f32 %v2379, %v2561
      %v2638 = vadd.f32 %v2380, %v2566
      %v2639 = vadd.f32 %v2381, %v2569
      %v2640 = vadd.f32 %v2382, %v2574
      %v2641 = vadd.f32 %v2383, %v2577
      %v2642 = vadd.f32 %v2384, %v2582
      %v2643 = vadd.f32 %v2385, %v2585
      %v2644 = vadd.f32 %v2386, %v2590
      %v2645 = vadd.f32 %v2387, %v2593
      %v2646 = vadd.f32 %v2388, %v2598
      %v2647 = vadd.f32 %v2389, %v2601
      %v2648 = vadd.f32 %v2390, %v2606
      %v2649 = vadd.f32 %v2391, %v2609
      %v2650 = vadd.f32 %v2392, %v2614
      %v2651 = vadd.f32 %v2393, %v2617
      %vm2688 = vcmask 1046528
      %v2689 = vrot.slane %v898, 1
      %v2690 = vrot.slane %v899, 1
      %v2691 = vsel %vm2688, %v2689, %v2690
      %v2692 = vrot.slane %v900, 1
      %v2693 = vrot.slane %v901, 1
      %v2694 = vsel %vm2688, %v2692, %v2693
      %v2695 = vrot.slane %v902, 1
      %v2696 = vrot.slane %v903, 1
      %v2697 = vsel %vm2688, %v2695, %v2696
      %v2698 = vrot.slane %v904, 1
      %v2699 = vrot.slane %v905, 1
      %v2700 = vsel %vm2688, %v2698, %v2699
      %v2701 = vrot.slane %v906, 1
      %v2702 = vrot.slane %v907, 1
      %v2703 = vsel %vm2688, %v2701, %v2702
      %v2704 = vrot.slane %v908, 1
      %v2705 = vrot.slane %v909, 1
      %v2706 = vsel %vm2688, %v2704, %v2705
      %v2707 = vrot.slane %v910, 1
      %v2708 = vrot.slane %v911, 1
      %v2709 = vsel %vm2688, %v2707, %v2708
      %v2710 = vrot.slane %v912, 1
      %v2711 = vrot.slane %v913, 1
      %v2712 = vsel %vm2688, %v2710, %v2711
      %v2713 = vrot.slane %v914, 1
      %v2714 = vrot.slane %v915, 1
      %v2715 = vsel %vm2688, %v2713, %v2714
      %v2716 = vrot.slane %v916, 1
      %v2717 = vrot.slane %v917, 1
      %v2718 = vsel %vm2688, %v2716, %v2717
      %v2719 = vrot.slane %v918, 1
      %v2720 = vrot.slane %v919, 1
      %v2721 = vsel %vm2688, %v2719, %v2720
      %v2722 = vrot.slane %v920, 1
      %v2723 = vrot.slane %v921, 1
      %v2724 = vsel %vm2688, %v2722, %v2723
      %v2725 = vrot.slane %v922, 1
      %v2726 = vrot.slane %v923, 1
      %v2727 = vsel %vm2688, %v2725, %v2726
      %v2728 = vrot.slane %v924, 1
      %v2729 = vrot.slane %v925, 1
      %v2730 = vsel %vm2688, %v2728, %v2729
      %v2731 = vrot.slane %v926, 1
      %v2732 = vrot.slane %v927, 1
      %v2733 = vsel %vm2688, %v2731, %v2732
      %v2734 = vrot.slane %v928, 1
      %v2735 = vrot.slane %v929, 1
      %v2736 = vsel %vm2688, %v2734, %v2735
      %v2737 = vrot.slane %v930, 1
      %v2738 = vrot.slane %v931, 1
      %v2739 = vsel %vm2688, %v2737, %v2738
      %v2740 = vrot.slane %v932, 1
      %v2741 = vrot.slane %v933, 1
      %v2742 = vsel %vm2688, %v2740, %v2741
      %s2761 = scalar_lea.vmem %s2, 128
      %v2762 = vld [vmem:[%s2761] sm:$0xf]
      %v2763 = vld [vmem:[%s2761 + $0x4] sm:$0xf]
      %v2764 = vld [vmem:[%s2761 + $0x8] sm:$0xf]
      %v2765 = vld [vmem:[%s2761 + $0xc] sm:$0xf]
      %v2766 = vld [vmem:[%s2761 + $0x10] sm:$0xf]
      %v2767 = vld [vmem:[%s2761 + $0x14] sm:$0xf]
      %v2768 = vld [vmem:[%s2761 + $0x18] sm:$0xf]
      %v2769 = vld [vmem:[%s2761 + $0x1c] sm:$0xf]
      %v2770 = vld [vmem:[%s2761 + $0x20] sm:$0xf]
      %v2771 = vld [vmem:[%s2761 + $0x24] sm:$0xf]
      %v2772 = vld [vmem:[%s2761 + $0x28] sm:$0xf]
      %v2773 = vld [vmem:[%s2761 + $0x2c] sm:$0xf]
      %v2774 = vld [vmem:[%s2761 + $0x30] sm:$0xf]
      %v2775 = vld [vmem:[%s2761 + $0x34] sm:$0xf]
      %v2776 = vld [vmem:[%s2761 + $0x38] sm:$0xf]
      %v2777 = vld [vmem:[%s2761 + $0x3c] sm:$0xf]
      %v2794 = vunpack.c.l.b16 %v2762
      %v2795 = vunpack.c.l.b16 %v2763
      %v2796 = vunpack.c.l.b16 %v2764
      %v2797 = vunpack.c.l.b16 %v2765
      %v2798 = vunpack.c.l.b16 %v2766
      %v2799 = vunpack.c.l.b16 %v2767
      %v2800 = vunpack.c.l.b16 %v2768
      %v2801 = vunpack.c.l.b16 %v2769
      %v2802 = vunpack.c.l.b16 %v2770
      %v2803 = vunpack.c.l.b16 %v2771
      %v2804 = vunpack.c.l.b16 %v2772
      %v2805 = vunpack.c.l.b16 %v2773
      %v2806 = vunpack.c.l.b16 %v2774
      %v2807 = vunpack.c.l.b16 %v2775
      %v2808 = vunpack.c.l.b16 %v2776
      %v2809 = vunpack.c.l.b16 %v2777
      %v2810 = vpack.c.b16 %v2795, %v2794
      %v2811 = vpack.c.b16 %v2797, %v2796
      %v2812 = vpack.c.b16 %v2799, %v2798
      %v2813 = vpack.c.b16 %v2801, %v2800
      %v2814 = vpack.c.b16 %v2803, %v2802
      %v2815 = vpack.c.b16 %v2805, %v2804
      %v2816 = vpack.c.b16 %v2807, %v2806
      %v2817 = vpack.c.b16 %v2809, %v2808
      %2826 = vmatprep.subr.bf16.mxu0 0
      %2827 = vmatpush1.bf16.msra.mxu0 %v2817
      %2828 = vmatprep.subr.bf16.mxu0 0
      %2829 = vmatpush1.bf16.msra.mxu0 %v2816
      %2830 = vmatprep.subr.bf16.mxu0 0
      %2831 = vmatpush1.bf16.msra.mxu0 %v2815
      %2832 = vmatprep.subr.bf16.mxu0 0
      %2833 = vmatpush1.bf16.msra.mxu0 %v2814
      %2834 = vmatprep.subr.bf16.mxu0 0
      %2835 = vmatpush1.bf16.msra.mxu0 %v2813
      %2836 = vmatprep.subr.bf16.mxu0 0
      %2837 = vmatpush1.bf16.msra.mxu0 %v2812
      %2838 = vmatprep.subr.bf16.mxu0 0
      %2839 = vmatpush1.bf16.msra.mxu0 %v2811
      %2840 = vmatprep.subr.bf16.mxu0 0
      %2841 = vmatpush1.bf16.msra.mxu0 %v2810
      %2842 = vmatprep.subr.bf16.mxu0 0
      %2843 = vmatpush2.bf16.msra.mxu0 0
      %2844 = vmatprep.subr.bf16.mxu0 0
      %2845 = vmatpush2.bf16.msra.mxu0 0
      %2846 = vmatprep.subr.bf16.mxu0 0
      %2847 = vmatpush2.bf16.msra.mxu0 0
      %2848 = vmatprep.subr.bf16.mxu0 0
      %2849 = vmatpush2.bf16.msra.mxu0 0
      %2850 = vmatprep.subr.bf16.mxu0 0
      %2851 = vmatpush2.bf16.msra.mxu0 0
      %2852 = vmatprep.subr.bf16.mxu0 0
      %2853 = vmatpush2.bf16.msra.mxu0 0
      %2854 = vmatprep.subr.bf16.mxu0 0
      %2855 = vmatpush2.bf16.msra.mxu0 0
      %2856 = vmatprep.subr.bf16.mxu0 0
      %2857 = vmatpush2.bf16.msra.mxu0 0
      %2858 = vmatprep.mubr.bf16.mxu0 0
      %2859 = vmatmul.mubr.bf16.gmra.mxu0 %v2691
      %v2860 = vpop.f32.mrf.mxu0
      %v2861 = vadd.f32 0.0, %v2860
      %v2862 = vpop.f32.mrf.mxu0
      %v2863 = vpop.f32.mrf.mxu0
      %v2864 = vadd.f32 0.0, %v2863
      %v2865 = vpop.f32.mrf.mxu0
      %2866 = vmatprep.mubr.bf16.mxu0 0
      %2867 = vmatmul.mubr.bf16.gmra.mxu0 %v2694
      %v2868 = vpop.f32.mrf.mxu0
      %v2869 = vadd.f32 0.0, %v2868
      %v2870 = vpop.f32.mrf.mxu0
      %v2871 = vpop.f32.mrf.mxu0
      %v2872 = vadd.f32 0.0, %v2871
      %v2873 = vpop.f32.mrf.mxu0
      %2874 = vmatprep.mubr.bf16.mxu0 0
      %2875 = vmatmul.mubr.bf16.gmra.mxu0 %v2697
      %v2876 = vpop.f32.mrf.mxu0
      %v2877 = vadd.f32 0.0, %v2876
      %v2878 = vpop.f32.mrf.mxu0
      %v2879 = vpop.f32.mrf.mxu0
      %v2880 = vadd.f32 0.0, %v2879
      %v2881 = vpop.f32.mrf.mxu0
      %2882 = vmatprep.mubr.bf16.mxu0 0
      %2883 = vmatmul.mubr.bf16.gmra.mxu0 %v2700
      %v2884 = vpop.f32.mrf.mxu0
      %v2885 = vadd.f32 0.0, %v2884
      %v2886 = vpop.f32.mrf.mxu0
      %v2887 = vpop.f32.mrf.mxu0
      %v2888 = vadd.f32 0.0, %v2887
      %v2889 = vpop.f32.mrf.mxu0
      %2890 = vmatprep.mubr.bf16.mxu0 0
      %2891 = vmatmul.mubr.bf16.gmra.mxu0 %v2703
      %v2892 = vpop.f32.mrf.mxu0
      %v2893 = vadd.f32 0.0, %v2892
      %v2894 = vpop.f32.mrf.mxu0
      %v2895 = vpop.f32.mrf.mxu0
      %v2896 = vadd.f32 0.0, %v2895
      %v2897 = vpop.f32.mrf.mxu0
      %2898 = vmatprep.mubr.bf16.mxu0 0
      %2899 = vmatmul.mubr.bf16.gmra.mxu0 %v2706
      %v2900 = vpop.f32.mrf.mxu0
      %v2901 = vadd.f32 0.0, %v2900
      %v2902 = vpop.f32.mrf.mxu0
      %v2903 = vpop.f32.mrf.mxu0
      %v2904 = vadd.f32 0.0, %v2903
      %v2905 = vpop.f32.mrf.mxu0
      %2906 = vmatprep.mubr.bf16.mxu0 0
      %2907 = vmatmul.mubr.bf16.gmra.mxu0 %v2709
      %v2908 = vpop.f32.mrf.mxu0
      %v2909 = vadd.f32 0.0, %v2908
      %v2910 = vpop.f32.mrf.mxu0
      %v2911 = vpop.f32.mrf.mxu0
      %v2912 = vadd.f32 0.0, %v2911
      %v2913 = vpop.f32.mrf.mxu0
      %2914 = vmatprep.mubr.bf16.mxu0 0
      %2915 = vmatmul.mubr.bf16.gmra.mxu0 %v2712
      %v2916 = vpop.f32.mrf.mxu0
      %v2917 = vadd.f32 0.0, %v2916
      %v2918 = vpop.f32.mrf.mxu0
      %v2919 = vpop.f32.mrf.mxu0
      %v2920 = vadd.f32 0.0, %v2919
      %v2921 = vpop.f32.mrf.mxu0
      %2922 = vmatprep.mubr.bf16.mxu0 0
      %2923 = vmatmul.mubr.bf16.gmra.mxu0 %v2715
      %v2924 = vpop.f32.mrf.mxu0
      %v2925 = vadd.f32 0.0, %v2924
      %v2926 = vpop.f32.mrf.mxu0
      %v2927 = vpop.f32.mrf.mxu0
      %v2928 = vadd.f32 0.0, %v2927
      %v2929 = vpop.f32.mrf.mxu0
      %2930 = vmatprep.mubr.bf16.mxu0 0
      %2931 = vmatmul.mubr.bf16.gmra.mxu0 %v2718
      %v2932 = vpop.f32.mrf.mxu0
      %v2933 = vadd.f32 0.0, %v2932
      %v2934 = vpop.f32.mrf.mxu0
      %v2935 = vpop.f32.mrf.mxu0
      %v2936 = vadd.f32 0.0, %v2935
      %v2937 = vpop.f32.mrf.mxu0
      %2938 = vmatprep.mubr.bf16.mxu0 0
      %2939 = vmatmul.mubr.bf16.gmra.mxu0 %v2721
      %v2940 = vpop.f32.mrf.mxu0
      %v2941 = vadd.f32 0.0, %v2940
      %v2942 = vpop.f32.mrf.mxu0
      %v2943 = vpop.f32.mrf.mxu0
      %v2944 = vadd.f32 0.0, %v2943
      %v2945 = vpop.f32.mrf.mxu0
      %2946 = vmatprep.mubr.bf16.mxu0 0
      %2947 = vmatmul.mubr.bf16.gmra.mxu0 %v2724
      %v2948 = vpop.f32.mrf.mxu0
      %v2949 = vadd.f32 0.0, %v2948
      %v2950 = vpop.f32.mrf.mxu0
      %v2951 = vpop.f32.mrf.mxu0
      %v2952 = vadd.f32 0.0, %v2951
      %v2953 = vpop.f32.mrf.mxu0
      %2954 = vmatprep.mubr.bf16.mxu0 0
      %2955 = vmatmul.mubr.bf16.gmra.mxu0 %v2727
      %v2956 = vpop.f32.mrf.mxu0
      %v2957 = vadd.f32 0.0, %v2956
      %v2958 = vpop.f32.mrf.mxu0
      %v2959 = vpop.f32.mrf.mxu0
      %v2960 = vadd.f32 0.0, %v2959
      %v2961 = vpop.f32.mrf.mxu0
      %2962 = vmatprep.mubr.bf16.mxu0 0
      %2963 = vmatmul.mubr.bf16.gmra.mxu0 %v2730
      %v2964 = vpop.f32.mrf.mxu0
      %v2965 = vadd.f32 0.0, %v2964
      %v2966 = vpop.f32.mrf.mxu0
      %v2967 = vpop.f32.mrf.mxu0
      %v2968 = vadd.f32 0.0, %v2967
      %v2969 = vpop.f32.mrf.mxu0
      %2970 = vmatprep.mubr.bf16.mxu0 0
      %2971 = vmatmul.mubr.bf16.gmra.mxu0 %v2733
      %v2972 = vpop.f32.mrf.mxu0
      %v2973 = vadd.f32 0.0, %v2972
      %v2974 = vpop.f32.mrf.mxu0
      %v2975 = vpop.f32.mrf.mxu0
      %v2976 = vadd.f32 0.0, %v2975
      %v2977 = vpop.f32.mrf.mxu0
      %2978 = vmatprep.mubr.bf16.mxu0 0
      %2979 = vmatmul.mubr.bf16.gmra.mxu0 %v2736
      %v2980 = vpop.f32.mrf.mxu0
      %v2981 = vadd.f32 0.0, %v2980
      %v2982 = vpop.f32.mrf.mxu0
      %v2983 = vpop.f32.mrf.mxu0
      %v2984 = vadd.f32 0.0, %v2983
      %v2985 = vpop.f32.mrf.mxu0
      %2986 = vdwg.mxu0
      %v2987 = vadd.f32 %v2620, %v2861
      %v2988 = vadd.f32 %v2621, %v2864
      %v2989 = vadd.f32 %v2622, %v2869
      %v2990 = vadd.f32 %v2623, %v2872
      %v2991 = vadd.f32 %v2624, %v2877
      %v2992 = vadd.f32 %v2625, %v2880
      %v2993 = vadd.f32 %v2626, %v2885
      %v2994 = vadd.f32 %v2627, %v2888
      %v2995 = vadd.f32 %v2628, %v2893
      %v2996 = vadd.f32 %v2629, %v2896
      %v2997 = vadd.f32 %v2630, %v2901
      %v2998 = vadd.f32 %v2631, %v2904
      %v2999 = vadd.f32 %v2632, %v2909
      %v3000 = vadd.f32 %v2633, %v2912
      %v3001 = vadd.f32 %v2634, %v2917
      %v3002 = vadd.f32 %v2635, %v2920
      %v3003 = vadd.f32 %v2636, %v2925
      %v3004 = vadd.f32 %v2637, %v2928
      %v3005 = vadd.f32 %v2638, %v2933
      %v3006 = vadd.f32 %v2639, %v2936
      %v3007 = vadd.f32 %v2640, %v2941
      %v3008 = vadd.f32 %v2641, %v2944
      %v3009 = vadd.f32 %v2642, %v2949
      %v3010 = vadd.f32 %v2643, %v2952
      %v3011 = vadd.f32 %v2644, %v2957
      %v3012 = vadd.f32 %v2645, %v2960
      %v3013 = vadd.f32 %v2646, %v2965
      %v3014 = vadd.f32 %v2647, %v2968
      %v3015 = vadd.f32 %v2648, %v2973
      %v3016 = vadd.f32 %v2649, %v2976
      %v3017 = vadd.f32 %v2650, %v2981
      %v3018 = vadd.f32 %v2651, %v2984
      %s3019 = scalar_lea.vmem %s2, 320
      %v3020 = vld [vmem:[%s3019] sm:$0xf]
      %v3021 = vld [vmem:[%s3019 + $0x4] sm:$0xf]
      %v3022 = vld [vmem:[%s3019 + $0x8] sm:$0xf]
      %v3023 = vld [vmem:[%s3019 + $0xc] sm:$0xf]
      %v3024 = vld [vmem:[%s3019 + $0x10] sm:$0xf]
      %v3025 = vld [vmem:[%s3019 + $0x14] sm:$0xf]
      %v3026 = vld [vmem:[%s3019 + $0x18] sm:$0xf]
      %v3027 = vld [vmem:[%s3019 + $0x1c] sm:$0xf]
      %v3028 = vld [vmem:[%s3019 + $0x20] sm:$0xf]
      %v3029 = vld [vmem:[%s3019 + $0x24] sm:$0xf]
      %v3030 = vld [vmem:[%s3019 + $0x28] sm:$0xf]
      %v3031 = vld [vmem:[%s3019 + $0x2c] sm:$0xf]
      %v3032 = vld [vmem:[%s3019 + $0x30] sm:$0xf]
      %v3033 = vld [vmem:[%s3019 + $0x34] sm:$0xf]
      %v3034 = vld [vmem:[%s3019 + $0x38] sm:$0xf]
      %v3035 = vld [vmem:[%s3019 + $0x3c] sm:$0xf]
      %v3052 = vunpack.c.l.b16 %v3020
      %v3053 = vunpack.c.l.b16 %v3021
      %v3054 = vunpack.c.l.b16 %v3022
      %v3055 = vunpack.c.l.b16 %v3023
      %v3056 = vunpack.c.l.b16 %v3024
      %v3057 = vunpack.c.l.b16 %v3025
      %v3058 = vunpack.c.l.b16 %v3026
      %v3059 = vunpack.c.l.b16 %v3027
      %v3060 = vunpack.c.l.b16 %v3028
      %v3061 = vunpack.c.l.b16 %v3029
      %v3062 = vunpack.c.l.b16 %v3030
      %v3063 = vunpack.c.l.b16 %v3031
      %v3064 = vunpack.c.l.b16 %v3032
      %v3065 = vunpack.c.l.b16 %v3033
      %v3066 = vunpack.c.l.b16 %v3034
      %v3067 = vunpack.c.l.b16 %v3035
      %v3068 = vpack.c.b16 %v3053, %v3052
      %v3069 = vpack.c.b16 %v3055, %v3054
      %v3070 = vpack.c.b16 %v3057, %v3056
      %v3071 = vpack.c.b16 %v3059, %v3058
      %v3072 = vpack.c.b16 %v3061, %v3060
      %v3073 = vpack.c.b16 %v3063, %v3062
      %v3074 = vpack.c.b16 %v3065, %v3064
      %v3075 = vpack.c.b16 %v3067, %v3066
      %3084 = vmatprep.subr.bf16.mxu0 0
      %3085 = vmatpush1.bf16.msra.mxu0 %v3075
      %3086 = vmatprep.subr.bf16.mxu0 0
      %3087 = vmatpush1.bf16.msra.mxu0 %v3074
      %3088 = vmatprep.subr.bf16.mxu0 0
      %3089 = vmatpush1.bf16.msra.mxu0 %v3073
      %3090 = vmatprep.subr.bf16.mxu0 0
      %3091 = vmatpush1.bf16.msra.mxu0 %v3072
      %3092 = vmatprep.subr.bf16.mxu0 0
      %3093 = vmatpush1.bf16.msra.mxu0 %v3071
      %3094 = vmatprep.subr.bf16.mxu0 0
      %3095 = vmatpush1.bf16.msra.mxu0 %v3070
      %3096 = vmatprep.subr.bf16.mxu0 0
      %3097 = vmatpush1.bf16.msra.mxu0 %v3069
      %3098 = vmatprep.subr.bf16.mxu0 0
      %3099 = vmatpush1.bf16.msra.mxu0 %v3068
      %3100 = vmatprep.subr.bf16.mxu0 0
      %3101 = vmatpush2.bf16.msra.mxu0 0
      %3102 = vmatprep.subr.bf16.mxu0 0
      %3103 = vmatpush2.bf16.msra.mxu0 0
      %3104 = vmatprep.subr.bf16.mxu0 0
      %3105 = vmatpush2.bf16.msra.mxu0 0
      %3106 = vmatprep.subr.bf16.mxu0 0
      %3107 = vmatpush2.bf16.msra.mxu0 0
      %3108 = vmatprep.subr.bf16.mxu0 0
      %3109 = vmatpush2.bf16.msra.mxu0 0
      %3110 = vmatprep.subr.bf16.mxu0 0
      %3111 = vmatpush2.bf16.msra.mxu0 0
      %3112 = vmatprep.subr.bf16.mxu0 0
      %3113 = vmatpush2.bf16.msra.mxu0 0
      %3114 = vmatprep.subr.bf16.mxu0 0
      %3115 = vmatpush2.bf16.msra.mxu0 0
      %3116 = vmatprep.mubr.bf16.mxu0 0
      %3117 = vmatmul.mubr.bf16.gmra.mxu0 %v2694
      %v3118 = vpop.f32.mrf.mxu0
      %v3119 = vadd.f32 0.0, %v3118
      %v3120 = vpop.f32.mrf.mxu0
      %v3121 = vpop.f32.mrf.mxu0
      %v3122 = vadd.f32 0.0, %v3121
      %v3123 = vpop.f32.mrf.mxu0
      %3124 = vmatprep.mubr.bf16.mxu0 0
      %3125 = vmatmul.mubr.bf16.gmra.mxu0 %v2697
      %v3126 = vpop.f32.mrf.mxu0
      %v3127 = vadd.f32 0.0, %v3126
      %v3128 = vpop.f32.mrf.mxu0
      %v3129 = vpop.f32.mrf.mxu0
      %v3130 = vadd.f32 0.0, %v3129
      %v3131 = vpop.f32.mrf.mxu0
      %3132 = vmatprep.mubr.bf16.mxu0 0
      %3133 = vmatmul.mubr.bf16.gmra.mxu0 %v2700
      %v3134 = vpop.f32.mrf.mxu0
      %v3135 = vadd.f32 0.0, %v3134
      %v3136 = vpop.f32.mrf.mxu0
      %v3137 = vpop.f32.mrf.mxu0
      %v3138 = vadd.f32 0.0, %v3137
      %v3139 = vpop.f32.mrf.mxu0
      %3140 = vmatprep.mubr.bf16.mxu0 0
      %3141 = vmatmul.mubr.bf16.gmra.mxu0 %v2703
      %v3142 = vpop.f32.mrf.mxu0
      %v3143 = vadd.f32 0.0, %v3142
      %v3144 = vpop.f32.mrf.mxu0
      %v3145 = vpop.f32.mrf.mxu0
      %v3146 = vadd.f32 0.0, %v3145
      %v3147 = vpop.f32.mrf.mxu0
      %3148 = vmatprep.mubr.bf16.mxu0 0
      %3149 = vmatmul.mubr.bf16.gmra.mxu0 %v2706
      %v3150 = vpop.f32.mrf.mxu0
      %v3151 = vadd.f32 0.0, %v3150
      %v3152 = vpop.f32.mrf.mxu0
      %v3153 = vpop.f32.mrf.mxu0
      %v3154 = vadd.f32 0.0, %v3153
      %v3155 = vpop.f32.mrf.mxu0
      %3156 = vmatprep.mubr.bf16.mxu0 0
      %3157 = vmatmul.mubr.bf16.gmra.mxu0 %v2709
      %v3158 = vpop.f32.mrf.mxu0
      %v3159 = vadd.f32 0.0, %v3158
      %v3160 = vpop.f32.mrf.mxu0
      %v3161 = vpop.f32.mrf.mxu0
      %v3162 = vadd.f32 0.0, %v3161
      %v3163 = vpop.f32.mrf.mxu0
      %3164 = vmatprep.mubr.bf16.mxu0 0
      %3165 = vmatmul.mubr.bf16.gmra.mxu0 %v2712
      %v3166 = vpop.f32.mrf.mxu0
      %v3167 = vadd.f32 0.0, %v3166
      %v3168 = vpop.f32.mrf.mxu0
      %v3169 = vpop.f32.mrf.mxu0
      %v3170 = vadd.f32 0.0, %v3169
      %v3171 = vpop.f32.mrf.mxu0
      %3172 = vmatprep.mubr.bf16.mxu0 0
      %3173 = vmatmul.mubr.bf16.gmra.mxu0 %v2715
      %v3174 = vpop.f32.mrf.mxu0
      %v3175 = vadd.f32 0.0, %v3174
      %v3176 = vpop.f32.mrf.mxu0
      %v3177 = vpop.f32.mrf.mxu0
      %v3178 = vadd.f32 0.0, %v3177
      %v3179 = vpop.f32.mrf.mxu0
      %3180 = vmatprep.mubr.bf16.mxu0 0
      %3181 = vmatmul.mubr.bf16.gmra.mxu0 %v2718
      %v3182 = vpop.f32.mrf.mxu0
      %v3183 = vadd.f32 0.0, %v3182
      %v3184 = vpop.f32.mrf.mxu0
      %v3185 = vpop.f32.mrf.mxu0
      %v3186 = vadd.f32 0.0, %v3185
      %v3187 = vpop.f32.mrf.mxu0
      %3188 = vmatprep.mubr.bf16.mxu0 0
      %3189 = vmatmul.mubr.bf16.gmra.mxu0 %v2721
      %v3190 = vpop.f32.mrf.mxu0
      %v3191 = vadd.f32 0.0, %v3190
      %v3192 = vpop.f32.mrf.mxu0
      %v3193 = vpop.f32.mrf.mxu0
      %v3194 = vadd.f32 0.0, %v3193
      %v3195 = vpop.f32.mrf.mxu0
      %3196 = vmatprep.mubr.bf16.mxu0 0
      %3197 = vmatmul.mubr.bf16.gmra.mxu0 %v2724
      %v3198 = vpop.f32.mrf.mxu0
      %v3199 = vadd.f32 0.0, %v3198
      %v3200 = vpop.f32.mrf.mxu0
      %v3201 = vpop.f32.mrf.mxu0
      %v3202 = vadd.f32 0.0, %v3201
      %v3203 = vpop.f32.mrf.mxu0
      %3204 = vmatprep.mubr.bf16.mxu0 0
      %3205 = vmatmul.mubr.bf16.gmra.mxu0 %v2727
      %v3206 = vpop.f32.mrf.mxu0
      %v3207 = vadd.f32 0.0, %v3206
      %v3208 = vpop.f32.mrf.mxu0
      %v3209 = vpop.f32.mrf.mxu0
      %v3210 = vadd.f32 0.0, %v3209
      %v3211 = vpop.f32.mrf.mxu0
      %3212 = vmatprep.mubr.bf16.mxu0 0
      %3213 = vmatmul.mubr.bf16.gmra.mxu0 %v2730
      %v3214 = vpop.f32.mrf.mxu0
      %v3215 = vadd.f32 0.0, %v3214
      %v3216 = vpop.f32.mrf.mxu0
      %v3217 = vpop.f32.mrf.mxu0
      %v3218 = vadd.f32 0.0, %v3217
      %v3219 = vpop.f32.mrf.mxu0
      %3220 = vmatprep.mubr.bf16.mxu0 0
      %3221 = vmatmul.mubr.bf16.gmra.mxu0 %v2733
      %v3222 = vpop.f32.mrf.mxu0
      %v3223 = vadd.f32 0.0, %v3222
      %v3224 = vpop.f32.mrf.mxu0
      %v3225 = vpop.f32.mrf.mxu0
      %v3226 = vadd.f32 0.0, %v3225
      %v3227 = vpop.f32.mrf.mxu0
      %3228 = vmatprep.mubr.bf16.mxu0 0
      %3229 = vmatmul.mubr.bf16.gmra.mxu0 %v2736
      %v3230 = vpop.f32.mrf.mxu0
      %v3231 = vadd.f32 0.0, %v3230
      %v3232 = vpop.f32.mrf.mxu0
      %v3233 = vpop.f32.mrf.mxu0
      %v3234 = vadd.f32 0.0, %v3233
      %v3235 = vpop.f32.mrf.mxu0
      %3236 = vmatprep.mubr.bf16.mxu0 0
      %3237 = vmatmul.mubr.bf16.gmra.mxu0 %v2739
      %v3238 = vpop.f32.mrf.mxu0
      %v3239 = vadd.f32 0.0, %v3238
      %v3240 = vpop.f32.mrf.mxu0
      %v3241 = vpop.f32.mrf.mxu0
      %v3242 = vadd.f32 0.0, %v3241
      %v3243 = vpop.f32.mrf.mxu0
      %3244 = vdwg.mxu0
      %v3245 = vadd.f32 %v2987, %v3119
      %v3246 = vadd.f32 %v2988, %v3122
      %v3247 = vadd.f32 %v2989, %v3127
      %v3248 = vadd.f32 %v2990, %v3130
      %v3249 = vadd.f32 %v2991, %v3135
      %v3250 = vadd.f32 %v2992, %v3138
      %v3251 = vadd.f32 %v2993, %v3143
      %v3252 = vadd.f32 %v2994, %v3146
      %v3253 = vadd.f32 %v2995, %v3151
      %v3254 = vadd.f32 %v2996, %v3154
      %v3255 = vadd.f32 %v2997, %v3159
      %v3256 = vadd.f32 %v2998, %v3162
      %v3257 = vadd.f32 %v2999, %v3167
      %v3258 = vadd.f32 %v3000, %v3170
      %v3259 = vadd.f32 %v3001, %v3175
      %v3260 = vadd.f32 %v3002, %v3178
      %v3261 = vadd.f32 %v3003, %v3183
      %v3262 = vadd.f32 %v3004, %v3186
      %v3263 = vadd.f32 %v3005, %v3191
      %v3264 = vadd.f32 %v3006, %v3194
      %v3265 = vadd.f32 %v3007, %v3199
      %v3266 = vadd.f32 %v3008, %v3202
      %v3267 = vadd.f32 %v3009, %v3207
      %v3268 = vadd.f32 %v3010, %v3210
      %v3269 = vadd.f32 %v3011, %v3215
      %v3270 = vadd.f32 %v3012, %v3218
      %v3271 = vadd.f32 %v3013, %v3223
      %v3272 = vadd.f32 %v3014, %v3226
      %v3273 = vadd.f32 %v3015, %v3231
      %v3274 = vadd.f32 %v3016, %v3234
      %v3275 = vadd.f32 %v3017, %v3239
      %v3276 = vadd.f32 %v3018, %v3242
      %s3277 = scalar_lea.vmem %s2, 512
      %v3278 = vld [vmem:[%s3277] sm:$0xf]
      %v3279 = vld [vmem:[%s3277 + $0x4] sm:$0xf]
      %v3280 = vld [vmem:[%s3277 + $0x8] sm:$0xf]
      %v3281 = vld [vmem:[%s3277 + $0xc] sm:$0xf]
      %v3282 = vld [vmem:[%s3277 + $0x10] sm:$0xf]
      %v3283 = vld [vmem:[%s3277 + $0x14] sm:$0xf]
      %v3284 = vld [vmem:[%s3277 + $0x18] sm:$0xf]
      %v3285 = vld [vmem:[%s3277 + $0x1c] sm:$0xf]
      %v3286 = vld [vmem:[%s3277 + $0x20] sm:$0xf]
      %v3287 = vld [vmem:[%s3277 + $0x24] sm:$0xf]
      %v3288 = vld [vmem:[%s3277 + $0x28] sm:$0xf]
      %v3289 = vld [vmem:[%s3277 + $0x2c] sm:$0xf]
      %v3290 = vld [vmem:[%s3277 + $0x30] sm:$0xf]
      %v3291 = vld [vmem:[%s3277 + $0x34] sm:$0xf]
      %v3292 = vld [vmem:[%s3277 + $0x38] sm:$0xf]
      %v3293 = vld [vmem:[%s3277 + $0x3c] sm:$0xf]
      %v3310 = vunpack.c.l.b16 %v3278
      %v3311 = vunpack.c.l.b16 %v3279
      %v3312 = vunpack.c.l.b16 %v3280
      %v3313 = vunpack.c.l.b16 %v3281
      %v3314 = vunpack.c.l.b16 %v3282
      %v3315 = vunpack.c.l.b16 %v3283
      %v3316 = vunpack.c.l.b16 %v3284
      %v3317 = vunpack.c.l.b16 %v3285
      %v3318 = vunpack.c.l.b16 %v3286
      %v3319 = vunpack.c.l.b16 %v3287
      %v3320 = vunpack.c.l.b16 %v3288
      %v3321 = vunpack.c.l.b16 %v3289
      %v3322 = vunpack.c.l.b16 %v3290
      %v3323 = vunpack.c.l.b16 %v3291
      %v3324 = vunpack.c.l.b16 %v3292
      %v3325 = vunpack.c.l.b16 %v3293
      %v3326 = vpack.c.b16 %v3311, %v3310
      %v3327 = vpack.c.b16 %v3313, %v3312
      %v3328 = vpack.c.b16 %v3315, %v3314
      %v3329 = vpack.c.b16 %v3317, %v3316
      %v3330 = vpack.c.b16 %v3319, %v3318
      %v3331 = vpack.c.b16 %v3321, %v3320
      %v3332 = vpack.c.b16 %v3323, %v3322
      %v3333 = vpack.c.b16 %v3325, %v3324
      %3342 = vmatprep.subr.bf16.mxu0 0
      %3343 = vmatpush1.bf16.msra.mxu0 %v3333
      %3344 = vmatprep.subr.bf16.mxu0 0
      %3345 = vmatpush1.bf16.msra.mxu0 %v3332
      %3346 = vmatprep.subr.bf16.mxu0 0
      %3347 = vmatpush1.bf16.msra.mxu0 %v3331
      %3348 = vmatprep.subr.bf16.mxu0 0
      %3349 = vmatpush1.bf16.msra.mxu0 %v3330
      %3350 = vmatprep.subr.bf16.mxu0 0
      %3351 = vmatpush1.bf16.msra.mxu0 %v3329
      %3352 = vmatprep.subr.bf16.mxu0 0
      %3353 = vmatpush1.bf16.msra.mxu0 %v3328
      %3354 = vmatprep.subr.bf16.mxu0 0
      %3355 = vmatpush1.bf16.msra.mxu0 %v3327
      %3356 = vmatprep.subr.bf16.mxu0 0
      %3357 = vmatpush1.bf16.msra.mxu0 %v3326
      %3358 = vmatprep.subr.bf16.mxu0 0
      %3359 = vmatpush2.bf16.msra.mxu0 0
      %3360 = vmatprep.subr.bf16.mxu0 0
      %3361 = vmatpush2.bf16.msra.mxu0 0
      %3362 = vmatprep.subr.bf16.mxu0 0
      %3363 = vmatpush2.bf16.msra.mxu0 0
      %3364 = vmatprep.subr.bf16.mxu0 0
      %3365 = vmatpush2.bf16.msra.mxu0 0
      %3366 = vmatprep.subr.bf16.mxu0 0
      %3367 = vmatpush2.bf16.msra.mxu0 0
      %3368 = vmatprep.subr.bf16.mxu0 0
      %3369 = vmatpush2.bf16.msra.mxu0 0
      %3370 = vmatprep.subr.bf16.mxu0 0
      %3371 = vmatpush2.bf16.msra.mxu0 0
      %3372 = vmatprep.subr.bf16.mxu0 0
      %3373 = vmatpush2.bf16.msra.mxu0 0
      %3374 = vmatprep.mubr.bf16.mxu0 0
      %3375 = vmatmul.mubr.bf16.gmra.mxu0 %v2697
      %v3376 = vpop.f32.mrf.mxu0
      %v3377 = vadd.f32 0.0, %v3376
      %v3378 = vpop.f32.mrf.mxu0
      %v3379 = vpop.f32.mrf.mxu0
      %v3380 = vadd.f32 0.0, %v3379
      %v3381 = vpop.f32.mrf.mxu0
      %3382 = vmatprep.mubr.bf16.mxu0 0
      %3383 = vmatmul.mubr.bf16.gmra.mxu0 %v2700
      %v3384 = vpop.f32.mrf.mxu0
      %v3385 = vadd.f32 0.0, %v3384
      %v3386 = vpop.f32.mrf.mxu0
      %v3387 = vpop.f32.mrf.mxu0
      %v3388 = vadd.f32 0.0, %v3387
      %v3389 = vpop.f32.mrf.mxu0
      %3390 = vmatprep.mubr.bf16.mxu0 0
      %3391 = vmatmul.mubr.bf16.gmra.mxu0 %v2703
      %v3392 = vpop.f32.mrf.mxu0
      %v3393 = vadd.f32 0.0, %v3392
      %v3394 = vpop.f32.mrf.mxu0
      %v3395 = vpop.f32.mrf.mxu0
      %v3396 = vadd.f32 0.0, %v3395
      %v3397 = vpop.f32.mrf.mxu0
      %3398 = vmatprep.mubr.bf16.mxu0 0
      %3399 = vmatmul.mubr.bf16.gmra.mxu0 %v2706
      %v3400 = vpop.f32.mrf.mxu0
      %v3401 = vadd.f32 0.0, %v3400
      %v3402 = vpop.f32.mrf.mxu0
      %v3403 = vpop.f32.mrf.mxu0
      %v3404 = vadd.f32 0.0, %v3403
      %v3405 = vpop.f32.mrf.mxu0
      %3406 = vmatprep.mubr.bf16.mxu0 0
      %3407 = vmatmul.mubr.bf16.gmra.mxu0 %v2709
      %v3408 = vpop.f32.mrf.mxu0
      %v3409 = vadd.f32 0.0, %v3408
      %v3410 = vpop.f32.mrf.mxu0
      %v3411 = vpop.f32.mrf.mxu0
      %v3412 = vadd.f32 0.0, %v3411
      %v3413 = vpop.f32.mrf.mxu0
      %3414 = vmatprep.mubr.bf16.mxu0 0
      %3415 = vmatmul.mubr.bf16.gmra.mxu0 %v2712
      %v3416 = vpop.f32.mrf.mxu0
      %v3417 = vadd.f32 0.0, %v3416
      %v3418 = vpop.f32.mrf.mxu0
      %v3419 = vpop.f32.mrf.mxu0
      %v3420 = vadd.f32 0.0, %v3419
      %v3421 = vpop.f32.mrf.mxu0
      %3422 = vmatprep.mubr.bf16.mxu0 0
      %3423 = vmatmul.mubr.bf16.gmra.mxu0 %v2715
      %v3424 = vpop.f32.mrf.mxu0
      %v3425 = vadd.f32 0.0, %v3424
      %v3426 = vpop.f32.mrf.mxu0
      %v3427 = vpop.f32.mrf.mxu0
      %v3428 = vadd.f32 0.0, %v3427
      %v3429 = vpop.f32.mrf.mxu0
      %3430 = vmatprep.mubr.bf16.mxu0 0
      %3431 = vmatmul.mubr.bf16.gmra.mxu0 %v2718
      %v3432 = vpop.f32.mrf.mxu0
      %v3433 = vadd.f32 0.0, %v3432
      %v3434 = vpop.f32.mrf.mxu0
      %v3435 = vpop.f32.mrf.mxu0
      %v3436 = vadd.f32 0.0, %v3435
      %v3437 = vpop.f32.mrf.mxu0
      %3438 = vmatprep.mubr.bf16.mxu0 0
      %3439 = vmatmul.mubr.bf16.gmra.mxu0 %v2721
      %v3440 = vpop.f32.mrf.mxu0
      %v3441 = vadd.f32 0.0, %v3440
      %v3442 = vpop.f32.mrf.mxu0
      %v3443 = vpop.f32.mrf.mxu0
      %v3444 = vadd.f32 0.0, %v3443
      %v3445 = vpop.f32.mrf.mxu0
      %3446 = vmatprep.mubr.bf16.mxu0 0
      %3447 = vmatmul.mubr.bf16.gmra.mxu0 %v2724
      %v3448 = vpop.f32.mrf.mxu0
      %v3449 = vadd.f32 0.0, %v3448
      %v3450 = vpop.f32.mrf.mxu0
      %v3451 = vpop.f32.mrf.mxu0
      %v3452 = vadd.f32 0.0, %v3451
      %v3453 = vpop.f32.mrf.mxu0
      %3454 = vmatprep.mubr.bf16.mxu0 0
      %3455 = vmatmul.mubr.bf16.gmra.mxu0 %v2727
      %v3456 = vpop.f32.mrf.mxu0
      %v3457 = vadd.f32 0.0, %v3456
      %v3458 = vpop.f32.mrf.mxu0
      %v3459 = vpop.f32.mrf.mxu0
      %v3460 = vadd.f32 0.0, %v3459
      %v3461 = vpop.f32.mrf.mxu0
      %3462 = vmatprep.mubr.bf16.mxu0 0
      %3463 = vmatmul.mubr.bf16.gmra.mxu0 %v2730
      %v3464 = vpop.f32.mrf.mxu0
      %v3465 = vadd.f32 0.0, %v3464
      %v3466 = vpop.f32.mrf.mxu0
      %v3467 = vpop.f32.mrf.mxu0
      %v3468 = vadd.f32 0.0, %v3467
      %v3469 = vpop.f32.mrf.mxu0
      %3470 = vmatprep.mubr.bf16.mxu0 0
      %3471 = vmatmul.mubr.bf16.gmra.mxu0 %v2733
      %v3472 = vpop.f32.mrf.mxu0
      %v3473 = vadd.f32 0.0, %v3472
      %v3474 = vpop.f32.mrf.mxu0
      %v3475 = vpop.f32.mrf.mxu0
      %v3476 = vadd.f32 0.0, %v3475
      %v3477 = vpop.f32.mrf.mxu0
      %3478 = vmatprep.mubr.bf16.mxu0 0
      %3479 = vmatmul.mubr.bf16.gmra.mxu0 %v2736
      %v3480 = vpop.f32.mrf.mxu0
      %v3481 = vadd.f32 0.0, %v3480
      %v3482 = vpop.f32.mrf.mxu0
      %v3483 = vpop.f32.mrf.mxu0
      %v3484 = vadd.f32 0.0, %v3483
      %v3485 = vpop.f32.mrf.mxu0
      %3486 = vmatprep.mubr.bf16.mxu0 0
      %3487 = vmatmul.mubr.bf16.gmra.mxu0 %v2739
      %v3488 = vpop.f32.mrf.mxu0
      %v3489 = vadd.f32 0.0, %v3488
      %v3490 = vpop.f32.mrf.mxu0
      %v3491 = vpop.f32.mrf.mxu0
      %v3492 = vadd.f32 0.0, %v3491
      %v3493 = vpop.f32.mrf.mxu0
      %3494 = vmatprep.mubr.bf16.mxu0 0
      %3495 = vmatmul.mubr.bf16.gmra.mxu0 %v2742
      %v3496 = vpop.f32.mrf.mxu0
      %v3497 = vadd.f32 0.0, %v3496
      %v3498 = vpop.f32.mrf.mxu0
      %v3499 = vpop.f32.mrf.mxu0
      %v3500 = vadd.f32 0.0, %v3499
      %v3501 = vpop.f32.mrf.mxu0
      %3502 = vdwg.mxu0
      %v3503 = vadd.f32 %v3245, %v3377
      %v3504 = vadd.f32 %v3246, %v3380
      %v3505 = vadd.f32 %v3247, %v3385
      %v3506 = vadd.f32 %v3248, %v3388
      %v3507 = vadd.f32 %v3249, %v3393
      %v3508 = vadd.f32 %v3250, %v3396
      %v3509 = vadd.f32 %v3251, %v3401
      %v3510 = vadd.f32 %v3252, %v3404
      %v3511 = vadd.f32 %v3253, %v3409
      %v3512 = vadd.f32 %v3254, %v3412
      %v3513 = vadd.f32 %v3255, %v3417
      %v3514 = vadd.f32 %v3256, %v3420
      %v3515 = vadd.f32 %v3257, %v3425
      %v3516 = vadd.f32 %v3258, %v3428
      %v3517 = vadd.f32 %v3259, %v3433
      %v3518 = vadd.f32 %v3260, %v3436
      %v3519 = vadd.f32 %v3261, %v3441
      %v3520 = vadd.f32 %v3262, %v3444
      %v3521 = vadd.f32 %v3263, %v3449
      %v3522 = vadd.f32 %v3264, %v3452
      %v3523 = vadd.f32 %v3265, %v3457
      %v3524 = vadd.f32 %v3266, %v3460
      %v3525 = vadd.f32 %v3267, %v3465
      %v3526 = vadd.f32 %v3268, %v3468
      %v3527 = vadd.f32 %v3269, %v3473
      %v3528 = vadd.f32 %v3270, %v3476
      %v3529 = vadd.f32 %v3271, %v3481
      %v3530 = vadd.f32 %v3272, %v3484
      %v3531 = vadd.f32 %v3273, %v3489
      %v3532 = vadd.f32 %v3274, %v3492
      %v3533 = vadd.f32 %v3275, %v3497
      %v3534 = vadd.f32 %v3276, %v3500
      %v3535 = vpack.c.bf16 %v3504, %v3503
      %v3536 = vpack.c.bf16 %v3506, %v3505
      %v3537 = vpack.c.bf16 %v3508, %v3507
      %v3538 = vpack.c.bf16 %v3510, %v3509
      %v3539 = vpack.c.bf16 %v3512, %v3511
      %v3540 = vpack.c.bf16 %v3514, %v3513
      %v3541 = vpack.c.bf16 %v3516, %v3515
      %v3542 = vpack.c.bf16 %v3518, %v3517
      %v3543 = vpack.c.bf16 %v3520, %v3519
      %v3544 = vpack.c.bf16 %v3522, %v3521
      %v3545 = vpack.c.bf16 %v3524, %v3523
      %v3546 = vpack.c.bf16 %v3526, %v3525
      %v3547 = vpack.c.bf16 %v3528, %v3527
      %v3548 = vpack.c.bf16 %v3530, %v3529
      %v3549 = vpack.c.bf16 %v3532, %v3531
      %v3550 = vpack.c.bf16 %v3534, %v3533
      %v3567 = vunpack.c.l.b16 %v3535
      %v3568 = vunpack.c.h.b16 %v3535
      %v3569 = vunpack.c.l.b16 %v3536
      %v3570 = vunpack.c.h.b16 %v3536
      %v3571 = vunpack.c.l.b16 %v3537
      %v3572 = vunpack.c.h.b16 %v3537
      %v3573 = vunpack.c.l.b16 %v3538
      %v3574 = vunpack.c.h.b16 %v3538
      %v3575 = vunpack.c.l.b16 %v3539
      %v3576 = vunpack.c.h.b16 %v3539
      %v3577 = vunpack.c.l.b16 %v3540
      %v3578 = vunpack.c.h.b16 %v3540
      %v3579 = vunpack.c.l.b16 %v3541
      %v3580 = vunpack.c.h.b16 %v3541
      %v3581 = vunpack.c.l.b16 %v3542
      %v3582 = vunpack.c.h.b16 %v3542
      %v3583 = vunpack.c.l.b16 %v3543
      %v3584 = vunpack.c.h.b16 %v3543
      %v3585 = vunpack.c.l.b16 %v3544
      %v3586 = vunpack.c.h.b16 %v3544
      %v3587 = vunpack.c.l.b16 %v3545
      %v3588 = vunpack.c.h.b16 %v3545
      %v3589 = vunpack.c.l.b16 %v3546
      %v3590 = vunpack.c.h.b16 %v3546
      %v3591 = vunpack.c.l.b16 %v3547
      %v3592 = vunpack.c.h.b16 %v3547
      %v3593 = vunpack.c.l.b16 %v3548
      %v3594 = vunpack.c.h.b16 %v3548
      %v3595 = vunpack.c.l.b16 %v3549
      %v3596 = vunpack.c.h.b16 %v3549
      %v3597 = vunpack.c.l.b16 %v3550
      %v3598 = vunpack.c.h.b16 %v3550
      %v3599 = vpack.c.b16 %v3567, %v3567
      %v3600 = vpack.c.b16 %v3568, %v3568
      %v3601 = vpack.c.b16 %v3569, %v3569
      %v3602 = vpack.c.b16 %v3570, %v3570
      %v3603 = vpack.c.b16 %v3571, %v3571
      %v3604 = vpack.c.b16 %v3572, %v3572
      %v3605 = vpack.c.b16 %v3573, %v3573
      %v3606 = vpack.c.b16 %v3574, %v3574
      %v3607 = vpack.c.b16 %v3575, %v3575
      %v3608 = vpack.c.b16 %v3576, %v3576
      %v3609 = vpack.c.b16 %v3577, %v3577
      %v3610 = vpack.c.b16 %v3578, %v3578
      %v3611 = vpack.c.b16 %v3579, %v3579
      %v3612 = vpack.c.b16 %v3580, %v3580
      %v3613 = vpack.c.b16 %v3581, %v3581
      %v3614 = vpack.c.b16 %v3582, %v3582
      %v3615 = vpack.c.b16 %v3583, %v3583
      %v3616 = vpack.c.b16 %v3584, %v3584
      %v3617 = vpack.c.b16 %v3585, %v3585
      %v3618 = vpack.c.b16 %v3586, %v3586
      %v3619 = vpack.c.b16 %v3587, %v3587
      %v3620 = vpack.c.b16 %v3588, %v3588
      %v3621 = vpack.c.b16 %v3589, %v3589
      %v3622 = vpack.c.b16 %v3590, %v3590
      %v3623 = vpack.c.b16 %v3591, %v3591
      %v3624 = vpack.c.b16 %v3592, %v3592
      %v3625 = vpack.c.b16 %v3593, %v3593
      %v3626 = vpack.c.b16 %v3594, %v3594
      %v3627 = vpack.c.b16 %v3595, %v3595
      %v3628 = vpack.c.b16 %v3596, %v3596
      %v3629 = vpack.c.b16 %v3597, %v3597
      %v3630 = vpack.c.b16 %v3598, %v3598
      %3663 = vst [vmem:[%s359] sm:$0xf] %v3599
      %3664 = vst [vmem:[%s359 + $0x4] sm:$0xf] %v3600
      %3665 = vst [vmem:[%s359 + $0x8] sm:$0xf] %v3601
      %3666 = vst [vmem:[%s359 + $0xc] sm:$0xf] %v3602
      %3667 = vst [vmem:[%s359 + $0x10] sm:$0xf] %v3603
      %3668 = vst [vmem:[%s359 + $0x14] sm:$0xf] %v3604
      %3669 = vst [vmem:[%s359 + $0x18] sm:$0xf] %v3605
      %3670 = vst [vmem:[%s359 + $0x1c] sm:$0xf] %v3606
      %3671 = vst [vmem:[%s359 + $0x20] sm:$0xf] %v3607
      %3672 = vst [vmem:[%s359 + $0x24] sm:$0xf] %v3608
      %3673 = vst [vmem:[%s359 + $0x28] sm:$0xf] %v3609
      %3674 = vst [vmem:[%s359 + $0x2c] sm:$0xf] %v3610
      %3675 = vst [vmem:[%s359 + $0x30] sm:$0xf] %v3611
      %3676 = vst [vmem:[%s359 + $0x34] sm:$0xf] %v3612
      %3677 = vst [vmem:[%s359 + $0x38] sm:$0xf] %v3613
      %3678 = vst [vmem:[%s359 + $0x3c] sm:$0xf] %v3614
      %3679 = vst [vmem:[%s359 + $0x40] sm:$0xf] %v3615
      %3680 = vst [vmem:[%s359 + $0x44] sm:$0xf] %v3616
      %3681 = vst [vmem:[%s359 + $0x48] sm:$0xf] %v3617
      %3682 = vst [vmem:[%s359 + $0x4c] sm:$0xf] %v3618
      %3683 = vst [vmem:[%s359 + $0x50] sm:$0xf] %v3619
      %3684 = vst [vmem:[%s359 + $0x54] sm:$0xf] %v3620
      %3685 = vst [vmem:[%s359 + $0x58] sm:$0xf] %v3621
      %3686 = vst [vmem:[%s359 + $0x5c] sm:$0xf] %v3622
      %3687 = vst [vmem:[%s359 + $0x60] sm:$0xf] %v3623
      %3688 = vst [vmem:[%s359 + $0x64] sm:$0xf] %v3624
      %3689 = vst [vmem:[%s359 + $0x68] sm:$0xf] %v3625
      %3690 = vst [vmem:[%s359 + $0x6c] sm:$0xf] %v3626
      %3691 = vst [vmem:[%s359 + $0x70] sm:$0xf] %v3627
      %3692 = vst [vmem:[%s359 + $0x74] sm:$0xf] %v3628
      %3693 = vst [vmem:[%s359 + $0x78] sm:$0xf] %v3629
      %3694 = vst [vmem:[%s359 + $0x7c] sm:$0xf] %v3630
      %v3695 = vadd.f32 %v3503, %v3504
      %v3696 = vadd.f32 %v3695, %v3505
      %v3697 = vadd.f32 %v3696, %v3506
      %v3698 = vadd.f32 %v3697, %v3507
      %v3699 = vadd.f32 %v3698, %v3508
      %v3700 = vadd.f32 %v3699, %v3509
      %v3701 = vadd.f32 %v3700, %v3510
      %v3702 = vadd.f32 %v3701, %v3511
      %v3703 = vadd.f32 %v3702, %v3512
      %v3704 = vadd.f32 %v3703, %v3513
      %v3705 = vadd.f32 %v3704, %v3514
      %v3706 = vadd.f32 %v3705, %v3515
      %v3707 = vadd.f32 %v3706, %v3516
      %v3708 = vadd.f32 %v3707, %v3517
      %v3709 = vadd.f32 %v3708, %v3518
      %v3710 = vadd.f32 %v3709, %v3519
      %v3711 = vadd.f32 %v3710, %v3520
      %v3712 = vadd.f32 %v3711, %v3521
      %v3713 = vadd.f32 %v3712, %v3522
      %v3714 = vadd.f32 %v3713, %v3523
      %v3715 = vadd.f32 %v3714, %v3524
      %v3716 = vadd.f32 %v3715, %v3525
      %v3717 = vadd.f32 %v3716, %v3526
      %v3718 = vadd.f32 %v3717, %v3527
      %v3719 = vadd.f32 %v3718, %v3528
      %v3720 = vadd.f32 %v3719, %v3529
      %v3721 = vadd.f32 %v3720, %v3530
      %v3722 = vadd.f32 %v3721, %v3531
      %v3723 = vadd.f32 %v3722, %v3532
      %v3724 = vadd.f32 %v3723, %v3533
      %v3725 = vadd.f32 %v3724, %v3534
      %v3726 = vrot.slane %v3725, 4
      %v3727 = vadd.f32 %v3725, %v3726
      %v3728 = vrot.slane %v3727, 2
      %v3729 = vadd.f32 %v3727, %v3728
      %v3730 = vrot.slane %v3729, 1
      %v3731 = vadd.f32 %v3729, %v3730
      %v3732 = vmul.f32 %v3731, 0.00390625
      %v3733 = vsub.f32 %v3503, %v3732
      %v3734 = vsub.f32 %v3504, %v3732
      %v3735 = vsub.f32 %v3505, %v3732
      %v3736 = vsub.f32 %v3506, %v3732
      %v3737 = vsub.f32 %v3507, %v3732
      %v3738 = vsub.f32 %v3508, %v3732
      %v3739 = vsub.f32 %v3509, %v3732
      %v3740 = vsub.f32 %v3510, %v3732
      %v3741 = vsub.f32 %v3511, %v3732
      %v3742 = vsub.f32 %v3512, %v3732
      %v3743 = vsub.f32 %v3513, %v3732
      %v3744 = vsub.f32 %v3514, %v3732
      %v3745 = vsub.f32 %v3515, %v3732
      %v3746 = vsub.f32 %v3516, %v3732
      %v3747 = vsub.f32 %v3517, %v3732
      %v3748 = vsub.f32 %v3518, %v3732
      %v3749 = vsub.f32 %v3519, %v3732
      %v3750 = vsub.f32 %v3520, %v3732
      %v3751 = vsub.f32 %v3521, %v3732
      %v3752 = vsub.f32 %v3522, %v3732
      %v3753 = vsub.f32 %v3523, %v3732
      %v3754 = vsub.f32 %v3524, %v3732
      %v3755 = vsub.f32 %v3525, %v3732
      %v3756 = vsub.f32 %v3526, %v3732
      %v3757 = vsub.f32 %v3527, %v3732
      %v3758 = vsub.f32 %v3528, %v3732
      %v3759 = vsub.f32 %v3529, %v3732
      %v3760 = vsub.f32 %v3530, %v3732
      %v3761 = vsub.f32 %v3531, %v3732
      %v3762 = vsub.f32 %v3532, %v3732
      %v3763 = vsub.f32 %v3533, %v3732
      %v3764 = vsub.f32 %v3534, %v3732
      %v3765 = vmul.f32 %v3733, %v3733
      %v3766 = vmul.f32 %v3734, %v3734
      %v3767 = vmul.f32 %v3735, %v3735
      %v3768 = vmul.f32 %v3736, %v3736
      %v3769 = vmul.f32 %v3737, %v3737
      %v3770 = vmul.f32 %v3738, %v3738
      %v3771 = vmul.f32 %v3739, %v3739
      %v3772 = vmul.f32 %v3740, %v3740
      %v3773 = vmul.f32 %v3741, %v3741
      %v3774 = vmul.f32 %v3742, %v3742
      %v3775 = vmul.f32 %v3743, %v3743
      %v3776 = vmul.f32 %v3744, %v3744
      %v3777 = vmul.f32 %v3745, %v3745
      %v3778 = vmul.f32 %v3746, %v3746
      %v3779 = vmul.f32 %v3747, %v3747
      %v3780 = vmul.f32 %v3748, %v3748
      %v3781 = vmul.f32 %v3749, %v3749
      %v3782 = vmul.f32 %v3750, %v3750
      %v3783 = vmul.f32 %v3751, %v3751
      %v3784 = vmul.f32 %v3752, %v3752
      %v3785 = vmul.f32 %v3753, %v3753
      %v3786 = vmul.f32 %v3754, %v3754
      %v3787 = vmul.f32 %v3755, %v3755
      %v3788 = vmul.f32 %v3756, %v3756
      %v3789 = vmul.f32 %v3757, %v3757
      %v3790 = vmul.f32 %v3758, %v3758
      %v3791 = vmul.f32 %v3759, %v3759
      %v3792 = vmul.f32 %v3760, %v3760
      %v3793 = vmul.f32 %v3761, %v3761
      %v3794 = vmul.f32 %v3762, %v3762
      %v3795 = vmul.f32 %v3763, %v3763
      %v3796 = vmul.f32 %v3764, %v3764
      %v3797 = vadd.f32 %v3765, %v3766
      %v3798 = vadd.f32 %v3797, %v3767
      %v3799 = vadd.f32 %v3798, %v3768
      %v3800 = vadd.f32 %v3799, %v3769
      %v3801 = vadd.f32 %v3800, %v3770
      %v3802 = vadd.f32 %v3801, %v3771
      %v3803 = vadd.f32 %v3802, %v3772
      %v3804 = vadd.f32 %v3803, %v3773
      %v3805 = vadd.f32 %v3804, %v3774
      %v3806 = vadd.f32 %v3805, %v3775
      %v3807 = vadd.f32 %v3806, %v3776
      %v3808 = vadd.f32 %v3807, %v3777
      %v3809 = vadd.f32 %v3808, %v3778
      %v3810 = vadd.f32 %v3809, %v3779
      %v3811 = vadd.f32 %v3810, %v3780
      %v3812 = vadd.f32 %v3811, %v3781
      %v3813 = vadd.f32 %v3812, %v3782
      %v3814 = vadd.f32 %v3813, %v3783
      %v3815 = vadd.f32 %v3814, %v3784
      %v3816 = vadd.f32 %v3815, %v3785
      %v3817 = vadd.f32 %v3816, %v3786
      %v3818 = vadd.f32 %v3817, %v3787
      %v3819 = vadd.f32 %v3818, %v3788
      %v3820 = vadd.f32 %v3819, %v3789
      %v3821 = vadd.f32 %v3820, %v3790
      %v3822 = vadd.f32 %v3821, %v3791
      %v3823 = vadd.f32 %v3822, %v3792
      %v3824 = vadd.f32 %v3823, %v3793
      %v3825 = vadd.f32 %v3824, %v3794
      %v3826 = vadd.f32 %v3825, %v3795
      %v3827 = vadd.f32 %v3826, %v3796
      %v3828 = vrot.slane %v3827, 4
      %v3829 = vadd.f32 %v3827, %v3828
      %v3830 = vrot.slane %v3829, 2
      %v3831 = vadd.f32 %v3829, %v3830
      %v3832 = vrot.slane %v3831, 1
      %v3833 = vadd.f32 %v3831, %v3832
      %vm3834 = vcmask 1040384
      %v3835 = vsel %vm3834, %v3731, %v3833
      %3836 = vst [vmem:[%s367] sm:$0x3] %v3835
      %s3837 = smul.u32 16, %s23
      %p3838 = scmp.lt.s32.totalorder %s22, 1
      %s3839 = scalar_select %p3838, %s22, 1
      %p3840 = scmp.lt.s32.totalorder %s3837, 15
      %s3841 = scalar_select %p3840, %s3837, 15
      %s3842 = smul.addr %s3841, 2
      %s3843 = smul.addr %s3839, 32
      %s3844 = sadd.s32 %s3842, %s3843
      %s3845 = smul.addr %s3844, 4
      %s3846 = scalar_lea.vmem %s5, %s3845
      %p3847 = scmp.lt.s32.totalorder %s22, 1
      %s3848 = scalar_select %p3847, %s22, 1
      %p3849 = scmp.lt.s32.totalorder %s23, 0
      %s3850 = scalar_select %p3849, %s23, 0
      %s3851 = sadd.s32 %s3850, %s3848
      %s3852 = smul.addr %s3851, 2
      %s3853 = scalar_lea.vmem %s6, %s3852
      // Predicated region
      $region41: #{_lambda_.4} parent=39 // pred_check
        %p3854 = pneg %p173
      $region42: #{_lambda_.4} parent=39 // pred_check_branch
        %3856 = sbr.rel (%p3854) target = $region44
      $region43: #{_lambda_.4} parent=39 // pred_region
        %s3857 = smul.u32 16, %s23
      $region44: #{_lambda_.4} parent=39 // pred_fallthru
        _
      // Predicated region
      $region45: #{_lambda_.4} parent=39 // pred_check
        %p3858 = pneg %p201
      $region46: #{_lambda_.4} parent=39 // pred_check_branch
        %3860 = sbr.rel (%p3858) target = $region48
      $region47: #{_lambda_.4} parent=39 // pred_region
        _
      $region48: #{_lambda_.4} parent=39 // pred_fallthru
        _
    $region40: #{_lambda_.4} parent=5 // pred_fallthru
      _
    %p3861 = scmp.le.s32.totalorder 2, %s13
    // Predicated region
    $region49: #{_lambda_.4} parent=5 // pred_check
      %p3862 = pneg %p3861
    $region50: #{_lambda_.4} parent=5 // pred_check_branch
      %3864 = sbr.rel (%p3862) target = $region52
    $region51: #{_lambda_.4} parent=5 // pred_region
      %s3865 = ssub.s32 %s13, 2
      // Predicated region
      $region53: #{_lambda_.4} parent=51 // pred_check
        %p3866 = pneg %p179
      $region54: #{_lambda_.4} parent=51 // pred_check_branch
        %3868 = sbr.rel (%p3866) target = $region56
      $region55: #{_lambda_.4} parent=51 // pred_region
        %s3869 = smul.u32 16, %s25
        %p3870 = scmp.lt.s32.totalorder %s24, 1
        %s3871 = scalar_select %p3870, %s24, 1
        %p3872 = scmp.lt.s32.totalorder %s3869, 15
        %s3873 = scalar_select %p3872, %s3869, 15
        %s3874 = smul.addr %s3873, 2
        %s3875 = smul.addr %s3871, 32
        %s3876 = sadd.s32 %s3874, %s3875
        %s3877 = smul.addr %s3876, 4
        %s3878 = scalar_lea.vmem %s5, %s3877
      $region56: #{_lambda_.4} parent=51 // pred_fallthru
        _
      // Predicated region
      $region57: #{_lambda_.4} parent=51 // pred_check
        %p3879 = pneg %p207
      $region58: #{_lambda_.4} parent=51 // pred_check_branch
        %3881 = sbr.rel (%p3879) target = $region60
      $region59: #{_lambda_.4} parent=51 // pred_region
        %p3882 = scmp.lt.s32.totalorder %s24, 1
        %s3883 = scalar_select %p3882, %s24, 1
        %p3884 = scmp.lt.s32.totalorder %s25, 0
        %s3885 = scalar_select %p3884, %s25, 0
        %s3886 = sadd.s32 %s3885, %s3883
        %s3887 = smul.addr %s3886, 2
        %s3888 = scalar_lea.vmem %s6, %s3887
      $region60: #{_lambda_.4} parent=51 // pred_fallthru
        _
    $region52: #{_lambda_.4} parent=5 // pred_fallthru
      _
  $region6: #{_lambda_.4} parent=0 // loop_footer
    %s17 = sadd.s32 1, %s13
  $region7: #{_lambda_.4} parent=0 // loop_footer_branch
    %12 = sbr.rel target = $region3
  $region8: #{_lambda_.4} parent=0 // loop_exit
    _

</llo_original>
